<compile_context>
chip_gen: v7x
topology: tpu7x:2x2x1
jax: 0.10.0
libtpu: 0.0.40
codegen_flags: <defaults>
</compile_context>

<pallas_src>
import functools

import jax
import jax.numpy as jnp
import numpy as np
from jax.experimental import pallas as pl
from jax.experimental.pallas import tpu as pltpu


K = 5        # conv kernel taps
HID = 25     # hidden channels of each conv
COUT = 2     # channels of x / tconv outputs
NBLK = 10    # residual blocks
CP = 8       # padded i/o channel count (sublane aligned)
HP = 32      # padded hidden channel count (sublane aligned)


# ----------------------------------------------------------------------------
# Pallas kernel: the whole 10-block forward pass for one batch slice.
# ----------------------------------------------------------------------------
def _net_kernel(x_ref, maskc_ref, wc_ref, bc_ref, wt_ref, bt_ref,
                lwc_ref, lbc_ref, lwt_ref, lbt_ref, out_ref,
                *, width, ksize, cp, n_blocks):
    S = x_ref.shape[-1]

    # Tap shifts: entries 0..K-1 = W-direction conv (stride 1),
    #             entries K..2K-1 = H-direction conv (stride = width).
    shifts_l = tuple((-k) % S for k in range(ksize)) + \
               tuple((-k * width) % S for k in range(ksize))
    shifts_r = tuple(k for k in range(ksize)) + \
               tuple(k * width for k in range(ksize))

    def conv_pair(x, wc, bc):
        # Stack tap-shifted copies of x -> one deep matmul for both sibling convs.
        pieces = [x if s == 0 else pltpu.roll(x, s, axis=1) for s in shifts_l]
        xs = jnp.concatenate(pieces, axis=0).astype(jnp.bfloat16)      # (2*K*CP, S)
        y = jnp.dot(wc, xs, preferred_element_type=jnp.float32)        # (2*HP, S)
        # bias + ReLU + valid-region mask (rows 0..HP-1: W-conv, HP..: H-conv)
        return (jnp.maximum(y + bc, 0.0) * maskc_ref[...]).astype(jnp.bfloat16)

    def tconv_pair(ab, wt, bt):
        # One matmul produces every (branch, tap) slab of the two fused
        # transposed convs; slabs are 8-row aligned -> roll (XLU) + accumulate.
        t = jnp.dot(wt, ab, preferred_element_type=jnp.float32)        # (2*K*CP, S)
        acc = t[0:cp, :]
        for q in range(1, 2 * ksize):
            blk = t[q * cp:(q + 1) * cp, :]
            s = shifts_r[q]
            if s != 0:
                blk = pltpu.roll(blk, s, axis=1)
            acc = acc + blk
        return acc + bt                                                # (CP, S)

    x = x_ref[...]                                                     # (CP, S) f32
    for i in range(n_blocks):                  # static unroll (trip count 10)
        x_in = x
        # shared conv/tconv pair
        ab = conv_pair(x, wc_ref[...], bc_ref[...])
        x = tconv_pair(ab, wt_ref[...], bt_ref[...])
        # per-block conv/tconv pair
        ab = conv_pair(x, lwc_ref[i], lbc_ref[i])
        x = tconv_pair(ab, lwt_ref[i], lbt_ref[i])
        x = jnp.maximum(x, 0.0)
        x = jnp.maximum(x_in + x, 0.0)
    out_ref[...] = x


# ----------------------------------------------------------------------------
# Weight packing: PyTorch conv / tconv weights -> fused, padded matmul blocks.
# ----------------------------------------------------------------------------
def _pack_conv_pair(w1, b1, w2, b2):
    # w1: Conv2d(2,25,(1,5)) weight (HID,2,1,K); w2: Conv2d(2,25,(5,1)) (HID,2,K,1)
    w1r = jnp.transpose(w1.reshape(HID, 2, K), (0, 2, 1))     # (co, k, ci)
    w2r = jnp.transpose(w2.reshape(HID, 2, K), (0, 2, 1))
    blk_a = jnp.pad(w1r, ((0, HP - HID), (0, 0), (0, CP - 2))).reshape(HP, K * CP)
    blk_b = jnp.pad(w2r, ((0, HP - HID), (0, 0), (0, CP - 2))).reshape(HP, K * CP)
    wc = jnp.concatenate([jnp.pad(blk_a, ((0, 0), (0, K * CP))),
                          jnp.pad(blk_b, ((0, 0), (K * CP, 0)))], axis=0)
    bc = jnp.concatenate([jnp.pad(b1, (0, HP - HID)),
                          jnp.pad(b2, (0, HP - HID))]).reshape(2 * HP, 1)
    return wc.astype(jnp.bfloat16), bc.astype(jnp.float32)


def _pack_tconv_pair(w1, b1, w2, b2):
    # w1: ConvTranspose2d(25,2,(1,5)) weight (HID,COUT,1,K); w2: (HID,COUT,K,1)
    w1r = jnp.transpose(w1.reshape(HID, COUT, K), (2, 1, 0))  # (k, co, ci)
    w2r = jnp.transpose(w2.reshape(HID, COUT, K), (2, 1, 0))
    blk_a = jnp.pad(w1r, ((0, 0), (0, CP - COUT), (0, HP - HID))).reshape(K * CP, HP)
    blk_b = jnp.pad(w2r, ((0, 0), (0, CP - COUT), (0, HP - HID))).reshape(K * CP, HP)
    wt = jnp.concatenate([jnp.pad(blk_a, ((0, 0), (0, HP))),
                          jnp.pad(blk_b, ((0, 0), (HP, 0)))], axis=0)
    bt = jnp.pad(b1 + b2, (0, CP - COUT)).reshape(CP, 1)
    return wt.astype(jnp.bfloat16), bt.astype(jnp.float32)


# ----------------------------------------------------------------------------
# JAX wrapper around pallas_call.
# ----------------------------------------------------------------------------
@jax.jit
def net_forward_pallas(x, p):
    N, cin, H, W = x.shape
    assert cin == 1
    HW = H * W
    S = N * HW
    # one grid step per image (halo-free thanks to the masks); fall back to a
    # single step if the per-image lane width is not 128-aligned.
    SB = HW if HW % 128 == 0 else S
    grid = (S // SB,)

    # x.repeat(1,2,1,1) + flatten to the kernel's (C, n*h*w) layout, pad to CP rows.
    xrow = x.reshape(1, S).astype(jnp.float32)
    x2d = jnp.pad(jnp.tile(xrow, (2, 1)), ((0, CP - 2), (0, 0)))        # (CP, S)

    # Combined crop mask: rows 0..HP-1 for the (1,5) conv, HP..2HP-1 for (5,1).
    col = jnp.arange(SB)
    mask_w = ((col % W) < (W - K + 1)).astype(jnp.float32)
    mask_h = (((col // W) % H) < (H - K + 1)).astype(jnp.float32)
    maskc = jnp.concatenate([jnp.broadcast_to(mask_w, (HP, SB)),
                             jnp.broadcast_to(mask_h, (HP, SB))], axis=0)

    wc, bc = _pack_conv_pair(p['c1_w'], p['c1_b'], p['c2_w'], p['c2_b'])
    wt, bt = _pack_tconv_pair(p['t1_w'], p['t1_b'], p['t2_w'], p['t2_b'])
    lwc, lbc = jax.vmap(_pack_conv_pair)(p['lc1_w'], p['lc1_b'], p['lc2_w'], p['lc2_b'])
    lwt, lbt = jax.vmap(_pack_tconv_pair)(p['lt1_w'], p['lt1_b'], p['lt2_w'], p['lt2_b'])

    kernel = functools.partial(_net_kernel, width=W, ksize=K, cp=CP, n_blocks=NBLK)

    def full(shape):
        return pl.BlockSpec(shape, lambda n, _l=len(shape): (0,) * _l)

    out2d = pl.pallas_call(
        kernel,
        out_shape=jax.ShapeDtypeStruct((CP, S), jnp.float32),
        grid=grid,
        in_specs=[
            pl.BlockSpec((CP, SB), lambda n: (0, n)),          # x slab (per image)
            full((2 * HP, SB)),                                # crop masks
            full((2 * HP, 2 * K * CP)), full((2 * HP, 1)),     # shared conv pair
            full((2 * K * CP, 2 * HP)), full((CP, 1)),         # shared tconv pair
            full((NBLK, 2 * HP, 2 * K * CP)), full((NBLK, 2 * HP, 1)),   # per-block conv
            full((NBLK, 2 * K * CP, 2 * HP)), full((NBLK, CP, 1)),       # per-block tconv
        ],
        out_specs=pl.BlockSpec((CP, SB), lambda n: (0, n)),
        compiler_params=pltpu.CompilerParams(dimension_semantics=("parallel",)),
    )(x2d, maskc, wc, bc, wt, bt, lwc, lbc, lwt, lbt)

    return out2d[:COUT].reshape(COUT, N, H, W).transpose(1, 0, 2, 3)    # (N, 2, H, W)


# ----------------------------------------------------------------------------
# Deterministic parameter init (shapes from Net.__init__) and pure-JAX reference.
# ----------------------------------------------------------------------------
def init_params(key):
    ks = jax.random.split(key, 16)
    bound = 0.1

    def u(k, shape):
        return jax.random.uniform(k, shape, jnp.float32, -bound, bound)

    return {
        'c1_w': u(ks[0], (25, 2, 1, 5)),  'c1_b': u(ks[1], (25,)),
        'c2_w': u(ks[2], (25, 2, 5, 1)),  'c2_b': u(ks[3], (25,)),
        't1_w': u(ks[4], (25, 2, 1, 5)),  't1_b': u(ks[5], (2,)),
        't2_w': u(ks[6], (25, 2, 5, 1)),  't2_b': u(ks[7], (2,)),
        'lc1_w': u(ks[8], (10, 25, 2, 1, 5)),  'lc1_b': u(ks[9], (10, 25)),
        'lc2_w': u(ks[10], (10, 25, 2, 5, 1)), 'lc2_b': u(ks[11], (10, 25)),
        'lt1_w': u(ks[12], (10, 25, 2, 1, 5)), 'lt1_b': u(ks[13], (10, 2)),
        'lt2_w': u(ks[14], (10, 25, 2, 5, 1)), 'lt2_b': u(ks[15], (10, 2)),
    }


def _conv2d_ref(x, w, b):
    out = jax.lax.conv_general_dilated(
        x, w, (1, 1), 'VALID', dimension_numbers=('NCHW', 'OIHW', 'NCHW'),
        precision=jax.lax.Precision.HIGHEST)
    return out + b.reshape(1, -1, 1, 1)


def _tconv2d_ref(y, wt, b):
    kh, kw = wt.shape[2], wt.shape[3]
    wc = jnp.flip(wt, axis=(2, 3)).transpose(1, 0, 2, 3)      # (Cout, Cin, kh, kw)
    ypad = jnp.pad(y, ((0, 0), (0, 0), (kh - 1, kh - 1), (kw - 1, kw - 1)))
    out = jax.lax.conv_general_dilated(
        ypad, wc, (1, 1), 'VALID', dimension_numbers=('NCHW', 'OIHW', 'NCHW'),
        precision=jax.lax.Precision.HIGHEST)
    return out + b.reshape(1, -1, 1, 1)


def net_forward_ref(x, p):
    relu = lambda v: jnp.maximum(v, 0.0)
    x = jnp.concatenate([x, x], axis=1)
    z = x
    for i in range(10):
        a = relu(_conv2d_ref(x, p['c1_w'], p['c1_b'])); a = _tconv2d_ref(a, p['t1_w'], p['t1_b'])
        b = relu(_conv2d_ref(x, p['c2_w'], p['c2_b'])); b = _tconv2d_ref(b, p['t2_w'], p['t2_b'])
        x = a + b
        a = relu(_conv2d_ref(x, p['lc1_w'][i], p['lc1_b'][i])); a = _tconv2d_ref(a, p['lt1_w'][i], p['lt1_b'][i])
        b = relu(_conv2d_ref(x, p['lc2_w'][i], p['lc2_b'][i])); b = _tconv2d_ref(b, p['lt2_w'][i], p['lt2_b'][i])
        x = a + b
        x = relu(x)
        x = relu(z + x)
        z = x
    return x


if __name__ == "__main__":
    key = jax.random.PRNGKey(0)
    kx, kp = jax.random.split(key)
    x = jax.random.normal(kx, (2, 1, 16, 16), jnp.float32)   # (N, C=1, H, W)
    params = init_params(kp)

    out = net_forward_pallas(x, params)
    out = jax.block_until_ready(out)
    assert out.shape == (2, 2, 16, 16)

    ref = net_forward_ref(x, params)
    err = float(jnp.max(jnp.abs(out - ref)) / (jnp.max(jnp.abs(ref)) + 1e-6))
    if not np.isfinite(err) or err > 0.05:
        raise AssertionError(f"Pallas output mismatch vs reference, rel err {err}")

    print("KERNEL_OK")
</pallas_src>

<mosaic_0001>
module attributes {stable_mosaic.version = 11 : i64} {
  func.func @_net_kernel(%arg0: i32, %arg1: memref<8x256xf32, #tpu.memory_space<vmem>>, %arg2: memref<64x256xf32, #tpu.memory_space<vmem>>, %arg3: memref<64x80xbf16, #tpu.memory_space<vmem>>, %arg4: memref<64x1xf32, #tpu.memory_space<vmem>>, %arg5: memref<80x64xbf16, #tpu.memory_space<vmem>>, %arg6: memref<8x1xf32, #tpu.memory_space<vmem>>, %arg7: memref<10x64x80xbf16, #tpu.memory_space<vmem>>, %arg8: memref<10x64x1xf32, #tpu.memory_space<vmem>>, %arg9: memref<10x80x64xbf16, #tpu.memory_space<vmem>>, %arg10: memref<10x8x1xf32, #tpu.memory_space<vmem>>, %arg11: memref<8x256xf32, #tpu.memory_space<vmem>>) attributes {dimension_semantics = [#tpu.dimension_semantics<parallel>], iteration_bounds = array<i64: 2>, scalar_prefetch = 0 : i64, scratch_operands = 0 : i64, tpu.core_type = #tpu.core_type<tc>, window_params = [{transform_indices = @transform_0, window_bounds = array<i64: 8, 256>}, {pipeline_mode = #tpu.pipeline_mode<synchronous>, transform_indices = @transform_1, window_bounds = array<i64: 64, 256>}, {pipeline_mode = #tpu.pipeline_mode<synchronous>, transform_indices = @transform_2, window_bounds = array<i64: 64, 80>}, {pipeline_mode = #tpu.pipeline_mode<synchronous>, transform_indices = @transform_3, window_bounds = array<i64: 64, 1>}, {pipeline_mode = #tpu.pipeline_mode<synchronous>, transform_indices = @transform_4, window_bounds = array<i64: 80, 64>}, {pipeline_mode = #tpu.pipeline_mode<synchronous>, transform_indices = @transform_5, window_bounds = array<i64: 8, 1>}, {pipeline_mode = #tpu.pipeline_mode<synchronous>, transform_indices = @transform_6, window_bounds = array<i64: 10, 64, 80>}, {pipeline_mode = #tpu.pipeline_mode<synchronous>, transform_indices = @transform_7, window_bounds = array<i64: 10, 64, 1>}, {pipeline_mode = #tpu.pipeline_mode<synchronous>, transform_indices = @transform_8, window_bounds = array<i64: 10, 80, 64>}, {pipeline_mode = #tpu.pipeline_mode<synchronous>, transform_indices = @transform_9, window_bounds = array<i64: 10, 8, 1>}, {transform_indices = @transform_10, window_bounds = array<i64: 8, 256>}]} {
    %c0 = arith.constant 0 : index
    %c0_0 = arith.constant 0 : index
    %0 = vector.load %arg1[%c0, %c0_0] : memref<8x256xf32, #tpu.memory_space<vmem>>, vector<8x256xf32>
    %c0_1 = arith.constant 0 : index
    %c0_2 = arith.constant 0 : index
    %1 = vector.load %arg3[%c0_1, %c0_2] : memref<64x80xbf16, #tpu.memory_space<vmem>>, vector<64x80xbf16>
    %c0_3 = arith.constant 0 : index
    %c0_4 = arith.constant 0 : index
    %2 = vector.load %arg4[%c0_3, %c0_4] : memref<64x1xf32, #tpu.memory_space<vmem>>, vector<64x1xf32>
    %c255_i32 = arith.constant 255 : i32
    %3 = tpu.dynamic_rotate %0 by %c255_i32 dim 1 : vector<8x256xf32>, i32 -> vector<8x256xf32>
    %c254_i32 = arith.constant 254 : i32
    %4 = tpu.dynamic_rotate %0 by %c254_i32 dim 1 : vector<8x256xf32>, i32 -> vector<8x256xf32>
    %c253_i32 = arith.constant 253 : i32
    %5 = tpu.dynamic_rotate %0 by %c253_i32 dim 1 : vector<8x256xf32>, i32 -> vector<8x256xf32>
    %c252_i32 = arith.constant 252 : i32
    %6 = tpu.dynamic_rotate %0 by %c252_i32 dim 1 : vector<8x256xf32>, i32 -> vector<8x256xf32>
    %c240_i32 = arith.constant 240 : i32
    %7 = tpu.dynamic_rotate %0 by %c240_i32 dim 1 : vector<8x256xf32>, i32 -> vector<8x256xf32>
    %c224_i32 = arith.constant 224 : i32
    %8 = tpu.dynamic_rotate %0 by %c224_i32 dim 1 : vector<8x256xf32>, i32 -> vector<8x256xf32>
    %c208_i32 = arith.constant 208 : i32
    %9 = tpu.dynamic_rotate %0 by %c208_i32 dim 1 : vector<8x256xf32>, i32 -> vector<8x256xf32>
    %c192_i32 = arith.constant 192 : i32
    %10 = tpu.dynamic_rotate %0 by %c192_i32 dim 1 : vector<8x256xf32>, i32 -> vector<8x256xf32>
    %11 = tpu.concatenate %0, %3, %4, %5, %6, %0, %7, %8, %9, %10 in 0 : vector<8x256xf32>, vector<8x256xf32>, vector<8x256xf32>, vector<8x256xf32>, vector<8x256xf32>, vector<8x256xf32>, vector<8x256xf32>, vector<8x256xf32>, vector<8x256xf32>, vector<8x256xf32> -> vector<80x256xf32>
    %12 = arith.truncf %11 : vector<80x256xf32> to vector<80x256xbf16>
    %cst = arith.constant dense<0.000000e+00> : vector<64x256xf32>
    %13 = tpu.matmul %1, %12, %cst {dimension_numbers = #tpu.dot_dimension_numbers<[1], [0], [0], [1], [0, 0, 1, 1], [], []>} : vector<64x80xbf16>, vector<80x256xbf16>, vector<64x256xf32> -> vector<64x256xf32>
    %14 = vector.broadcast %2 : vector<64x1xf32> to vector<64x256xf32>
    %15 = arith.addf %13, %14 : vector<64x256xf32>
    %cst_5 = arith.constant 0.000000e+00 : f32
    %16 = vector.broadcast %cst_5 : f32 to vector<64x256xf32>
    %17 = arith.maximumf %15, %16 : vector<64x256xf32>
    %c0_6 = arith.constant 0 : index
    %c0_7 = arith.constant 0 : index
    %18 = vector.load %arg2[%c0_6, %c0_7] : memref<64x256xf32, #tpu.memory_space<vmem>>, vector<64x256xf32>
    %19 = arith.mulf %17, %18 : vector<64x256xf32>
    %20 = arith.truncf %19 : vector<64x256xf32> to vector<64x256xbf16>
    %c0_8 = arith.constant 0 : index
    %c0_9 = arith.constant 0 : index
    %21 = vector.load %arg5[%c0_8, %c0_9] : memref<80x64xbf16, #tpu.memory_space<vmem>>, vector<80x64xbf16>
    %c0_10 = arith.constant 0 : index
    %c0_11 = arith.constant 0 : index
    %22 = vector.load %arg6[%c0_10, %c0_11] : memref<8x1xf32, #tpu.memory_space<vmem>>, vector<8x1xf32>
    %cst_12 = arith.constant dense<0.000000e+00> : vector<80x256xf32>
    %23 = tpu.matmul %21, %20, %cst_12 {dimension_numbers = #tpu.dot_dimension_numbers<[1], [0], [0], [1], [0, 0, 1, 1], [], []>} : vector<80x64xbf16>, vector<64x256xbf16>, vector<80x256xf32> -> vector<80x256xf32>
    %24 = vector.extract_strided_slice %23 {offsets = [0, 0], sizes = [8, 256], strides = [1, 1]} : vector<80x256xf32> to vector<8x256xf32>
    %25 = vector.extract_strided_slice %23 {offsets = [8, 0], sizes = [8, 256], strides = [1, 1]} : vector<80x256xf32> to vector<8x256xf32>
    %c1_i32 = arith.constant 1 : i32
    %26 = tpu.dynamic_rotate %25 by %c1_i32 dim 1 : vector<8x256xf32>, i32 -> vector<8x256xf32>
    %27 = arith.addf %24, %26 : vector<8x256xf32>
    %28 = vector.extract_strided_slice %23 {offsets = [16, 0], sizes = [8, 256], strides = [1, 1]} : vector<80x256xf32> to vector<8x256xf32>
    %c2_i32 = arith.constant 2 : i32
    %29 = tpu.dynamic_rotate %28 by %c2_i32 dim 1 : vector<8x256xf32>, i32 -> vector<8x256xf32>
    %30 = arith.addf %27, %29 : vector<8x256xf32>
    %31 = vector.extract_strided_slice %23 {offsets = [24, 0], sizes = [8, 256], strides = [1, 1]} : vector<80x256xf32> to vector<8x256xf32>
    %c3_i32 = arith.constant 3 : i32
    %32 = tpu.dynamic_rotate %31 by %c3_i32 dim 1 : vector<8x256xf32>, i32 -> vector<8x256xf32>
    %33 = arith.addf %30, %32 : vector<8x256xf32>
    %34 = vector.extract_strided_slice %23 {offsets = [32, 0], sizes = [8, 256], strides = [1, 1]} : vector<80x256xf32> to vector<8x256xf32>
    %c4_i32 = arith.constant 4 : i32
    %35 = tpu.dynamic_rotate %34 by %c4_i32 dim 1 : vector<8x256xf32>, i32 -> vector<8x256xf32>
    %36 = arith.addf %33, %35 : vector<8x256xf32>
    %37 = vector.extract_strided_slice %23 {offsets = [40, 0], sizes = [8, 256], strides = [1, 1]} : vector<80x256xf32> to vector<8x256xf32>
    %38 = arith.addf %36, %37 : vector<8x256xf32>
    %39 = vector.extract_strided_slice %23 {offsets = [48, 0], sizes = [8, 256], strides = [1, 1]} : vector<80x256xf32> to vector<8x256xf32>
    %c16_i32 = arith.constant 16 : i32
    %40 = tpu.dynamic_rotate %39 by %c16_i32 dim 1 : vector<8x256xf32>, i32 -> vector<8x256xf32>
    %41 = arith.addf %38, %40 : vector<8x256xf32>
    %42 = vector.extract_strided_slice %23 {offsets = [56, 0], sizes = [8, 256], strides = [1, 1]} : vector<80x256xf32> to vector<8x256xf32>
    %c32_i32 = arith.constant 32 : i32
    %43 = tpu.dynamic_rotate %42 by %c32_i32 dim 1 : vector<8x256xf32>, i32 -> vector<8x256xf32>
    %44 = arith.addf %41, %43 : vector<8x256xf32>
    %45 = vector.extract_strided_slice %23 {offsets = [64, 0], sizes = [8, 256], strides = [1, 1]} : vector<80x256xf32> to vector<8x256xf32>
    %c48_i32 = arith.constant 48 : i32
    %46 = tpu.dynamic_rotate %45 by %c48_i32 dim 1 : vector<8x256xf32>, i32 -> vector<8x256xf32>
    %47 = arith.addf %44, %46 : vector<8x256xf32>
    %48 = vector.extract_strided_slice %23 {offsets = [72, 0], sizes = [8, 256], strides = [1, 1]} : vector<80x256xf32> to vector<8x256xf32>
    %c64_i32 = arith.constant 64 : i32
    %49 = tpu.dynamic_rotate %48 by %c64_i32 dim 1 : vector<8x256xf32>, i32 -> vector<8x256xf32>
    %50 = arith.addf %47, %49 : vector<8x256xf32>
    %51 = vector.broadcast %22 : vector<8x1xf32> to vector<8x256xf32>
    %52 = arith.addf %50, %51 : vector<8x256xf32>
    %c0_13 = arith.constant 0 : index
    %c0_14 = arith.constant 0 : index
    %c0_15 = arith.constant 0 : index
    %53 = vector.load %arg7[%c0_13, %c0_14, %c0_15] : memref<10x64x80xbf16, #tpu.memory_space<vmem>>, vector<1x64x80xbf16>
    %54 = vector.shape_cast %53 : vector<1x64x80xbf16> to vector<64x80xbf16>
    %c0_16 = arith.constant 0 : index
    %c0_17 = arith.constant 0 : index
    %c0_18 = arith.constant 0 : index
    %55 = vector.load %arg8[%c0_16, %c0_17, %c0_18] : memref<10x64x1xf32, #tpu.memory_space<vmem>>, vector<1x64x1xf32>
    %56 = vector.shape_cast %55 : vector<1x64x1xf32> to vector<64x1xf32>
    %c255_i32_19 = arith.constant 255 : i32
    %57 = tpu.dynamic_rotate %52 by %c255_i32_19 dim 1 : vector<8x256xf32>, i32 -> vector<8x256xf32>
    %c254_i32_20 = arith.constant 254 : i32
    %58 = tpu.dynamic_rotate %52 by %c254_i32_20 dim 1 : vector<8x256xf32>, i32 -> vector<8x256xf32>
    %c253_i32_21 = arith.constant 253 : i32
    %59 = tpu.dynamic_rotate %52 by %c253_i32_21 dim 1 : vector<8x256xf32>, i32 -> vector<8x256xf32>
    %c252_i32_22 = arith.constant 252 : i32
    %60 = tpu.dynamic_rotate %52 by %c252_i32_22 dim 1 : vector<8x256xf32>, i32 -> vector<8x256xf32>
    %c240_i32_23 = arith.constant 240 : i32
    %61 = tpu.dynamic_rotate %52 by %c240_i32_23 dim 1 : vector<8x256xf32>, i32 -> vector<8x256xf32>
    %c224_i32_24 = arith.constant 224 : i32
    %62 = tpu.dynamic_rotate %52 by %c224_i32_24 dim 1 : vector<8x256xf32>, i32 -> vector<8x256xf32>
    %c208_i32_25 = arith.constant 208 : i32
    %63 = tpu.dynamic_rotate %52 by %c208_i32_25 dim 1 : vector<8x256xf32>, i32 -> vector<8x256xf32>
    %c192_i32_26 = arith.constant 192 : i32
    %64 = tpu.dynamic_rotate %52 by %c192_i32_26 dim 1 : vector<8x256xf32>, i32 -> vector<8x256xf32>
    %65 = tpu.concatenate %52, %57, %58, %59, %60, %52, %61, %62, %63, %64 in 0 : vector<8x256xf32>, vector<8x256xf32>, vector<8x256xf32>, vector<8x256xf32>, vector<8x256xf32>, vector<8x256xf32>, vector<8x256xf32>, vector<8x256xf32>, vector<8x256xf32>, vector<8x256xf32> -> vector<80x256xf32>
    %66 = arith.truncf %65 : vector<80x256xf32> to vector<80x256xbf16>
    %cst_27 = arith.constant dense<0.000000e+00> : vector<64x256xf32>
    %67 = tpu.matmul %54, %66, %cst_27 {dimension_numbers = #tpu.dot_dimension_numbers<[1], [0], [0], [1], [0, 0, 1, 1], [], []>} : vector<64x80xbf16>, vector<80x256xbf16>, vector<64x256xf32> -> vector<64x256xf32>
    %68 = vector.broadcast %56 : vector<64x1xf32> to vector<64x256xf32>
    %69 = arith.addf %67, %68 : vector<64x256xf32>
    %cst_28 = arith.constant 0.000000e+00 : f32
    %70 = vector.broadcast %cst_28 : f32 to vector<64x256xf32>
    %71 = arith.maximumf %69, %70 : vector<64x256xf32>
    %c0_29 = arith.constant 0 : index
    %c0_30 = arith.constant 0 : index
    %72 = vector.load %arg2[%c0_29, %c0_30] : memref<64x256xf32, #tpu.memory_space<vmem>>, vector<64x256xf32>
    %73 = arith.mulf %71, %72 : vector<64x256xf32>
    %74 = arith.truncf %73 : vector<64x256xf32> to vector<64x256xbf16>
    %c0_31 = arith.constant 0 : index
    %c0_32 = arith.constant 0 : index
    %c0_33 = arith.constant 0 : index
    %75 = vector.load %arg9[%c0_31, %c0_32, %c0_33] : memref<10x80x64xbf16, #tpu.memory_space<vmem>>, vector<1x80x64xbf16>
    %76 = vector.shape_cast %75 : vector<1x80x64xbf16> to vector<80x64xbf16>
    %c0_34 = arith.constant 0 : index
    %c0_35 = arith.constant 0 : index
    %c0_36 = arith.constant 0 : index
    %77 = vector.load %arg10[%c0_34, %c0_35, %c0_36] : memref<10x8x1xf32, #tpu.memory_space<vmem>>, vector<1x8x1xf32>
    %78 = vector.shape_cast %77 : vector<1x8x1xf32> to vector<8x1xf32>
    %cst_37 = arith.constant dense<0.000000e+00> : vector<80x256xf32>
    %79 = tpu.matmul %76, %74, %cst_37 {dimension_numbers = #tpu.dot_dimension_numbers<[1], [0], [0], [1], [0, 0, 1, 1], [], []>} : vector<80x64xbf16>, vector<64x256xbf16>, vector<80x256xf32> -> vector<80x256xf32>
    %80 = vector.extract_strided_slice %79 {offsets = [0, 0], sizes = [8, 256], strides = [1, 1]} : vector<80x256xf32> to vector<8x256xf32>
    %81 = vector.extract_strided_slice %79 {offsets = [8, 0], sizes = [8, 256], strides = [1, 1]} : vector<80x256xf32> to vector<8x256xf32>
    %c1_i32_38 = arith.constant 1 : i32
    %82 = tpu.dynamic_rotate %81 by %c1_i32_38 dim 1 : vector<8x256xf32>, i32 -> vector<8x256xf32>
    %83 = arith.addf %80, %82 : vector<8x256xf32>
    %84 = vector.extract_strided_slice %79 {offsets = [16, 0], sizes = [8, 256], strides = [1, 1]} : vector<80x256xf32> to vector<8x256xf32>
    %c2_i32_39 = arith.constant 2 : i32
    %85 = tpu.dynamic_rotate %84 by %c2_i32_39 dim 1 : vector<8x256xf32>, i32 -> vector<8x256xf32>
    %86 = arith.addf %83, %85 : vector<8x256xf32>
    %87 = vector.extract_strided_slice %79 {offsets = [24, 0], sizes = [8, 256], strides = [1, 1]} : vector<80x256xf32> to vector<8x256xf32>
    %c3_i32_40 = arith.constant 3 : i32
    %88 = tpu.dynamic_rotate %87 by %c3_i32_40 dim 1 : vector<8x256xf32>, i32 -> vector<8x256xf32>
    %89 = arith.addf %86, %88 : vector<8x256xf32>
    %90 = vector.extract_strided_slice %79 {offsets = [32, 0], sizes = [8, 256], strides = [1, 1]} : vector<80x256xf32> to vector<8x256xf32>
    %c4_i32_41 = arith.constant 4 : i32
    %91 = tpu.dynamic_rotate %90 by %c4_i32_41 dim 1 : vector<8x256xf32>, i32 -> vector<8x256xf32>
    %92 = arith.addf %89, %91 : vector<8x256xf32>
    %93 = vector.extract_strided_slice %79 {offsets = [40, 0], sizes = [8, 256], strides = [1, 1]} : vector<80x256xf32> to vector<8x256xf32>
    %94 = arith.addf %92, %93 : vector<8x256xf32>
    %95 = vector.extract_strided_slice %79 {offsets = [48, 0], sizes = [8, 256], strides = [1, 1]} : vector<80x256xf32> to vector<8x256xf32>
    %c16_i32_42 = arith.constant 16 : i32
    %96 = tpu.dynamic_rotate %95 by %c16_i32_42 dim 1 : vector<8x256xf32>, i32 -> vector<8x256xf32>
    %97 = arith.addf %94, %96 : vector<8x256xf32>
    %98 = vector.extract_strided_slice %79 {offsets = [56, 0], sizes = [8, 256], strides = [1, 1]} : vector<80x256xf32> to vector<8x256xf32>
    %c32_i32_43 = arith.constant 32 : i32
    %99 = tpu.dynamic_rotate %98 by %c32_i32_43 dim 1 : vector<8x256xf32>, i32 -> vector<8x256xf32>
    %100 = arith.addf %97, %99 : vector<8x256xf32>
    %101 = vector.extract_strided_slice %79 {offsets = [64, 0], sizes = [8, 256], strides = [1, 1]} : vector<80x256xf32> to vector<8x256xf32>
    %c48_i32_44 = arith.constant 48 : i32
    %102 = tpu.dynamic_rotate %101 by %c48_i32_44 dim 1 : vector<8x256xf32>, i32 -> vector<8x256xf32>
    %103 = arith.addf %100, %102 : vector<8x256xf32>
    %104 = vector.extract_strided_slice %79 {offsets = [72, 0], sizes = [8, 256], strides = [1, 1]} : vector<80x256xf32> to vector<8x256xf32>
    %c64_i32_45 = arith.constant 64 : i32
    %105 = tpu.dynamic_rotate %104 by %c64_i32_45 dim 1 : vector<8x256xf32>, i32 -> vector<8x256xf32>
    %106 = arith.addf %103, %105 : vector<8x256xf32>
    %107 = vector.broadcast %78 : vector<8x1xf32> to vector<8x256xf32>
    %108 = arith.addf %106, %107 : vector<8x256xf32>
    %cst_46 = arith.constant 0.000000e+00 : f32
    %109 = vector.broadcast %cst_46 : f32 to vector<8x256xf32>
    %110 = arith.maximumf %108, %109 : vector<8x256xf32>
    %111 = arith.addf %0, %110 : vector<8x256xf32>
    %cst_47 = arith.constant 0.000000e+00 : f32
    %112 = vector.broadcast %cst_47 : f32 to vector<8x256xf32>
    %113 = arith.maximumf %111, %112 : vector<8x256xf32>
    %c0_48 = arith.constant 0 : index
    %c0_49 = arith.constant 0 : index
    %114 = vector.load %arg3[%c0_48, %c0_49] : memref<64x80xbf16, #tpu.memory_space<vmem>>, vector<64x80xbf16>
    %c0_50 = arith.constant 0 : index
    %c0_51 = arith.constant 0 : index
    %115 = vector.load %arg4[%c0_50, %c0_51] : memref<64x1xf32, #tpu.memory_space<vmem>>, vector<64x1xf32>
    %c255_i32_52 = arith.constant 255 : i32
    %116 = tpu.dynamic_rotate %113 by %c255_i32_52 dim 1 : vector<8x256xf32>, i32 -> vector<8x256xf32>
    %c254_i32_53 = arith.constant 254 : i32
    %117 = tpu.dynamic_rotate %113 by %c254_i32_53 dim 1 : vector<8x256xf32>, i32 -> vector<8x256xf32>
    %c253_i32_54 = arith.constant 253 : i32
    %118 = tpu.dynamic_rotate %113 by %c253_i32_54 dim 1 : vector<8x256xf32>, i32 -> vector<8x256xf32>
    %c252_i32_55 = arith.constant 252 : i32
    %119 = tpu.dynamic_rotate %113 by %c252_i32_55 dim 1 : vector<8x256xf32>, i32 -> vector<8x256xf32>
    %c240_i32_56 = arith.constant 240 : i32
    %120 = tpu.dynamic_rotate %113 by %c240_i32_56 dim 1 : vector<8x256xf32>, i32 -> vector<8x256xf32>
    %c224_i32_57 = arith.constant 224 : i32
    %121 = tpu.dynamic_rotate %113 by %c224_i32_57 dim 1 : vector<8x256xf32>, i32 -> vector<8x256xf32>
    %c208_i32_58 = arith.constant 208 : i32
    %122 = tpu.dynamic_rotate %113 by %c208_i32_58 dim 1 : vector<8x256xf32>, i32 -> vector<8x256xf32>
    %c192_i32_59 = arith.constant 192 : i32
    %123 = tpu.dynamic_rotate %113 by %c192_i32_59 dim 1 : vector<8x256xf32>, i32 -> vector<8x256xf32>
    %124 = tpu.concatenate %113, %116, %117, %118, %119, %113, %120, %121, %122, %123 in 0 : vector<8x256xf32>, vector<8x256xf32>, vector<8x256xf32>, vector<8x256xf32>, vector<8x256xf32>, vector<8x256xf32>, vector<8x256xf32>, vector<8x256xf32>, vector<8x256xf32>, vector<8x256xf32> -> vector<80x256xf32>
    %125 = arith.truncf %124 : vector<80x256xf32> to vector<80x256xbf16>
    %cst_60 = arith.constant dense<0.000000e+00> : vector<64x256xf32>
    %126 = tpu.matmul %114, %125, %cst_60 {dimension_numbers = #tpu.dot_dimension_numbers<[1], [0], [0], [1], [0, 0, 1, 1], [], []>} : vector<64x80xbf16>, vector<80x256xbf16>, vector<64x256xf32> -> vector<64x256xf32>
    %127 = vector.broadcast %115 : vector<64x1xf32> to vector<64x256xf32>
    %128 = arith.addf %126, %127 : vector<64x256xf32>
    %cst_61 = arith.constant 0.000000e+00 : f32
    %129 = vector.broadcast %cst_61 : f32 to vector<64x256xf32>
    %130 = arith.maximumf %128, %129 : vector<64x256xf32>
    %c0_62 = arith.constant 0 : index
    %c0_63 = arith.constant 0 : index
    %131 = vector.load %arg2[%c0_62, %c0_63] : memref<64x256xf32, #tpu.memory_space<vmem>>, vector<64x256xf32>
    %132 = arith.mulf %130, %131 : vector<64x256xf32>
    %133 = arith.truncf %132 : vector<64x256xf32> to vector<64x256xbf16>
    %c0_64 = arith.constant 0 : index
    %c0_65 = arith.constant 0 : index
    %134 = vector.load %arg5[%c0_64, %c0_65] : memref<80x64xbf16, #tpu.memory_space<vmem>>, vector<80x64xbf16>
    %c0_66 = arith.constant 0 : index
    %c0_67 = arith.constant 0 : index
    %135 = vector.load %arg6[%c0_66, %c0_67] : memref<8x1xf32, #tpu.memory_space<vmem>>, vector<8x1xf32>
    %cst_68 = arith.constant dense<0.000000e+00> : vector<80x256xf32>
    %136 = tpu.matmul %134, %133, %cst_68 {dimension_numbers = #tpu.dot_dimension_numbers<[1], [0], [0], [1], [0, 0, 1, 1], [], []>} : vector<80x64xbf16>, vector<64x256xbf16>, vector<80x256xf32> -> vector<80x256xf32>
    %137 = vector.extract_strided_slice %136 {offsets = [0, 0], sizes = [8, 256], strides = [1, 1]} : vector<80x256xf32> to vector<8x256xf32>
    %138 = vector.extract_strided_slice %136 {offsets = [8, 0], sizes = [8, 256], strides = [1, 1]} : vector<80x256xf32> to vector<8x256xf32>
    %c1_i32_69 = arith.constant 1 : i32
    %139 = tpu.dynamic_rotate %138 by %c1_i32_69 dim 1 : vector<8x256xf32>, i32 -> vector<8x256xf32>
    %140 = arith.addf %137, %139 : vector<8x256xf32>
    %141 = vector.extract_strided_slice %136 {offsets = [16, 0], sizes = [8, 256], strides = [1, 1]} : vector<80x256xf32> to vector<8x256xf32>
    %c2_i32_70 = arith.constant 2 : i32
    %142 = tpu.dynamic_rotate %141 by %c2_i32_70 dim 1 : vector<8x256xf32>, i32 -> vector<8x256xf32>
    %143 = arith.addf %140, %142 : vector<8x256xf32>
    %144 = vector.extract_strided_slice %136 {offsets = [24, 0], sizes = [8, 256], strides = [1, 1]} : vector<80x256xf32> to vector<8x256xf32>
    %c3_i32_71 = arith.constant 3 : i32
    %145 = tpu.dynamic_rotate %144 by %c3_i32_71 dim 1 : vector<8x256xf32>, i32 -> vector<8x256xf32>
    %146 = arith.addf %143, %145 : vector<8x256xf32>
    %147 = vector.extract_strided_slice %136 {offsets = [32, 0], sizes = [8, 256], strides = [1, 1]} : vector<80x256xf32> to vector<8x256xf32>
    %c4_i32_72 = arith.constant 4 : i32
    %148 = tpu.dynamic_rotate %147 by %c4_i32_72 dim 1 : vector<8x256xf32>, i32 -> vector<8x256xf32>
    %149 = arith.addf %146, %148 : vector<8x256xf32>
    %150 = vector.extract_strided_slice %136 {offsets = [40, 0], sizes = [8, 256], strides = [1, 1]} : vector<80x256xf32> to vector<8x256xf32>
    %151 = arith.addf %149, %150 : vector<8x256xf32>
    %152 = vector.extract_strided_slice %136 {offsets = [48, 0], sizes = [8, 256], strides = [1, 1]} : vector<80x256xf32> to vector<8x256xf32>
    %c16_i32_73 = arith.constant 16 : i32
    %153 = tpu.dynamic_rotate %152 by %c16_i32_73 dim 1 : vector<8x256xf32>, i32 -> vector<8x256xf32>
    %154 = arith.addf %151, %153 : vector<8x256xf32>
    %155 = vector.extract_strided_slice %136 {offsets = [56, 0], sizes = [8, 256], strides = [1, 1]} : vector<80x256xf32> to vector<8x256xf32>
    %c32_i32_74 = arith.constant 32 : i32
    %156 = tpu.dynamic_rotate %155 by %c32_i32_74 dim 1 : vector<8x256xf32>, i32 -> vector<8x256xf32>
    %157 = arith.addf %154, %156 : vector<8x256xf32>
    %158 = vector.extract_strided_slice %136 {offsets = [64, 0], sizes = [8, 256], strides = [1, 1]} : vector<80x256xf32> to vector<8x256xf32>
    %c48_i32_75 = arith.constant 48 : i32
    %159 = tpu.dynamic_rotate %158 by %c48_i32_75 dim 1 : vector<8x256xf32>, i32 -> vector<8x256xf32>
    %160 = arith.addf %157, %159 : vector<8x256xf32>
    %161 = vector.extract_strided_slice %136 {offsets = [72, 0], sizes = [8, 256], strides = [1, 1]} : vector<80x256xf32> to vector<8x256xf32>
    %c64_i32_76 = arith.constant 64 : i32
    %162 = tpu.dynamic_rotate %161 by %c64_i32_76 dim 1 : vector<8x256xf32>, i32 -> vector<8x256xf32>
    %163 = arith.addf %160, %162 : vector<8x256xf32>
    %164 = vector.broadcast %135 : vector<8x1xf32> to vector<8x256xf32>
    %165 = arith.addf %163, %164 : vector<8x256xf32>
    %c1 = arith.constant 1 : index
    %c0_77 = arith.constant 0 : index
    %c0_78 = arith.constant 0 : index
    %166 = vector.load %arg7[%c1, %c0_77, %c0_78] : memref<10x64x80xbf16, #tpu.memory_space<vmem>>, vector<1x64x80xbf16>
    %167 = vector.shape_cast %166 : vector<1x64x80xbf16> to vector<64x80xbf16>
    %c1_79 = arith.constant 1 : index
    %c0_80 = arith.constant 0 : index
    %c0_81 = arith.constant 0 : index
    %168 = vector.load %arg8[%c1_79, %c0_80, %c0_81] : memref<10x64x1xf32, #tpu.memory_space<vmem>>, vector<1x64x1xf32>
    %169 = vector.shape_cast %168 : vector<1x64x1xf32> to vector<64x1xf32>
    %c255_i32_82 = arith.constant 255 : i32
    %170 = tpu.dynamic_rotate %165 by %c255_i32_82 dim 1 : vector<8x256xf32>, i32 -> vector<8x256xf32>
    %c254_i32_83 = arith.constant 254 : i32
    %171 = tpu.dynamic_rotate %165 by %c254_i32_83 dim 1 : vector<8x256xf32>, i32 -> vector<8x256xf32>
    %c253_i32_84 = arith.constant 253 : i32
    %172 = tpu.dynamic_rotate %165 by %c253_i32_84 dim 1 : vector<8x256xf32>, i32 -> vector<8x256xf32>
    %c252_i32_85 = arith.constant 252 : i32
    %173 = tpu.dynamic_rotate %165 by %c252_i32_85 dim 1 : vector<8x256xf32>, i32 -> vector<8x256xf32>
    %c240_i32_86 = arith.constant 240 : i32
    %174 = tpu.dynamic_rotate %165 by %c240_i32_86 dim 1 : vector<8x256xf32>, i32 -> vector<8x256xf32>
    %c224_i32_87 = arith.constant 224 : i32
    %175 = tpu.dynamic_rotate %165 by %c224_i32_87 dim 1 : vector<8x256xf32>, i32 -> vector<8x256xf32>
    %c208_i32_88 = arith.constant 208 : i32
    %176 = tpu.dynamic_rotate %165 by %c208_i32_88 dim 1 : vector<8x256xf32>, i32 -> vector<8x256xf32>
    %c192_i32_89 = arith.constant 192 : i32
    %177 = tpu.dynamic_rotate %165 by %c192_i32_89 dim 1 : vector<8x256xf32>, i32 -> vector<8x256xf32>
    %178 = tpu.concatenate %165, %170, %171, %172, %173, %165, %174, %175, %176, %177 in 0 : vector<8x256xf32>, vector<8x256xf32>, vector<8x256xf32>, vector<8x256xf32>, vector<8x256xf32>, vector<8x256xf32>, vector<8x256xf32>, vector<8x256xf32>, vector<8x256xf32>, vector<8x256xf32> -> vector<80x256xf32>
    %179 = arith.truncf %178 : vector<80x256xf32> to vector<80x256xbf16>
    %cst_90 = arith.constant dense<0.000000e+00> : vector<64x256xf32>
    %180 = tpu.matmul %167, %179, %cst_90 {dimension_numbers = #tpu.dot_dimension_numbers<[1], [0], [0], [1], [0, 0, 1, 1], [], []>} : vector<64x80xbf16>, vector<80x256xbf16>, vector<64x256xf32> -> vector<64x256xf32>
    %181 = vector.broadcast %169 : vector<64x1xf32> to vector<64x256xf32>
    %182 = arith.addf %180, %181 : vector<64x256xf32>
    %cst_91 = arith.constant 0.000000e+00 : f32
    %183 = vector.broadcast %cst_91 : f32 to vector<64x256xf32>
    %184 = arith.maximumf %182, %183 : vector<64x256xf32>
    %c0_92 = arith.constant 0 : index
    %c0_93 = arith.constant 0 : index
    %185 = vector.load %arg2[%c0_92, %c0_93] : memref<64x256xf32, #tpu.memory_space<vmem>>, vector<64x256xf32>
    %186 = arith.mulf %184, %185 : vector<64x256xf32>
    %187 = arith.truncf %186 : vector<64x256xf32> to vector<64x256xbf16>
    %c1_94 = arith.constant 1 : index
    %c0_95 = arith.constant 0 : index
    %c0_96 = arith.constant 0 : index
    %188 = vector.load %arg9[%c1_94, %c0_95, %c0_96] : memref<10x80x64xbf16, #tpu.memory_space<vmem>>, vector<1x80x64xbf16>
    %189 = vector.shape_cast %188 : vector<1x80x64xbf16> to vector<80x64xbf16>
    %c1_97 = arith.constant 1 : index
    %c0_98 = arith.constant 0 : index
    %c0_99 = arith.constant 0 : index
    %190 = vector.load %arg10[%c1_97, %c0_98, %c0_99] : memref<10x8x1xf32, #tpu.memory_space<vmem>>, vector<1x8x1xf32>
    %191 = vector.shape_cast %190 : vector<1x8x1xf32> to vector<8x1xf32>
    %cst_100 = arith.constant dense<0.000000e+00> : vector<80x256xf32>
    %192 = tpu.matmul %189, %187, %cst_100 {dimension_numbers = #tpu.dot_dimension_numbers<[1], [0], [0], [1], [0, 0, 1, 1], [], []>} : vector<80x64xbf16>, vector<64x256xbf16>, vector<80x256xf32> -> vector<80x256xf32>
    %193 = vector.extract_strided_slice %192 {offsets = [0, 0], sizes = [8, 256], strides = [1, 1]} : vector<80x256xf32> to vector<8x256xf32>
    %194 = vector.extract_strided_slice %192 {offsets = [8, 0], sizes = [8, 256], strides = [1, 1]} : vector<80x256xf32> to vector<8x256xf32>
    %c1_i32_101 = arith.constant 1 : i32
    %195 = tpu.dynamic_rotate %194 by %c1_i32_101 dim 1 : vector<8x256xf32>, i32 -> vector<8x256xf32>
    %196 = arith.addf %193, %195 : vector<8x256xf32>
    %197 = vector.extract_strided_slice %192 {offsets = [16, 0], sizes = [8, 256], strides = [1, 1]} : vector<80x256xf32> to vector<8x256xf32>
    %c2_i32_102 = arith.constant 2 : i32
    %198 = tpu.dynamic_rotate %197 by %c2_i32_102 dim 1 : vector<8x256xf32>, i32 -> vector<8x256xf32>
    %199 = arith.addf %196, %198 : vector<8x256xf32>
    %200 = vector.extract_strided_slice %192 {offsets = [24, 0], sizes = [8, 256], strides = [1, 1]} : vector<80x256xf32> to vector<8x256xf32>
    %c3_i32_103 = arith.constant 3 : i32
    %201 = tpu.dynamic_rotate %200 by %c3_i32_103 dim 1 : vector<8x256xf32>, i32 -> vector<8x256xf32>
    %202 = arith.addf %199, %201 : vector<8x256xf32>
    %203 = vector.extract_strided_slice %192 {offsets = [32, 0], sizes = [8, 256], strides = [1, 1]} : vector<80x256xf32> to vector<8x256xf32>
    %c4_i32_104 = arith.constant 4 : i32
    %204 = tpu.dynamic_rotate %203 by %c4_i32_104 dim 1 : vector<8x256xf32>, i32 -> vector<8x256xf32>
    %205 = arith.addf %202, %204 : vector<8x256xf32>
    %206 = vector.extract_strided_slice %192 {offsets = [40, 0], sizes = [8, 256], strides = [1, 1]} : vector<80x256xf32> to vector<8x256xf32>
    %207 = arith.addf %205, %206 : vector<8x256xf32>
    %208 = vector.extract_strided_slice %192 {offsets = [48, 0], sizes = [8, 256], strides = [1, 1]} : vector<80x256xf32> to vector<8x256xf32>
    %c16_i32_105 = arith.constant 16 : i32
    %209 = tpu.dynamic_rotate %208 by %c16_i32_105 dim 1 : vector<8x256xf32>, i32 -> vector<8x256xf32>
    %210 = arith.addf %207, %209 : vector<8x256xf32>
    %211 = vector.extract_strided_slice %192 {offsets = [56, 0], sizes = [8, 256], strides = [1, 1]} : vector<80x256xf32> to vector<8x256xf32>
    %c32_i32_106 = arith.constant 32 : i32
    %212 = tpu.dynamic_rotate %211 by %c32_i32_106 dim 1 : vector<8x256xf32>, i32 -> vector<8x256xf32>
    %213 = arith.addf %210, %212 : vector<8x256xf32>
    %214 = vector.extract_strided_slice %192 {offsets = [64, 0], sizes = [8, 256], strides = [1, 1]} : vector<80x256xf32> to vector<8x256xf32>
    %c48_i32_107 = arith.constant 48 : i32
    %215 = tpu.dynamic_rotate %214 by %c48_i32_107 dim 1 : vector<8x256xf32>, i32 -> vector<8x256xf32>
    %216 = arith.addf %213, %215 : vector<8x256xf32>
    %217 = vector.extract_strided_slice %192 {offsets = [72, 0], sizes = [8, 256], strides = [1, 1]} : vector<80x256xf32> to vector<8x256xf32>
    %c64_i32_108 = arith.constant 64 : i32
    %218 = tpu.dynamic_rotate %217 by %c64_i32_108 dim 1 : vector<8x256xf32>, i32 -> vector<8x256xf32>
    %219 = arith.addf %216, %218 : vector<8x256xf32>
    %220 = vector.broadcast %191 : vector<8x1xf32> to vector<8x256xf32>
    %221 = arith.addf %219, %220 : vector<8x256xf32>
    %cst_109 = arith.constant 0.000000e+00 : f32
    %222 = vector.broadcast %cst_109 : f32 to vector<8x256xf32>
    %223 = arith.maximumf %221, %222 : vector<8x256xf32>
    %224 = arith.addf %113, %223 : vector<8x256xf32>
    %cst_110 = arith.constant 0.000000e+00 : f32
    %225 = vector.broadcast %cst_110 : f32 to vector<8x256xf32>
    %226 = arith.maximumf %224, %225 : vector<8x256xf32>
    %c0_111 = arith.constant 0 : index
    %c0_112 = arith.constant 0 : index
    %227 = vector.load %arg3[%c0_111, %c0_112] : memref<64x80xbf16, #tpu.memory_space<vmem>>, vector<64x80xbf16>
    %c0_113 = arith.constant 0 : index
    %c0_114 = arith.constant 0 : index
    %228 = vector.load %arg4[%c0_113, %c0_114] : memref<64x1xf32, #tpu.memory_space<vmem>>, vector<64x1xf32>
    %c255_i32_115 = arith.constant 255 : i32
    %229 = tpu.dynamic_rotate %226 by %c255_i32_115 dim 1 : vector<8x256xf32>, i32 -> vector<8x256xf32>
    %c254_i32_116 = arith.constant 254 : i32
    %230 = tpu.dynamic_rotate %226 by %c254_i32_116 dim 1 : vector<8x256xf32>, i32 -> vector<8x256xf32>
    %c253_i32_117 = arith.constant 253 : i32
    %231 = tpu.dynamic_rotate %226 by %c253_i32_117 dim 1 : vector<8x256xf32>, i32 -> vector<8x256xf32>
    %c252_i32_118 = arith.constant 252 : i32
    %232 = tpu.dynamic_rotate %226 by %c252_i32_118 dim 1 : vector<8x256xf32>, i32 -> vector<8x256xf32>
    %c240_i32_119 = arith.constant 240 : i32
    %233 = tpu.dynamic_rotate %226 by %c240_i32_119 dim 1 : vector<8x256xf32>, i32 -> vector<8x256xf32>
    %c224_i32_120 = arith.constant 224 : i32
    %234 = tpu.dynamic_rotate %226 by %c224_i32_120 dim 1 : vector<8x256xf32>, i32 -> vector<8x256xf32>
    %c208_i32_121 = arith.constant 208 : i32
    %235 = tpu.dynamic_rotate %226 by %c208_i32_121 dim 1 : vector<8x256xf32>, i32 -> vector<8x256xf32>
    %c192_i32_122 = arith.constant 192 : i32
    %236 = tpu.dynamic_rotate %226 by %c192_i32_122 dim 1 : vector<8x256xf32>, i32 -> vector<8x256xf32>
    %237 = tpu.concatenate %226, %229, %230, %231, %232, %226, %233, %234, %235, %236 in 0 : vector<8x256xf32>, vector<8x256xf32>, vector<8x256xf32>, vector<8x256xf32>, vector<8x256xf32>, vector<8x256xf32>, vector<8x256xf32>, vector<8x256xf32>, vector<8x256xf32>, vector<8x256xf32> -> vector<80x256xf32>
    %238 = arith.truncf %237 : vector<80x256xf32> to vector<80x256xbf16>
    %cst_123 = arith.constant dense<0.000000e+00> : vector<64x256xf32>
    %239 = tpu.matmul %227, %238, %cst_123 {dimension_numbers = #tpu.dot_dimension_numbers<[1], [0], [0], [1], [0, 0, 1, 1], [], []>} : vector<64x80xbf16>, vector<80x256xbf16>, vector<64x256xf32> -> vector<64x256xf32>
    %240 = vector.broadcast %228 : vector<64x1xf32> to vector<64x256xf32>
    %241 = arith.addf %239, %240 : vector<64x256xf32>
    %cst_124 = arith.constant 0.000000e+00 : f32
    %242 = vector.broadcast %cst_124 : f32 to vector<64x256xf32>
    %243 = arith.maximumf %241, %242 : vector<64x256xf32>
    %c0_125 = arith.constant 0 : index
    %c0_126 = arith.constant 0 : index
    %244 = vector.load %arg2[%c0_125, %c0_126] : memref<64x256xf32, #tpu.memory_space<vmem>>, vector<64x256xf32>
    %245 = arith.mulf %243, %244 : vector<64x256xf32>
    %246 = arith.truncf %245 : vector<64x256xf32> to vector<64x256xbf16>
    %c0_127 = arith.constant 0 : index
    %c0_128 = arith.constant 0 : index
    %247 = vector.load %arg5[%c0_127, %c0_128] : memref<80x64xbf16, #tpu.memory_space<vmem>>, vector<80x64xbf16>
    %c0_129 = arith.constant 0 : index
    %c0_130 = arith.constant 0 : index
    %248 = vector.load %arg6[%c0_129, %c0_130] : memref<8x1xf32, #tpu.memory_space<vmem>>, vector<8x1xf32>
    %cst_131 = arith.constant dense<0.000000e+00> : vector<80x256xf32>
    %249 = tpu.matmul %247, %246, %cst_131 {dimension_numbers = #tpu.dot_dimension_numbers<[1], [0], [0], [1], [0, 0, 1, 1], [], []>} : vector<80x64xbf16>, vector<64x256xbf16>, vector<80x256xf32> -> vector<80x256xf32>
    %250 = vector.extract_strided_slice %249 {offsets = [0, 0], sizes = [8, 256], strides = [1, 1]} : vector<80x256xf32> to vector<8x256xf32>
    %251 = vector.extract_strided_slice %249 {offsets = [8, 0], sizes = [8, 256], strides = [1, 1]} : vector<80x256xf32> to vector<8x256xf32>
    %c1_i32_132 = arith.constant 1 : i32
    %252 = tpu.dynamic_rotate %251 by %c1_i32_132 dim 1 : vector<8x256xf32>, i32 -> vector<8x256xf32>
    %253 = arith.addf %250, %252 : vector<8x256xf32>
    %254 = vector.extract_strided_slice %249 {offsets = [16, 0], sizes = [8, 256], strides = [1, 1]} : vector<80x256xf32> to vector<8x256xf32>
    %c2_i32_133 = arith.constant 2 : i32
    %255 = tpu.dynamic_rotate %254 by %c2_i32_133 dim 1 : vector<8x256xf32>, i32 -> vector<8x256xf32>
    %256 = arith.addf %253, %255 : vector<8x256xf32>
    %257 = vector.extract_strided_slice %249 {offsets = [24, 0], sizes = [8, 256], strides = [1, 1]} : vector<80x256xf32> to vector<8x256xf32>
    %c3_i32_134 = arith.constant 3 : i32
    %258 = tpu.dynamic_rotate %257 by %c3_i32_134 dim 1 : vector<8x256xf32>, i32 -> vector<8x256xf32>
    %259 = arith.addf %256, %258 : vector<8x256xf32>
    %260 = vector.extract_strided_slice %249 {offsets = [32, 0], sizes = [8, 256], strides = [1, 1]} : vector<80x256xf32> to vector<8x256xf32>
    %c4_i32_135 = arith.constant 4 : i32
    %261 = tpu.dynamic_rotate %260 by %c4_i32_135 dim 1 : vector<8x256xf32>, i32 -> vector<8x256xf32>
    %262 = arith.addf %259, %261 : vector<8x256xf32>
    %263 = vector.extract_strided_slice %249 {offsets = [40, 0], sizes = [8, 256], strides = [1, 1]} : vector<80x256xf32> to vector<8x256xf32>
    %264 = arith.addf %262, %263 : vector<8x256xf32>
    %265 = vector.extract_strided_slice %249 {offsets = [48, 0], sizes = [8, 256], strides = [1, 1]} : vector<80x256xf32> to vector<8x256xf32>
    %c16_i32_136 = arith.constant 16 : i32
    %266 = tpu.dynamic_rotate %265 by %c16_i32_136 dim 1 : vector<8x256xf32>, i32 -> vector<8x256xf32>
    %267 = arith.addf %264, %266 : vector<8x256xf32>
    %268 = vector.extract_strided_slice %249 {offsets = [56, 0], sizes = [8, 256], strides = [1, 1]} : vector<80x256xf32> to vector<8x256xf32>
    %c32_i32_137 = arith.constant 32 : i32
    %269 = tpu.dynamic_rotate %268 by %c32_i32_137 dim 1 : vector<8x256xf32>, i32 -> vector<8x256xf32>
    %270 = arith.addf %267, %269 : vector<8x256xf32>
    %271 = vector.extract_strided_slice %249 {offsets = [64, 0], sizes = [8, 256], strides = [1, 1]} : vector<80x256xf32> to vector<8x256xf32>
    %c48_i32_138 = arith.constant 48 : i32
    %272 = tpu.dynamic_rotate %271 by %c48_i32_138 dim 1 : vector<8x256xf32>, i32 -> vector<8x256xf32>
    %273 = arith.addf %270, %272 : vector<8x256xf32>
    %274 = vector.extract_strided_slice %249 {offsets = [72, 0], sizes = [8, 256], strides = [1, 1]} : vector<80x256xf32> to vector<8x256xf32>
    %c64_i32_139 = arith.constant 64 : i32
    %275 = tpu.dynamic_rotate %274 by %c64_i32_139 dim 1 : vector<8x256xf32>, i32 -> vector<8x256xf32>
    %276 = arith.addf %273, %275 : vector<8x256xf32>
    %277 = vector.broadcast %248 : vector<8x1xf32> to vector<8x256xf32>
    %278 = arith.addf %276, %277 : vector<8x256xf32>
    %c2 = arith.constant 2 : index
    %c0_140 = arith.constant 0 : index
    %c0_141 = arith.constant 0 : index
    %279 = vector.load %arg7[%c2, %c0_140, %c0_141] : memref<10x64x80xbf16, #tpu.memory_space<vmem>>, vector<1x64x80xbf16>
    %280 = vector.shape_cast %279 : vector<1x64x80xbf16> to vector<64x80xbf16>
    %c2_142 = arith.constant 2 : index
    %c0_143 = arith.constant 0 : index
    %c0_144 = arith.constant 0 : index
    %281 = vector.load %arg8[%c2_142, %c0_143, %c0_144] : memref<10x64x1xf32, #tpu.memory_space<vmem>>, vector<1x64x1xf32>
    %282 = vector.shape_cast %281 : vector<1x64x1xf32> to vector<64x1xf32>
    %c255_i32_145 = arith.constant 255 : i32
    %283 = tpu.dynamic_rotate %278 by %c255_i32_145 dim 1 : vector<8x256xf32>, i32 -> vector<8x256xf32>
    %c254_i32_146 = arith.constant 254 : i32
    %284 = tpu.dynamic_rotate %278 by %c254_i32_146 dim 1 : vector<8x256xf32>, i32 -> vector<8x256xf32>
    %c253_i32_147 = arith.constant 253 : i32
    %285 = tpu.dynamic_rotate %278 by %c253_i32_147 dim 1 : vector<8x256xf32>, i32 -> vector<8x256xf32>
    %c252_i32_148 = arith.constant 252 : i32
    %286 = tpu.dynamic_rotate %278 by %c252_i32_148 dim 1 : vector<8x256xf32>, i32 -> vector<8x256xf32>
    %c240_i32_149 = arith.constant 240 : i32
    %287 = tpu.dynamic_rotate %278 by %c240_i32_149 dim 1 : vector<8x256xf32>, i32 -> vector<8x256xf32>
    %c224_i32_150 = arith.constant 224 : i32
    %288 = tpu.dynamic_rotate %278 by %c224_i32_150 dim 1 : vector<8x256xf32>, i32 -> vector<8x256xf32>
    %c208_i32_151 = arith.constant 208 : i32
    %289 = tpu.dynamic_rotate %278 by %c208_i32_151 dim 1 : vector<8x256xf32>, i32 -> vector<8x256xf32>
    %c192_i32_152 = arith.constant 192 : i32
    %290 = tpu.dynamic_rotate %278 by %c192_i32_152 dim 1 : vector<8x256xf32>, i32 -> vector<8x256xf32>
    %291 = tpu.concatenate %278, %283, %284, %285, %286, %278, %287, %288, %289, %290 in 0 : vector<8x256xf32>, vector<8x256xf32>, vector<8x256xf32>, vector<8x256xf32>, vector<8x256xf32>, vector<8x256xf32>, vector<8x256xf32>, vector<8x256xf32>, vector<8x256xf32>, vector<8x256xf32> -> vector<80x256xf32>
    %292 = arith.truncf %291 : vector<80x256xf32> to vector<80x256xbf16>
    %cst_153 = arith.constant dense<0.000000e+00> : vector<64x256xf32>
    %293 = tpu.matmul %280, %292, %cst_153 {dimension_numbers = #tpu.dot_dimension_numbers<[1], [0], [0], [1], [0, 0, 1, 1], [], []>} : vector<64x80xbf16>, vector<80x256xbf16>, vector<64x256xf32> -> vector<64x256xf32>
    %294 = vector.broadcast %282 : vector<64x1xf32> to vector<64x256xf32>
    %295 = arith.addf %293, %294 : vector<64x256xf32>
    %cst_154 = arith.constant 0.000000e+00 : f32
    %296 = vector.broadcast %cst_154 : f32 to vector<64x256xf32>
    %297 = arith.maximumf %295, %296 : vector<64x256xf32>
    %c0_155 = arith.constant 0 : index
    %c0_156 = arith.constant 0 : index
    %298 = vector.load %arg2[%c0_155, %c0_156] : memref<64x256xf32, #tpu.memory_space<vmem>>, vector<64x256xf32>
    %299 = arith.mulf %297, %298 : vector<64x256xf32>
    %300 = arith.truncf %299 : vector<64x256xf32> to vector<64x256xbf16>
    %c2_157 = arith.constant 2 : index
    %c0_158 = arith.constant 0 : index
    %c0_159 = arith.constant 0 : index
    %301 = vector.load %arg9[%c2_157, %c0_158, %c0_159] : memref<10x80x64xbf16, #tpu.memory_space<vmem>>, vector<1x80x64xbf16>
    %302 = vector.shape_cast %301 : vector<1x80x64xbf16> to vector<80x64xbf16>
    %c2_160 = arith.constant 2 : index
    %c0_161 = arith.constant 0 : index
    %c0_162 = arith.constant 0 : index
    %303 = vector.load %arg10[%c2_160, %c0_161, %c0_162] : memref<10x8x1xf32, #tpu.memory_space<vmem>>, vector<1x8x1xf32>
    %304 = vector.shape_cast %303 : vector<1x8x1xf32> to vector<8x1xf32>
    %cst_163 = arith.constant dense<0.000000e+00> : vector<80x256xf32>
    %305 = tpu.matmul %302, %300, %cst_163 {dimension_numbers = #tpu.dot_dimension_numbers<[1], [0], [0], [1], [0, 0, 1, 1], [], []>} : vector<80x64xbf16>, vector<64x256xbf16>, vector<80x256xf32> -> vector<80x256xf32>
    %306 = vector.extract_strided_slice %305 {offsets = [0, 0], sizes = [8, 256], strides = [1, 1]} : vector<80x256xf32> to vector<8x256xf32>
    %307 = vector.extract_strided_slice %305 {offsets = [8, 0], sizes = [8, 256], strides = [1, 1]} : vector<80x256xf32> to vector<8x256xf32>
    %c1_i32_164 = arith.constant 1 : i32
    %308 = tpu.dynamic_rotate %307 by %c1_i32_164 dim 1 : vector<8x256xf32>, i32 -> vector<8x256xf32>
    %309 = arith.addf %306, %308 : vector<8x256xf32>
    %310 = vector.extract_strided_slice %305 {offsets = [16, 0], sizes = [8, 256], strides = [1, 1]} : vector<80x256xf32> to vector<8x256xf32>
    %c2_i32_165 = arith.constant 2 : i32
    %311 = tpu.dynamic_rotate %310 by %c2_i32_165 dim 1 : vector<8x256xf32>, i32 -> vector<8x256xf32>
    %312 = arith.addf %309, %311 : vector<8x256xf32>
    %313 = vector.extract_strided_slice %305 {offsets = [24, 0], sizes = [8, 256], strides = [1, 1]} : vector<80x256xf32> to vector<8x256xf32>
    %c3_i32_166 = arith.constant 3 : i32
    %314 = tpu.dynamic_rotate %313 by %c3_i32_166 dim 1 : vector<8x256xf32>, i32 -> vector<8x256xf32>
    %315 = arith.addf %312, %314 : vector<8x256xf32>
    %316 = vector.extract_strided_slice %305 {offsets = [32, 0], sizes = [8, 256], strides = [1, 1]} : vector<80x256xf32> to vector<8x256xf32>
    %c4_i32_167 = arith.constant 4 : i32
    %317 = tpu.dynamic_rotate %316 by %c4_i32_167 dim 1 : vector<8x256xf32>, i32 -> vector<8x256xf32>
    %318 = arith.addf %315, %317 : vector<8x256xf32>
    %319 = vector.extract_strided_slice %305 {offsets = [40, 0], sizes = [8, 256], strides = [1, 1]} : vector<80x256xf32> to vector<8x256xf32>
    %320 = arith.addf %318, %319 : vector<8x256xf32>
    %321 = vector.extract_strided_slice %305 {offsets = [48, 0], sizes = [8, 256], strides = [1, 1]} : vector<80x256xf32> to vector<8x256xf32>
    %c16_i32_168 = arith.constant 16 : i32
    %322 = tpu.dynamic_rotate %321 by %c16_i32_168 dim 1 : vector<8x256xf32>, i32 -> vector<8x256xf32>
    %323 = arith.addf %320, %322 : vector<8x256xf32>
    %324 = vector.extract_strided_slice %305 {offsets = [56, 0], sizes = [8, 256], strides = [1, 1]} : vector<80x256xf32> to vector<8x256xf32>
    %c32_i32_169 = arith.constant 32 : i32
    %325 = tpu.dynamic_rotate %324 by %c32_i32_169 dim 1 : vector<8x256xf32>, i32 -> vector<8x256xf32>
    %326 = arith.addf %323, %325 : vector<8x256xf32>
    %327 = vector.extract_strided_slice %305 {offsets = [64, 0], sizes = [8, 256], strides = [1, 1]} : vector<80x256xf32> to vector<8x256xf32>
    %c48_i32_170 = arith.constant 48 : i32
    %328 = tpu.dynamic_rotate %327 by %c48_i32_170 dim 1 : vector<8x256xf32>, i32 -> vector<8x256xf32>
    %329 = arith.addf %326, %328 : vector<8x256xf32>
    %330 = vector.extract_strided_slice %305 {offsets = [72, 0], sizes = [8, 256], strides = [1, 1]} : vector<80x256xf32> to vector<8x256xf32>
    %c64_i32_171 = arith.constant 64 : i32
    %331 = tpu.dynamic_rotate %330 by %c64_i32_171 dim 1 : vector<8x256xf32>, i32 -> vector<8x256xf32>
    %332 = arith.addf %329, %331 : vector<8x256xf32>
    %333 = vector.broadcast %304 : vector<8x1xf32> to vector<8x256xf32>
    %334 = arith.addf %332, %333 : vector<8x256xf32>
    %cst_172 = arith.constant 0.000000e+00 : f32
    %335 = vector.broadcast %cst_172 : f32 to vector<8x256xf32>
    %336 = arith.maximumf %334, %335 : vector<8x256xf32>
    %337 = arith.addf %226, %336 : vector<8x256xf32>
    %cst_173 = arith.constant 0.000000e+00 : f32
    %338 = vector.broadcast %cst_173 : f32 to vector<8x256xf32>
    %339 = arith.maximumf %337, %338 : vector<8x256xf32>
    %c0_174 = arith.constant 0 : index
    %c0_175 = arith.constant 0 : index
    %340 = vector.load %arg3[%c0_174, %c0_175] : memref<64x80xbf16, #tpu.memory_space<vmem>>, vector<64x80xbf16>
    %c0_176 = arith.constant 0 : index
    %c0_177 = arith.constant 0 : index
    %341 = vector.load %arg4[%c0_176, %c0_177] : memref<64x1xf32, #tpu.memory_space<vmem>>, vector<64x1xf32>
    %c255_i32_178 = arith.constant 255 : i32
    %342 = tpu.dynamic_rotate %339 by %c255_i32_178 dim 1 : vector<8x256xf32>, i32 -> vector<8x256xf32>
    %c254_i32_179 = arith.constant 254 : i32
    %343 = tpu.dynamic_rotate %339 by %c254_i32_179 dim 1 : vector<8x256xf32>, i32 -> vector<8x256xf32>
    %c253_i32_180 = arith.constant 253 : i32
    %344 = tpu.dynamic_rotate %339 by %c253_i32_180 dim 1 : vector<8x256xf32>, i32 -> vector<8x256xf32>
    %c252_i32_181 = arith.constant 252 : i32
    %345 = tpu.dynamic_rotate %339 by %c252_i32_181 dim 1 : vector<8x256xf32>, i32 -> vector<8x256xf32>
    %c240_i32_182 = arith.constant 240 : i32
    %346 = tpu.dynamic_rotate %339 by %c240_i32_182 dim 1 : vector<8x256xf32>, i32 -> vector<8x256xf32>
    %c224_i32_183 = arith.constant 224 : i32
    %347 = tpu.dynamic_rotate %339 by %c224_i32_183 dim 1 : vector<8x256xf32>, i32 -> vector<8x256xf32>
    %c208_i32_184 = arith.constant 208 : i32
    %348 = tpu.dynamic_rotate %339 by %c208_i32_184 dim 1 : vector<8x256xf32>, i32 -> vector<8x256xf32>
    %c192_i32_185 = arith.constant 192 : i32
    %349 = tpu.dynamic_rotate %339 by %c192_i32_185 dim 1 : vector<8x256xf32>, i32 -> vector<8x256xf32>
    %350 = tpu.concatenate %339, %342, %343, %344, %345, %339, %346, %347, %348, %349 in 0 : vector<8x256xf32>, vector<8x256xf32>, vector<8x256xf32>, vector<8x256xf32>, vector<8x256xf32>, vector<8x256xf32>, vector<8x256xf32>, vector<8x256xf32>, vector<8x256xf32>, vector<8x256xf32> -> vector<80x256xf32>
    %351 = arith.truncf %350 : vector<80x256xf32> to vector<80x256xbf16>
    %cst_186 = arith.constant dense<0.000000e+00> : vector<64x256xf32>
    %352 = tpu.matmul %340, %351, %cst_186 {dimension_numbers = #tpu.dot_dimension_numbers<[1], [0], [0], [1], [0, 0, 1, 1], [], []>} : vector<64x80xbf16>, vector<80x256xbf16>, vector<64x256xf32> -> vector<64x256xf32>
    %353 = vector.broadcast %341 : vector<64x1xf32> to vector<64x256xf32>
    %354 = arith.addf %352, %353 : vector<64x256xf32>
    %cst_187 = arith.constant 0.000000e+00 : f32
    %355 = vector.broadcast %cst_187 : f32 to vector<64x256xf32>
    %356 = arith.maximumf %354, %355 : vector<64x256xf32>
    %c0_188 = arith.constant 0 : index
    %c0_189 = arith.constant 0 : index
    %357 = vector.load %arg2[%c0_188, %c0_189] : memref<64x256xf32, #tpu.memory_space<vmem>>, vector<64x256xf32>
    %358 = arith.mulf %356, %357 : vector<64x256xf32>
    %359 = arith.truncf %358 : vector<64x256xf32> to vector<64x256xbf16>
    %c0_190 = arith.constant 0 : index
    %c0_191 = arith.constant 0 : index
    %360 = vector.load %arg5[%c0_190, %c0_191] : memref<80x64xbf16, #tpu.memory_space<vmem>>, vector<80x64xbf16>
    %c0_192 = arith.constant 0 : index
    %c0_193 = arith.constant 0 : index
    %361 = vector.load %arg6[%c0_192, %c0_193] : memref<8x1xf32, #tpu.memory_space<vmem>>, vector<8x1xf32>
    %cst_194 = arith.constant dense<0.000000e+00> : vector<80x256xf32>
    %362 = tpu.matmul %360, %359, %cst_194 {dimension_numbers = #tpu.dot_dimension_numbers<[1], [0], [0], [1], [0, 0, 1, 1], [], []>} : vector<80x64xbf16>, vector<64x256xbf16>, vector<80x256xf32> -> vector<80x256xf32>
    %363 = vector.extract_strided_slice %362 {offsets = [0, 0], sizes = [8, 256], strides = [1, 1]} : vector<80x256xf32> to vector<8x256xf32>
    %364 = vector.extract_strided_slice %362 {offsets = [8, 0], sizes = [8, 256], strides = [1, 1]} : vector<80x256xf32> to vector<8x256xf32>
    %c1_i32_195 = arith.constant 1 : i32
    %365 = tpu.dynamic_rotate %364 by %c1_i32_195 dim 1 : vector<8x256xf32>, i32 -> vector<8x256xf32>
    %366 = arith.addf %363, %365 : vector<8x256xf32>
    %367 = vector.extract_strided_slice %362 {offsets = [16, 0], sizes = [8, 256], strides = [1, 1]} : vector<80x256xf32> to vector<8x256xf32>
    %c2_i32_196 = arith.constant 2 : i32
    %368 = tpu.dynamic_rotate %367 by %c2_i32_196 dim 1 : vector<8x256xf32>, i32 -> vector<8x256xf32>
    %369 = arith.addf %366, %368 : vector<8x256xf32>
    %370 = vector.extract_strided_slice %362 {offsets = [24, 0], sizes = [8, 256], strides = [1, 1]} : vector<80x256xf32> to vector<8x256xf32>
    %c3_i32_197 = arith.constant 3 : i32
    %371 = tpu.dynamic_rotate %370 by %c3_i32_197 dim 1 : vector<8x256xf32>, i32 -> vector<8x256xf32>
    %372 = arith.addf %369, %371 : vector<8x256xf32>
    %373 = vector.extract_strided_slice %362 {offsets = [32, 0], sizes = [8, 256], strides = [1, 1]} : vector<80x256xf32> to vector<8x256xf32>
    %c4_i32_198 = arith.constant 4 : i32
    %374 = tpu.dynamic_rotate %373 by %c4_i32_198 dim 1 : vector<8x256xf32>, i32 -> vector<8x256xf32>
    %375 = arith.addf %372, %374 : vector<8x256xf32>
    %376 = vector.extract_strided_slice %362 {offsets = [40, 0], sizes = [8, 256], strides = [1, 1]} : vector<80x256xf32> to vector<8x256xf32>
    %377 = arith.addf %375, %376 : vector<8x256xf32>
    %378 = vector.extract_strided_slice %362 {offsets = [48, 0], sizes = [8, 256], strides = [1, 1]} : vector<80x256xf32> to vector<8x256xf32>
    %c16_i32_199 = arith.constant 16 : i32
    %379 = tpu.dynamic_rotate %378 by %c16_i32_199 dim 1 : vector<8x256xf32>, i32 -> vector<8x256xf32>
    %380 = arith.addf %377, %379 : vector<8x256xf32>
    %381 = vector.extract_strided_slice %362 {offsets = [56, 0], sizes = [8, 256], strides = [1, 1]} : vector<80x256xf32> to vector<8x256xf32>
    %c32_i32_200 = arith.constant 32 : i32
    %382 = tpu.dynamic_rotate %381 by %c32_i32_200 dim 1 : vector<8x256xf32>, i32 -> vector<8x256xf32>
    %383 = arith.addf %380, %382 : vector<8x256xf32>
    %384 = vector.extract_strided_slice %362 {offsets = [64, 0], sizes = [8, 256], strides = [1, 1]} : vector<80x256xf32> to vector<8x256xf32>
    %c48_i32_201 = arith.constant 48 : i32
    %385 = tpu.dynamic_rotate %384 by %c48_i32_201 dim 1 : vector<8x256xf32>, i32 -> vector<8x256xf32>
    %386 = arith.addf %383, %385 : vector<8x256xf32>
    %387 = vector.extract_strided_slice %362 {offsets = [72, 0], sizes = [8, 256], strides = [1, 1]} : vector<80x256xf32> to vector<8x256xf32>
    %c64_i32_202 = arith.constant 64 : i32
    %388 = tpu.dynamic_rotate %387 by %c64_i32_202 dim 1 : vector<8x256xf32>, i32 -> vector<8x256xf32>
    %389 = arith.addf %386, %388 : vector<8x256xf32>
    %390 = vector.broadcast %361 : vector<8x1xf32> to vector<8x256xf32>
    %391 = arith.addf %389, %390 : vector<8x256xf32>
    %c3 = arith.constant 3 : index
    %c0_203 = arith.constant 0 : index
    %c0_204 = arith.constant 0 : index
    %392 = vector.load %arg7[%c3, %c0_203, %c0_204] : memref<10x64x80xbf16, #tpu.memory_space<vmem>>, vector<1x64x80xbf16>
    %393 = vector.shape_cast %392 : vector<1x64x80xbf16> to vector<64x80xbf16>
    %c3_205 = arith.constant 3 : index
    %c0_206 = arith.constant 0 : index
    %c0_207 = arith.constant 0 : index
    %394 = vector.load %arg8[%c3_205, %c0_206, %c0_207] : memref<10x64x1xf32, #tpu.memory_space<vmem>>, vector<1x64x1xf32>
    %395 = vector.shape_cast %394 : vector<1x64x1xf32> to vector<64x1xf32>
    %c255_i32_208 = arith.constant 255 : i32
    %396 = tpu.dynamic_rotate %391 by %c255_i32_208 dim 1 : vector<8x256xf32>, i32 -> vector<8x256xf32>
    %c254_i32_209 = arith.constant 254 : i32
    %397 = tpu.dynamic_rotate %391 by %c254_i32_209 dim 1 : vector<8x256xf32>, i32 -> vector<8x256xf32>
    %c253_i32_210 = arith.constant 253 : i32
    %398 = tpu.dynamic_rotate %391 by %c253_i32_210 dim 1 : vector<8x256xf32>, i32 -> vector<8x256xf32>
    %c252_i32_211 = arith.constant 252 : i32
    %399 = tpu.dynamic_rotate %391 by %c252_i32_211 dim 1 : vector<8x256xf32>, i32 -> vector<8x256xf32>
    %c240_i32_212 = arith.constant 240 : i32
    %400 = tpu.dynamic_rotate %391 by %c240_i32_212 dim 1 : vector<8x256xf32>, i32 -> vector<8x256xf32>
    %c224_i32_213 = arith.constant 224 : i32
    %401 = tpu.dynamic_rotate %391 by %c224_i32_213 dim 1 : vector<8x256xf32>, i32 -> vector<8x256xf32>
    %c208_i32_214 = arith.constant 208 : i32
    %402 = tpu.dynamic_rotate %391 by %c208_i32_214 dim 1 : vector<8x256xf32>, i32 -> vector<8x256xf32>
    %c192_i32_215 = arith.constant 192 : i32
    %403 = tpu.dynamic_rotate %391 by %c192_i32_215 dim 1 : vector<8x256xf32>, i32 -> vector<8x256xf32>
    %404 = tpu.concatenate %391, %396, %397, %398, %399, %391, %400, %401, %402, %403 in 0 : vector<8x256xf32>, vector<8x256xf32>, vector<8x256xf32>, vector<8x256xf32>, vector<8x256xf32>, vector<8x256xf32>, vector<8x256xf32>, vector<8x256xf32>, vector<8x256xf32>, vector<8x256xf32> -> vector<80x256xf32>
    %405 = arith.truncf %404 : vector<80x256xf32> to vector<80x256xbf16>
    %cst_216 = arith.constant dense<0.000000e+00> : vector<64x256xf32>
    %406 = tpu.matmul %393, %405, %cst_216 {dimension_numbers = #tpu.dot_dimension_numbers<[1], [0], [0], [1], [0, 0, 1, 1], [], []>} : vector<64x80xbf16>, vector<80x256xbf16>, vector<64x256xf32> -> vector<64x256xf32>
    %407 = vector.broadcast %395 : vector<64x1xf32> to vector<64x256xf32>
    %408 = arith.addf %406, %407 : vector<64x256xf32>
    %cst_217 = arith.constant 0.000000e+00 : f32
    %409 = vector.broadcast %cst_217 : f32 to vector<64x256xf32>
    %410 = arith.maximumf %408, %409 : vector<64x256xf32>
    %c0_218 = arith.constant 0 : index
    %c0_219 = arith.constant 0 : index
    %411 = vector.load %arg2[%c0_218, %c0_219] : memref<64x256xf32, #tpu.memory_space<vmem>>, vector<64x256xf32>
    %412 = arith.mulf %410, %411 : vector<64x256xf32>
    %413 = arith.truncf %412 : vector<64x256xf32> to vector<64x256xbf16>
    %c3_220 = arith.constant 3 : index
    %c0_221 = arith.constant 0 : index
    %c0_222 = arith.constant 0 : index
    %414 = vector.load %arg9[%c3_220, %c0_221, %c0_222] : memref<10x80x64xbf16, #tpu.memory_space<vmem>>, vector<1x80x64xbf16>
    %415 = vector.shape_cast %414 : vector<1x80x64xbf16> to vector<80x64xbf16>
    %c3_223 = arith.constant 3 : index
    %c0_224 = arith.constant 0 : index
    %c0_225 = arith.constant 0 : index
    %416 = vector.load %arg10[%c3_223, %c0_224, %c0_225] : memref<10x8x1xf32, #tpu.memory_space<vmem>>, vector<1x8x1xf32>
    %417 = vector.shape_cast %416 : vector<1x8x1xf32> to vector<8x1xf32>
    %cst_226 = arith.constant dense<0.000000e+00> : vector<80x256xf32>
    %418 = tpu.matmul %415, %413, %cst_226 {dimension_numbers = #tpu.dot_dimension_numbers<[1], [0], [0], [1], [0, 0, 1, 1], [], []>} : vector<80x64xbf16>, vector<64x256xbf16>, vector<80x256xf32> -> vector<80x256xf32>
    %419 = vector.extract_strided_slice %418 {offsets = [0, 0], sizes = [8, 256], strides = [1, 1]} : vector<80x256xf32> to vector<8x256xf32>
    %420 = vector.extract_strided_slice %418 {offsets = [8, 0], sizes = [8, 256], strides = [1, 1]} : vector<80x256xf32> to vector<8x256xf32>
    %c1_i32_227 = arith.constant 1 : i32
    %421 = tpu.dynamic_rotate %420 by %c1_i32_227 dim 1 : vector<8x256xf32>, i32 -> vector<8x256xf32>
    %422 = arith.addf %419, %421 : vector<8x256xf32>
    %423 = vector.extract_strided_slice %418 {offsets = [16, 0], sizes = [8, 256], strides = [1, 1]} : vector<80x256xf32> to vector<8x256xf32>
    %c2_i32_228 = arith.constant 2 : i32
    %424 = tpu.dynamic_rotate %423 by %c2_i32_228 dim 1 : vector<8x256xf32>, i32 -> vector<8x256xf32>
    %425 = arith.addf %422, %424 : vector<8x256xf32>
    %426 = vector.extract_strided_slice %418 {offsets = [24, 0], sizes = [8, 256], strides = [1, 1]} : vector<80x256xf32> to vector<8x256xf32>
    %c3_i32_229 = arith.constant 3 : i32
    %427 = tpu.dynamic_rotate %426 by %c3_i32_229 dim 1 : vector<8x256xf32>, i32 -> vector<8x256xf32>
    %428 = arith.addf %425, %427 : vector<8x256xf32>
    %429 = vector.extract_strided_slice %418 {offsets = [32, 0], sizes = [8, 256], strides = [1, 1]} : vector<80x256xf32> to vector<8x256xf32>
    %c4_i32_230 = arith.constant 4 : i32
    %430 = tpu.dynamic_rotate %429 by %c4_i32_230 dim 1 : vector<8x256xf32>, i32 -> vector<8x256xf32>
    %431 = arith.addf %428, %430 : vector<8x256xf32>
    %432 = vector.extract_strided_slice %418 {offsets = [40, 0], sizes = [8, 256], strides = [1, 1]} : vector<80x256xf32> to vector<8x256xf32>
    %433 = arith.addf %431, %432 : vector<8x256xf32>
    %434 = vector.extract_strided_slice %418 {offsets = [48, 0], sizes = [8, 256], strides = [1, 1]} : vector<80x256xf32> to vector<8x256xf32>
    %c16_i32_231 = arith.constant 16 : i32
    %435 = tpu.dynamic_rotate %434 by %c16_i32_231 dim 1 : vector<8x256xf32>, i32 -> vector<8x256xf32>
    %436 = arith.addf %433, %435 : vector<8x256xf32>
    %437 = vector.extract_strided_slice %418 {offsets = [56, 0], sizes = [8, 256], strides = [1, 1]} : vector<80x256xf32> to vector<8x256xf32>
    %c32_i32_232 = arith.constant 32 : i32
    %438 = tpu.dynamic_rotate %437 by %c32_i32_232 dim 1 : vector<8x256xf32>, i32 -> vector<8x256xf32>
    %439 = arith.addf %436, %438 : vector<8x256xf32>
    %440 = vector.extract_strided_slice %418 {offsets = [64, 0], sizes = [8, 256], strides = [1, 1]} : vector<80x256xf32> to vector<8x256xf32>
    %c48_i32_233 = arith.constant 48 : i32
    %441 = tpu.dynamic_rotate %440 by %c48_i32_233 dim 1 : vector<8x256xf32>, i32 -> vector<8x256xf32>
    %442 = arith.addf %439, %441 : vector<8x256xf32>
    %443 = vector.extract_strided_slice %418 {offsets = [72, 0], sizes = [8, 256], strides = [1, 1]} : vector<80x256xf32> to vector<8x256xf32>
    %c64_i32_234 = arith.constant 64 : i32
    %444 = tpu.dynamic_rotate %443 by %c64_i32_234 dim 1 : vector<8x256xf32>, i32 -> vector<8x256xf32>
    %445 = arith.addf %442, %444 : vector<8x256xf32>
    %446 = vector.broadcast %417 : vector<8x1xf32> to vector<8x256xf32>
    %447 = arith.addf %445, %446 : vector<8x256xf32>
    %cst_235 = arith.constant 0.000000e+00 : f32
    %448 = vector.broadcast %cst_235 : f32 to vector<8x256xf32>
    %449 = arith.maximumf %447, %448 : vector<8x256xf32>
    %450 = arith.addf %339, %449 : vector<8x256xf32>
    %cst_236 = arith.constant 0.000000e+00 : f32
    %451 = vector.broadcast %cst_236 : f32 to vector<8x256xf32>
    %452 = arith.maximumf %450, %451 : vector<8x256xf32>
    %c0_237 = arith.constant 0 : index
    %c0_238 = arith.constant 0 : index
    %453 = vector.load %arg3[%c0_237, %c0_238] : memref<64x80xbf16, #tpu.memory_space<vmem>>, vector<64x80xbf16>
    %c0_239 = arith.constant 0 : index
    %c0_240 = arith.constant 0 : index
    %454 = vector.load %arg4[%c0_239, %c0_240] : memref<64x1xf32, #tpu.memory_space<vmem>>, vector<64x1xf32>
    %c255_i32_241 = arith.constant 255 : i32
    %455 = tpu.dynamic_rotate %452 by %c255_i32_241 dim 1 : vector<8x256xf32>, i32 -> vector<8x256xf32>
    %c254_i32_242 = arith.constant 254 : i32
    %456 = tpu.dynamic_rotate %452 by %c254_i32_242 dim 1 : vector<8x256xf32>, i32 -> vector<8x256xf32>
    %c253_i32_243 = arith.constant 253 : i32
    %457 = tpu.dynamic_rotate %452 by %c253_i32_243 dim 1 : vector<8x256xf32>, i32 -> vector<8x256xf32>
    %c252_i32_244 = arith.constant 252 : i32
    %458 = tpu.dynamic_rotate %452 by %c252_i32_244 dim 1 : vector<8x256xf32>, i32 -> vector<8x256xf32>
    %c240_i32_245 = arith.constant 240 : i32
    %459 = tpu.dynamic_rotate %452 by %c240_i32_245 dim 1 : vector<8x256xf32>, i32 -> vector<8x256xf32>
    %c224_i32_246 = arith.constant 224 : i32
    %460 = tpu.dynamic_rotate %452 by %c224_i32_246 dim 1 : vector<8x256xf32>, i32 -> vector<8x256xf32>
    %c208_i32_247 = arith.constant 208 : i32
    %461 = tpu.dynamic_rotate %452 by %c208_i32_247 dim 1 : vector<8x256xf32>, i32 -> vector<8x256xf32>
    %c192_i32_248 = arith.constant 192 : i32
    %462 = tpu.dynamic_rotate %452 by %c192_i32_248 dim 1 : vector<8x256xf32>, i32 -> vector<8x256xf32>
    %463 = tpu.concatenate %452, %455, %456, %457, %458, %452, %459, %460, %461, %462 in 0 : vector<8x256xf32>, vector<8x256xf32>, vector<8x256xf32>, vector<8x256xf32>, vector<8x256xf32>, vector<8x256xf32>, vector<8x256xf32>, vector<8x256xf32>, vector<8x256xf32>, vector<8x256xf32> -> vector<80x256xf32>
    %464 = arith.truncf %463 : vector<80x256xf32> to vector<80x256xbf16>
    %cst_249 = arith.constant dense<0.000000e+00> : vector<64x256xf32>
    %465 = tpu.matmul %453, %464, %cst_249 {dimension_numbers = #tpu.dot_dimension_numbers<[1], [0], [0], [1], [0, 0, 1, 1], [], []>} : vector<64x80xbf16>, vector<80x256xbf16>, vector<64x256xf32> -> vector<64x256xf32>
    %466 = vector.broadcast %454 : vector<64x1xf32> to vector<64x256xf32>
    %467 = arith.addf %465, %466 : vector<64x256xf32>
    %cst_250 = arith.constant 0.000000e+00 : f32
    %468 = vector.broadcast %cst_250 : f32 to vector<64x256xf32>
    %469 = arith.maximumf %467, %468 : vector<64x256xf32>
    %c0_251 = arith.constant 0 : index
    %c0_252 = arith.constant 0 : index
    %470 = vector.load %arg2[%c0_251, %c0_252] : memref<64x256xf32, #tpu.memory_space<vmem>>, vector<64x256xf32>
    %471 = arith.mulf %469, %470 : vector<64x256xf32>
    %472 = arith.truncf %471 : vector<64x256xf32> to vector<64x256xbf16>
    %c0_253 = arith.constant 0 : index
    %c0_254 = arith.constant 0 : index
    %473 = vector.load %arg5[%c0_253, %c0_254] : memref<80x64xbf16, #tpu.memory_space<vmem>>, vector<80x64xbf16>
    %c0_255 = arith.constant 0 : index
    %c0_256 = arith.constant 0 : index
    %474 = vector.load %arg6[%c0_255, %c0_256] : memref<8x1xf32, #tpu.memory_space<vmem>>, vector<8x1xf32>
    %cst_257 = arith.constant dense<0.000000e+00> : vector<80x256xf32>
    %475 = tpu.matmul %473, %472, %cst_257 {dimension_numbers = #tpu.dot_dimension_numbers<[1], [0], [0], [1], [0, 0, 1, 1], [], []>} : vector<80x64xbf16>, vector<64x256xbf16>, vector<80x256xf32> -> vector<80x256xf32>
    %476 = vector.extract_strided_slice %475 {offsets = [0, 0], sizes = [8, 256], strides = [1, 1]} : vector<80x256xf32> to vector<8x256xf32>
    %477 = vector.extract_strided_slice %475 {offsets = [8, 0], sizes = [8, 256], strides = [1, 1]} : vector<80x256xf32> to vector<8x256xf32>
    %c1_i32_258 = arith.constant 1 : i32
    %478 = tpu.dynamic_rotate %477 by %c1_i32_258 dim 1 : vector<8x256xf32>, i32 -> vector<8x256xf32>
    %479 = arith.addf %476, %478 : vector<8x256xf32>
    %480 = vector.extract_strided_slice %475 {offsets = [16, 0], sizes = [8, 256], strides = [1, 1]} : vector<80x256xf32> to vector<8x256xf32>
    %c2_i32_259 = arith.constant 2 : i32
    %481 = tpu.dynamic_rotate %480 by %c2_i32_259 dim 1 : vector<8x256xf32>, i32 -> vector<8x256xf32>
    %482 = arith.addf %479, %481 : vector<8x256xf32>
    %483 = vector.extract_strided_slice %475 {offsets = [24, 0], sizes = [8, 256], strides = [1, 1]} : vector<80x256xf32> to vector<8x256xf32>
    %c3_i32_260 = arith.constant 3 : i32
    %484 = tpu.dynamic_rotate %483 by %c3_i32_260 dim 1 : vector<8x256xf32>, i32 -> vector<8x256xf32>
    %485 = arith.addf %482, %484 : vector<8x256xf32>
    %486 = vector.extract_strided_slice %475 {offsets = [32, 0], sizes = [8, 256], strides = [1, 1]} : vector<80x256xf32> to vector<8x256xf32>
    %c4_i32_261 = arith.constant 4 : i32
    %487 = tpu.dynamic_rotate %486 by %c4_i32_261 dim 1 : vector<8x256xf32>, i32 -> vector<8x256xf32>
    %488 = arith.addf %485, %487 : vector<8x256xf32>
    %489 = vector.extract_strided_slice %475 {offsets = [40, 0], sizes = [8, 256], strides = [1, 1]} : vector<80x256xf32> to vector<8x256xf32>
    %490 = arith.addf %488, %489 : vector<8x256xf32>
    %491 = vector.extract_strided_slice %475 {offsets = [48, 0], sizes = [8, 256], strides = [1, 1]} : vector<80x256xf32> to vector<8x256xf32>
    %c16_i32_262 = arith.constant 16 : i32
    %492 = tpu.dynamic_rotate %491 by %c16_i32_262 dim 1 : vector<8x256xf32>, i32 -> vector<8x256xf32>
    %493 = arith.addf %490, %492 : vector<8x256xf32>
    %494 = vector.extract_strided_slice %475 {offsets = [56, 0], sizes = [8, 256], strides = [1, 1]} : vector<80x256xf32> to vector<8x256xf32>
    %c32_i32_263 = arith.constant 32 : i32
    %495 = tpu.dynamic_rotate %494 by %c32_i32_263 dim 1 : vector<8x256xf32>, i32 -> vector<8x256xf32>
    %496 = arith.addf %493, %495 : vector<8x256xf32>
    %497 = vector.extract_strided_slice %475 {offsets = [64, 0], sizes = [8, 256], strides = [1, 1]} : vector<80x256xf32> to vector<8x256xf32>
    %c48_i32_264 = arith.constant 48 : i32
    %498 = tpu.dynamic_rotate %497 by %c48_i32_264 dim 1 : vector<8x256xf32>, i32 -> vector<8x256xf32>
    %499 = arith.addf %496, %498 : vector<8x256xf32>
    %500 = vector.extract_strided_slice %475 {offsets = [72, 0], sizes = [8, 256], strides = [1, 1]} : vector<80x256xf32> to vector<8x256xf32>
    %c64_i32_265 = arith.constant 64 : i32
    %501 = tpu.dynamic_rotate %500 by %c64_i32_265 dim 1 : vector<8x256xf32>, i32 -> vector<8x256xf32>
    %502 = arith.addf %499, %501 : vector<8x256xf32>
    %503 = vector.broadcast %474 : vector<8x1xf32> to vector<8x256xf32>
    %504 = arith.addf %502, %503 : vector<8x256xf32>
    %c4 = arith.constant 4 : index
    %c0_266 = arith.constant 0 : index
    %c0_267 = arith.constant 0 : index
    %505 = vector.load %arg7[%c4, %c0_266, %c0_267] : memref<10x64x80xbf16, #tpu.memory_space<vmem>>, vector<1x64x80xbf16>
    %506 = vector.shape_cast %505 : vector<1x64x80xbf16> to vector<64x80xbf16>
    %c4_268 = arith.constant 4 : index
    %c0_269 = arith.constant 0 : index
    %c0_270 = arith.constant 0 : index
    %507 = vector.load %arg8[%c4_268, %c0_269, %c0_270] : memref<10x64x1xf32, #tpu.memory_space<vmem>>, vector<1x64x1xf32>
    %508 = vector.shape_cast %507 : vector<1x64x1xf32> to vector<64x1xf32>
    %c255_i32_271 = arith.constant 255 : i32
    %509 = tpu.dynamic_rotate %504 by %c255_i32_271 dim 1 : vector<8x256xf32>, i32 -> vector<8x256xf32>
    %c254_i32_272 = arith.constant 254 : i32
    %510 = tpu.dynamic_rotate %504 by %c254_i32_272 dim 1 : vector<8x256xf32>, i32 -> vector<8x256xf32>
    %c253_i32_273 = arith.constant 253 : i32
    %511 = tpu.dynamic_rotate %504 by %c253_i32_273 dim 1 : vector<8x256xf32>, i32 -> vector<8x256xf32>
    %c252_i32_274 = arith.constant 252 : i32
    %512 = tpu.dynamic_rotate %504 by %c252_i32_274 dim 1 : vector<8x256xf32>, i32 -> vector<8x256xf32>
    %c240_i32_275 = arith.constant 240 : i32
    %513 = tpu.dynamic_rotate %504 by %c240_i32_275 dim 1 : vector<8x256xf32>, i32 -> vector<8x256xf32>
    %c224_i32_276 = arith.constant 224 : i32
    %514 = tpu.dynamic_rotate %504 by %c224_i32_276 dim 1 : vector<8x256xf32>, i32 -> vector<8x256xf32>
    %c208_i32_277 = arith.constant 208 : i32
    %515 = tpu.dynamic_rotate %504 by %c208_i32_277 dim 1 : vector<8x256xf32>, i32 -> vector<8x256xf32>
    %c192_i32_278 = arith.constant 192 : i32
    %516 = tpu.dynamic_rotate %504 by %c192_i32_278 dim 1 : vector<8x256xf32>, i32 -> vector<8x256xf32>
    %517 = tpu.concatenate %504, %509, %510, %511, %512, %504, %513, %514, %515, %516 in 0 : vector<8x256xf32>, vector<8x256xf32>, vector<8x256xf32>, vector<8x256xf32>, vector<8x256xf32>, vector<8x256xf32>, vector<8x256xf32>, vector<8x256xf32>, vector<8x256xf32>, vector<8x256xf32> -> vector<80x256xf32>
    %518 = arith.truncf %517 : vector<80x256xf32> to vector<80x256xbf16>
    %cst_279 = arith.constant dense<0.000000e+00> : vector<64x256xf32>
    %519 = tpu.matmul %506, %518, %cst_279 {dimension_numbers = #tpu.dot_dimension_numbers<[1], [0], [0], [1], [0, 0, 1, 1], [], []>} : vector<64x80xbf16>, vector<80x256xbf16>, vector<64x256xf32> -> vector<64x256xf32>
    %520 = vector.broadcast %508 : vector<64x1xf32> to vector<64x256xf32>
    %521 = arith.addf %519, %520 : vector<64x256xf32>
    %cst_280 = arith.constant 0.000000e+00 : f32
    %522 = vector.broadcast %cst_280 : f32 to vector<64x256xf32>
    %523 = arith.maximumf %521, %522 : vector<64x256xf32>
    %c0_281 = arith.constant 0 : index
    %c0_282 = arith.constant 0 : index
    %524 = vector.load %arg2[%c0_281, %c0_282] : memref<64x256xf32, #tpu.memory_space<vmem>>, vector<64x256xf32>
    %525 = arith.mulf %523, %524 : vector<64x256xf32>
    %526 = arith.truncf %525 : vector<64x256xf32> to vector<64x256xbf16>
    %c4_283 = arith.constant 4 : index
    %c0_284 = arith.constant 0 : index
    %c0_285 = arith.constant 0 : index
    %527 = vector.load %arg9[%c4_283, %c0_284, %c0_285] : memref<10x80x64xbf16, #tpu.memory_space<vmem>>, vector<1x80x64xbf16>
    %528 = vector.shape_cast %527 : vector<1x80x64xbf16> to vector<80x64xbf16>
    %c4_286 = arith.constant 4 : index
    %c0_287 = arith.constant 0 : index
    %c0_288 = arith.constant 0 : index
    %529 = vector.load %arg10[%c4_286, %c0_287, %c0_288] : memref<10x8x1xf32, #tpu.memory_space<vmem>>, vector<1x8x1xf32>
    %530 = vector.shape_cast %529 : vector<1x8x1xf32> to vector<8x1xf32>
    %cst_289 = arith.constant dense<0.000000e+00> : vector<80x256xf32>
    %531 = tpu.matmul %528, %526, %cst_289 {dimension_numbers = #tpu.dot_dimension_numbers<[1], [0], [0], [1], [0, 0, 1, 1], [], []>} : vector<80x64xbf16>, vector<64x256xbf16>, vector<80x256xf32> -> vector<80x256xf32>
    %532 = vector.extract_strided_slice %531 {offsets = [0, 0], sizes = [8, 256], strides = [1, 1]} : vector<80x256xf32> to vector<8x256xf32>
    %533 = vector.extract_strided_slice %531 {offsets = [8, 0], sizes = [8, 256], strides = [1, 1]} : vector<80x256xf32> to vector<8x256xf32>
    %c1_i32_290 = arith.constant 1 : i32
    %534 = tpu.dynamic_rotate %533 by %c1_i32_290 dim 1 : vector<8x256xf32>, i32 -> vector<8x256xf32>
    %535 = arith.addf %532, %534 : vector<8x256xf32>
    %536 = vector.extract_strided_slice %531 {offsets = [16, 0], sizes = [8, 256], strides = [1, 1]} : vector<80x256xf32> to vector<8x256xf32>
    %c2_i32_291 = arith.constant 2 : i32
    %537 = tpu.dynamic_rotate %536 by %c2_i32_291 dim 1 : vector<8x256xf32>, i32 -> vector<8x256xf32>
    %538 = arith.addf %535, %537 : vector<8x256xf32>
    %539 = vector.extract_strided_slice %531 {offsets = [24, 0], sizes = [8, 256], strides = [1, 1]} : vector<80x256xf32> to vector<8x256xf32>
    %c3_i32_292 = arith.constant 3 : i32
    %540 = tpu.dynamic_rotate %539 by %c3_i32_292 dim 1 : vector<8x256xf32>, i32 -> vector<8x256xf32>
    %541 = arith.addf %538, %540 : vector<8x256xf32>
    %542 = vector.extract_strided_slice %531 {offsets = [32, 0], sizes = [8, 256], strides = [1, 1]} : vector<80x256xf32> to vector<8x256xf32>
    %c4_i32_293 = arith.constant 4 : i32
    %543 = tpu.dynamic_rotate %542 by %c4_i32_293 dim 1 : vector<8x256xf32>, i32 -> vector<8x256xf32>
    %544 = arith.addf %541, %543 : vector<8x256xf32>
    %545 = vector.extract_strided_slice %531 {offsets = [40, 0], sizes = [8, 256], strides = [1, 1]} : vector<80x256xf32> to vector<8x256xf32>
    %546 = arith.addf %544, %545 : vector<8x256xf32>
    %547 = vector.extract_strided_slice %531 {offsets = [48, 0], sizes = [8, 256], strides = [1, 1]} : vector<80x256xf32> to vector<8x256xf32>
    %c16_i32_294 = arith.constant 16 : i32
    %548 = tpu.dynamic_rotate %547 by %c16_i32_294 dim 1 : vector<8x256xf32>, i32 -> vector<8x256xf32>
    %549 = arith.addf %546, %548 : vector<8x256xf32>
    %550 = vector.extract_strided_slice %531 {offsets = [56, 0], sizes = [8, 256], strides = [1, 1]} : vector<80x256xf32> to vector<8x256xf32>
    %c32_i32_295 = arith.constant 32 : i32
    %551 = tpu.dynamic_rotate %550 by %c32_i32_295 dim 1 : vector<8x256xf32>, i32 -> vector<8x256xf32>
    %552 = arith.addf %549, %551 : vector<8x256xf32>
    %553 = vector.extract_strided_slice %531 {offsets = [64, 0], sizes = [8, 256], strides = [1, 1]} : vector<80x256xf32> to vector<8x256xf32>
    %c48_i32_296 = arith.constant 48 : i32
    %554 = tpu.dynamic_rotate %553 by %c48_i32_296 dim 1 : vector<8x256xf32>, i32 -> vector<8x256xf32>
    %555 = arith.addf %552, %554 : vector<8x256xf32>
    %556 = vector.extract_strided_slice %531 {offsets = [72, 0], sizes = [8, 256], strides = [1, 1]} : vector<80x256xf32> to vector<8x256xf32>
    %c64_i32_297 = arith.constant 64 : i32
    %557 = tpu.dynamic_rotate %556 by %c64_i32_297 dim 1 : vector<8x256xf32>, i32 -> vector<8x256xf32>
    %558 = arith.addf %555, %557 : vector<8x256xf32>
    %559 = vector.broadcast %530 : vector<8x1xf32> to vector<8x256xf32>
    %560 = arith.addf %558, %559 : vector<8x256xf32>
    %cst_298 = arith.constant 0.000000e+00 : f32
    %561 = vector.broadcast %cst_298 : f32 to vector<8x256xf32>
    %562 = arith.maximumf %560, %561 : vector<8x256xf32>
    %563 = arith.addf %452, %562 : vector<8x256xf32>
    %cst_299 = arith.constant 0.000000e+00 : f32
    %564 = vector.broadcast %cst_299 : f32 to vector<8x256xf32>
    %565 = arith.maximumf %563, %564 : vector<8x256xf32>
    %c0_300 = arith.constant 0 : index
    %c0_301 = arith.constant 0 : index
    %566 = vector.load %arg3[%c0_300, %c0_301] : memref<64x80xbf16, #tpu.memory_space<vmem>>, vector<64x80xbf16>
    %c0_302 = arith.constant 0 : index
    %c0_303 = arith.constant 0 : index
    %567 = vector.load %arg4[%c0_302, %c0_303] : memref<64x1xf32, #tpu.memory_space<vmem>>, vector<64x1xf32>
    %c255_i32_304 = arith.constant 255 : i32
    %568 = tpu.dynamic_rotate %565 by %c255_i32_304 dim 1 : vector<8x256xf32>, i32 -> vector<8x256xf32>
    %c254_i32_305 = arith.constant 254 : i32
    %569 = tpu.dynamic_rotate %565 by %c254_i32_305 dim 1 : vector<8x256xf32>, i32 -> vector<8x256xf32>
    %c253_i32_306 = arith.constant 253 : i32
    %570 = tpu.dynamic_rotate %565 by %c253_i32_306 dim 1 : vector<8x256xf32>, i32 -> vector<8x256xf32>
    %c252_i32_307 = arith.constant 252 : i32
    %571 = tpu.dynamic_rotate %565 by %c252_i32_307 dim 1 : vector<8x256xf32>, i32 -> vector<8x256xf32>
    %c240_i32_308 = arith.constant 240 : i32
    %572 = tpu.dynamic_rotate %565 by %c240_i32_308 dim 1 : vector<8x256xf32>, i32 -> vector<8x256xf32>
    %c224_i32_309 = arith.constant 224 : i32
    %573 = tpu.dynamic_rotate %565 by %c224_i32_309 dim 1 : vector<8x256xf32>, i32 -> vector<8x256xf32>
    %c208_i32_310 = arith.constant 208 : i32
    %574 = tpu.dynamic_rotate %565 by %c208_i32_310 dim 1 : vector<8x256xf32>, i32 -> vector<8x256xf32>
    %c192_i32_311 = arith.constant 192 : i32
    %575 = tpu.dynamic_rotate %565 by %c192_i32_311 dim 1 : vector<8x256xf32>, i32 -> vector<8x256xf32>
    %576 = tpu.concatenate %565, %568, %569, %570, %571, %565, %572, %573, %574, %575 in 0 : vector<8x256xf32>, vector<8x256xf32>, vector<8x256xf32>, vector<8x256xf32>, vector<8x256xf32>, vector<8x256xf32>, vector<8x256xf32>, vector<8x256xf32>, vector<8x256xf32>, vector<8x256xf32> -> vector<80x256xf32>
    %577 = arith.truncf %576 : vector<80x256xf32> to vector<80x256xbf16>
    %cst_312 = arith.constant dense<0.000000e+00> : vector<64x256xf32>
    %578 = tpu.matmul %566, %577, %cst_312 {dimension_numbers = #tpu.dot_dimension_numbers<[1], [0], [0], [1], [0, 0, 1, 1], [], []>} : vector<64x80xbf16>, vector<80x256xbf16>, vector<64x256xf32> -> vector<64x256xf32>
    %579 = vector.broadcast %567 : vector<64x1xf32> to vector<64x256xf32>
    %580 = arith.addf %578, %579 : vector<64x256xf32>
    %cst_313 = arith.constant 0.000000e+00 : f32
    %581 = vector.broadcast %cst_313 : f32 to vector<64x256xf32>
    %582 = arith.maximumf %580, %581 : vector<64x256xf32>
    %c0_314 = arith.constant 0 : index
    %c0_315 = arith.constant 0 : index
    %583 = vector.load %arg2[%c0_314, %c0_315] : memref<64x256xf32, #tpu.memory_space<vmem>>, vector<64x256xf32>
    %584 = arith.mulf %582, %583 : vector<64x256xf32>
    %585 = arith.truncf %584 : vector<64x256xf32> to vector<64x256xbf16>
    %c0_316 = arith.constant 0 : index
    %c0_317 = arith.constant 0 : index
    %586 = vector.load %arg5[%c0_316, %c0_317] : memref<80x64xbf16, #tpu.memory_space<vmem>>, vector<80x64xbf16>
    %c0_318 = arith.constant 0 : index
    %c0_319 = arith.constant 0 : index
    %587 = vector.load %arg6[%c0_318, %c0_319] : memref<8x1xf32, #tpu.memory_space<vmem>>, vector<8x1xf32>
    %cst_320 = arith.constant dense<0.000000e+00> : vector<80x256xf32>
    %588 = tpu.matmul %586, %585, %cst_320 {dimension_numbers = #tpu.dot_dimension_numbers<[1], [0], [0], [1], [0, 0, 1, 1], [], []>} : vector<80x64xbf16>, vector<64x256xbf16>, vector<80x256xf32> -> vector<80x256xf32>
    %589 = vector.extract_strided_slice %588 {offsets = [0, 0], sizes = [8, 256], strides = [1, 1]} : vector<80x256xf32> to vector<8x256xf32>
    %590 = vector.extract_strided_slice %588 {offsets = [8, 0], sizes = [8, 256], strides = [1, 1]} : vector<80x256xf32> to vector<8x256xf32>
    %c1_i32_321 = arith.constant 1 : i32
    %591 = tpu.dynamic_rotate %590 by %c1_i32_321 dim 1 : vector<8x256xf32>, i32 -> vector<8x256xf32>
    %592 = arith.addf %589, %591 : vector<8x256xf32>
    %593 = vector.extract_strided_slice %588 {offsets = [16, 0], sizes = [8, 256], strides = [1, 1]} : vector<80x256xf32> to vector<8x256xf32>
    %c2_i32_322 = arith.constant 2 : i32
    %594 = tpu.dynamic_rotate %593 by %c2_i32_322 dim 1 : vector<8x256xf32>, i32 -> vector<8x256xf32>
    %595 = arith.addf %592, %594 : vector<8x256xf32>
    %596 = vector.extract_strided_slice %588 {offsets = [24, 0], sizes = [8, 256], strides = [1, 1]} : vector<80x256xf32> to vector<8x256xf32>
    %c3_i32_323 = arith.constant 3 : i32
    %597 = tpu.dynamic_rotate %596 by %c3_i32_323 dim 1 : vector<8x256xf32>, i32 -> vector<8x256xf32>
    %598 = arith.addf %595, %597 : vector<8x256xf32>
    %599 = vector.extract_strided_slice %588 {offsets = [32, 0], sizes = [8, 256], strides = [1, 1]} : vector<80x256xf32> to vector<8x256xf32>
    %c4_i32_324 = arith.constant 4 : i32
    %600 = tpu.dynamic_rotate %599 by %c4_i32_324 dim 1 : vector<8x256xf32>, i32 -> vector<8x256xf32>
    %601 = arith.addf %598, %600 : vector<8x256xf32>
    %602 = vector.extract_strided_slice %588 {offsets = [40, 0], sizes = [8, 256], strides = [1, 1]} : vector<80x256xf32> to vector<8x256xf32>
    %603 = arith.addf %601, %602 : vector<8x256xf32>
    %604 = vector.extract_strided_slice %588 {offsets = [48, 0], sizes = [8, 256], strides = [1, 1]} : vector<80x256xf32> to vector<8x256xf32>
    %c16_i32_325 = arith.constant 16 : i32
    %605 = tpu.dynamic_rotate %604 by %c16_i32_325 dim 1 : vector<8x256xf32>, i32 -> vector<8x256xf32>
    %606 = arith.addf %603, %605 : vector<8x256xf32>
    %607 = vector.extract_strided_slice %588 {offsets = [56, 0], sizes = [8, 256], strides = [1, 1]} : vector<80x256xf32> to vector<8x256xf32>
    %c32_i32_326 = arith.constant 32 : i32
    %608 = tpu.dynamic_rotate %607 by %c32_i32_326 dim 1 : vector<8x256xf32>, i32 -> vector<8x256xf32>
    %609 = arith.addf %606, %608 : vector<8x256xf32>
    %610 = vector.extract_strided_slice %588 {offsets = [64, 0], sizes = [8, 256], strides = [1, 1]} : vector<80x256xf32> to vector<8x256xf32>
    %c48_i32_327 = arith.constant 48 : i32
    %611 = tpu.dynamic_rotate %610 by %c48_i32_327 dim 1 : vector<8x256xf32>, i32 -> vector<8x256xf32>
    %612 = arith.addf %609, %611 : vector<8x256xf32>
    %613 = vector.extract_strided_slice %588 {offsets = [72, 0], sizes = [8, 256], strides = [1, 1]} : vector<80x256xf32> to vector<8x256xf32>
    %c64_i32_328 = arith.constant 64 : i32
    %614 = tpu.dynamic_rotate %613 by %c64_i32_328 dim 1 : vector<8x256xf32>, i32 -> vector<8x256xf32>
    %615 = arith.addf %612, %614 : vector<8x256xf32>
    %616 = vector.broadcast %587 : vector<8x1xf32> to vector<8x256xf32>
    %617 = arith.addf %615, %616 : vector<8x256xf32>
    %c5 = arith.constant 5 : index
    %c0_329 = arith.constant 0 : index
    %c0_330 = arith.constant 0 : index
    %618 = vector.load %arg7[%c5, %c0_329, %c0_330] : memref<10x64x80xbf16, #tpu.memory_space<vmem>>, vector<1x64x80xbf16>
    %619 = vector.shape_cast %618 : vector<1x64x80xbf16> to vector<64x80xbf16>
    %c5_331 = arith.constant 5 : index
    %c0_332 = arith.constant 0 : index
    %c0_333 = arith.constant 0 : index
    %620 = vector.load %arg8[%c5_331, %c0_332, %c0_333] : memref<10x64x1xf32, #tpu.memory_space<vmem>>, vector<1x64x1xf32>
    %621 = vector.shape_cast %620 : vector<1x64x1xf32> to vector<64x1xf32>
    %c255_i32_334 = arith.constant 255 : i32
    %622 = tpu.dynamic_rotate %617 by %c255_i32_334 dim 1 : vector<8x256xf32>, i32 -> vector<8x256xf32>
    %c254_i32_335 = arith.constant 254 : i32
    %623 = tpu.dynamic_rotate %617 by %c254_i32_335 dim 1 : vector<8x256xf32>, i32 -> vector<8x256xf32>
    %c253_i32_336 = arith.constant 253 : i32
    %624 = tpu.dynamic_rotate %617 by %c253_i32_336 dim 1 : vector<8x256xf32>, i32 -> vector<8x256xf32>
    %c252_i32_337 = arith.constant 252 : i32
    %625 = tpu.dynamic_rotate %617 by %c252_i32_337 dim 1 : vector<8x256xf32>, i32 -> vector<8x256xf32>
    %c240_i32_338 = arith.constant 240 : i32
    %626 = tpu.dynamic_rotate %617 by %c240_i32_338 dim 1 : vector<8x256xf32>, i32 -> vector<8x256xf32>
    %c224_i32_339 = arith.constant 224 : i32
    %627 = tpu.dynamic_rotate %617 by %c224_i32_339 dim 1 : vector<8x256xf32>, i32 -> vector<8x256xf32>
    %c208_i32_340 = arith.constant 208 : i32
    %628 = tpu.dynamic_rotate %617 by %c208_i32_340 dim 1 : vector<8x256xf32>, i32 -> vector<8x256xf32>
    %c192_i32_341 = arith.constant 192 : i32
    %629 = tpu.dynamic_rotate %617 by %c192_i32_341 dim 1 : vector<8x256xf32>, i32 -> vector<8x256xf32>
    %630 = tpu.concatenate %617, %622, %623, %624, %625, %617, %626, %627, %628, %629 in 0 : vector<8x256xf32>, vector<8x256xf32>, vector<8x256xf32>, vector<8x256xf32>, vector<8x256xf32>, vector<8x256xf32>, vector<8x256xf32>, vector<8x256xf32>, vector<8x256xf32>, vector<8x256xf32> -> vector<80x256xf32>
    %631 = arith.truncf %630 : vector<80x256xf32> to vector<80x256xbf16>
    %cst_342 = arith.constant dense<0.000000e+00> : vector<64x256xf32>
    %632 = tpu.matmul %619, %631, %cst_342 {dimension_numbers = #tpu.dot_dimension_numbers<[1], [0], [0], [1], [0, 0, 1, 1], [], []>} : vector<64x80xbf16>, vector<80x256xbf16>, vector<64x256xf32> -> vector<64x256xf32>
    %633 = vector.broadcast %621 : vector<64x1xf32> to vector<64x256xf32>
    %634 = arith.addf %632, %633 : vector<64x256xf32>
    %cst_343 = arith.constant 0.000000e+00 : f32
    %635 = vector.broadcast %cst_343 : f32 to vector<64x256xf32>
    %636 = arith.maximumf %634, %635 : vector<64x256xf32>
    %c0_344 = arith.constant 0 : index
    %c0_345 = arith.constant 0 : index
    %637 = vector.load %arg2[%c0_344, %c0_345] : memref<64x256xf32, #tpu.memory_space<vmem>>, vector<64x256xf32>
    %638 = arith.mulf %636, %637 : vector<64x256xf32>
    %639 = arith.truncf %638 : vector<64x256xf32> to vector<64x256xbf16>
    %c5_346 = arith.constant 5 : index
    %c0_347 = arith.constant 0 : index
    %c0_348 = arith.constant 0 : index
    %640 = vector.load %arg9[%c5_346, %c0_347, %c0_348] : memref<10x80x64xbf16, #tpu.memory_space<vmem>>, vector<1x80x64xbf16>
    %641 = vector.shape_cast %640 : vector<1x80x64xbf16> to vector<80x64xbf16>
    %c5_349 = arith.constant 5 : index
    %c0_350 = arith.constant 0 : index
    %c0_351 = arith.constant 0 : index
    %642 = vector.load %arg10[%c5_349, %c0_350, %c0_351] : memref<10x8x1xf32, #tpu.memory_space<vmem>>, vector<1x8x1xf32>
    %643 = vector.shape_cast %642 : vector<1x8x1xf32> to vector<8x1xf32>
    %cst_352 = arith.constant dense<0.000000e+00> : vector<80x256xf32>
    %644 = tpu.matmul %641, %639, %cst_352 {dimension_numbers = #tpu.dot_dimension_numbers<[1], [0], [0], [1], [0, 0, 1, 1], [], []>} : vector<80x64xbf16>, vector<64x256xbf16>, vector<80x256xf32> -> vector<80x256xf32>
    %645 = vector.extract_strided_slice %644 {offsets = [0, 0], sizes = [8, 256], strides = [1, 1]} : vector<80x256xf32> to vector<8x256xf32>
    %646 = vector.extract_strided_slice %644 {offsets = [8, 0], sizes = [8, 256], strides = [1, 1]} : vector<80x256xf32> to vector<8x256xf32>
    %c1_i32_353 = arith.constant 1 : i32
    %647 = tpu.dynamic_rotate %646 by %c1_i32_353 dim 1 : vector<8x256xf32>, i32 -> vector<8x256xf32>
    %648 = arith.addf %645, %647 : vector<8x256xf32>
    %649 = vector.extract_strided_slice %644 {offsets = [16, 0], sizes = [8, 256], strides = [1, 1]} : vector<80x256xf32> to vector<8x256xf32>
    %c2_i32_354 = arith.constant 2 : i32
    %650 = tpu.dynamic_rotate %649 by %c2_i32_354 dim 1 : vector<8x256xf32>, i32 -> vector<8x256xf32>
    %651 = arith.addf %648, %650 : vector<8x256xf32>
    %652 = vector.extract_strided_slice %644 {offsets = [24, 0], sizes = [8, 256], strides = [1, 1]} : vector<80x256xf32> to vector<8x256xf32>
    %c3_i32_355 = arith.constant 3 : i32
    %653 = tpu.dynamic_rotate %652 by %c3_i32_355 dim 1 : vector<8x256xf32>, i32 -> vector<8x256xf32>
    %654 = arith.addf %651, %653 : vector<8x256xf32>
    %655 = vector.extract_strided_slice %644 {offsets = [32, 0], sizes = [8, 256], strides = [1, 1]} : vector<80x256xf32> to vector<8x256xf32>
    %c4_i32_356 = arith.constant 4 : i32
    %656 = tpu.dynamic_rotate %655 by %c4_i32_356 dim 1 : vector<8x256xf32>, i32 -> vector<8x256xf32>
    %657 = arith.addf %654, %656 : vector<8x256xf32>
    %658 = vector.extract_strided_slice %644 {offsets = [40, 0], sizes = [8, 256], strides = [1, 1]} : vector<80x256xf32> to vector<8x256xf32>
    %659 = arith.addf %657, %658 : vector<8x256xf32>
    %660 = vector.extract_strided_slice %644 {offsets = [48, 0], sizes = [8, 256], strides = [1, 1]} : vector<80x256xf32> to vector<8x256xf32>
    %c16_i32_357 = arith.constant 16 : i32
    %661 = tpu.dynamic_rotate %660 by %c16_i32_357 dim 1 : vector<8x256xf32>, i32 -> vector<8x256xf32>
    %662 = arith.addf %659, %661 : vector<8x256xf32>
    %663 = vector.extract_strided_slice %644 {offsets = [56, 0], sizes = [8, 256], strides = [1, 1]} : vector<80x256xf32> to vector<8x256xf32>
    %c32_i32_358 = arith.constant 32 : i32
    %664 = tpu.dynamic_rotate %663 by %c32_i32_358 dim 1 : vector<8x256xf32>, i32 -> vector<8x256xf32>
    %665 = arith.addf %662, %664 : vector<8x256xf32>
    %666 = vector.extract_strided_slice %644 {offsets = [64, 0], sizes = [8, 256], strides = [1, 1]} : vector<80x256xf32> to vector<8x256xf32>
    %c48_i32_359 = arith.constant 48 : i32
    %667 = tpu.dynamic_rotate %666 by %c48_i32_359 dim 1 : vector<8x256xf32>, i32 -> vector<8x256xf32>
    %668 = arith.addf %665, %667 : vector<8x256xf32>
    %669 = vector.extract_strided_slice %644 {offsets = [72, 0], sizes = [8, 256], strides = [1, 1]} : vector<80x256xf32> to vector<8x256xf32>
    %c64_i32_360 = arith.constant 64 : i32
    %670 = tpu.dynamic_rotate %669 by %c64_i32_360 dim 1 : vector<8x256xf32>, i32 -> vector<8x256xf32>
    %671 = arith.addf %668, %670 : vector<8x256xf32>
    %672 = vector.broadcast %643 : vector<8x1xf32> to vector<8x256xf32>
    %673 = arith.addf %671, %672 : vector<8x256xf32>
    %cst_361 = arith.constant 0.000000e+00 : f32
    %674 = vector.broadcast %cst_361 : f32 to vector<8x256xf32>
    %675 = arith.maximumf %673, %674 : vector<8x256xf32>
    %676 = arith.addf %565, %675 : vector<8x256xf32>
    %cst_362 = arith.constant 0.000000e+00 : f32
    %677 = vector.broadcast %cst_362 : f32 to vector<8x256xf32>
    %678 = arith.maximumf %676, %677 : vector<8x256xf32>
    %c0_363 = arith.constant 0 : index
    %c0_364 = arith.constant 0 : index
    %679 = vector.load %arg3[%c0_363, %c0_364] : memref<64x80xbf16, #tpu.memory_space<vmem>>, vector<64x80xbf16>
    %c0_365 = arith.constant 0 : index
    %c0_366 = arith.constant 0 : index
    %680 = vector.load %arg4[%c0_365, %c0_366] : memref<64x1xf32, #tpu.memory_space<vmem>>, vector<64x1xf32>
    %c255_i32_367 = arith.constant 255 : i32
    %681 = tpu.dynamic_rotate %678 by %c255_i32_367 dim 1 : vector<8x256xf32>, i32 -> vector<8x256xf32>
    %c254_i32_368 = arith.constant 254 : i32
    %682 = tpu.dynamic_rotate %678 by %c254_i32_368 dim 1 : vector<8x256xf32>, i32 -> vector<8x256xf32>
    %c253_i32_369 = arith.constant 253 : i32
    %683 = tpu.dynamic_rotate %678 by %c253_i32_369 dim 1 : vector<8x256xf32>, i32 -> vector<8x256xf32>
    %c252_i32_370 = arith.constant 252 : i32
    %684 = tpu.dynamic_rotate %678 by %c252_i32_370 dim 1 : vector<8x256xf32>, i32 -> vector<8x256xf32>
    %c240_i32_371 = arith.constant 240 : i32
    %685 = tpu.dynamic_rotate %678 by %c240_i32_371 dim 1 : vector<8x256xf32>, i32 -> vector<8x256xf32>
    %c224_i32_372 = arith.constant 224 : i32
    %686 = tpu.dynamic_rotate %678 by %c224_i32_372 dim 1 : vector<8x256xf32>, i32 -> vector<8x256xf32>
    %c208_i32_373 = arith.constant 208 : i32
    %687 = tpu.dynamic_rotate %678 by %c208_i32_373 dim 1 : vector<8x256xf32>, i32 -> vector<8x256xf32>
    %c192_i32_374 = arith.constant 192 : i32
    %688 = tpu.dynamic_rotate %678 by %c192_i32_374 dim 1 : vector<8x256xf32>, i32 -> vector<8x256xf32>
    %689 = tpu.concatenate %678, %681, %682, %683, %684, %678, %685, %686, %687, %688 in 0 : vector<8x256xf32>, vector<8x256xf32>, vector<8x256xf32>, vector<8x256xf32>, vector<8x256xf32>, vector<8x256xf32>, vector<8x256xf32>, vector<8x256xf32>, vector<8x256xf32>, vector<8x256xf32> -> vector<80x256xf32>
    %690 = arith.truncf %689 : vector<80x256xf32> to vector<80x256xbf16>
    %cst_375 = arith.constant dense<0.000000e+00> : vector<64x256xf32>
    %691 = tpu.matmul %679, %690, %cst_375 {dimension_numbers = #tpu.dot_dimension_numbers<[1], [0], [0], [1], [0, 0, 1, 1], [], []>} : vector<64x80xbf16>, vector<80x256xbf16>, vector<64x256xf32> -> vector<64x256xf32>
    %692 = vector.broadcast %680 : vector<64x1xf32> to vector<64x256xf32>
    %693 = arith.addf %691, %692 : vector<64x256xf32>
    %cst_376 = arith.constant 0.000000e+00 : f32
    %694 = vector.broadcast %cst_376 : f32 to vector<64x256xf32>
    %695 = arith.maximumf %693, %694 : vector<64x256xf32>
    %c0_377 = arith.constant 0 : index
    %c0_378 = arith.constant 0 : index
    %696 = vector.load %arg2[%c0_377, %c0_378] : memref<64x256xf32, #tpu.memory_space<vmem>>, vector<64x256xf32>
    %697 = arith.mulf %695, %696 : vector<64x256xf32>
    %698 = arith.truncf %697 : vector<64x256xf32> to vector<64x256xbf16>
    %c0_379 = arith.constant 0 : index
    %c0_380 = arith.constant 0 : index
    %699 = vector.load %arg5[%c0_379, %c0_380] : memref<80x64xbf16, #tpu.memory_space<vmem>>, vector<80x64xbf16>
    %c0_381 = arith.constant 0 : index
    %c0_382 = arith.constant 0 : index
    %700 = vector.load %arg6[%c0_381, %c0_382] : memref<8x1xf32, #tpu.memory_space<vmem>>, vector<8x1xf32>
    %cst_383 = arith.constant dense<0.000000e+00> : vector<80x256xf32>
    %701 = tpu.matmul %699, %698, %cst_383 {dimension_numbers = #tpu.dot_dimension_numbers<[1], [0], [0], [1], [0, 0, 1, 1], [], []>} : vector<80x64xbf16>, vector<64x256xbf16>, vector<80x256xf32> -> vector<80x256xf32>
    %702 = vector.extract_strided_slice %701 {offsets = [0, 0], sizes = [8, 256], strides = [1, 1]} : vector<80x256xf32> to vector<8x256xf32>
    %703 = vector.extract_strided_slice %701 {offsets = [8, 0], sizes = [8, 256], strides = [1, 1]} : vector<80x256xf32> to vector<8x256xf32>
    %c1_i32_384 = arith.constant 1 : i32
    %704 = tpu.dynamic_rotate %703 by %c1_i32_384 dim 1 : vector<8x256xf32>, i32 -> vector<8x256xf32>
    %705 = arith.addf %702, %704 : vector<8x256xf32>
    %706 = vector.extract_strided_slice %701 {offsets = [16, 0], sizes = [8, 256], strides = [1, 1]} : vector<80x256xf32> to vector<8x256xf32>
    %c2_i32_385 = arith.constant 2 : i32
    %707 = tpu.dynamic_rotate %706 by %c2_i32_385 dim 1 : vector<8x256xf32>, i32 -> vector<8x256xf32>
    %708 = arith.addf %705, %707 : vector<8x256xf32>
    %709 = vector.extract_strided_slice %701 {offsets = [24, 0], sizes = [8, 256], strides = [1, 1]} : vector<80x256xf32> to vector<8x256xf32>
    %c3_i32_386 = arith.constant 3 : i32
    %710 = tpu.dynamic_rotate %709 by %c3_i32_386 dim 1 : vector<8x256xf32>, i32 -> vector<8x256xf32>
    %711 = arith.addf %708, %710 : vector<8x256xf32>
    %712 = vector.extract_strided_slice %701 {offsets = [32, 0], sizes = [8, 256], strides = [1, 1]} : vector<80x256xf32> to vector<8x256xf32>
    %c4_i32_387 = arith.constant 4 : i32
    %713 = tpu.dynamic_rotate %712 by %c4_i32_387 dim 1 : vector<8x256xf32>, i32 -> vector<8x256xf32>
    %714 = arith.addf %711, %713 : vector<8x256xf32>
    %715 = vector.extract_strided_slice %701 {offsets = [40, 0], sizes = [8, 256], strides = [1, 1]} : vector<80x256xf32> to vector<8x256xf32>
    %716 = arith.addf %714, %715 : vector<8x256xf32>
    %717 = vector.extract_strided_slice %701 {offsets = [48, 0], sizes = [8, 256], strides = [1, 1]} : vector<80x256xf32> to vector<8x256xf32>
    %c16_i32_388 = arith.constant 16 : i32
    %718 = tpu.dynamic_rotate %717 by %c16_i32_388 dim 1 : vector<8x256xf32>, i32 -> vector<8x256xf32>
    %719 = arith.addf %716, %718 : vector<8x256xf32>
    %720 = vector.extract_strided_slice %701 {offsets = [56, 0], sizes = [8, 256], strides = [1, 1]} : vector<80x256xf32> to vector<8x256xf32>
    %c32_i32_389 = arith.constant 32 : i32
    %721 = tpu.dynamic_rotate %720 by %c32_i32_389 dim 1 : vector<8x256xf32>, i32 -> vector<8x256xf32>
    %722 = arith.addf %719, %721 : vector<8x256xf32>
    %723 = vector.extract_strided_slice %701 {offsets = [64, 0], sizes = [8, 256], strides = [1, 1]} : vector<80x256xf32> to vector<8x256xf32>
    %c48_i32_390 = arith.constant 48 : i32
    %724 = tpu.dynamic_rotate %723 by %c48_i32_390 dim 1 : vector<8x256xf32>, i32 -> vector<8x256xf32>
    %725 = arith.addf %722, %724 : vector<8x256xf32>
    %726 = vector.extract_strided_slice %701 {offsets = [72, 0], sizes = [8, 256], strides = [1, 1]} : vector<80x256xf32> to vector<8x256xf32>
    %c64_i32_391 = arith.constant 64 : i32
    %727 = tpu.dynamic_rotate %726 by %c64_i32_391 dim 1 : vector<8x256xf32>, i32 -> vector<8x256xf32>
    %728 = arith.addf %725, %727 : vector<8x256xf32>
    %729 = vector.broadcast %700 : vector<8x1xf32> to vector<8x256xf32>
    %730 = arith.addf %728, %729 : vector<8x256xf32>
    %c6 = arith.constant 6 : index
    %c0_392 = arith.constant 0 : index
    %c0_393 = arith.constant 0 : index
    %731 = vector.load %arg7[%c6, %c0_392, %c0_393] : memref<10x64x80xbf16, #tpu.memory_space<vmem>>, vector<1x64x80xbf16>
    %732 = vector.shape_cast %731 : vector<1x64x80xbf16> to vector<64x80xbf16>
    %c6_394 = arith.constant 6 : index
    %c0_395 = arith.constant 0 : index
    %c0_396 = arith.constant 0 : index
    %733 = vector.load %arg8[%c6_394, %c0_395, %c0_396] : memref<10x64x1xf32, #tpu.memory_space<vmem>>, vector<1x64x1xf32>
    %734 = vector.shape_cast %733 : vector<1x64x1xf32> to vector<64x1xf32>
    %c255_i32_397 = arith.constant 255 : i32
    %735 = tpu.dynamic_rotate %730 by %c255_i32_397 dim 1 : vector<8x256xf32>, i32 -> vector<8x256xf32>
    %c254_i32_398 = arith.constant 254 : i32
    %736 = tpu.dynamic_rotate %730 by %c254_i32_398 dim 1 : vector<8x256xf32>, i32 -> vector<8x256xf32>
    %c253_i32_399 = arith.constant 253 : i32
    %737 = tpu.dynamic_rotate %730 by %c253_i32_399 dim 1 : vector<8x256xf32>, i32 -> vector<8x256xf32>
    %c252_i32_400 = arith.constant 252 : i32
    %738 = tpu.dynamic_rotate %730 by %c252_i32_400 dim 1 : vector<8x256xf32>, i32 -> vector<8x256xf32>
    %c240_i32_401 = arith.constant 240 : i32
    %739 = tpu.dynamic_rotate %730 by %c240_i32_401 dim 1 : vector<8x256xf32>, i32 -> vector<8x256xf32>
    %c224_i32_402 = arith.constant 224 : i32
    %740 = tpu.dynamic_rotate %730 by %c224_i32_402 dim 1 : vector<8x256xf32>, i32 -> vector<8x256xf32>
    %c208_i32_403 = arith.constant 208 : i32
    %741 = tpu.dynamic_rotate %730 by %c208_i32_403 dim 1 : vector<8x256xf32>, i32 -> vector<8x256xf32>
    %c192_i32_404 = arith.constant 192 : i32
    %742 = tpu.dynamic_rotate %730 by %c192_i32_404 dim 1 : vector<8x256xf32>, i32 -> vector<8x256xf32>
    %743 = tpu.concatenate %730, %735, %736, %737, %738, %730, %739, %740, %741, %742 in 0 : vector<8x256xf32>, vector<8x256xf32>, vector<8x256xf32>, vector<8x256xf32>, vector<8x256xf32>, vector<8x256xf32>, vector<8x256xf32>, vector<8x256xf32>, vector<8x256xf32>, vector<8x256xf32> -> vector<80x256xf32>
    %744 = arith.truncf %743 : vector<80x256xf32> to vector<80x256xbf16>
    %cst_405 = arith.constant dense<0.000000e+00> : vector<64x256xf32>
    %745 = tpu.matmul %732, %744, %cst_405 {dimension_numbers = #tpu.dot_dimension_numbers<[1], [0], [0], [1], [0, 0, 1, 1], [], []>} : vector<64x80xbf16>, vector<80x256xbf16>, vector<64x256xf32> -> vector<64x256xf32>
    %746 = vector.broadcast %734 : vector<64x1xf32> to vector<64x256xf32>
    %747 = arith.addf %745, %746 : vector<64x256xf32>
    %cst_406 = arith.constant 0.000000e+00 : f32
    %748 = vector.broadcast %cst_406 : f32 to vector<64x256xf32>
    %749 = arith.maximumf %747, %748 : vector<64x256xf32>
    %c0_407 = arith.constant 0 : index
    %c0_408 = arith.constant 0 : index
    %750 = vector.load %arg2[%c0_407, %c0_408] : memref<64x256xf32, #tpu.memory_space<vmem>>, vector<64x256xf32>
    %751 = arith.mulf %749, %750 : vector<64x256xf32>
    %752 = arith.truncf %751 : vector<64x256xf32> to vector<64x256xbf16>
    %c6_409 = arith.constant 6 : index
    %c0_410 = arith.constant 0 : index
    %c0_411 = arith.constant 0 : index
    %753 = vector.load %arg9[%c6_409, %c0_410, %c0_411] : memref<10x80x64xbf16, #tpu.memory_space<vmem>>, vector<1x80x64xbf16>
    %754 = vector.shape_cast %753 : vector<1x80x64xbf16> to vector<80x64xbf16>
    %c6_412 = arith.constant 6 : index
    %c0_413 = arith.constant 0 : index
    %c0_414 = arith.constant 0 : index
    %755 = vector.load %arg10[%c6_412, %c0_413, %c0_414] : memref<10x8x1xf32, #tpu.memory_space<vmem>>, vector<1x8x1xf32>
    %756 = vector.shape_cast %755 : vector<1x8x1xf32> to vector<8x1xf32>
    %cst_415 = arith.constant dense<0.000000e+00> : vector<80x256xf32>
    %757 = tpu.matmul %754, %752, %cst_415 {dimension_numbers = #tpu.dot_dimension_numbers<[1], [0], [0], [1], [0, 0, 1, 1], [], []>} : vector<80x64xbf16>, vector<64x256xbf16>, vector<80x256xf32> -> vector<80x256xf32>
    %758 = vector.extract_strided_slice %757 {offsets = [0, 0], sizes = [8, 256], strides = [1, 1]} : vector<80x256xf32> to vector<8x256xf32>
    %759 = vector.extract_strided_slice %757 {offsets = [8, 0], sizes = [8, 256], strides = [1, 1]} : vector<80x256xf32> to vector<8x256xf32>
    %c1_i32_416 = arith.constant 1 : i32
    %760 = tpu.dynamic_rotate %759 by %c1_i32_416 dim 1 : vector<8x256xf32>, i32 -> vector<8x256xf32>
    %761 = arith.addf %758, %760 : vector<8x256xf32>
    %762 = vector.extract_strided_slice %757 {offsets = [16, 0], sizes = [8, 256], strides = [1, 1]} : vector<80x256xf32> to vector<8x256xf32>
    %c2_i32_417 = arith.constant 2 : i32
    %763 = tpu.dynamic_rotate %762 by %c2_i32_417 dim 1 : vector<8x256xf32>, i32 -> vector<8x256xf32>
    %764 = arith.addf %761, %763 : vector<8x256xf32>
    %765 = vector.extract_strided_slice %757 {offsets = [24, 0], sizes = [8, 256], strides = [1, 1]} : vector<80x256xf32> to vector<8x256xf32>
    %c3_i32_418 = arith.constant 3 : i32
    %766 = tpu.dynamic_rotate %765 by %c3_i32_418 dim 1 : vector<8x256xf32>, i32 -> vector<8x256xf32>
    %767 = arith.addf %764, %766 : vector<8x256xf32>
    %768 = vector.extract_strided_slice %757 {offsets = [32, 0], sizes = [8, 256], strides = [1, 1]} : vector<80x256xf32> to vector<8x256xf32>
    %c4_i32_419 = arith.constant 4 : i32
    %769 = tpu.dynamic_rotate %768 by %c4_i32_419 dim 1 : vector<8x256xf32>, i32 -> vector<8x256xf32>
    %770 = arith.addf %767, %769 : vector<8x256xf32>
    %771 = vector.extract_strided_slice %757 {offsets = [40, 0], sizes = [8, 256], strides = [1, 1]} : vector<80x256xf32> to vector<8x256xf32>
    %772 = arith.addf %770, %771 : vector<8x256xf32>
    %773 = vector.extract_strided_slice %757 {offsets = [48, 0], sizes = [8, 256], strides = [1, 1]} : vector<80x256xf32> to vector<8x256xf32>
    %c16_i32_420 = arith.constant 16 : i32
    %774 = tpu.dynamic_rotate %773 by %c16_i32_420 dim 1 : vector<8x256xf32>, i32 -> vector<8x256xf32>
    %775 = arith.addf %772, %774 : vector<8x256xf32>
    %776 = vector.extract_strided_slice %757 {offsets = [56, 0], sizes = [8, 256], strides = [1, 1]} : vector<80x256xf32> to vector<8x256xf32>
    %c32_i32_421 = arith.constant 32 : i32
    %777 = tpu.dynamic_rotate %776 by %c32_i32_421 dim 1 : vector<8x256xf32>, i32 -> vector<8x256xf32>
    %778 = arith.addf %775, %777 : vector<8x256xf32>
    %779 = vector.extract_strided_slice %757 {offsets = [64, 0], sizes = [8, 256], strides = [1, 1]} : vector<80x256xf32> to vector<8x256xf32>
    %c48_i32_422 = arith.constant 48 : i32
    %780 = tpu.dynamic_rotate %779 by %c48_i32_422 dim 1 : vector<8x256xf32>, i32 -> vector<8x256xf32>
    %781 = arith.addf %778, %780 : vector<8x256xf32>
    %782 = vector.extract_strided_slice %757 {offsets = [72, 0], sizes = [8, 256], strides = [1, 1]} : vector<80x256xf32> to vector<8x256xf32>
    %c64_i32_423 = arith.constant 64 : i32
    %783 = tpu.dynamic_rotate %782 by %c64_i32_423 dim 1 : vector<8x256xf32>, i32 -> vector<8x256xf32>
    %784 = arith.addf %781, %783 : vector<8x256xf32>
    %785 = vector.broadcast %756 : vector<8x1xf32> to vector<8x256xf32>
    %786 = arith.addf %784, %785 : vector<8x256xf32>
    %cst_424 = arith.constant 0.000000e+00 : f32
    %787 = vector.broadcast %cst_424 : f32 to vector<8x256xf32>
    %788 = arith.maximumf %786, %787 : vector<8x256xf32>
    %789 = arith.addf %678, %788 : vector<8x256xf32>
    %cst_425 = arith.constant 0.000000e+00 : f32
    %790 = vector.broadcast %cst_425 : f32 to vector<8x256xf32>
    %791 = arith.maximumf %789, %790 : vector<8x256xf32>
    %c0_426 = arith.constant 0 : index
    %c0_427 = arith.constant 0 : index
    %792 = vector.load %arg3[%c0_426, %c0_427] : memref<64x80xbf16, #tpu.memory_space<vmem>>, vector<64x80xbf16>
    %c0_428 = arith.constant 0 : index
    %c0_429 = arith.constant 0 : index
    %793 = vector.load %arg4[%c0_428, %c0_429] : memref<64x1xf32, #tpu.memory_space<vmem>>, vector<64x1xf32>
    %c255_i32_430 = arith.constant 255 : i32
    %794 = tpu.dynamic_rotate %791 by %c255_i32_430 dim 1 : vector<8x256xf32>, i32 -> vector<8x256xf32>
    %c254_i32_431 = arith.constant 254 : i32
    %795 = tpu.dynamic_rotate %791 by %c254_i32_431 dim 1 : vector<8x256xf32>, i32 -> vector<8x256xf32>
    %c253_i32_432 = arith.constant 253 : i32
    %796 = tpu.dynamic_rotate %791 by %c253_i32_432 dim 1 : vector<8x256xf32>, i32 -> vector<8x256xf32>
    %c252_i32_433 = arith.constant 252 : i32
    %797 = tpu.dynamic_rotate %791 by %c252_i32_433 dim 1 : vector<8x256xf32>, i32 -> vector<8x256xf32>
    %c240_i32_434 = arith.constant 240 : i32
    %798 = tpu.dynamic_rotate %791 by %c240_i32_434 dim 1 : vector<8x256xf32>, i32 -> vector<8x256xf32>
    %c224_i32_435 = arith.constant 224 : i32
    %799 = tpu.dynamic_rotate %791 by %c224_i32_435 dim 1 : vector<8x256xf32>, i32 -> vector<8x256xf32>
    %c208_i32_436 = arith.constant 208 : i32
    %800 = tpu.dynamic_rotate %791 by %c208_i32_436 dim 1 : vector<8x256xf32>, i32 -> vector<8x256xf32>
    %c192_i32_437 = arith.constant 192 : i32
    %801 = tpu.dynamic_rotate %791 by %c192_i32_437 dim 1 : vector<8x256xf32>, i32 -> vector<8x256xf32>
    %802 = tpu.concatenate %791, %794, %795, %796, %797, %791, %798, %799, %800, %801 in 0 : vector<8x256xf32>, vector<8x256xf32>, vector<8x256xf32>, vector<8x256xf32>, vector<8x256xf32>, vector<8x256xf32>, vector<8x256xf32>, vector<8x256xf32>, vector<8x256xf32>, vector<8x256xf32> -> vector<80x256xf32>
    %803 = arith.truncf %802 : vector<80x256xf32> to vector<80x256xbf16>
    %cst_438 = arith.constant dense<0.000000e+00> : vector<64x256xf32>
    %804 = tpu.matmul %792, %803, %cst_438 {dimension_numbers = #tpu.dot_dimension_numbers<[1], [0], [0], [1], [0, 0, 1, 1], [], []>} : vector<64x80xbf16>, vector<80x256xbf16>, vector<64x256xf32> -> vector<64x256xf32>
    %805 = vector.broadcast %793 : vector<64x1xf32> to vector<64x256xf32>
    %806 = arith.addf %804, %805 : vector<64x256xf32>
    %cst_439 = arith.constant 0.000000e+00 : f32
    %807 = vector.broadcast %cst_439 : f32 to vector<64x256xf32>
    %808 = arith.maximumf %806, %807 : vector<64x256xf32>
    %c0_440 = arith.constant 0 : index
    %c0_441 = arith.constant 0 : index
    %809 = vector.load %arg2[%c0_440, %c0_441] : memref<64x256xf32, #tpu.memory_space<vmem>>, vector<64x256xf32>
    %810 = arith.mulf %808, %809 : vector<64x256xf32>
    %811 = arith.truncf %810 : vector<64x256xf32> to vector<64x256xbf16>
    %c0_442 = arith.constant 0 : index
    %c0_443 = arith.constant 0 : index
    %812 = vector.load %arg5[%c0_442, %c0_443] : memref<80x64xbf16, #tpu.memory_space<vmem>>, vector<80x64xbf16>
    %c0_444 = arith.constant 0 : index
    %c0_445 = arith.constant 0 : index
    %813 = vector.load %arg6[%c0_444, %c0_445] : memref<8x1xf32, #tpu.memory_space<vmem>>, vector<8x1xf32>
    %cst_446 = arith.constant dense<0.000000e+00> : vector<80x256xf32>
    %814 = tpu.matmul %812, %811, %cst_446 {dimension_numbers = #tpu.dot_dimension_numbers<[1], [0], [0], [1], [0, 0, 1, 1], [], []>} : vector<80x64xbf16>, vector<64x256xbf16>, vector<80x256xf32> -> vector<80x256xf32>
    %815 = vector.extract_strided_slice %814 {offsets = [0, 0], sizes = [8, 256], strides = [1, 1]} : vector<80x256xf32> to vector<8x256xf32>
    %816 = vector.extract_strided_slice %814 {offsets = [8, 0], sizes = [8, 256], strides = [1, 1]} : vector<80x256xf32> to vector<8x256xf32>
    %c1_i32_447 = arith.constant 1 : i32
    %817 = tpu.dynamic_rotate %816 by %c1_i32_447 dim 1 : vector<8x256xf32>, i32 -> vector<8x256xf32>
    %818 = arith.addf %815, %817 : vector<8x256xf32>
    %819 = vector.extract_strided_slice %814 {offsets = [16, 0], sizes = [8, 256], strides = [1, 1]} : vector<80x256xf32> to vector<8x256xf32>
    %c2_i32_448 = arith.constant 2 : i32
    %820 = tpu.dynamic_rotate %819 by %c2_i32_448 dim 1 : vector<8x256xf32>, i32 -> vector<8x256xf32>
    %821 = arith.addf %818, %820 : vector<8x256xf32>
    %822 = vector.extract_strided_slice %814 {offsets = [24, 0], sizes = [8, 256], strides = [1, 1]} : vector<80x256xf32> to vector<8x256xf32>
    %c3_i32_449 = arith.constant 3 : i32
    %823 = tpu.dynamic_rotate %822 by %c3_i32_449 dim 1 : vector<8x256xf32>, i32 -> vector<8x256xf32>
    %824 = arith.addf %821, %823 : vector<8x256xf32>
    %825 = vector.extract_strided_slice %814 {offsets = [32, 0], sizes = [8, 256], strides = [1, 1]} : vector<80x256xf32> to vector<8x256xf32>
    %c4_i32_450 = arith.constant 4 : i32
    %826 = tpu.dynamic_rotate %825 by %c4_i32_450 dim 1 : vector<8x256xf32>, i32 -> vector<8x256xf32>
    %827 = arith.addf %824, %826 : vector<8x256xf32>
    %828 = vector.extract_strided_slice %814 {offsets = [40, 0], sizes = [8, 256], strides = [1, 1]} : vector<80x256xf32> to vector<8x256xf32>
    %829 = arith.addf %827, %828 : vector<8x256xf32>
    %830 = vector.extract_strided_slice %814 {offsets = [48, 0], sizes = [8, 256], strides = [1, 1]} : vector<80x256xf32> to vector<8x256xf32>
    %c16_i32_451 = arith.constant 16 : i32
    %831 = tpu.dynamic_rotate %830 by %c16_i32_451 dim 1 : vector<8x256xf32>, i32 -> vector<8x256xf32>
    %832 = arith.addf %829, %831 : vector<8x256xf32>
    %833 = vector.extract_strided_slice %814 {offsets = [56, 0], sizes = [8, 256], strides = [1, 1]} : vector<80x256xf32> to vector<8x256xf32>
    %c32_i32_452 = arith.constant 32 : i32
    %834 = tpu.dynamic_rotate %833 by %c32_i32_452 dim 1 : vector<8x256xf32>, i32 -> vector<8x256xf32>
    %835 = arith.addf %832, %834 : vector<8x256xf32>
    %836 = vector.extract_strided_slice %814 {offsets = [64, 0], sizes = [8, 256], strides = [1, 1]} : vector<80x256xf32> to vector<8x256xf32>
    %c48_i32_453 = arith.constant 48 : i32
    %837 = tpu.dynamic_rotate %836 by %c48_i32_453 dim 1 : vector<8x256xf32>, i32 -> vector<8x256xf32>
    %838 = arith.addf %835, %837 : vector<8x256xf32>
    %839 = vector.extract_strided_slice %814 {offsets = [72, 0], sizes = [8, 256], strides = [1, 1]} : vector<80x256xf32> to vector<8x256xf32>
    %c64_i32_454 = arith.constant 64 : i32
    %840 = tpu.dynamic_rotate %839 by %c64_i32_454 dim 1 : vector<8x256xf32>, i32 -> vector<8x256xf32>
    %841 = arith.addf %838, %840 : vector<8x256xf32>
    %842 = vector.broadcast %813 : vector<8x1xf32> to vector<8x256xf32>
    %843 = arith.addf %841, %842 : vector<8x256xf32>
    %c7 = arith.constant 7 : index
    %c0_455 = arith.constant 0 : index
    %c0_456 = arith.constant 0 : index
    %844 = vector.load %arg7[%c7, %c0_455, %c0_456] : memref<10x64x80xbf16, #tpu.memory_space<vmem>>, vector<1x64x80xbf16>
    %845 = vector.shape_cast %844 : vector<1x64x80xbf16> to vector<64x80xbf16>
    %c7_457 = arith.constant 7 : index
    %c0_458 = arith.constant 0 : index
    %c0_459 = arith.constant 0 : index
    %846 = vector.load %arg8[%c7_457, %c0_458, %c0_459] : memref<10x64x1xf32, #tpu.memory_space<vmem>>, vector<1x64x1xf32>
    %847 = vector.shape_cast %846 : vector<1x64x1xf32> to vector<64x1xf32>
    %c255_i32_460 = arith.constant 255 : i32
    %848 = tpu.dynamic_rotate %843 by %c255_i32_460 dim 1 : vector<8x256xf32>, i32 -> vector<8x256xf32>
    %c254_i32_461 = arith.constant 254 : i32
    %849 = tpu.dynamic_rotate %843 by %c254_i32_461 dim 1 : vector<8x256xf32>, i32 -> vector<8x256xf32>
    %c253_i32_462 = arith.constant 253 : i32
    %850 = tpu.dynamic_rotate %843 by %c253_i32_462 dim 1 : vector<8x256xf32>, i32 -> vector<8x256xf32>
    %c252_i32_463 = arith.constant 252 : i32
    %851 = tpu.dynamic_rotate %843 by %c252_i32_463 dim 1 : vector<8x256xf32>, i32 -> vector<8x256xf32>
    %c240_i32_464 = arith.constant 240 : i32
    %852 = tpu.dynamic_rotate %843 by %c240_i32_464 dim 1 : vector<8x256xf32>, i32 -> vector<8x256xf32>
    %c224_i32_465 = arith.constant 224 : i32
    %853 = tpu.dynamic_rotate %843 by %c224_i32_465 dim 1 : vector<8x256xf32>, i32 -> vector<8x256xf32>
    %c208_i32_466 = arith.constant 208 : i32
    %854 = tpu.dynamic_rotate %843 by %c208_i32_466 dim 1 : vector<8x256xf32>, i32 -> vector<8x256xf32>
    %c192_i32_467 = arith.constant 192 : i32
    %855 = tpu.dynamic_rotate %843 by %c192_i32_467 dim 1 : vector<8x256xf32>, i32 -> vector<8x256xf32>
    %856 = tpu.concatenate %843, %848, %849, %850, %851, %843, %852, %853, %854, %855 in 0 : vector<8x256xf32>, vector<8x256xf32>, vector<8x256xf32>, vector<8x256xf32>, vector<8x256xf32>, vector<8x256xf32>, vector<8x256xf32>, vector<8x256xf32>, vector<8x256xf32>, vector<8x256xf32> -> vector<80x256xf32>
    %857 = arith.truncf %856 : vector<80x256xf32> to vector<80x256xbf16>
    %cst_468 = arith.constant dense<0.000000e+00> : vector<64x256xf32>
    %858 = tpu.matmul %845, %857, %cst_468 {dimension_numbers = #tpu.dot_dimension_numbers<[1], [0], [0], [1], [0, 0, 1, 1], [], []>} : vector<64x80xbf16>, vector<80x256xbf16>, vector<64x256xf32> -> vector<64x256xf32>
    %859 = vector.broadcast %847 : vector<64x1xf32> to vector<64x256xf32>
    %860 = arith.addf %858, %859 : vector<64x256xf32>
    %cst_469 = arith.constant 0.000000e+00 : f32
    %861 = vector.broadcast %cst_469 : f32 to vector<64x256xf32>
    %862 = arith.maximumf %860, %861 : vector<64x256xf32>
    %c0_470 = arith.constant 0 : index
    %c0_471 = arith.constant 0 : index
    %863 = vector.load %arg2[%c0_470, %c0_471] : memref<64x256xf32, #tpu.memory_space<vmem>>, vector<64x256xf32>
    %864 = arith.mulf %862, %863 : vector<64x256xf32>
    %865 = arith.truncf %864 : vector<64x256xf32> to vector<64x256xbf16>
    %c7_472 = arith.constant 7 : index
    %c0_473 = arith.constant 0 : index
    %c0_474 = arith.constant 0 : index
    %866 = vector.load %arg9[%c7_472, %c0_473, %c0_474] : memref<10x80x64xbf16, #tpu.memory_space<vmem>>, vector<1x80x64xbf16>
    %867 = vector.shape_cast %866 : vector<1x80x64xbf16> to vector<80x64xbf16>
    %c7_475 = arith.constant 7 : index
    %c0_476 = arith.constant 0 : index
    %c0_477 = arith.constant 0 : index
    %868 = vector.load %arg10[%c7_475, %c0_476, %c0_477] : memref<10x8x1xf32, #tpu.memory_space<vmem>>, vector<1x8x1xf32>
    %869 = vector.shape_cast %868 : vector<1x8x1xf32> to vector<8x1xf32>
    %cst_478 = arith.constant dense<0.000000e+00> : vector<80x256xf32>
    %870 = tpu.matmul %867, %865, %cst_478 {dimension_numbers = #tpu.dot_dimension_numbers<[1], [0], [0], [1], [0, 0, 1, 1], [], []>} : vector<80x64xbf16>, vector<64x256xbf16>, vector<80x256xf32> -> vector<80x256xf32>
    %871 = vector.extract_strided_slice %870 {offsets = [0, 0], sizes = [8, 256], strides = [1, 1]} : vector<80x256xf32> to vector<8x256xf32>
    %872 = vector.extract_strided_slice %870 {offsets = [8, 0], sizes = [8, 256], strides = [1, 1]} : vector<80x256xf32> to vector<8x256xf32>
    %c1_i32_479 = arith.constant 1 : i32
    %873 = tpu.dynamic_rotate %872 by %c1_i32_479 dim 1 : vector<8x256xf32>, i32 -> vector<8x256xf32>
    %874 = arith.addf %871, %873 : vector<8x256xf32>
    %875 = vector.extract_strided_slice %870 {offsets = [16, 0], sizes = [8, 256], strides = [1, 1]} : vector<80x256xf32> to vector<8x256xf32>
    %c2_i32_480 = arith.constant 2 : i32
    %876 = tpu.dynamic_rotate %875 by %c2_i32_480 dim 1 : vector<8x256xf32>, i32 -> vector<8x256xf32>
    %877 = arith.addf %874, %876 : vector<8x256xf32>
    %878 = vector.extract_strided_slice %870 {offsets = [24, 0], sizes = [8, 256], strides = [1, 1]} : vector<80x256xf32> to vector<8x256xf32>
    %c3_i32_481 = arith.constant 3 : i32
    %879 = tpu.dynamic_rotate %878 by %c3_i32_481 dim 1 : vector<8x256xf32>, i32 -> vector<8x256xf32>
    %880 = arith.addf %877, %879 : vector<8x256xf32>
    %881 = vector.extract_strided_slice %870 {offsets = [32, 0], sizes = [8, 256], strides = [1, 1]} : vector<80x256xf32> to vector<8x256xf32>
    %c4_i32_482 = arith.constant 4 : i32
    %882 = tpu.dynamic_rotate %881 by %c4_i32_482 dim 1 : vector<8x256xf32>, i32 -> vector<8x256xf32>
    %883 = arith.addf %880, %882 : vector<8x256xf32>
    %884 = vector.extract_strided_slice %870 {offsets = [40, 0], sizes = [8, 256], strides = [1, 1]} : vector<80x256xf32> to vector<8x256xf32>
    %885 = arith.addf %883, %884 : vector<8x256xf32>
    %886 = vector.extract_strided_slice %870 {offsets = [48, 0], sizes = [8, 256], strides = [1, 1]} : vector<80x256xf32> to vector<8x256xf32>
    %c16_i32_483 = arith.constant 16 : i32
    %887 = tpu.dynamic_rotate %886 by %c16_i32_483 dim 1 : vector<8x256xf32>, i32 -> vector<8x256xf32>
    %888 = arith.addf %885, %887 : vector<8x256xf32>
    %889 = vector.extract_strided_slice %870 {offsets = [56, 0], sizes = [8, 256], strides = [1, 1]} : vector<80x256xf32> to vector<8x256xf32>
    %c32_i32_484 = arith.constant 32 : i32
    %890 = tpu.dynamic_rotate %889 by %c32_i32_484 dim 1 : vector<8x256xf32>, i32 -> vector<8x256xf32>
    %891 = arith.addf %888, %890 : vector<8x256xf32>
    %892 = vector.extract_strided_slice %870 {offsets = [64, 0], sizes = [8, 256], strides = [1, 1]} : vector<80x256xf32> to vector<8x256xf32>
    %c48_i32_485 = arith.constant 48 : i32
    %893 = tpu.dynamic_rotate %892 by %c48_i32_485 dim 1 : vector<8x256xf32>, i32 -> vector<8x256xf32>
    %894 = arith.addf %891, %893 : vector<8x256xf32>
    %895 = vector.extract_strided_slice %870 {offsets = [72, 0], sizes = [8, 256], strides = [1, 1]} : vector<80x256xf32> to vector<8x256xf32>
    %c64_i32_486 = arith.constant 64 : i32
    %896 = tpu.dynamic_rotate %895 by %c64_i32_486 dim 1 : vector<8x256xf32>, i32 -> vector<8x256xf32>
    %897 = arith.addf %894, %896 : vector<8x256xf32>
    %898 = vector.broadcast %869 : vector<8x1xf32> to vector<8x256xf32>
    %899 = arith.addf %897, %898 : vector<8x256xf32>
    %cst_487 = arith.constant 0.000000e+00 : f32
    %900 = vector.broadcast %cst_487 : f32 to vector<8x256xf32>
    %901 = arith.maximumf %899, %900 : vector<8x256xf32>
    %902 = arith.addf %791, %901 : vector<8x256xf32>
    %cst_488 = arith.constant 0.000000e+00 : f32
    %903 = vector.broadcast %cst_488 : f32 to vector<8x256xf32>
    %904 = arith.maximumf %902, %903 : vector<8x256xf32>
    %c0_489 = arith.constant 0 : index
    %c0_490 = arith.constant 0 : index
    %905 = vector.load %arg3[%c0_489, %c0_490] : memref<64x80xbf16, #tpu.memory_space<vmem>>, vector<64x80xbf16>
    %c0_491 = arith.constant 0 : index
    %c0_492 = arith.constant 0 : index
    %906 = vector.load %arg4[%c0_491, %c0_492] : memref<64x1xf32, #tpu.memory_space<vmem>>, vector<64x1xf32>
    %c255_i32_493 = arith.constant 255 : i32
    %907 = tpu.dynamic_rotate %904 by %c255_i32_493 dim 1 : vector<8x256xf32>, i32 -> vector<8x256xf32>
    %c254_i32_494 = arith.constant 254 : i32
    %908 = tpu.dynamic_rotate %904 by %c254_i32_494 dim 1 : vector<8x256xf32>, i32 -> vector<8x256xf32>
    %c253_i32_495 = arith.constant 253 : i32
    %909 = tpu.dynamic_rotate %904 by %c253_i32_495 dim 1 : vector<8x256xf32>, i32 -> vector<8x256xf32>
    %c252_i32_496 = arith.constant 252 : i32
    %910 = tpu.dynamic_rotate %904 by %c252_i32_496 dim 1 : vector<8x256xf32>, i32 -> vector<8x256xf32>
    %c240_i32_497 = arith.constant 240 : i32
    %911 = tpu.dynamic_rotate %904 by %c240_i32_497 dim 1 : vector<8x256xf32>, i32 -> vector<8x256xf32>
    %c224_i32_498 = arith.constant 224 : i32
    %912 = tpu.dynamic_rotate %904 by %c224_i32_498 dim 1 : vector<8x256xf32>, i32 -> vector<8x256xf32>
    %c208_i32_499 = arith.constant 208 : i32
    %913 = tpu.dynamic_rotate %904 by %c208_i32_499 dim 1 : vector<8x256xf32>, i32 -> vector<8x256xf32>
    %c192_i32_500 = arith.constant 192 : i32
    %914 = tpu.dynamic_rotate %904 by %c192_i32_500 dim 1 : vector<8x256xf32>, i32 -> vector<8x256xf32>
    %915 = tpu.concatenate %904, %907, %908, %909, %910, %904, %911, %912, %913, %914 in 0 : vector<8x256xf32>, vector<8x256xf32>, vector<8x256xf32>, vector<8x256xf32>, vector<8x256xf32>, vector<8x256xf32>, vector<8x256xf32>, vector<8x256xf32>, vector<8x256xf32>, vector<8x256xf32> -> vector<80x256xf32>
    %916 = arith.truncf %915 : vector<80x256xf32> to vector<80x256xbf16>
    %cst_501 = arith.constant dense<0.000000e+00> : vector<64x256xf32>
    %917 = tpu.matmul %905, %916, %cst_501 {dimension_numbers = #tpu.dot_dimension_numbers<[1], [0], [0], [1], [0, 0, 1, 1], [], []>} : vector<64x80xbf16>, vector<80x256xbf16>, vector<64x256xf32> -> vector<64x256xf32>
    %918 = vector.broadcast %906 : vector<64x1xf32> to vector<64x256xf32>
    %919 = arith.addf %917, %918 : vector<64x256xf32>
    %cst_502 = arith.constant 0.000000e+00 : f32
    %920 = vector.broadcast %cst_502 : f32 to vector<64x256xf32>
    %921 = arith.maximumf %919, %920 : vector<64x256xf32>
    %c0_503 = arith.constant 0 : index
    %c0_504 = arith.constant 0 : index
    %922 = vector.load %arg2[%c0_503, %c0_504] : memref<64x256xf32, #tpu.memory_space<vmem>>, vector<64x256xf32>
    %923 = arith.mulf %921, %922 : vector<64x256xf32>
    %924 = arith.truncf %923 : vector<64x256xf32> to vector<64x256xbf16>
    %c0_505 = arith.constant 0 : index
    %c0_506 = arith.constant 0 : index
    %925 = vector.load %arg5[%c0_505, %c0_506] : memref<80x64xbf16, #tpu.memory_space<vmem>>, vector<80x64xbf16>
    %c0_507 = arith.constant 0 : index
    %c0_508 = arith.constant 0 : index
    %926 = vector.load %arg6[%c0_507, %c0_508] : memref<8x1xf32, #tpu.memory_space<vmem>>, vector<8x1xf32>
    %cst_509 = arith.constant dense<0.000000e+00> : vector<80x256xf32>
    %927 = tpu.matmul %925, %924, %cst_509 {dimension_numbers = #tpu.dot_dimension_numbers<[1], [0], [0], [1], [0, 0, 1, 1], [], []>} : vector<80x64xbf16>, vector<64x256xbf16>, vector<80x256xf32> -> vector<80x256xf32>
    %928 = vector.extract_strided_slice %927 {offsets = [0, 0], sizes = [8, 256], strides = [1, 1]} : vector<80x256xf32> to vector<8x256xf32>
    %929 = vector.extract_strided_slice %927 {offsets = [8, 0], sizes = [8, 256], strides = [1, 1]} : vector<80x256xf32> to vector<8x256xf32>
    %c1_i32_510 = arith.constant 1 : i32
    %930 = tpu.dynamic_rotate %929 by %c1_i32_510 dim 1 : vector<8x256xf32>, i32 -> vector<8x256xf32>
    %931 = arith.addf %928, %930 : vector<8x256xf32>
    %932 = vector.extract_strided_slice %927 {offsets = [16, 0], sizes = [8, 256], strides = [1, 1]} : vector<80x256xf32> to vector<8x256xf32>
    %c2_i32_511 = arith.constant 2 : i32
    %933 = tpu.dynamic_rotate %932 by %c2_i32_511 dim 1 : vector<8x256xf32>, i32 -> vector<8x256xf32>
    %934 = arith.addf %931, %933 : vector<8x256xf32>
    %935 = vector.extract_strided_slice %927 {offsets = [24, 0], sizes = [8, 256], strides = [1, 1]} : vector<80x256xf32> to vector<8x256xf32>
    %c3_i32_512 = arith.constant 3 : i32
    %936 = tpu.dynamic_rotate %935 by %c3_i32_512 dim 1 : vector<8x256xf32>, i32 -> vector<8x256xf32>
    %937 = arith.addf %934, %936 : vector<8x256xf32>
    %938 = vector.extract_strided_slice %927 {offsets = [32, 0], sizes = [8, 256], strides = [1, 1]} : vector<80x256xf32> to vector<8x256xf32>
    %c4_i32_513 = arith.constant 4 : i32
    %939 = tpu.dynamic_rotate %938 by %c4_i32_513 dim 1 : vector<8x256xf32>, i32 -> vector<8x256xf32>
    %940 = arith.addf %937, %939 : vector<8x256xf32>
    %941 = vector.extract_strided_slice %927 {offsets = [40, 0], sizes = [8, 256], strides = [1, 1]} : vector<80x256xf32> to vector<8x256xf32>
    %942 = arith.addf %940, %941 : vector<8x256xf32>
    %943 = vector.extract_strided_slice %927 {offsets = [48, 0], sizes = [8, 256], strides = [1, 1]} : vector<80x256xf32> to vector<8x256xf32>
    %c16_i32_514 = arith.constant 16 : i32
    %944 = tpu.dynamic_rotate %943 by %c16_i32_514 dim 1 : vector<8x256xf32>, i32 -> vector<8x256xf32>
    %945 = arith.addf %942, %944 : vector<8x256xf32>
    %946 = vector.extract_strided_slice %927 {offsets = [56, 0], sizes = [8, 256], strides = [1, 1]} : vector<80x256xf32> to vector<8x256xf32>
    %c32_i32_515 = arith.constant 32 : i32
    %947 = tpu.dynamic_rotate %946 by %c32_i32_515 dim 1 : vector<8x256xf32>, i32 -> vector<8x256xf32>
    %948 = arith.addf %945, %947 : vector<8x256xf32>
    %949 = vector.extract_strided_slice %927 {offsets = [64, 0], sizes = [8, 256], strides = [1, 1]} : vector<80x256xf32> to vector<8x256xf32>
    %c48_i32_516 = arith.constant 48 : i32
    %950 = tpu.dynamic_rotate %949 by %c48_i32_516 dim 1 : vector<8x256xf32>, i32 -> vector<8x256xf32>
    %951 = arith.addf %948, %950 : vector<8x256xf32>
    %952 = vector.extract_strided_slice %927 {offsets = [72, 0], sizes = [8, 256], strides = [1, 1]} : vector<80x256xf32> to vector<8x256xf32>
    %c64_i32_517 = arith.constant 64 : i32
    %953 = tpu.dynamic_rotate %952 by %c64_i32_517 dim 1 : vector<8x256xf32>, i32 -> vector<8x256xf32>
    %954 = arith.addf %951, %953 : vector<8x256xf32>
    %955 = vector.broadcast %926 : vector<8x1xf32> to vector<8x256xf32>
    %956 = arith.addf %954, %955 : vector<8x256xf32>
    %c8 = arith.constant 8 : index
    %c0_518 = arith.constant 0 : index
    %c0_519 = arith.constant 0 : index
    %957 = vector.load %arg7[%c8, %c0_518, %c0_519] : memref<10x64x80xbf16, #tpu.memory_space<vmem>>, vector<1x64x80xbf16>
    %958 = vector.shape_cast %957 : vector<1x64x80xbf16> to vector<64x80xbf16>
    %c8_520 = arith.constant 8 : index
    %c0_521 = arith.constant 0 : index
    %c0_522 = arith.constant 0 : index
    %959 = vector.load %arg8[%c8_520, %c0_521, %c0_522] : memref<10x64x1xf32, #tpu.memory_space<vmem>>, vector<1x64x1xf32>
    %960 = vector.shape_cast %959 : vector<1x64x1xf32> to vector<64x1xf32>
    %c255_i32_523 = arith.constant 255 : i32
    %961 = tpu.dynamic_rotate %956 by %c255_i32_523 dim 1 : vector<8x256xf32>, i32 -> vector<8x256xf32>
    %c254_i32_524 = arith.constant 254 : i32
    %962 = tpu.dynamic_rotate %956 by %c254_i32_524 dim 1 : vector<8x256xf32>, i32 -> vector<8x256xf32>
    %c253_i32_525 = arith.constant 253 : i32
    %963 = tpu.dynamic_rotate %956 by %c253_i32_525 dim 1 : vector<8x256xf32>, i32 -> vector<8x256xf32>
    %c252_i32_526 = arith.constant 252 : i32
    %964 = tpu.dynamic_rotate %956 by %c252_i32_526 dim 1 : vector<8x256xf32>, i32 -> vector<8x256xf32>
    %c240_i32_527 = arith.constant 240 : i32
    %965 = tpu.dynamic_rotate %956 by %c240_i32_527 dim 1 : vector<8x256xf32>, i32 -> vector<8x256xf32>
    %c224_i32_528 = arith.constant 224 : i32
    %966 = tpu.dynamic_rotate %956 by %c224_i32_528 dim 1 : vector<8x256xf32>, i32 -> vector<8x256xf32>
    %c208_i32_529 = arith.constant 208 : i32
    %967 = tpu.dynamic_rotate %956 by %c208_i32_529 dim 1 : vector<8x256xf32>, i32 -> vector<8x256xf32>
    %c192_i32_530 = arith.constant 192 : i32
    %968 = tpu.dynamic_rotate %956 by %c192_i32_530 dim 1 : vector<8x256xf32>, i32 -> vector<8x256xf32>
    %969 = tpu.concatenate %956, %961, %962, %963, %964, %956, %965, %966, %967, %968 in 0 : vector<8x256xf32>, vector<8x256xf32>, vector<8x256xf32>, vector<8x256xf32>, vector<8x256xf32>, vector<8x256xf32>, vector<8x256xf32>, vector<8x256xf32>, vector<8x256xf32>, vector<8x256xf32> -> vector<80x256xf32>
    %970 = arith.truncf %969 : vector<80x256xf32> to vector<80x256xbf16>
    %cst_531 = arith.constant dense<0.000000e+00> : vector<64x256xf32>
    %971 = tpu.matmul %958, %970, %cst_531 {dimension_numbers = #tpu.dot_dimension_numbers<[1], [0], [0], [1], [0, 0, 1, 1], [], []>} : vector<64x80xbf16>, vector<80x256xbf16>, vector<64x256xf32> -> vector<64x256xf32>
    %972 = vector.broadcast %960 : vector<64x1xf32> to vector<64x256xf32>
    %973 = arith.addf %971, %972 : vector<64x256xf32>
    %cst_532 = arith.constant 0.000000e+00 : f32
    %974 = vector.broadcast %cst_532 : f32 to vector<64x256xf32>
    %975 = arith.maximumf %973, %974 : vector<64x256xf32>
    %c0_533 = arith.constant 0 : index
    %c0_534 = arith.constant 0 : index
    %976 = vector.load %arg2[%c0_533, %c0_534] : memref<64x256xf32, #tpu.memory_space<vmem>>, vector<64x256xf32>
    %977 = arith.mulf %975, %976 : vector<64x256xf32>
    %978 = arith.truncf %977 : vector<64x256xf32> to vector<64x256xbf16>
    %c8_535 = arith.constant 8 : index
    %c0_536 = arith.constant 0 : index
    %c0_537 = arith.constant 0 : index
    %979 = vector.load %arg9[%c8_535, %c0_536, %c0_537] : memref<10x80x64xbf16, #tpu.memory_space<vmem>>, vector<1x80x64xbf16>
    %980 = vector.shape_cast %979 : vector<1x80x64xbf16> to vector<80x64xbf16>
    %c8_538 = arith.constant 8 : index
    %c0_539 = arith.constant 0 : index
    %c0_540 = arith.constant 0 : index
    %981 = vector.load %arg10[%c8_538, %c0_539, %c0_540] : memref<10x8x1xf32, #tpu.memory_space<vmem>>, vector<1x8x1xf32>
    %982 = vector.shape_cast %981 : vector<1x8x1xf32> to vector<8x1xf32>
    %cst_541 = arith.constant dense<0.000000e+00> : vector<80x256xf32>
    %983 = tpu.matmul %980, %978, %cst_541 {dimension_numbers = #tpu.dot_dimension_numbers<[1], [0], [0], [1], [0, 0, 1, 1], [], []>} : vector<80x64xbf16>, vector<64x256xbf16>, vector<80x256xf32> -> vector<80x256xf32>
    %984 = vector.extract_strided_slice %983 {offsets = [0, 0], sizes = [8, 256], strides = [1, 1]} : vector<80x256xf32> to vector<8x256xf32>
    %985 = vector.extract_strided_slice %983 {offsets = [8, 0], sizes = [8, 256], strides = [1, 1]} : vector<80x256xf32> to vector<8x256xf32>
    %c1_i32_542 = arith.constant 1 : i32
    %986 = tpu.dynamic_rotate %985 by %c1_i32_542 dim 1 : vector<8x256xf32>, i32 -> vector<8x256xf32>
    %987 = arith.addf %984, %986 : vector<8x256xf32>
    %988 = vector.extract_strided_slice %983 {offsets = [16, 0], sizes = [8, 256], strides = [1, 1]} : vector<80x256xf32> to vector<8x256xf32>
    %c2_i32_543 = arith.constant 2 : i32
    %989 = tpu.dynamic_rotate %988 by %c2_i32_543 dim 1 : vector<8x256xf32>, i32 -> vector<8x256xf32>
    %990 = arith.addf %987, %989 : vector<8x256xf32>
    %991 = vector.extract_strided_slice %983 {offsets = [24, 0], sizes = [8, 256], strides = [1, 1]} : vector<80x256xf32> to vector<8x256xf32>
    %c3_i32_544 = arith.constant 3 : i32
    %992 = tpu.dynamic_rotate %991 by %c3_i32_544 dim 1 : vector<8x256xf32>, i32 -> vector<8x256xf32>
    %993 = arith.addf %990, %992 : vector<8x256xf32>
    %994 = vector.extract_strided_slice %983 {offsets = [32, 0], sizes = [8, 256], strides = [1, 1]} : vector<80x256xf32> to vector<8x256xf32>
    %c4_i32_545 = arith.constant 4 : i32
    %995 = tpu.dynamic_rotate %994 by %c4_i32_545 dim 1 : vector<8x256xf32>, i32 -> vector<8x256xf32>
    %996 = arith.addf %993, %995 : vector<8x256xf32>
    %997 = vector.extract_strided_slice %983 {offsets = [40, 0], sizes = [8, 256], strides = [1, 1]} : vector<80x256xf32> to vector<8x256xf32>
    %998 = arith.addf %996, %997 : vector<8x256xf32>
    %999 = vector.extract_strided_slice %983 {offsets = [48, 0], sizes = [8, 256], strides = [1, 1]} : vector<80x256xf32> to vector<8x256xf32>
    %c16_i32_546 = arith.constant 16 : i32
    %1000 = tpu.dynamic_rotate %999 by %c16_i32_546 dim 1 : vector<8x256xf32>, i32 -> vector<8x256xf32>
    %1001 = arith.addf %998, %1000 : vector<8x256xf32>
    %1002 = vector.extract_strided_slice %983 {offsets = [56, 0], sizes = [8, 256], strides = [1, 1]} : vector<80x256xf32> to vector<8x256xf32>
    %c32_i32_547 = arith.constant 32 : i32
    %1003 = tpu.dynamic_rotate %1002 by %c32_i32_547 dim 1 : vector<8x256xf32>, i32 -> vector<8x256xf32>
    %1004 = arith.addf %1001, %1003 : vector<8x256xf32>
    %1005 = vector.extract_strided_slice %983 {offsets = [64, 0], sizes = [8, 256], strides = [1, 1]} : vector<80x256xf32> to vector<8x256xf32>
    %c48_i32_548 = arith.constant 48 : i32
    %1006 = tpu.dynamic_rotate %1005 by %c48_i32_548 dim 1 : vector<8x256xf32>, i32 -> vector<8x256xf32>
    %1007 = arith.addf %1004, %1006 : vector<8x256xf32>
    %1008 = vector.extract_strided_slice %983 {offsets = [72, 0], sizes = [8, 256], strides = [1, 1]} : vector<80x256xf32> to vector<8x256xf32>
    %c64_i32_549 = arith.constant 64 : i32
    %1009 = tpu.dynamic_rotate %1008 by %c64_i32_549 dim 1 : vector<8x256xf32>, i32 -> vector<8x256xf32>
    %1010 = arith.addf %1007, %1009 : vector<8x256xf32>
    %1011 = vector.broadcast %982 : vector<8x1xf32> to vector<8x256xf32>
    %1012 = arith.addf %1010, %1011 : vector<8x256xf32>
    %cst_550 = arith.constant 0.000000e+00 : f32
    %1013 = vector.broadcast %cst_550 : f32 to vector<8x256xf32>
    %1014 = arith.maximumf %1012, %1013 : vector<8x256xf32>
    %1015 = arith.addf %904, %1014 : vector<8x256xf32>
    %cst_551 = arith.constant 0.000000e+00 : f32
    %1016 = vector.broadcast %cst_551 : f32 to vector<8x256xf32>
    %1017 = arith.maximumf %1015, %1016 : vector<8x256xf32>
    %c0_552 = arith.constant 0 : index
    %c0_553 = arith.constant 0 : index
    %1018 = vector.load %arg3[%c0_552, %c0_553] : memref<64x80xbf16, #tpu.memory_space<vmem>>, vector<64x80xbf16>
    %c0_554 = arith.constant 0 : index
    %c0_555 = arith.constant 0 : index
    %1019 = vector.load %arg4[%c0_554, %c0_555] : memref<64x1xf32, #tpu.memory_space<vmem>>, vector<64x1xf32>
    %c255_i32_556 = arith.constant 255 : i32
    %1020 = tpu.dynamic_rotate %1017 by %c255_i32_556 dim 1 : vector<8x256xf32>, i32 -> vector<8x256xf32>
    %c254_i32_557 = arith.constant 254 : i32
    %1021 = tpu.dynamic_rotate %1017 by %c254_i32_557 dim 1 : vector<8x256xf32>, i32 -> vector<8x256xf32>
    %c253_i32_558 = arith.constant 253 : i32
    %1022 = tpu.dynamic_rotate %1017 by %c253_i32_558 dim 1 : vector<8x256xf32>, i32 -> vector<8x256xf32>
    %c252_i32_559 = arith.constant 252 : i32
    %1023 = tpu.dynamic_rotate %1017 by %c252_i32_559 dim 1 : vector<8x256xf32>, i32 -> vector<8x256xf32>
    %c240_i32_560 = arith.constant 240 : i32
    %1024 = tpu.dynamic_rotate %1017 by %c240_i32_560 dim 1 : vector<8x256xf32>, i32 -> vector<8x256xf32>
    %c224_i32_561 = arith.constant 224 : i32
    %1025 = tpu.dynamic_rotate %1017 by %c224_i32_561 dim 1 : vector<8x256xf32>, i32 -> vector<8x256xf32>
    %c208_i32_562 = arith.constant 208 : i32
    %1026 = tpu.dynamic_rotate %1017 by %c208_i32_562 dim 1 : vector<8x256xf32>, i32 -> vector<8x256xf32>
    %c192_i32_563 = arith.constant 192 : i32
    %1027 = tpu.dynamic_rotate %1017 by %c192_i32_563 dim 1 : vector<8x256xf32>, i32 -> vector<8x256xf32>
    %1028 = tpu.concatenate %1017, %1020, %1021, %1022, %1023, %1017, %1024, %1025, %1026, %1027 in 0 : vector<8x256xf32>, vector<8x256xf32>, vector<8x256xf32>, vector<8x256xf32>, vector<8x256xf32>, vector<8x256xf32>, vector<8x256xf32>, vector<8x256xf32>, vector<8x256xf32>, vector<8x256xf32> -> vector<80x256xf32>
    %1029 = arith.truncf %1028 : vector<80x256xf32> to vector<80x256xbf16>
    %cst_564 = arith.constant dense<0.000000e+00> : vector<64x256xf32>
    %1030 = tpu.matmul %1018, %1029, %cst_564 {dimension_numbers = #tpu.dot_dimension_numbers<[1], [0], [0], [1], [0, 0, 1, 1], [], []>} : vector<64x80xbf16>, vector<80x256xbf16>, vector<64x256xf32> -> vector<64x256xf32>
    %1031 = vector.broadcast %1019 : vector<64x1xf32> to vector<64x256xf32>
    %1032 = arith.addf %1030, %1031 : vector<64x256xf32>
    %cst_565 = arith.constant 0.000000e+00 : f32
    %1033 = vector.broadcast %cst_565 : f32 to vector<64x256xf32>
    %1034 = arith.maximumf %1032, %1033 : vector<64x256xf32>
    %c0_566 = arith.constant 0 : index
    %c0_567 = arith.constant 0 : index
    %1035 = vector.load %arg2[%c0_566, %c0_567] : memref<64x256xf32, #tpu.memory_space<vmem>>, vector<64x256xf32>
    %1036 = arith.mulf %1034, %1035 : vector<64x256xf32>
    %1037 = arith.truncf %1036 : vector<64x256xf32> to vector<64x256xbf16>
    %c0_568 = arith.constant 0 : index
    %c0_569 = arith.constant 0 : index
    %1038 = vector.load %arg5[%c0_568, %c0_569] : memref<80x64xbf16, #tpu.memory_space<vmem>>, vector<80x64xbf16>
    %c0_570 = arith.constant 0 : index
    %c0_571 = arith.constant 0 : index
    %1039 = vector.load %arg6[%c0_570, %c0_571] : memref<8x1xf32, #tpu.memory_space<vmem>>, vector<8x1xf32>
    %cst_572 = arith.constant dense<0.000000e+00> : vector<80x256xf32>
    %1040 = tpu.matmul %1038, %1037, %cst_572 {dimension_numbers = #tpu.dot_dimension_numbers<[1], [0], [0], [1], [0, 0, 1, 1], [], []>} : vector<80x64xbf16>, vector<64x256xbf16>, vector<80x256xf32> -> vector<80x256xf32>
    %1041 = vector.extract_strided_slice %1040 {offsets = [0, 0], sizes = [8, 256], strides = [1, 1]} : vector<80x256xf32> to vector<8x256xf32>
    %1042 = vector.extract_strided_slice %1040 {offsets = [8, 0], sizes = [8, 256], strides = [1, 1]} : vector<80x256xf32> to vector<8x256xf32>
    %c1_i32_573 = arith.constant 1 : i32
    %1043 = tpu.dynamic_rotate %1042 by %c1_i32_573 dim 1 : vector<8x256xf32>, i32 -> vector<8x256xf32>
    %1044 = arith.addf %1041, %1043 : vector<8x256xf32>
    %1045 = vector.extract_strided_slice %1040 {offsets = [16, 0], sizes = [8, 256], strides = [1, 1]} : vector<80x256xf32> to vector<8x256xf32>
    %c2_i32_574 = arith.constant 2 : i32
    %1046 = tpu.dynamic_rotate %1045 by %c2_i32_574 dim 1 : vector<8x256xf32>, i32 -> vector<8x256xf32>
    %1047 = arith.addf %1044, %1046 : vector<8x256xf32>
    %1048 = vector.extract_strided_slice %1040 {offsets = [24, 0], sizes = [8, 256], strides = [1, 1]} : vector<80x256xf32> to vector<8x256xf32>
    %c3_i32_575 = arith.constant 3 : i32
    %1049 = tpu.dynamic_rotate %1048 by %c3_i32_575 dim 1 : vector<8x256xf32>, i32 -> vector<8x256xf32>
    %1050 = arith.addf %1047, %1049 : vector<8x256xf32>
    %1051 = vector.extract_strided_slice %1040 {offsets = [32, 0], sizes = [8, 256], strides = [1, 1]} : vector<80x256xf32> to vector<8x256xf32>
    %c4_i32_576 = arith.constant 4 : i32
    %1052 = tpu.dynamic_rotate %1051 by %c4_i32_576 dim 1 : vector<8x256xf32>, i32 -> vector<8x256xf32>
    %1053 = arith.addf %1050, %1052 : vector<8x256xf32>
    %1054 = vector.extract_strided_slice %1040 {offsets = [40, 0], sizes = [8, 256], strides = [1, 1]} : vector<80x256xf32> to vector<8x256xf32>
    %1055 = arith.addf %1053, %1054 : vector<8x256xf32>
    %1056 = vector.extract_strided_slice %1040 {offsets = [48, 0], sizes = [8, 256], strides = [1, 1]} : vector<80x256xf32> to vector<8x256xf32>
    %c16_i32_577 = arith.constant 16 : i32
    %1057 = tpu.dynamic_rotate %1056 by %c16_i32_577 dim 1 : vector<8x256xf32>, i32 -> vector<8x256xf32>
    %1058 = arith.addf %1055, %1057 : vector<8x256xf32>
    %1059 = vector.extract_strided_slice %1040 {offsets = [56, 0], sizes = [8, 256], strides = [1, 1]} : vector<80x256xf32> to vector<8x256xf32>
    %c32_i32_578 = arith.constant 32 : i32
    %1060 = tpu.dynamic_rotate %1059 by %c32_i32_578 dim 1 : vector<8x256xf32>, i32 -> vector<8x256xf32>
    %1061 = arith.addf %1058, %1060 : vector<8x256xf32>
    %1062 = vector.extract_strided_slice %1040 {offsets = [64, 0], sizes = [8, 256], strides = [1, 1]} : vector<80x256xf32> to vector<8x256xf32>
    %c48_i32_579 = arith.constant 48 : i32
    %1063 = tpu.dynamic_rotate %1062 by %c48_i32_579 dim 1 : vector<8x256xf32>, i32 -> vector<8x256xf32>
    %1064 = arith.addf %1061, %1063 : vector<8x256xf32>
    %1065 = vector.extract_strided_slice %1040 {offsets = [72, 0], sizes = [8, 256], strides = [1, 1]} : vector<80x256xf32> to vector<8x256xf32>
    %c64_i32_580 = arith.constant 64 : i32
    %1066 = tpu.dynamic_rotate %1065 by %c64_i32_580 dim 1 : vector<8x256xf32>, i32 -> vector<8x256xf32>
    %1067 = arith.addf %1064, %1066 : vector<8x256xf32>
    %1068 = vector.broadcast %1039 : vector<8x1xf32> to vector<8x256xf32>
    %1069 = arith.addf %1067, %1068 : vector<8x256xf32>
    %c9 = arith.constant 9 : index
    %c0_581 = arith.constant 0 : index
    %c0_582 = arith.constant 0 : index
    %1070 = vector.load %arg7[%c9, %c0_581, %c0_582] : memref<10x64x80xbf16, #tpu.memory_space<vmem>>, vector<1x64x80xbf16>
    %1071 = vector.shape_cast %1070 : vector<1x64x80xbf16> to vector<64x80xbf16>
    %c9_583 = arith.constant 9 : index
    %c0_584 = arith.constant 0 : index
    %c0_585 = arith.constant 0 : index
    %1072 = vector.load %arg8[%c9_583, %c0_584, %c0_585] : memref<10x64x1xf32, #tpu.memory_space<vmem>>, vector<1x64x1xf32>
    %1073 = vector.shape_cast %1072 : vector<1x64x1xf32> to vector<64x1xf32>
    %c255_i32_586 = arith.constant 255 : i32
    %1074 = tpu.dynamic_rotate %1069 by %c255_i32_586 dim 1 : vector<8x256xf32>, i32 -> vector<8x256xf32>
    %c254_i32_587 = arith.constant 254 : i32
    %1075 = tpu.dynamic_rotate %1069 by %c254_i32_587 dim 1 : vector<8x256xf32>, i32 -> vector<8x256xf32>
    %c253_i32_588 = arith.constant 253 : i32
    %1076 = tpu.dynamic_rotate %1069 by %c253_i32_588 dim 1 : vector<8x256xf32>, i32 -> vector<8x256xf32>
    %c252_i32_589 = arith.constant 252 : i32
    %1077 = tpu.dynamic_rotate %1069 by %c252_i32_589 dim 1 : vector<8x256xf32>, i32 -> vector<8x256xf32>
    %c240_i32_590 = arith.constant 240 : i32
    %1078 = tpu.dynamic_rotate %1069 by %c240_i32_590 dim 1 : vector<8x256xf32>, i32 -> vector<8x256xf32>
    %c224_i32_591 = arith.constant 224 : i32
    %1079 = tpu.dynamic_rotate %1069 by %c224_i32_591 dim 1 : vector<8x256xf32>, i32 -> vector<8x256xf32>
    %c208_i32_592 = arith.constant 208 : i32
    %1080 = tpu.dynamic_rotate %1069 by %c208_i32_592 dim 1 : vector<8x256xf32>, i32 -> vector<8x256xf32>
    %c192_i32_593 = arith.constant 192 : i32
    %1081 = tpu.dynamic_rotate %1069 by %c192_i32_593 dim 1 : vector<8x256xf32>, i32 -> vector<8x256xf32>
    %1082 = tpu.concatenate %1069, %1074, %1075, %1076, %1077, %1069, %1078, %1079, %1080, %1081 in 0 : vector<8x256xf32>, vector<8x256xf32>, vector<8x256xf32>, vector<8x256xf32>, vector<8x256xf32>, vector<8x256xf32>, vector<8x256xf32>, vector<8x256xf32>, vector<8x256xf32>, vector<8x256xf32> -> vector<80x256xf32>
    %1083 = arith.truncf %1082 : vector<80x256xf32> to vector<80x256xbf16>
    %cst_594 = arith.constant dense<0.000000e+00> : vector<64x256xf32>
    %1084 = tpu.matmul %1071, %1083, %cst_594 {dimension_numbers = #tpu.dot_dimension_numbers<[1], [0], [0], [1], [0, 0, 1, 1], [], []>} : vector<64x80xbf16>, vector<80x256xbf16>, vector<64x256xf32> -> vector<64x256xf32>
    %1085 = vector.broadcast %1073 : vector<64x1xf32> to vector<64x256xf32>
    %1086 = arith.addf %1084, %1085 : vector<64x256xf32>
    %cst_595 = arith.constant 0.000000e+00 : f32
    %1087 = vector.broadcast %cst_595 : f32 to vector<64x256xf32>
    %1088 = arith.maximumf %1086, %1087 : vector<64x256xf32>
    %c0_596 = arith.constant 0 : index
    %c0_597 = arith.constant 0 : index
    %1089 = vector.load %arg2[%c0_596, %c0_597] : memref<64x256xf32, #tpu.memory_space<vmem>>, vector<64x256xf32>
    %1090 = arith.mulf %1088, %1089 : vector<64x256xf32>
    %1091 = arith.truncf %1090 : vector<64x256xf32> to vector<64x256xbf16>
    %c9_598 = arith.constant 9 : index
    %c0_599 = arith.constant 0 : index
    %c0_600 = arith.constant 0 : index
    %1092 = vector.load %arg9[%c9_598, %c0_599, %c0_600] : memref<10x80x64xbf16, #tpu.memory_space<vmem>>, vector<1x80x64xbf16>
    %1093 = vector.shape_cast %1092 : vector<1x80x64xbf16> to vector<80x64xbf16>
    %c9_601 = arith.constant 9 : index
    %c0_602 = arith.constant 0 : index
    %c0_603 = arith.constant 0 : index
    %1094 = vector.load %arg10[%c9_601, %c0_602, %c0_603] : memref<10x8x1xf32, #tpu.memory_space<vmem>>, vector<1x8x1xf32>
    %1095 = vector.shape_cast %1094 : vector<1x8x1xf32> to vector<8x1xf32>
    %cst_604 = arith.constant dense<0.000000e+00> : vector<80x256xf32>
    %1096 = tpu.matmul %1093, %1091, %cst_604 {dimension_numbers = #tpu.dot_dimension_numbers<[1], [0], [0], [1], [0, 0, 1, 1], [], []>} : vector<80x64xbf16>, vector<64x256xbf16>, vector<80x256xf32> -> vector<80x256xf32>
    %1097 = vector.extract_strided_slice %1096 {offsets = [0, 0], sizes = [8, 256], strides = [1, 1]} : vector<80x256xf32> to vector<8x256xf32>
    %1098 = vector.extract_strided_slice %1096 {offsets = [8, 0], sizes = [8, 256], strides = [1, 1]} : vector<80x256xf32> to vector<8x256xf32>
    %c1_i32_605 = arith.constant 1 : i32
    %1099 = tpu.dynamic_rotate %1098 by %c1_i32_605 dim 1 : vector<8x256xf32>, i32 -> vector<8x256xf32>
    %1100 = arith.addf %1097, %1099 : vector<8x256xf32>
    %1101 = vector.extract_strided_slice %1096 {offsets = [16, 0], sizes = [8, 256], strides = [1, 1]} : vector<80x256xf32> to vector<8x256xf32>
    %c2_i32_606 = arith.constant 2 : i32
    %1102 = tpu.dynamic_rotate %1101 by %c2_i32_606 dim 1 : vector<8x256xf32>, i32 -> vector<8x256xf32>
    %1103 = arith.addf %1100, %1102 : vector<8x256xf32>
    %1104 = vector.extract_strided_slice %1096 {offsets = [24, 0], sizes = [8, 256], strides = [1, 1]} : vector<80x256xf32> to vector<8x256xf32>
    %c3_i32_607 = arith.constant 3 : i32
    %1105 = tpu.dynamic_rotate %1104 by %c3_i32_607 dim 1 : vector<8x256xf32>, i32 -> vector<8x256xf32>
    %1106 = arith.addf %1103, %1105 : vector<8x256xf32>
    %1107 = vector.extract_strided_slice %1096 {offsets = [32, 0], sizes = [8, 256], strides = [1, 1]} : vector<80x256xf32> to vector<8x256xf32>
    %c4_i32_608 = arith.constant 4 : i32
    %1108 = tpu.dynamic_rotate %1107 by %c4_i32_608 dim 1 : vector<8x256xf32>, i32 -> vector<8x256xf32>
    %1109 = arith.addf %1106, %1108 : vector<8x256xf32>
    %1110 = vector.extract_strided_slice %1096 {offsets = [40, 0], sizes = [8, 256], strides = [1, 1]} : vector<80x256xf32> to vector<8x256xf32>
    %1111 = arith.addf %1109, %1110 : vector<8x256xf32>
    %1112 = vector.extract_strided_slice %1096 {offsets = [48, 0], sizes = [8, 256], strides = [1, 1]} : vector<80x256xf32> to vector<8x256xf32>
    %c16_i32_609 = arith.constant 16 : i32
    %1113 = tpu.dynamic_rotate %1112 by %c16_i32_609 dim 1 : vector<8x256xf32>, i32 -> vector<8x256xf32>
    %1114 = arith.addf %1111, %1113 : vector<8x256xf32>
    %1115 = vector.extract_strided_slice %1096 {offsets = [56, 0], sizes = [8, 256], strides = [1, 1]} : vector<80x256xf32> to vector<8x256xf32>
    %c32_i32_610 = arith.constant 32 : i32
    %1116 = tpu.dynamic_rotate %1115 by %c32_i32_610 dim 1 : vector<8x256xf32>, i32 -> vector<8x256xf32>
    %1117 = arith.addf %1114, %1116 : vector<8x256xf32>
    %1118 = vector.extract_strided_slice %1096 {offsets = [64, 0], sizes = [8, 256], strides = [1, 1]} : vector<80x256xf32> to vector<8x256xf32>
    %c48_i32_611 = arith.constant 48 : i32
    %1119 = tpu.dynamic_rotate %1118 by %c48_i32_611 dim 1 : vector<8x256xf32>, i32 -> vector<8x256xf32>
    %1120 = arith.addf %1117, %1119 : vector<8x256xf32>
    %1121 = vector.extract_strided_slice %1096 {offsets = [72, 0], sizes = [8, 256], strides = [1, 1]} : vector<80x256xf32> to vector<8x256xf32>
    %c64_i32_612 = arith.constant 64 : i32
    %1122 = tpu.dynamic_rotate %1121 by %c64_i32_612 dim 1 : vector<8x256xf32>, i32 -> vector<8x256xf32>
    %1123 = arith.addf %1120, %1122 : vector<8x256xf32>
    %1124 = vector.broadcast %1095 : vector<8x1xf32> to vector<8x256xf32>
    %1125 = arith.addf %1123, %1124 : vector<8x256xf32>
    %cst_613 = arith.constant 0.000000e+00 : f32
    %1126 = vector.broadcast %cst_613 : f32 to vector<8x256xf32>
    %1127 = arith.maximumf %1125, %1126 : vector<8x256xf32>
    %1128 = arith.addf %1017, %1127 : vector<8x256xf32>
    %cst_614 = arith.constant 0.000000e+00 : f32
    %1129 = vector.broadcast %cst_614 : f32 to vector<8x256xf32>
    %1130 = arith.maximumf %1128, %1129 : vector<8x256xf32>
    %c0_615 = arith.constant 0 : index
    %c0_616 = arith.constant 0 : index
    %1131 = vector.load %arg11[%c0_615, %c0_616] : memref<8x256xf32, #tpu.memory_space<vmem>>, vector<8x256xf32>
    tpu.vector_store %arg11[%c0_615, %c0_616], %1130 {strides = array<i32>} : memref<8x256xf32, #tpu.memory_space<vmem>>, vector<8x256xf32>,
    return
  }
  func.func @transform_0(%arg0: i32) -> (i32, i32) {
    %c0_i32 = arith.constant 0 : i32
    %c0_i32_0 = arith.constant 0 : i32
    return %c0_i32, %arg0 : i32, i32
  }
  func.func @transform_1(%arg0: i32) -> (i32, i32) {
    %c0_i32 = arith.constant 0 : i32
    %c0_i32_0 = arith.constant 0 : i32
    %c0_i32_1 = arith.constant 0 : i32
    return %c0_i32, %c0_i32_0 : i32, i32
  }
  func.func @transform_2(%arg0: i32) -> (i32, i32) {
    %c0_i32 = arith.constant 0 : i32
    %c0_i32_0 = arith.constant 0 : i32
    %c0_i32_1 = arith.constant 0 : i32
    return %c0_i32, %c0_i32_0 : i32, i32
  }
  func.func @transform_3(%arg0: i32) -> (i32, i32) {
    %c0_i32 = arith.constant 0 : i32
    %c0_i32_0 = arith.constant 0 : i32
    %c0_i32_1 = arith.constant 0 : i32
    return %c0_i32, %c0_i32_0 : i32, i32
  }
  func.func @transform_4(%arg0: i32) -> (i32, i32) {
    %c0_i32 = arith.constant 0 : i32
    %c0_i32_0 = arith.constant 0 : i32
    %c0_i32_1 = arith.constant 0 : i32
    return %c0_i32, %c0_i32_0 : i32, i32
  }
  func.func @transform_5(%arg0: i32) -> (i32, i32) {
    %c0_i32 = arith.constant 0 : i32
    %c0_i32_0 = arith.constant 0 : i32
    %c0_i32_1 = arith.constant 0 : i32
    return %c0_i32, %c0_i32_0 : i32, i32
  }
  func.func @transform_6(%arg0: i32) -> (i32, i32, i32) {
    %c0_i32 = arith.constant 0 : i32
    %c0_i32_0 = arith.constant 0 : i32
    %c0_i32_1 = arith.constant 0 : i32
    %c0_i32_2 = arith.constant 0 : i32
    return %c0_i32, %c0_i32_0, %c0_i32_1 : i32, i32, i32
  }
  func.func @transform_7(%arg0: i32) -> (i32, i32, i32) {
    %c0_i32 = arith.constant 0 : i32
    %c0_i32_0 = arith.constant 0 : i32
    %c0_i32_1 = arith.constant 0 : i32
    %c0_i32_2 = arith.constant 0 : i32
    return %c0_i32, %c0_i32_0, %c0_i32_1 : i32, i32, i32
  }
  func.func @transform_8(%arg0: i32) -> (i32, i32, i32) {
    %c0_i32 = arith.constant 0 : i32
    %c0_i32_0 = arith.constant 0 : i32
    %c0_i32_1 = arith.constant 0 : i32
    %c0_i32_2 = arith.constant 0 : i32
    return %c0_i32, %c0_i32_0, %c0_i32_1 : i32, i32, i32
  }
  func.func @transform_9(%arg0: i32) -> (i32, i32, i32) {
    %c0_i32 = arith.constant 0 : i32
    %c0_i32_0 = arith.constant 0 : i32
    %c0_i32_1 = arith.constant 0 : i32
    %c0_i32_2 = arith.constant 0 : i32
    return %c0_i32, %c0_i32_0, %c0_i32_1 : i32, i32, i32
  }
  func.func @transform_10(%arg0: i32) -> (i32, i32) {
    %c0_i32 = arith.constant 0 : i32
    %c0_i32_0 = arith.constant 0 : i32
    return %c0_i32, %arg0 : i32, i32
  }
}

</mosaic_0001>

<llo_original>
// kernel: net_forward_pallas.1
$region0: #{net_forward_pallas.1}
  #allocation0 [shape = 'u32[]', space=smem, size = 0x4, offset = 0x4, fixed_abs, tag = 'smem constant byte address 0x4 - core index']
  #allocation1 [shape = 'u32[144,128]{1,0:T(1,128)}', space=vmem, size = 0x12000, scoped, tag = 'internal scratch']
  %s0 = inlined_call_operand.vmem [shape: f32[8,512], index: 0, kind: input, shape index: {}]
  %s1 = inlined_call_operand.vmem [shape: f32[64,256], index: 1, kind: input, shape index: {}]
  %s2 = inlined_call_operand.vmem [shape: bf16[64,80], index: 2, kind: input, shape index: {}]
  %s3 = inlined_call_operand.vmem [shape: f32[64,1], index: 3, kind: input, shape index: {}]
  %s4 = inlined_call_operand.vmem [shape: bf16[80,64], index: 4, kind: input, shape index: {}]
  %s5 = inlined_call_operand.vmem [shape: f32[8,1], index: 5, kind: input, shape index: {}]
  %s6 = inlined_call_operand.vmem [shape: bf16[10,64,80], index: 6, kind: input, shape index: {}]
  %s7 = inlined_call_operand.vmem [shape: f32[10,64,1], index: 7, kind: input, shape index: {}]
  %s8 = inlined_call_operand.vmem [shape: bf16[10,80,64], index: 8, kind: input, shape index: {}]
  %s9 = inlined_call_operand.vmem [shape: f32[10,8,1], index: 9, kind: input, shape index: {}]
  %s10 = inlined_call_operand.vmem [shape: f32[8,512], index: 10, kind: output, shape index: {}]
  %s11 = sld [smem:[#allocation0]]
  $region73: #{net_forward_pallas.1} parent=0
    _
  %s13 = ssub.s32 1, %s11
  %s14 = scalar_select 0, %s13, %s11
  loop: start=0, step=1, limit=4
  $region2: #{net_forward_pallas.1} parent=0 // loop_pre_header
    _
  $region3: #{net_forward_pallas.1} parent=0 // loop_header
    %s16 = sphi 0, %s20
    %p17 = scmp.ge.s32.totalorder %s16, 4
    %s26 = sphi 0, %s28
    %s29 = sphi 0, %s26
    %s30 = sphi 0, %s29
    %s46 = sphi 0, %s30
    %s50 = sphi 0, %s50
    %s52 = sphi 0, %s50
    %s53 = sphi 0, %s52
    %s67 = sphi 0, %s53
    %s71 = sphi 0, %s71
    %s73 = sphi 0, %s71
    %s74 = sphi 0, %s73
    %s88 = sphi 0, %s74
    %s92 = sphi 0, %s92
    %s94 = sphi 0, %s92
    %s95 = sphi 0, %s94
    %s109 = sphi 0, %s95
    %s113 = sphi 0, %s113
    %s115 = sphi 0, %s113
    %s116 = sphi 0, %s115
    %s130 = sphi 0, %s116
    %s134 = sphi 0, %s134
    %s136 = sphi 0, %s134
    %s137 = sphi 0, %s136
    %s151 = sphi 0, %s137
    %s155 = sphi 0, %s155
    %s157 = sphi 0, %s155
    %s158 = sphi 0, %s157
    %s172 = sphi 0, %s158
    %s176 = sphi 0, %s176
    %s178 = sphi 0, %s176
    %s179 = sphi 0, %s178
    %s193 = sphi 0, %s179
    %s197 = sphi 0, %s197
    %s199 = sphi 0, %s197
    %s200 = sphi 0, %s199
    %s214 = sphi 0, %s200
    %s218 = sphi 0, %s218
    %s220 = sphi 0, %s218
    %s221 = sphi 0, %s220
    %s235 = sphi 0, %s221
    %s241 = sphi 0, %s243
    %s244 = sphi 0, %s241
    %s245 = sphi 0, %s244
    %s261 = sphi 0, %s245
  $region4: #{net_forward_pallas.1} parent=0 // loop_header_branch
    %19 = sbr.rel (%p17) target = $region8
  $region5: #{net_forward_pallas.1} parent=0 // loop_body
    %s21 = ssub.s32 %s16, 1
    %s22 = ssub.s32 %s16, 2
    %s23 = sadd.s32 %s16, 1
    %s24 = ssub.s32 %s16, %s23
    %p25 = scmp.eq.s32.totalorder %s24, 0
    %s27 = sadd.s32 %s26, 1
    %s28 = scalar_select %p25, %s26, %s27
    %p31 = pneg %p25
    %p32 = scmp.eq.s32.totalorder %s16, 1
    %p33 = por %p31, %p32
    %p34 = scmp.ne.s32.totalorder %s26, %s29
    %p35 = scmp.eq.s32.totalorder %s16, 0
    %p36 = por %p34, %p35
    %p37 = scmp.ne.s32.totalorder %s26, %s29
    %p38 = scmp.eq.s32.totalorder %s21, 1
    %p39 = por %p37, %p38
    %p40 = scmp.ne.s32.totalorder %s29, %s30
    %p41 = scmp.eq.s32.totalorder %s21, 0
    %p42 = por %p40, %p41
    %p43 = scmp.ne.s32.totalorder %s29, %s30
    %p44 = scmp.eq.s32.totalorder %s22, 1
    %p45 = por %p43, %p44
    %p47 = scmp.ne.s32.totalorder %s30, %s46
    %p48 = scmp.eq.s32.totalorder %s22, 0
    %p49 = por %p47, %p48
    %s51 = sadd.s32 %s50, 1
    %p54 = scmp.eq.s32.totalorder %s16, 1
    %p55 = scmp.ne.s32.totalorder %s50, %s52
    %p56 = scmp.eq.s32.totalorder %s16, 0
    %p57 = por %p55, %p56
    %p58 = scmp.ne.s32.totalorder %s50, %s52
    %p59 = scmp.eq.s32.totalorder %s21, 1
    %p60 = por %p58, %p59
    %p61 = scmp.ne.s32.totalorder %s52, %s53
    %p62 = scmp.eq.s32.totalorder %s21, 0
    %p63 = por %p61, %p62
    %p64 = scmp.ne.s32.totalorder %s52, %s53
    %p65 = scmp.eq.s32.totalorder %s22, 1
    %p66 = por %p64, %p65
    %p68 = scmp.ne.s32.totalorder %s53, %s67
    %p69 = scmp.eq.s32.totalorder %s22, 0
    %p70 = por %p68, %p69
    %s72 = sadd.s32 %s71, 1
    %p75 = scmp.eq.s32.totalorder %s16, 1
    %p76 = scmp.ne.s32.totalorder %s71, %s73
    %p77 = scmp.eq.s32.totalorder %s16, 0
    %p78 = por %p76, %p77
    %p79 = scmp.ne.s32.totalorder %s71, %s73
    %p80 = scmp.eq.s32.totalorder %s21, 1
    %p81 = por %p79, %p80
    %p82 = scmp.ne.s32.totalorder %s73, %s74
    %p83 = scmp.eq.s32.totalorder %s21, 0
    %p84 = por %p82, %p83
    %p85 = scmp.ne.s32.totalorder %s73, %s74
    %p86 = scmp.eq.s32.totalorder %s22, 1
    %p87 = por %p85, %p86
    %p89 = scmp.ne.s32.totalorder %s74, %s88
    %p90 = scmp.eq.s32.totalorder %s22, 0
    %p91 = por %p89, %p90
    %s93 = sadd.s32 %s92, 1
    %p96 = scmp.eq.s32.totalorder %s16, 1
    %p97 = scmp.ne.s32.totalorder %s92, %s94
    %p98 = scmp.eq.s32.totalorder %s16, 0
    %p99 = por %p97, %p98
    %p100 = scmp.ne.s32.totalorder %s92, %s94
    %p101 = scmp.eq.s32.totalorder %s21, 1
    %p102 = por %p100, %p101
    %p103 = scmp.ne.s32.totalorder %s94, %s95
    %p104 = scmp.eq.s32.totalorder %s21, 0
    %p105 = por %p103, %p104
    %p106 = scmp.ne.s32.totalorder %s94, %s95
    %p107 = scmp.eq.s32.totalorder %s22, 1
    %p108 = por %p106, %p107
    %p110 = scmp.ne.s32.totalorder %s95, %s109
    %p111 = scmp.eq.s32.totalorder %s22, 0
    %p112 = por %p110, %p111
    %s114 = sadd.s32 %s113, 1
    %p117 = scmp.eq.s32.totalorder %s16, 1
    %p118 = scmp.ne.s32.totalorder %s113, %s115
    %p119 = scmp.eq.s32.totalorder %s16, 0
    %p120 = por %p118, %p119
    %p121 = scmp.ne.s32.totalorder %s113, %s115
    %p122 = scmp.eq.s32.totalorder %s21, 1
    %p123 = por %p121, %p122
    %p124 = scmp.ne.s32.totalorder %s115, %s116
    %p125 = scmp.eq.s32.totalorder %s21, 0
    %p126 = por %p124, %p125
    %p127 = scmp.ne.s32.totalorder %s115, %s116
    %p128 = scmp.eq.s32.totalorder %s22, 1
    %p129 = por %p127, %p128
    %p131 = scmp.ne.s32.totalorder %s116, %s130
    %p132 = scmp.eq.s32.totalorder %s22, 0
    %p133 = por %p131, %p132
    %s135 = sadd.s32 %s134, 1
    %p138 = scmp.eq.s32.totalorder %s16, 1
    %p139 = scmp.ne.s32.totalorder %s134, %s136
    %p140 = scmp.eq.s32.totalorder %s16, 0
    %p141 = por %p139, %p140
    %p142 = scmp.ne.s32.totalorder %s134, %s136
    %p143 = scmp.eq.s32.totalorder %s21, 1
    %p144 = por %p142, %p143
    %p145 = scmp.ne.s32.totalorder %s136, %s137
    %p146 = scmp.eq.s32.totalorder %s21, 0
    %p147 = por %p145, %p146
    %p148 = scmp.ne.s32.totalorder %s136, %s137
    %p149 = scmp.eq.s32.totalorder %s22, 1
    %p150 = por %p148, %p149
    %p152 = scmp.ne.s32.totalorder %s137, %s151
    %p153 = scmp.eq.s32.totalorder %s22, 0
    %p154 = por %p152, %p153
    %s156 = sadd.s32 %s155, 1
    %p159 = scmp.eq.s32.totalorder %s16, 1
    %p160 = scmp.ne.s32.totalorder %s155, %s157
    %p161 = scmp.eq.s32.totalorder %s16, 0
    %p162 = por %p160, %p161
    %p163 = scmp.ne.s32.totalorder %s155, %s157
    %p164 = scmp.eq.s32.totalorder %s21, 1
    %p165 = por %p163, %p164
    %p166 = scmp.ne.s32.totalorder %s157, %s158
    %p167 = scmp.eq.s32.totalorder %s21, 0
    %p168 = por %p166, %p167
    %p169 = scmp.ne.s32.totalorder %s157, %s158
    %p170 = scmp.eq.s32.totalorder %s22, 1
    %p171 = por %p169, %p170
    %p173 = scmp.ne.s32.totalorder %s158, %s172
    %p174 = scmp.eq.s32.totalorder %s22, 0
    %p175 = por %p173, %p174
    %s177 = sadd.s32 %s176, 1
    %p180 = scmp.eq.s32.totalorder %s16, 1
    %p181 = scmp.ne.s32.totalorder %s176, %s178
    %p182 = scmp.eq.s32.totalorder %s16, 0
    %p183 = por %p181, %p182
    %p184 = scmp.ne.s32.totalorder %s176, %s178
    %p185 = scmp.eq.s32.totalorder %s21, 1
    %p186 = por %p184, %p185
    %p187 = scmp.ne.s32.totalorder %s178, %s179
    %p188 = scmp.eq.s32.totalorder %s21, 0
    %p189 = por %p187, %p188
    %p190 = scmp.ne.s32.totalorder %s178, %s179
    %p191 = scmp.eq.s32.totalorder %s22, 1
    %p192 = por %p190, %p191
    %p194 = scmp.ne.s32.totalorder %s179, %s193
    %p195 = scmp.eq.s32.totalorder %s22, 0
    %p196 = por %p194, %p195
    %s198 = sadd.s32 %s197, 1
    %p201 = scmp.eq.s32.totalorder %s16, 1
    %p202 = scmp.ne.s32.totalorder %s197, %s199
    %p203 = scmp.eq.s32.totalorder %s16, 0
    %p204 = por %p202, %p203
    %p205 = scmp.ne.s32.totalorder %s197, %s199
    %p206 = scmp.eq.s32.totalorder %s21, 1
    %p207 = por %p205, %p206
    %p208 = scmp.ne.s32.totalorder %s199, %s200
    %p209 = scmp.eq.s32.totalorder %s21, 0
    %p210 = por %p208, %p209
    %p211 = scmp.ne.s32.totalorder %s199, %s200
    %p212 = scmp.eq.s32.totalorder %s22, 1
    %p213 = por %p211, %p212
    %p215 = scmp.ne.s32.totalorder %s200, %s214
    %p216 = scmp.eq.s32.totalorder %s22, 0
    %p217 = por %p215, %p216
    %s219 = sadd.s32 %s218, 1
    %p222 = scmp.eq.s32.totalorder %s16, 1
    %p223 = scmp.ne.s32.totalorder %s218, %s220
    %p224 = scmp.eq.s32.totalorder %s16, 0
    %p225 = por %p223, %p224
    %p226 = scmp.ne.s32.totalorder %s218, %s220
    %p227 = scmp.eq.s32.totalorder %s21, 1
    %p228 = por %p226, %p227
    %p229 = scmp.ne.s32.totalorder %s220, %s221
    %p230 = scmp.eq.s32.totalorder %s21, 0
    %p231 = por %p229, %p230
    %p232 = scmp.ne.s32.totalorder %s220, %s221
    %p233 = scmp.eq.s32.totalorder %s22, 1
    %p234 = por %p232, %p233
    %p236 = scmp.ne.s32.totalorder %s221, %s235
    %p237 = scmp.eq.s32.totalorder %s22, 0
    %p238 = por %p236, %p237
    %s239 = ssub.s32 %s16, %s23
    %p240 = scmp.eq.s32.totalorder %s239, 0
    %s242 = sadd.s32 %s241, 1
    %s243 = scalar_select %p240, %s241, %s242
    %p246 = pneg %p240
    %p247 = scmp.eq.s32.totalorder %s16, 1
    %p248 = por %p246, %p247
    %p249 = scmp.ne.s32.totalorder %s241, %s244
    %p250 = scmp.eq.s32.totalorder %s16, 0
    %p251 = por %p249, %p250
    %p252 = scmp.ne.s32.totalorder %s241, %s244
    %p253 = scmp.eq.s32.totalorder %s21, 1
    %p254 = por %p252, %p253
    %p255 = scmp.ne.s32.totalorder %s244, %s245
    %p256 = scmp.eq.s32.totalorder %s21, 0
    %p257 = por %p255, %p256
    %p258 = scmp.ne.s32.totalorder %s244, %s245
    %p259 = scmp.eq.s32.totalorder %s22, 1
    %p260 = por %p258, %p259
    %p262 = scmp.ne.s32.totalorder %s245, %s261
    %p263 = scmp.eq.s32.totalorder %s22, 0
    %p264 = por %p262, %p263
    %p265 = scmp.le.s32.totalorder 1, %s16
    %p266 = scmp.lt.s32.totalorder %s16, 3
    %p267 = pnand %p265, %p266
    %p268 = pneg %p267
    // Predicated region
    $region9: #{net_forward_pallas.1} parent=5 // pred_check
      _
    $region10: #{net_forward_pallas.1} parent=5 // pred_check_branch
      %270 = sbr.rel (%p267) target = $region12
    $region11: #{net_forward_pallas.1} parent=5 // pred_region
      %s271 = ssub.s32 %s16, 1
      // Predicated region
      $region13: #{net_forward_pallas.1} parent=11 // pred_check
        %p272 = pneg %p63
      $region14: #{net_forward_pallas.1} parent=11 // pred_check_branch
        %274 = sbr.rel (%p272) target = $region16
      $region15: #{net_forward_pallas.1} parent=11 // pred_region
        _
      $region16: #{net_forward_pallas.1} parent=11 // pred_fallthru
        _
      // Predicated region
      $region17: #{net_forward_pallas.1} parent=11 // pred_check
        %p275 = pneg %p84
      $region18: #{net_forward_pallas.1} parent=11 // pred_check_branch
        %277 = sbr.rel (%p275) target = $region20
      $region19: #{net_forward_pallas.1} parent=11 // pred_region
        _
      $region20: #{net_forward_pallas.1} parent=11 // pred_fallthru
        _
      // Predicated region
      $region21: #{net_forward_pallas.1} parent=11 // pred_check
        %p278 = pneg %p105
      $region22: #{net_forward_pallas.1} parent=11 // pred_check_branch
        %280 = sbr.rel (%p278) target = $region24
      $region23: #{net_forward_pallas.1} parent=11 // pred_region
        _
      $region24: #{net_forward_pallas.1} parent=11 // pred_fallthru
        _
      // Predicated region
      $region25: #{net_forward_pallas.1} parent=11 // pred_check
        %p281 = pneg %p126
      $region26: #{net_forward_pallas.1} parent=11 // pred_check_branch
        %283 = sbr.rel (%p281) target = $region28
      $region27: #{net_forward_pallas.1} parent=11 // pred_region
        _
      $region28: #{net_forward_pallas.1} parent=11 // pred_fallthru
        _
      // Predicated region
      $region29: #{net_forward_pallas.1} parent=11 // pred_check
        %p284 = pneg %p147
      $region30: #{net_forward_pallas.1} parent=11 // pred_check_branch
        %286 = sbr.rel (%p284) target = $region32
      $region31: #{net_forward_pallas.1} parent=11 // pred_region
        _
      $region32: #{net_forward_pallas.1} parent=11 // pred_fallthru
        _
      // Predicated region
      $region33: #{net_forward_pallas.1} parent=11 // pred_check
        %p287 = pneg %p168
      $region34: #{net_forward_pallas.1} parent=11 // pred_check_branch
        %289 = sbr.rel (%p287) target = $region36
      $region35: #{net_forward_pallas.1} parent=11 // pred_region
        _
      $region36: #{net_forward_pallas.1} parent=11 // pred_fallthru
        _
      // Predicated region
      $region37: #{net_forward_pallas.1} parent=11 // pred_check
        %p290 = pneg %p189
      $region38: #{net_forward_pallas.1} parent=11 // pred_check_branch
        %292 = sbr.rel (%p290) target = $region40
      $region39: #{net_forward_pallas.1} parent=11 // pred_region
        _
      $region40: #{net_forward_pallas.1} parent=11 // pred_fallthru
        _
      // Predicated region
      $region41: #{net_forward_pallas.1} parent=11 // pred_check
        %p293 = pneg %p210
      $region42: #{net_forward_pallas.1} parent=11 // pred_check_branch
        %295 = sbr.rel (%p293) target = $region44
      $region43: #{net_forward_pallas.1} parent=11 // pred_region
        _
      $region44: #{net_forward_pallas.1} parent=11 // pred_fallthru
        _
      // Predicated region
      $region45: #{net_forward_pallas.1} parent=11 // pred_check
        %p296 = pneg %p231
      $region46: #{net_forward_pallas.1} parent=11 // pred_check_branch
        %298 = sbr.rel (%p296) target = $region48
      $region47: #{net_forward_pallas.1} parent=11 // pred_region
        _
      $region48: #{net_forward_pallas.1} parent=11 // pred_fallthru
        _
    $region12: #{net_forward_pallas.1} parent=5 // pred_fallthru
      _
    %p299 = scmp.lt.s32.totalorder %s16, 2
    // Predicated region
    $region49: #{net_forward_pallas.1} parent=5 // pred_check
      %p300 = pneg %p299
    $region50: #{net_forward_pallas.1} parent=5 // pred_check_branch
      %302 = sbr.rel (%p300) target = $region52
    $region51: #{net_forward_pallas.1} parent=5 // pred_region
      // Predicated region
      $region53: #{net_forward_pallas.1} parent=51 // pred_check
        %p303 = pneg %p36
      $region54: #{net_forward_pallas.1} parent=51 // pred_check_branch
        %305 = sbr.rel (%p303) target = $region56
      $region55: #{net_forward_pallas.1} parent=51 // pred_region
        %s306 = smul.u32 2, %s16
        %p307 = scmp.lt.s32.totalorder %s306, 3
        %s308 = scalar_select %p307, %s306, 3
        %s309 = smul.addr %s308, 8
        %s310 = scalar_lea.vmem %s0, %s309
        %s311 = smul.u32 2, %s16
      $region56: #{net_forward_pallas.1} parent=51 // pred_fallthru
        _
    $region52: #{net_forward_pallas.1} parent=5 // pred_fallthru
      _
    %p312 = scmp.le.s32.totalorder 1, %s16
    %p313 = scmp.lt.s32.totalorder %s16, 3
    %p314 = pnand %p312, %p313
    %p315 = pneg %p314
    // Predicated region
    $region57: #{net_forward_pallas.1} parent=5 // pred_check
      _
    $region58: #{net_forward_pallas.1} parent=5 // pred_check_branch
      %317 = sbr.rel (%p314) target = $region60
    $region59: #{net_forward_pallas.1} parent=5 // pred_region
      %s318 = ssub.s32 %s16, 1
      %s319 = smul.u32 2, %s21
      %p320 = scmp.lt.s32.totalorder %s319, 3
      %s321 = scalar_select %p320, %s319, 3
      %s322 = smul.addr %s321, 8
      %s323 = scalar_lea.vmem %s0, %s322
      %p324 = pneg %p42
      %p325 = pneg %p39
      %p326 = pneg %p63
      %p327 = pneg %p60
      %p328 = pneg %p84
      %p329 = pneg %p81
      %p330 = pneg %p105
      %p331 = pneg %p102
      %p332 = pneg %p126
      %p333 = pneg %p123
      %p334 = pneg %p147
      %p335 = pneg %p144
      %p336 = pneg %p168
      %p337 = pneg %p165
      %p338 = pneg %p189
      %p339 = pneg %p186
      %p340 = pneg %p210
      %p341 = pneg %p207
      %p342 = pneg %p231
      %p343 = pneg %p228
      %p344 = pneg %p257
      %p345 = pneg %p254
      %s346 = smul.u32 2, %s21
      %p347 = scmp.lt.s32.totalorder %s346, 3
      %s348 = scalar_select %p347, %s346, 3
      %s349 = smul.addr %s348, 8
      %s350 = scalar_lea.vmem %s10, %s349
      %s351 = smul.u32 2, %s21
      %p352 = scmp.lt.s32.totalorder %s351, 3
      %s353 = scalar_select %p352, %s351, 3
      %s354 = smul.addr %s353, 8
      %s355 = scalar_lea.vmem %s0, %s354
      %s356 = smul.u32 2, %s21
      %s357 = smul.u32 2, %s21
      %p358 = scmp.lt.s32.totalorder %s357, 3
      %s359 = scalar_select %p358, %s357, 3
      %s360 = smul.addr %s359, 8
      %s361 = scalar_lea.vmem %s10, %s360
      %s362 = smul.u32 2, %s21
      %v364 = vld [vmem:[%s355] sm:$0xff]
      %v365 = vld [vmem:[%s355 + $0x8] sm:$0xff]
      %v366 = vld [vmem:[%s2] sm:$0xf]
      %v367 = vld [vmem:[%s2 + $0x4] sm:$0xf]
      %v368 = vld [vmem:[%s2 + $0x8] sm:$0xf]
      %v369 = vld [vmem:[%s2 + $0xc] sm:$0xf]
      %v370 = vld [vmem:[%s2 + $0x10] sm:$0xf]
      %v371 = vld [vmem:[%s2 + $0x14] sm:$0xf]
      %v372 = vld [vmem:[%s2 + $0x18] sm:$0xf]
      %v373 = vld [vmem:[%s2 + $0x1c] sm:$0xf]
      %v374 = vld [vmem:[%s3] sm:$0xff]
      %v375 = vld [vmem:[%s3 + $0x8] sm:$0xff]
      %v376 = vld [vmem:[%s3 + $0x10] sm:$0xff]
      %v377 = vld [vmem:[%s3 + $0x18] sm:$0xff]
      %v378 = vld [vmem:[%s3 + $0x20] sm:$0xff]
      %v379 = vld [vmem:[%s3 + $0x28] sm:$0xff]
      %v380 = vld [vmem:[%s3 + $0x30] sm:$0xff]
      %v381 = vld [vmem:[%s3 + $0x38] sm:$0xff]
      %382 = vrot.lane.b32.xlu0 %v364, 127
      %v383 = vpop.permute.xlu0 %382
      %384 = vrot.lane.b32.xlu0 %v365, 127
      %v385 = vpop.permute.xlu0 %384
      %v386 = vlaneseq
      %v387 = vand.u32 %v386, 127
      %vm388 = vcmp.lt.s32.totalorder %v387, 127
      %v389 = vsel %vm388, %v383, %v385
      %v390 = vsel %vm388, %v385, %v383
      %391 = vrot.lane.b32.xlu0 %v364, 126
      %v392 = vpop.permute.xlu0 %391
      %393 = vrot.lane.b32.xlu0 %v365, 126
      %v394 = vpop.permute.xlu0 %393
      %vm395 = vcmp.lt.s32.totalorder %v387, 126
      %v396 = vsel %vm395, %v392, %v394
      %v397 = vsel %vm395, %v394, %v392
      %398 = vrot.lane.b32.xlu0 %v364, 125
      %v399 = vpop.permute.xlu0 %398
      %400 = vrot.lane.b32.xlu0 %v365, 125
      %v401 = vpop.permute.xlu0 %400
      %vm402 = vcmp.lt.s32.totalorder %v387, 125
      %v403 = vsel %vm402, %v399, %v401
      %v404 = vsel %vm402, %v401, %v399
      %405 = vrot.lane.b32.xlu0 %v364, 124
      %v406 = vpop.permute.xlu0 %405
      %407 = vrot.lane.b32.xlu0 %v365, 124
      %v408 = vpop.permute.xlu0 %407
      %vm409 = vcmp.lt.s32.totalorder %v387, 124
      %v410 = vsel %vm409, %v406, %v408
      %v411 = vsel %vm409, %v408, %v406
      %412 = vrot.lane.b32.xlu0 %v364, 112
      %v413 = vpop.permute.xlu0 %412
      %414 = vrot.lane.b32.xlu0 %v365, 112
      %v415 = vpop.permute.xlu0 %414
      %vm416 = vcmp.lt.s32.totalorder %v387, 112
      %v417 = vsel %vm416, %v413, %v415
      %v418 = vsel %vm416, %v415, %v413
      %419 = vrot.lane.b32.xlu0 %v364, 96
      %v420 = vpop.permute.xlu0 %419
      %421 = vrot.lane.b32.xlu0 %v365, 96
      %v422 = vpop.permute.xlu0 %421
      %vm423 = vcmp.lt.s32.totalorder %v387, 96
      %v424 = vsel %vm423, %v420, %v422
      %v425 = vsel %vm423, %v422, %v420
      %426 = vrot.lane.b32.xlu0 %v364, 80
      %v427 = vpop.permute.xlu0 %426
      %428 = vrot.lane.b32.xlu0 %v365, 80
      %v429 = vpop.permute.xlu0 %428
      %vm430 = vcmp.lt.s32.totalorder %v387, 80
      %v431 = vsel %vm430, %v427, %v429
      %v432 = vsel %vm430, %v429, %v427
      %433 = vrot.lane.b32.xlu0 %v364, 64
      %v434 = vpop.permute.xlu0 %433
      %435 = vrot.lane.b32.xlu0 %v365, 64
      %v436 = vpop.permute.xlu0 %435
      %vm437 = vcmp.lt.s32.totalorder %v387, 64
      %v438 = vsel %vm437, %v434, %v436
      %v439 = vsel %vm437, %v436, %v434
      %v440 = vpack.c.bf16 %v389, %v364
      %v441 = vpack.c.bf16 %v390, %v365
      %v442 = vpack.c.bf16 %v403, %v396
      %v443 = vpack.c.bf16 %v404, %v397
      %v444 = vpack.c.bf16 %v364, %v410
      %v445 = vpack.c.bf16 %v365, %v411
      %v446 = vpack.c.bf16 %v424, %v417
      %v447 = vpack.c.bf16 %v425, %v418
      %v448 = vpack.c.bf16 %v438, %v431
      %v449 = vpack.c.bf16 %v439, %v432
      %451 = vset.pattern.permute.xlu0 0
      %452 = vperm.xlu0 %451, %v374
      %v453 = vpop.permute.xlu0 %452
      %456 = vset.pattern.permute.xlu0 0
      %457 = vperm.xlu0 %456, %v375
      %v458 = vpop.permute.xlu0 %457
      %461 = vset.pattern.permute.xlu0 0
      %462 = vperm.xlu0 %461, %v376
      %v463 = vpop.permute.xlu0 %462
      %466 = vset.pattern.permute.xlu0 0
      %467 = vperm.xlu0 %466, %v377
      %v468 = vpop.permute.xlu0 %467
      %471 = vset.pattern.permute.xlu0 0
      %472 = vperm.xlu0 %471, %v378
      %v473 = vpop.permute.xlu0 %472
      %476 = vset.pattern.permute.xlu0 0
      %477 = vperm.xlu0 %476, %v379
      %v478 = vpop.permute.xlu0 %477
      %481 = vset.pattern.permute.xlu0 0
      %482 = vperm.xlu0 %481, %v380
      %v483 = vpop.permute.xlu0 %482
      %486 = vset.pattern.permute.xlu0 0
      %487 = vperm.xlu0 %486, %v381
      %v488 = vpop.permute.xlu0 %487
      %v498 = vunpack.c.l.b16 %v366
      %v499 = vunpack.c.l.b16 %v367
      %v500 = vunpack.c.l.b16 %v368
      %v501 = vunpack.c.l.b16 %v369
      %v502 = vunpack.c.l.b16 %v370
      %v503 = vunpack.c.l.b16 %v371
      %v504 = vunpack.c.l.b16 %v372
      %v505 = vunpack.c.l.b16 %v373
      %v506 = vpack.c.b16 %v499, %v498
      %v507 = vpack.c.b16 %v501, %v500
      %v508 = vpack.c.b16 %v503, %v502
      %v509 = vpack.c.b16 %v505, %v504
      %vm510 = vcmask 654336
      %v512 = vsel %vm510, %v506, 0
      %v515 = vsel %vm510, %v507, 0
      %v518 = vsel %vm510, %v508, 0
      %v521 = vsel %vm510, %v509, 0
      %523 = vmatprep.subr.bf16.mxu0 %v441
      %524 = vmatpush1.bf16.msra.mxu0 %v440
      %525 = vmatprep.subr.bf16.mxu0 %v443
      %526 = vmatpush1.bf16.msra.mxu0 %v442
      %527 = vmatprep.subr.bf16.mxu0 %v445
      %528 = vmatpush1.bf16.msra.mxu0 %v444
      %529 = vmatprep.subr.bf16.mxu0 %v447
      %530 = vmatpush1.bf16.msra.mxu0 %v446
      %531 = vmatprep.subr.bf16.mxu0 %v449
      %532 = vmatpush1.bf16.msra.mxu0 %v448
      %533 = vmatprep.subr.bf16.mxu0 0
      %534 = vmatpush1.bf16.msra.mxu0 0
      %535 = vmatprep.subr.bf16.mxu0 0
      %536 = vmatpush1.bf16.msra.mxu0 0
      %537 = vmatprep.subr.bf16.mxu0 0
      %538 = vmatpush1.bf16.msra.mxu0 0
      %539 = vmatprep.subr.bf16.mxu0 0
      %540 = vmatpush1.bf16.msra.mxu0 0
      %541 = vmatprep.subr.bf16.mxu0 0
      %542 = vmatpush1.bf16.msra.mxu0 0
      %543 = vmatprep.subr.bf16.mxu0 0
      %544 = vmatpush1.bf16.msra.mxu0 0
      %545 = vmatprep.subr.bf16.mxu0 0
      %546 = vmatpush1.bf16.msra.mxu0 0
      %547 = vmatprep.subr.bf16.mxu0 0
      %548 = vmatpush1.bf16.msra.mxu0 0
      %549 = vmatprep.subr.bf16.mxu0 0
      %550 = vmatpush1.bf16.msra.mxu0 0
      %551 = vmatprep.subr.bf16.mxu0 0
      %552 = vmatpush1.bf16.msra.mxu0 0
      %553 = vmatprep.subr.bf16.mxu0 0
      %554 = vmatpush1.bf16.msra.mxu0 0
      %555 = vmatprep.mubr.bf16.mxu0 0
      %556 = vmatmul.mubr.bf16.gmra.mrb[0].mxu0 %v512
      %v557 = vpop.f32.mrb[0].mxu0
      %v558 = vadd.f32 %v453, %v557
      %v559 = vpop.f32.mrb[0].mxu0
      %v560 = vadd.f32 %v453, %v559
      %v561 = vpop.f32.mrb[0].mxu0
      %v562 = vadd.f32 %v458, %v561
      %v563 = vpop.f32.mrb[0].mxu0
      %v564 = vadd.f32 %v458, %v563
      %565 = vmatprep.mubr.bf16.mxu0 0
      %566 = vmatmul.mubr.bf16.gmra.mrb[0].mxu0 %v515
      %v567 = vpop.f32.mrb[0].mxu0
      %v568 = vadd.f32 %v463, %v567
      %v569 = vpop.f32.mrb[0].mxu0
      %v570 = vadd.f32 %v463, %v569
      %v571 = vpop.f32.mrb[0].mxu0
      %v572 = vadd.f32 %v468, %v571
      %v573 = vpop.f32.mrb[0].mxu0
      %v574 = vadd.f32 %v468, %v573
      %575 = vmatprep.mubr.bf16.mxu0 0
      %576 = vmatmul.mubr.bf16.gmra.mrb[0].mxu0 %v518
      %v577 = vpop.f32.mrb[0].mxu0
      %v578 = vadd.f32 %v473, %v577
      %v579 = vpop.f32.mrb[0].mxu0
      %v580 = vadd.f32 %v473, %v579
      %v581 = vpop.f32.mrb[0].mxu0
      %v582 = vadd.f32 %v478, %v581
      %v583 = vpop.f32.mrb[0].mxu0
      %v584 = vadd.f32 %v478, %v583
      %585 = vmatprep.mubr.bf16.mxu0 0
      %586 = vmatmul.mubr.bf16.gmra.mrb[0].mxu0 %v521
      %v587 = vpop.f32.mrb[0].mxu0
      %v588 = vadd.f32 %v483, %v587
      %v589 = vpop.f32.mrb[0].mxu0
      %v590 = vadd.f32 %v483, %v589
      %v591 = vpop.f32.mrb[0].mxu0
      %v592 = vadd.f32 %v488, %v591
      %v593 = vpop.f32.mrb[0].mxu0
      %v594 = vadd.f32 %v488, %v593
      %595 = vdwg.mxu0
      %v596 = vmax.f32 %v558, 0.0
      %v597 = vmax.f32 %v560, 0.0
      %v598 = vmax.f32 %v562, 0.0
      %v599 = vmax.f32 %v564, 0.0
      %v600 = vmax.f32 %v568, 0.0
      %v601 = vmax.f32 %v570, 0.0
      %v602 = vmax.f32 %v572, 0.0
      %v603 = vmax.f32 %v574, 0.0
      %v604 = vmax.f32 %v578, 0.0
      %v605 = vmax.f32 %v580, 0.0
      %v606 = vmax.f32 %v582, 0.0
      %v607 = vmax.f32 %v584, 0.0
      %v608 = vmax.f32 %v588, 0.0
      %v609 = vmax.f32 %v590, 0.0
      %v610 = vmax.f32 %v592, 0.0
      %v611 = vmax.f32 %v594, 0.0
      %v612 = vld [vmem:[%s1] sm:$0xff]
      %v613 = vld [vmem:[%s1 + $0x8] sm:$0xff]
      %v614 = vld [vmem:[%s1 + $0x10] sm:$0xff]
      %v615 = vld [vmem:[%s1 + $0x18] sm:$0xff]
      %v616 = vld [vmem:[%s1 + $0x20] sm:$0xff]
      %v617 = vld [vmem:[%s1 + $0x28] sm:$0xff]
      %v618 = vld [vmem:[%s1 + $0x30] sm:$0xff]
      %v619 = vld [vmem:[%s1 + $0x38] sm:$0xff]
      %v620 = vld [vmem:[%s1 + $0x40] sm:$0xff]
      %v621 = vld [vmem:[%s1 + $0x48] sm:$0xff]
      %v622 = vld [vmem:[%s1 + $0x50] sm:$0xff]
      %v623 = vld [vmem:[%s1 + $0x58] sm:$0xff]
      %v624 = vld [vmem:[%s1 + $0x60] sm:$0xff]
      %v625 = vld [vmem:[%s1 + $0x68] sm:$0xff]
      %v626 = vld [vmem:[%s1 + $0x70] sm:$0xff]
      %v627 = vld [vmem:[%s1 + $0x78] sm:$0xff]
      %v628 = vmul.f32 %v596, %v612
      %v629 = vmul.f32 %v597, %v613
      %v630 = vmul.f32 %v598, %v614
      %v631 = vmul.f32 %v599, %v615
      %v632 = vmul.f32 %v600, %v616
      %v633 = vmul.f32 %v601, %v617
      %v634 = vmul.f32 %v602, %v618
      %v635 = vmul.f32 %v603, %v619
      %v636 = vmul.f32 %v604, %v620
      %v637 = vmul.f32 %v605, %v621
      %v638 = vmul.f32 %v606, %v622
      %v639 = vmul.f32 %v607, %v623
      %v640 = vmul.f32 %v608, %v624
      %v641 = vmul.f32 %v609, %v625
      %v642 = vmul.f32 %v610, %v626
      %v643 = vmul.f32 %v611, %v627
      %v644 = vpack.c.bf16 %v630, %v628
      %v645 = vpack.c.bf16 %v631, %v629
      %v646 = vpack.c.bf16 %v634, %v632
      %v647 = vpack.c.bf16 %v635, %v633
      %v648 = vpack.c.bf16 %v638, %v636
      %v649 = vpack.c.bf16 %v639, %v637
      %v650 = vpack.c.bf16 %v642, %v640
      %v651 = vpack.c.bf16 %v643, %v641
      %v652 = vld [vmem:[%s4] sm:$0xf]
      %v653 = vld [vmem:[%s4 + $0x4] sm:$0xf]
      %v654 = vld [vmem:[%s4 + $0x8] sm:$0xf]
      %v655 = vld [vmem:[%s4 + $0xc] sm:$0xf]
      %v656 = vld [vmem:[%s4 + $0x10] sm:$0xf]
      %v657 = vld [vmem:[%s4 + $0x14] sm:$0xf]
      %v658 = vld [vmem:[%s4 + $0x18] sm:$0xf]
      %v659 = vld [vmem:[%s4 + $0x1c] sm:$0xf]
      %v660 = vld [vmem:[%s4 + $0x20] sm:$0xf]
      %v661 = vld [vmem:[%s4 + $0x24] sm:$0xf]
      %v662 = vld [vmem:[%s5] sm:$0xff]
      %v673 = vunpack.c.l.b16 %v652
      %v674 = vunpack.c.l.b16 %v653
      %v675 = vunpack.c.l.b16 %v654
      %v676 = vunpack.c.l.b16 %v655
      %v677 = vunpack.c.l.b16 %v656
      %v678 = vunpack.c.l.b16 %v657
      %v679 = vunpack.c.l.b16 %v658
      %v680 = vunpack.c.l.b16 %v659
      %v681 = vunpack.c.l.b16 %v660
      %v682 = vunpack.c.l.b16 %v661
      %v683 = vpack.c.b16 %v674, %v673
      %v684 = vpack.c.b16 %v676, %v675
      %v685 = vpack.c.b16 %v678, %v677
      %v686 = vpack.c.b16 %v680, %v679
      %v687 = vpack.c.b16 %v682, %v681
      %vm688 = vcmask 523264
      %v690 = vsel %vm688, %v683, 0
      %v693 = vsel %vm688, %v684, 0
      %v696 = vsel %vm688, %v685, 0
      %v699 = vsel %vm688, %v686, 0
      %v702 = vsel %vm688, %v687, 0
      %704 = vmatprep.subr.bf16.mxu0 %v645
      %705 = vmatpush1.bf16.msra.mxu0 %v644
      %706 = vmatprep.subr.bf16.mxu0 %v647
      %707 = vmatpush1.bf16.msra.mxu0 %v646
      %708 = vmatprep.subr.bf16.mxu0 %v649
      %709 = vmatpush1.bf16.msra.mxu0 %v648
      %710 = vmatprep.subr.bf16.mxu0 %v651
      %711 = vmatpush1.bf16.msra.mxu0 %v650
      %712 = vmatprep.subr.bf16.mxu0 0
      %713 = vmatpush1.bf16.msra.mxu0 0
      %714 = vmatprep.subr.bf16.mxu0 0
      %715 = vmatpush1.bf16.msra.mxu0 0
      %716 = vmatprep.subr.bf16.mxu0 0
      %717 = vmatpush1.bf16.msra.mxu0 0
      %718 = vmatprep.subr.bf16.mxu0 0
      %719 = vmatpush1.bf16.msra.mxu0 0
      %720 = vmatprep.subr.bf16.mxu0 0
      %721 = vmatpush1.bf16.msra.mxu0 0
      %722 = vmatprep.subr.bf16.mxu0 0
      %723 = vmatpush1.bf16.msra.mxu0 0
      %724 = vmatprep.subr.bf16.mxu0 0
      %725 = vmatpush1.bf16.msra.mxu0 0
      %726 = vmatprep.subr.bf16.mxu0 0
      %727 = vmatpush1.bf16.msra.mxu0 0
      %728 = vmatprep.subr.bf16.mxu0 0
      %729 = vmatpush1.bf16.msra.mxu0 0
      %730 = vmatprep.subr.bf16.mxu0 0
      %731 = vmatpush1.bf16.msra.mxu0 0
      %732 = vmatprep.subr.bf16.mxu0 0
      %733 = vmatpush1.bf16.msra.mxu0 0
      %734 = vmatprep.subr.bf16.mxu0 0
      %735 = vmatpush1.bf16.msra.mxu0 0
      %736 = vmatprep.mubr.bf16.mxu0 0
      %737 = vmatmul.mubr.bf16.gmra.mrb[0].mxu0 %v690
      %v738 = vpop.f32.mrb[0].mxu0
      %v739 = vadd.f32 0.0, %v738
      %v740 = vpop.f32.mrb[0].mxu0
      %v741 = vadd.f32 0.0, %v740
      %v742 = vpop.f32.mrb[0].mxu0
      %v743 = vadd.f32 0.0, %v742
      %v744 = vpop.f32.mrb[0].mxu0
      %v745 = vadd.f32 0.0, %v744
      %746 = vmatprep.mubr.bf16.mxu0 0
      %747 = vmatmul.mubr.bf16.gmra.mrb[0].mxu0 %v693
      %v748 = vpop.f32.mrb[0].mxu0
      %v749 = vadd.f32 0.0, %v748
      %v750 = vpop.f32.mrb[0].mxu0
      %v751 = vadd.f32 0.0, %v750
      %v752 = vpop.f32.mrb[0].mxu0
      %v753 = vadd.f32 0.0, %v752
      %v754 = vpop.f32.mrb[0].mxu0
      %v755 = vadd.f32 0.0, %v754
      %756 = vmatprep.mubr.bf16.mxu0 0
      %757 = vmatmul.mubr.bf16.gmra.mrb[0].mxu0 %v696
      %v758 = vpop.f32.mrb[0].mxu0
      %v759 = vadd.f32 0.0, %v758
      %v760 = vpop.f32.mrb[0].mxu0
      %v761 = vadd.f32 0.0, %v760
      %v762 = vpop.f32.mrb[0].mxu0
      %v763 = vadd.f32 0.0, %v762
      %v764 = vpop.f32.mrb[0].mxu0
      %v765 = vadd.f32 0.0, %v764
      %766 = vmatprep.mubr.bf16.mxu0 0
      %767 = vmatmul.mubr.bf16.gmra.mrb[0].mxu0 %v699
      %v768 = vpop.f32.mrb[0].mxu0
      %v769 = vadd.f32 0.0, %v768
      %v770 = vpop.f32.mrb[0].mxu0
      %v771 = vadd.f32 0.0, %v770
      %v772 = vpop.f32.mrb[0].mxu0
      %v773 = vadd.f32 0.0, %v772
      %v774 = vpop.f32.mrb[0].mxu0
      %v775 = vadd.f32 0.0, %v774
      %776 = vmatprep.mubr.bf16.mxu0 0
      %777 = vmatmul.mubr.bf16.gmra.mrb[0].mxu0 %v702
      %v778 = vpop.f32.mrb[0].mxu0
      %v779 = vadd.f32 0.0, %v778
      %v780 = vpop.f32.mrb[0].mxu0
      %v781 = vadd.f32 0.0, %v780
      %v782 = vpop.f32.mrb[0].mxu0
      %v783 = vadd.f32 0.0, %v782
      %v784 = vpop.f32.mrb[0].mxu0
      %v785 = vadd.f32 0.0, %v784
      %786 = vdwg.mxu0
      %787 = vrot.lane.b32.xlu0 %v743, 1
      %v788 = vpop.permute.xlu0 %787
      %789 = vrot.lane.b32.xlu0 %v745, 1
      %v790 = vpop.permute.xlu0 %789
      %vm791 = vcmp.lt.s32.totalorder %v387, 1
      %v792 = vsel %vm791, %v788, %v790
      %v793 = vsel %vm791, %v790, %v788
      %v794 = vadd.f32 %v739, %v793
      %v795 = vadd.f32 %v741, %v792
      %796 = vrot.lane.b32.xlu0 %v749, 2
      %v797 = vpop.permute.xlu0 %796
      %798 = vrot.lane.b32.xlu0 %v751, 2
      %v799 = vpop.permute.xlu0 %798
      %vm800 = vcmp.lt.s32.totalorder %v387, 2
      %v801 = vsel %vm800, %v797, %v799
      %v802 = vsel %vm800, %v799, %v797
      %v803 = vadd.f32 %v794, %v802
      %v804 = vadd.f32 %v795, %v801
      %805 = vrot.lane.b32.xlu0 %v753, 3
      %v806 = vpop.permute.xlu0 %805
      %807 = vrot.lane.b32.xlu0 %v755, 3
      %v808 = vpop.permute.xlu0 %807
      %vm809 = vcmp.lt.s32.totalorder %v387, 3
      %v810 = vsel %vm809, %v806, %v808
      %v811 = vsel %vm809, %v808, %v806
      %v812 = vadd.f32 %v803, %v811
      %v813 = vadd.f32 %v804, %v810
      %814 = vrot.lane.b32.xlu0 %v759, 4
      %v815 = vpop.permute.xlu0 %814
      %816 = vrot.lane.b32.xlu0 %v761, 4
      %v817 = vpop.permute.xlu0 %816
      %vm818 = vcmp.lt.s32.totalorder %v387, 4
      %v819 = vsel %vm818, %v815, %v817
      %v820 = vsel %vm818, %v817, %v815
      %v821 = vadd.f32 %v812, %v820
      %v822 = vadd.f32 %v813, %v819
      %v823 = vadd.f32 %v821, %v763
      %v824 = vadd.f32 %v822, %v765
      %825 = vrot.lane.b32.xlu0 %v769, 16
      %v826 = vpop.permute.xlu0 %825
      %827 = vrot.lane.b32.xlu0 %v771, 16
      %v828 = vpop.permute.xlu0 %827
      %vm829 = vcmp.lt.s32.totalorder %v387, 16
      %v830 = vsel %vm829, %v826, %v828
      %v831 = vsel %vm829, %v828, %v826
      %v832 = vadd.f32 %v823, %v831
      %v833 = vadd.f32 %v824, %v830
      %834 = vrot.lane.b32.xlu0 %v773, 32
      %v835 = vpop.permute.xlu0 %834
      %836 = vrot.lane.b32.xlu0 %v775, 32
      %v837 = vpop.permute.xlu0 %836
      %vm838 = vcmp.lt.s32.totalorder %v387, 32
      %v839 = vsel %vm838, %v835, %v837
      %v840 = vsel %vm838, %v837, %v835
      %v841 = vadd.f32 %v832, %v840
      %v842 = vadd.f32 %v833, %v839
      %843 = vrot.lane.b32.xlu0 %v779, 48
      %v844 = vpop.permute.xlu0 %843
      %845 = vrot.lane.b32.xlu0 %v781, 48
      %v846 = vpop.permute.xlu0 %845
      %vm847 = vcmp.lt.s32.totalorder %v387, 48
      %v848 = vsel %vm847, %v844, %v846
      %v849 = vsel %vm847, %v846, %v844
      %v850 = vadd.f32 %v841, %v849
      %v851 = vadd.f32 %v842, %v848
      %852 = vrot.lane.b32.xlu0 %v783, 64
      %v853 = vpop.permute.xlu0 %852
      %854 = vrot.lane.b32.xlu0 %v785, 64
      %v855 = vpop.permute.xlu0 %854
      %v856 = vsel %vm437, %v853, %v855
      %v857 = vsel %vm437, %v855, %v853
      %v858 = vadd.f32 %v850, %v857
      %v859 = vadd.f32 %v851, %v856
      %861 = vset.pattern.permute.xlu0 0
      %862 = vperm.xlu0 %861, %v662
      %v863 = vpop.permute.xlu0 %862
      %v865 = vadd.f32 %v858, %v863
      %v866 = vadd.f32 %v859, %v863
      %v867 = vld [vmem:[%s6] sm:$0xf]
      %v868 = vld [vmem:[%s6 + $0x4] sm:$0xf]
      %v869 = vld [vmem:[%s6 + $0x8] sm:$0xf]
      %v870 = vld [vmem:[%s6 + $0xc] sm:$0xf]
      %v871 = vld [vmem:[%s6 + $0x10] sm:$0xf]
      %v872 = vld [vmem:[%s6 + $0x14] sm:$0xf]
      %v873 = vld [vmem:[%s6 + $0x18] sm:$0xf]
      %v874 = vld [vmem:[%s6 + $0x1c] sm:$0xf]
      %v875 = vld [vmem:[%s7] sm:$0xff]
      %v876 = vld [vmem:[%s7 + $0x8] sm:$0xff]
      %v877 = vld [vmem:[%s7 + $0x10] sm:$0xff]
      %v878 = vld [vmem:[%s7 + $0x18] sm:$0xff]
      %v879 = vld [vmem:[%s7 + $0x20] sm:$0xff]
      %v880 = vld [vmem:[%s7 + $0x28] sm:$0xff]
      %v881 = vld [vmem:[%s7 + $0x30] sm:$0xff]
      %v882 = vld [vmem:[%s7 + $0x38] sm:$0xff]
      %883 = vrot.lane.b32.xlu0 %v865, 127
      %v884 = vpop.permute.xlu0 %883
      %885 = vrot.lane.b32.xlu0 %v866, 127
      %v886 = vpop.permute.xlu0 %885
      %v887 = vsel %vm388, %v884, %v886
      %v888 = vsel %vm388, %v886, %v884
      %889 = vrot.lane.b32.xlu0 %v865, 126
      %v890 = vpop.permute.xlu0 %889
      %891 = vrot.lane.b32.xlu0 %v866, 126
      %v892 = vpop.permute.xlu0 %891
      %v893 = vsel %vm395, %v890, %v892
      %v894 = vsel %vm395, %v892, %v890
      %895 = vrot.lane.b32.xlu0 %v865, 125
      %v896 = vpop.permute.xlu0 %895
      %897 = vrot.lane.b32.xlu0 %v866, 125
      %v898 = vpop.permute.xlu0 %897
      %v899 = vsel %vm402, %v896, %v898
      %v900 = vsel %vm402, %v898, %v896
      %901 = vrot.lane.b32.xlu0 %v865, 124
      %v902 = vpop.permute.xlu0 %901
      %903 = vrot.lane.b32.xlu0 %v866, 124
      %v904 = vpop.permute.xlu0 %903
      %v905 = vsel %vm409, %v902, %v904
      %v906 = vsel %vm409, %v904, %v902
      %907 = vrot.lane.b32.xlu0 %v865, 112
      %v908 = vpop.permute.xlu0 %907
      %909 = vrot.lane.b32.xlu0 %v866, 112
      %v910 = vpop.permute.xlu0 %909
      %v911 = vsel %vm416, %v908, %v910
      %v912 = vsel %vm416, %v910, %v908
      %913 = vrot.lane.b32.xlu0 %v865, 96
      %v914 = vpop.permute.xlu0 %913
      %915 = vrot.lane.b32.xlu0 %v866, 96
      %v916 = vpop.permute.xlu0 %915
      %v917 = vsel %vm423, %v914, %v916
      %v918 = vsel %vm423, %v916, %v914
      %919 = vrot.lane.b32.xlu0 %v865, 80
      %v920 = vpop.permute.xlu0 %919
      %921 = vrot.lane.b32.xlu0 %v866, 80
      %v922 = vpop.permute.xlu0 %921
      %v923 = vsel %vm430, %v920, %v922
      %v924 = vsel %vm430, %v922, %v920
      %925 = vrot.lane.b32.xlu0 %v865, 64
      %v926 = vpop.permute.xlu0 %925
      %927 = vrot.lane.b32.xlu0 %v866, 64
      %v928 = vpop.permute.xlu0 %927
      %v929 = vsel %vm437, %v926, %v928
      %v930 = vsel %vm437, %v928, %v926
      %v931 = vpack.c.bf16 %v887, %v865
      %v932 = vpack.c.bf16 %v888, %v866
      %v933 = vpack.c.bf16 %v899, %v893
      %v934 = vpack.c.bf16 %v900, %v894
      %v935 = vpack.c.bf16 %v865, %v905
      %v936 = vpack.c.bf16 %v866, %v906
      %v937 = vpack.c.bf16 %v917, %v911
      %v938 = vpack.c.bf16 %v918, %v912
      %v939 = vpack.c.bf16 %v929, %v923
      %v940 = vpack.c.bf16 %v930, %v924
      %942 = vset.pattern.permute.xlu0 0
      %943 = vperm.xlu0 %942, %v875
      %v944 = vpop.permute.xlu0 %943
      %947 = vset.pattern.permute.xlu0 0
      %948 = vperm.xlu0 %947, %v876
      %v949 = vpop.permute.xlu0 %948
      %952 = vset.pattern.permute.xlu0 0
      %953 = vperm.xlu0 %952, %v877
      %v954 = vpop.permute.xlu0 %953
      %957 = vset.pattern.permute.xlu0 0
      %958 = vperm.xlu0 %957, %v878
      %v959 = vpop.permute.xlu0 %958
      %962 = vset.pattern.permute.xlu0 0
      %963 = vperm.xlu0 %962, %v879
      %v964 = vpop.permute.xlu0 %963
      %967 = vset.pattern.permute.xlu0 0
      %968 = vperm.xlu0 %967, %v880
      %v969 = vpop.permute.xlu0 %968
      %972 = vset.pattern.permute.xlu0 0
      %973 = vperm.xlu0 %972, %v881
      %v974 = vpop.permute.xlu0 %973
      %977 = vset.pattern.permute.xlu0 0
      %978 = vperm.xlu0 %977, %v882
      %v979 = vpop.permute.xlu0 %978
      %v989 = vunpack.c.l.b16 %v867
      %v990 = vunpack.c.l.b16 %v868
      %v991 = vunpack.c.l.b16 %v869
      %v992 = vunpack.c.l.b16 %v870
      %v993 = vunpack.c.l.b16 %v871
      %v994 = vunpack.c.l.b16 %v872
      %v995 = vunpack.c.l.b16 %v873
      %v996 = vunpack.c.l.b16 %v874
      %v997 = vpack.c.b16 %v990, %v989
      %v998 = vpack.c.b16 %v992, %v991
      %v999 = vpack.c.b16 %v994, %v993
      %v1000 = vpack.c.b16 %v996, %v995
      %v1002 = vsel %vm510, %v997, 0
      %v1005 = vsel %vm510, %v998, 0
      %v1008 = vsel %vm510, %v999, 0
      %v1011 = vsel %vm510, %v1000, 0
      %1013 = vmatprep.subr.bf16.mxu0 %v932
      %1014 = vmatpush1.bf16.msra.mxu0 %v931
      %1015 = vmatprep.subr.bf16.mxu0 %v934
      %1016 = vmatpush1.bf16.msra.mxu0 %v933
      %1017 = vmatprep.subr.bf16.mxu0 %v936
      %1018 = vmatpush1.bf16.msra.mxu0 %v935
      %1019 = vmatprep.subr.bf16.mxu0 %v938
      %1020 = vmatpush1.bf16.msra.mxu0 %v937
      %1021 = vmatprep.subr.bf16.mxu0 %v940
      %1022 = vmatpush1.bf16.msra.mxu0 %v939
      %1023 = vmatprep.subr.bf16.mxu0 0
      %1024 = vmatpush1.bf16.msra.mxu0 0
      %1025 = vmatprep.subr.bf16.mxu0 0
      %1026 = vmatpush1.bf16.msra.mxu0 0
      %1027 = vmatprep.subr.bf16.mxu0 0
      %1028 = vmatpush1.bf16.msra.mxu0 0
      %1029 = vmatprep.subr.bf16.mxu0 0
      %1030 = vmatpush1.bf16.msra.mxu0 0
      %1031 = vmatprep.subr.bf16.mxu0 0
      %1032 = vmatpush1.bf16.msra.mxu0 0
      %1033 = vmatprep.subr.bf16.mxu0 0
      %1034 = vmatpush1.bf16.msra.mxu0 0
      %1035 = vmatprep.subr.bf16.mxu0 0
      %1036 = vmatpush1.bf16.msra.mxu0 0
      %1037 = vmatprep.subr.bf16.mxu0 0
      %1038 = vmatpush1.bf16.msra.mxu0 0
      %1039 = vmatprep.subr.bf16.mxu0 0
      %1040 = vmatpush1.bf16.msra.mxu0 0
      %1041 = vmatprep.subr.bf16.mxu0 0
      %1042 = vmatpush1.bf16.msra.mxu0 0
      %1043 = vmatprep.subr.bf16.mxu0 0
      %1044 = vmatpush1.bf16.msra.mxu0 0
      %1045 = vmatprep.mubr.bf16.mxu0 0
      %1046 = vmatmul.mubr.bf16.gmra.mrb[0].mxu0 %v1002
      %v1047 = vpop.f32.mrb[0].mxu0
      %v1048 = vadd.f32 %v944, %v1047
      %v1049 = vpop.f32.mrb[0].mxu0
      %v1050 = vadd.f32 %v944, %v1049
      %v1051 = vpop.f32.mrb[0].mxu0
      %v1052 = vadd.f32 %v949, %v1051
      %v1053 = vpop.f32.mrb[0].mxu0
      %v1054 = vadd.f32 %v949, %v1053
      %1055 = vmatprep.mubr.bf16.mxu0 0
      %1056 = vmatmul.mubr.bf16.gmra.mrb[0].mxu0 %v1005
      %v1057 = vpop.f32.mrb[0].mxu0
      %v1058 = vadd.f32 %v954, %v1057
      %v1059 = vpop.f32.mrb[0].mxu0
      %v1060 = vadd.f32 %v954, %v1059
      %v1061 = vpop.f32.mrb[0].mxu0
      %v1062 = vadd.f32 %v959, %v1061
      %v1063 = vpop.f32.mrb[0].mxu0
      %v1064 = vadd.f32 %v959, %v1063
      %1065 = vmatprep.mubr.bf16.mxu0 0
      %1066 = vmatmul.mubr.bf16.gmra.mrb[0].mxu0 %v1008
      %v1067 = vpop.f32.mrb[0].mxu0
      %v1068 = vadd.f32 %v964, %v1067
      %v1069 = vpop.f32.mrb[0].mxu0
      %v1070 = vadd.f32 %v964, %v1069
      %v1071 = vpop.f32.mrb[0].mxu0
      %v1072 = vadd.f32 %v969, %v1071
      %v1073 = vpop.f32.mrb[0].mxu0
      %v1074 = vadd.f32 %v969, %v1073
      %1075 = vmatprep.mubr.bf16.mxu0 0
      %1076 = vmatmul.mubr.bf16.gmra.mrb[0].mxu0 %v1011
      %v1077 = vpop.f32.mrb[0].mxu0
      %v1078 = vadd.f32 %v974, %v1077
      %v1079 = vpop.f32.mrb[0].mxu0
      %v1080 = vadd.f32 %v974, %v1079
      %v1081 = vpop.f32.mrb[0].mxu0
      %v1082 = vadd.f32 %v979, %v1081
      %v1083 = vpop.f32.mrb[0].mxu0
      %v1084 = vadd.f32 %v979, %v1083
      %1085 = vdwg.mxu0
      %v1086 = vmax.f32 %v1048, 0.0
      %v1087 = vmax.f32 %v1050, 0.0
      %v1088 = vmax.f32 %v1052, 0.0
      %v1089 = vmax.f32 %v1054, 0.0
      %v1090 = vmax.f32 %v1058, 0.0
      %v1091 = vmax.f32 %v1060, 0.0
      %v1092 = vmax.f32 %v1062, 0.0
      %v1093 = vmax.f32 %v1064, 0.0
      %v1094 = vmax.f32 %v1068, 0.0
      %v1095 = vmax.f32 %v1070, 0.0
      %v1096 = vmax.f32 %v1072, 0.0
      %v1097 = vmax.f32 %v1074, 0.0
      %v1098 = vmax.f32 %v1078, 0.0
      %v1099 = vmax.f32 %v1080, 0.0
      %v1100 = vmax.f32 %v1082, 0.0
      %v1101 = vmax.f32 %v1084, 0.0
      %v1102 = vmul.f32 %v1086, %v612
      %v1103 = vmul.f32 %v1087, %v613
      %v1104 = vmul.f32 %v1088, %v614
      %v1105 = vmul.f32 %v1089, %v615
      %v1106 = vmul.f32 %v1090, %v616
      %v1107 = vmul.f32 %v1091, %v617
      %v1108 = vmul.f32 %v1092, %v618
      %v1109 = vmul.f32 %v1093, %v619
      %v1110 = vmul.f32 %v1094, %v620
      %v1111 = vmul.f32 %v1095, %v621
      %v1112 = vmul.f32 %v1096, %v622
      %v1113 = vmul.f32 %v1097, %v623
      %v1114 = vmul.f32 %v1098, %v624
      %v1115 = vmul.f32 %v1099, %v625
      %v1116 = vmul.f32 %v1100, %v626
      %v1117 = vmul.f32 %v1101, %v627
      %v1118 = vpack.c.bf16 %v1104, %v1102
      %v1119 = vpack.c.bf16 %v1105, %v1103
      %v1120 = vpack.c.bf16 %v1108, %v1106
      %v1121 = vpack.c.bf16 %v1109, %v1107
      %v1122 = vpack.c.bf16 %v1112, %v1110
      %v1123 = vpack.c.bf16 %v1113, %v1111
      %v1124 = vpack.c.bf16 %v1116, %v1114
      %v1125 = vpack.c.bf16 %v1117, %v1115
      %v1126 = vld [vmem:[%s8] sm:$0xf]
      %v1127 = vld [vmem:[%s8 + $0x4] sm:$0xf]
      %v1128 = vld [vmem:[%s8 + $0x8] sm:$0xf]
      %v1129 = vld [vmem:[%s8 + $0xc] sm:$0xf]
      %v1130 = vld [vmem:[%s8 + $0x10] sm:$0xf]
      %v1131 = vld [vmem:[%s8 + $0x14] sm:$0xf]
      %v1132 = vld [vmem:[%s8 + $0x18] sm:$0xf]
      %v1133 = vld [vmem:[%s8 + $0x1c] sm:$0xf]
      %v1134 = vld [vmem:[%s8 + $0x20] sm:$0xf]
      %v1135 = vld [vmem:[%s8 + $0x24] sm:$0xf]
      %v1136 = vld [vmem:[%s9] sm:$0xff]
      %v1147 = vunpack.c.l.b16 %v1126
      %v1148 = vunpack.c.l.b16 %v1127
      %v1149 = vunpack.c.l.b16 %v1128
      %v1150 = vunpack.c.l.b16 %v1129
      %v1151 = vunpack.c.l.b16 %v1130
      %v1152 = vunpack.c.l.b16 %v1131
      %v1153 = vunpack.c.l.b16 %v1132
      %v1154 = vunpack.c.l.b16 %v1133
      %v1155 = vunpack.c.l.b16 %v1134
      %v1156 = vunpack.c.l.b16 %v1135
      %v1157 = vpack.c.b16 %v1148, %v1147
      %v1158 = vpack.c.b16 %v1150, %v1149
      %v1159 = vpack.c.b16 %v1152, %v1151
      %v1160 = vpack.c.b16 %v1154, %v1153
      %v1161 = vpack.c.b16 %v1156, %v1155
      %v1163 = vsel %vm688, %v1157, 0
      %v1166 = vsel %vm688, %v1158, 0
      %v1169 = vsel %vm688, %v1159, 0
      %v1172 = vsel %vm688, %v1160, 0
      %v1175 = vsel %vm688, %v1161, 0
      %1177 = vmatprep.subr.bf16.mxu0 %v1119
      %1178 = vmatpush1.bf16.msra.mxu0 %v1118
      %1179 = vmatprep.subr.bf16.mxu0 %v1121
      %1180 = vmatpush1.bf16.msra.mxu0 %v1120
      %1181 = vmatprep.subr.bf16.mxu0 %v1123
      %1182 = vmatpush1.bf16.msra.mxu0 %v1122
      %1183 = vmatprep.subr.bf16.mxu0 %v1125
      %1184 = vmatpush1.bf16.msra.mxu0 %v1124
      %1185 = vmatprep.subr.bf16.mxu0 0
      %1186 = vmatpush1.bf16.msra.mxu0 0
      %1187 = vmatprep.subr.bf16.mxu0 0
      %1188 = vmatpush1.bf16.msra.mxu0 0
      %1189 = vmatprep.subr.bf16.mxu0 0
      %1190 = vmatpush1.bf16.msra.mxu0 0
      %1191 = vmatprep.subr.bf16.mxu0 0
      %1192 = vmatpush1.bf16.msra.mxu0 0
      %1193 = vmatprep.subr.bf16.mxu0 0
      %1194 = vmatpush1.bf16.msra.mxu0 0
      %1195 = vmatprep.subr.bf16.mxu0 0
      %1196 = vmatpush1.bf16.msra.mxu0 0
      %1197 = vmatprep.subr.bf16.mxu0 0
      %1198 = vmatpush1.bf16.msra.mxu0 0
      %1199 = vmatprep.subr.bf16.mxu0 0
      %1200 = vmatpush1.bf16.msra.mxu0 0
      %1201 = vmatprep.subr.bf16.mxu0 0
      %1202 = vmatpush1.bf16.msra.mxu0 0
      %1203 = vmatprep.subr.bf16.mxu0 0
      %1204 = vmatpush1.bf16.msra.mxu0 0
      %1205 = vmatprep.subr.bf16.mxu0 0
      %1206 = vmatpush1.bf16.msra.mxu0 0
      %1207 = vmatprep.subr.bf16.mxu0 0
      %1208 = vmatpush1.bf16.msra.mxu0 0
      %1209 = vmatprep.mubr.bf16.mxu0 0
      %1210 = vmatmul.mubr.bf16.gmra.mrb[0].mxu0 %v1163
      %v1211 = vpop.f32.mrb[0].mxu0
      %v1212 = vadd.f32 0.0, %v1211
      %v1213 = vpop.f32.mrb[0].mxu0
      %v1214 = vadd.f32 0.0, %v1213
      %v1215 = vpop.f32.mrb[0].mxu0
      %v1216 = vadd.f32 0.0, %v1215
      %v1217 = vpop.f32.mrb[0].mxu0
      %v1218 = vadd.f32 0.0, %v1217
      %1219 = vmatprep.mubr.bf16.mxu0 0
      %1220 = vmatmul.mubr.bf16.gmra.mrb[0].mxu0 %v1166
      %v1221 = vpop.f32.mrb[0].mxu0
      %v1222 = vadd.f32 0.0, %v1221
      %v1223 = vpop.f32.mrb[0].mxu0
      %v1224 = vadd.f32 0.0, %v1223
      %v1225 = vpop.f32.mrb[0].mxu0
      %v1226 = vadd.f32 0.0, %v1225
      %v1227 = vpop.f32.mrb[0].mxu0
      %v1228 = vadd.f32 0.0, %v1227
      %1229 = vmatprep.mubr.bf16.mxu0 0
      %1230 = vmatmul.mubr.bf16.gmra.mrb[0].mxu0 %v1169
      %v1231 = vpop.f32.mrb[0].mxu0
      %v1232 = vadd.f32 0.0, %v1231
      %v1233 = vpop.f32.mrb[0].mxu0
      %v1234 = vadd.f32 0.0, %v1233
      %v1235 = vpop.f32.mrb[0].mxu0
      %v1236 = vadd.f32 0.0, %v1235
      %v1237 = vpop.f32.mrb[0].mxu0
      %v1238 = vadd.f32 0.0, %v1237
      %1239 = vmatprep.mubr.bf16.mxu0 0
      %1240 = vmatmul.mubr.bf16.gmra.mrb[0].mxu0 %v1172
      %v1241 = vpop.f32.mrb[0].mxu0
      %v1242 = vadd.f32 0.0, %v1241
      %v1243 = vpop.f32.mrb[0].mxu0
      %v1244 = vadd.f32 0.0, %v1243
      %v1245 = vpop.f32.mrb[0].mxu0
      %v1246 = vadd.f32 0.0, %v1245
      %v1247 = vpop.f32.mrb[0].mxu0
      %v1248 = vadd.f32 0.0, %v1247
      %1249 = vmatprep.mubr.bf16.mxu0 0
      %1250 = vmatmul.mubr.bf16.gmra.mrb[0].mxu0 %v1175
      %v1251 = vpop.f32.mrb[0].mxu0
      %v1252 = vadd.f32 0.0, %v1251
      %v1253 = vpop.f32.mrb[0].mxu0
      %v1254 = vadd.f32 0.0, %v1253
      %v1255 = vpop.f32.mrb[0].mxu0
      %v1256 = vadd.f32 0.0, %v1255
      %v1257 = vpop.f32.mrb[0].mxu0
      %v1258 = vadd.f32 0.0, %v1257
      %1259 = vdwg.mxu0
      %1260 = vrot.lane.b32.xlu0 %v1216, 1
      %v1261 = vpop.permute.xlu0 %1260
      %1262 = vrot.lane.b32.xlu0 %v1218, 1
      %v1263 = vpop.permute.xlu0 %1262
      %v1264 = vsel %vm791, %v1261, %v1263
      %v1265 = vsel %vm791, %v1263, %v1261
      %v1266 = vadd.f32 %v1212, %v1265
      %v1267 = vadd.f32 %v1214, %v1264
      %1268 = vrot.lane.b32.xlu0 %v1222, 2
      %v1269 = vpop.permute.xlu0 %1268
      %1270 = vrot.lane.b32.xlu0 %v1224, 2
      %v1271 = vpop.permute.xlu0 %1270
      %v1272 = vsel %vm800, %v1269, %v1271
      %v1273 = vsel %vm800, %v1271, %v1269
      %v1274 = vadd.f32 %v1266, %v1273
      %v1275 = vadd.f32 %v1267, %v1272
      %1276 = vrot.lane.b32.xlu0 %v1226, 3
      %v1277 = vpop.permute.xlu0 %1276
      %1278 = vrot.lane.b32.xlu0 %v1228, 3
      %v1279 = vpop.permute.xlu0 %1278
      %v1280 = vsel %vm809, %v1277, %v1279
      %v1281 = vsel %vm809, %v1279, %v1277
      %v1282 = vadd.f32 %v1274, %v1281
      %v1283 = vadd.f32 %v1275, %v1280
      %1284 = vrot.lane.b32.xlu0 %v1232, 4
      %v1285 = vpop.permute.xlu0 %1284
      %1286 = vrot.lane.b32.xlu0 %v1234, 4
      %v1287 = vpop.permute.xlu0 %1286
      %v1288 = vsel %vm818, %v1285, %v1287
      %v1289 = vsel %vm818, %v1287, %v1285
      %v1290 = vadd.f32 %v1282, %v1289
      %v1291 = vadd.f32 %v1283, %v1288
      %v1292 = vadd.f32 %v1290, %v1236
      %v1293 = vadd.f32 %v1291, %v1238
      %1294 = vrot.lane.b32.xlu0 %v1242, 16
      %v1295 = vpop.permute.xlu0 %1294
      %1296 = vrot.lane.b32.xlu0 %v1244, 16
      %v1297 = vpop.permute.xlu0 %1296
      %v1298 = vsel %vm829, %v1295, %v1297
      %v1299 = vsel %vm829, %v1297, %v1295
      %v1300 = vadd.f32 %v1292, %v1299
      %v1301 = vadd.f32 %v1293, %v1298
      %1302 = vrot.lane.b32.xlu0 %v1246, 32
      %v1303 = vpop.permute.xlu0 %1302
      %1304 = vrot.lane.b32.xlu0 %v1248, 32
      %v1305 = vpop.permute.xlu0 %1304
      %v1306 = vsel %vm838, %v1303, %v1305
      %v1307 = vsel %vm838, %v1305, %v1303
      %v1308 = vadd.f32 %v1300, %v1307
      %v1309 = vadd.f32 %v1301, %v1306
      %1310 = vrot.lane.b32.xlu0 %v1252, 48
      %v1311 = vpop.permute.xlu0 %1310
      %1312 = vrot.lane.b32.xlu0 %v1254, 48
      %v1313 = vpop.permute.xlu0 %1312
      %v1314 = vsel %vm847, %v1311, %v1313
      %v1315 = vsel %vm847, %v1313, %v1311
      %v1316 = vadd.f32 %v1308, %v1315
      %v1317 = vadd.f32 %v1309, %v1314
      %1318 = vrot.lane.b32.xlu0 %v1256, 64
      %v1319 = vpop.permute.xlu0 %1318
      %1320 = vrot.lane.b32.xlu0 %v1258, 64
      %v1321 = vpop.permute.xlu0 %1320
      %v1322 = vsel %vm437, %v1319, %v1321
      %v1323 = vsel %vm437, %v1321, %v1319
      %v1324 = vadd.f32 %v1316, %v1323
      %v1325 = vadd.f32 %v1317, %v1322
      %1327 = vset.pattern.permute.xlu0 0
      %1328 = vperm.xlu0 %1327, %v1136
      %v1329 = vpop.permute.xlu0 %1328
      %v1331 = vadd.f32 %v1324, %v1329
      %v1332 = vadd.f32 %v1325, %v1329
      %v1333 = vmax.f32 %v1331, 0.0
      %v1334 = vmax.f32 %v1332, 0.0
      %v1335 = vadd.f32 %v364, %v1333
      %v1336 = vadd.f32 %v365, %v1334
      %v1337 = vmax.f32 %v1335, 0.0
      %v1338 = vmax.f32 %v1336, 0.0
      %1339 = vrot.lane.b32.xlu0 %v1337, 127
      %v1340 = vpop.permute.xlu0 %1339
      %1341 = vrot.lane.b32.xlu0 %v1338, 127
      %v1342 = vpop.permute.xlu0 %1341
      %v1343 = vsel %vm388, %v1340, %v1342
      %v1344 = vsel %vm388, %v1342, %v1340
      %1345 = vrot.lane.b32.xlu0 %v1337, 126
      %v1346 = vpop.permute.xlu0 %1345
      %1347 = vrot.lane.b32.xlu0 %v1338, 126
      %v1348 = vpop.permute.xlu0 %1347
      %v1349 = vsel %vm395, %v1346, %v1348
      %v1350 = vsel %vm395, %v1348, %v1346
      %1351 = vrot.lane.b32.xlu0 %v1337, 125
      %v1352 = vpop.permute.xlu0 %1351
      %1353 = vrot.lane.b32.xlu0 %v1338, 125
      %v1354 = vpop.permute.xlu0 %1353
      %v1355 = vsel %vm402, %v1352, %v1354
      %v1356 = vsel %vm402, %v1354, %v1352
      %1357 = vrot.lane.b32.xlu0 %v1337, 124
      %v1358 = vpop.permute.xlu0 %1357
      %1359 = vrot.lane.b32.xlu0 %v1338, 124
      %v1360 = vpop.permute.xlu0 %1359
      %v1361 = vsel %vm409, %v1358, %v1360
      %v1362 = vsel %vm409, %v1360, %v1358
      %1363 = vrot.lane.b32.xlu0 %v1337, 112
      %v1364 = vpop.permute.xlu0 %1363
      %1365 = vrot.lane.b32.xlu0 %v1338, 112
      %v1366 = vpop.permute.xlu0 %1365
      %v1367 = vsel %vm416, %v1364, %v1366
      %v1368 = vsel %vm416, %v1366, %v1364
      %1369 = vrot.lane.b32.xlu0 %v1337, 96
      %v1370 = vpop.permute.xlu0 %1369
      %1371 = vrot.lane.b32.xlu0 %v1338, 96
      %v1372 = vpop.permute.xlu0 %1371
      %v1373 = vsel %vm423, %v1370, %v1372
      %v1374 = vsel %vm423, %v1372, %v1370
      %1375 = vrot.lane.b32.xlu0 %v1337, 80
      %v1376 = vpop.permute.xlu0 %1375
      %1377 = vrot.lane.b32.xlu0 %v1338, 80
      %v1378 = vpop.permute.xlu0 %1377
      %v1379 = vsel %vm430, %v1376, %v1378
      %v1380 = vsel %vm430, %v1378, %v1376
      %1381 = vrot.lane.b32.xlu0 %v1337, 64
      %v1382 = vpop.permute.xlu0 %1381
      %1383 = vrot.lane.b32.xlu0 %v1338, 64
      %v1384 = vpop.permute.xlu0 %1383
      %v1385 = vsel %vm437, %v1382, %v1384
      %v1386 = vsel %vm437, %v1384, %v1382
      %v1387 = vpack.c.bf16 %v1343, %v1337
      %v1388 = vpack.c.bf16 %v1344, %v1338
      %v1389 = vpack.c.bf16 %v1355, %v1349
      %v1390 = vpack.c.bf16 %v1356, %v1350
      %v1391 = vpack.c.bf16 %v1337, %v1361
      %v1392 = vpack.c.bf16 %v1338, %v1362
      %v1393 = vpack.c.bf16 %v1373, %v1367
      %v1394 = vpack.c.bf16 %v1374, %v1368
      %v1395 = vpack.c.bf16 %v1385, %v1379
      %v1396 = vpack.c.bf16 %v1386, %v1380
      %1397 = vmatprep.subr.bf16.mxu0 %v1388
      %1398 = vmatpush1.bf16.msra.mxu0 %v1387
      %1399 = vmatprep.subr.bf16.mxu0 %v1390
      %1400 = vmatpush1.bf16.msra.mxu0 %v1389
      %1401 = vmatprep.subr.bf16.mxu0 %v1392
      %1402 = vmatpush1.bf16.msra.mxu0 %v1391
      %1403 = vmatprep.subr.bf16.mxu0 %v1394
      %1404 = vmatpush1.bf16.msra.mxu0 %v1393
      %1405 = vmatprep.subr.bf16.mxu0 %v1396
      %1406 = vmatpush1.bf16.msra.mxu0 %v1395
      %1407 = vmatprep.subr.bf16.mxu0 0
      %1408 = vmatpush1.bf16.msra.mxu0 0
      %1409 = vmatprep.subr.bf16.mxu0 0
      %1410 = vmatpush1.bf16.msra.mxu0 0
      %1411 = vmatprep.subr.bf16.mxu0 0
      %1412 = vmatpush1.bf16.msra.mxu0 0
      %1413 = vmatprep.subr.bf16.mxu0 0
      %1414 = vmatpush1.bf16.msra.mxu0 0
      %1415 = vmatprep.subr.bf16.mxu0 0
      %1416 = vmatpush1.bf16.msra.mxu0 0
      %1417 = vmatprep.subr.bf16.mxu0 0
      %1418 = vmatpush1.bf16.msra.mxu0 0
      %1419 = vmatprep.subr.bf16.mxu0 0
      %1420 = vmatpush1.bf16.msra.mxu0 0
      %1421 = vmatprep.subr.bf16.mxu0 0
      %1422 = vmatpush1.bf16.msra.mxu0 0
      %1423 = vmatprep.subr.bf16.mxu0 0
      %1424 = vmatpush1.bf16.msra.mxu0 0
      %1425 = vmatprep.subr.bf16.mxu0 0
      %1426 = vmatpush1.bf16.msra.mxu0 0
      %1427 = vmatprep.subr.bf16.mxu0 0
      %1428 = vmatpush1.bf16.msra.mxu0 0
      %1429 = vmatprep.mubr.bf16.mxu0 0
      %1430 = vmatmul.mubr.bf16.gmra.mrb[0].mxu0 %v512
      %v1431 = vpop.f32.mrb[0].mxu0
      %v1432 = vadd.f32 %v453, %v1431
      %v1433 = vpop.f32.mrb[0].mxu0
      %v1434 = vadd.f32 %v453, %v1433
      %v1435 = vpop.f32.mrb[0].mxu0
      %v1436 = vadd.f32 %v458, %v1435
      %v1437 = vpop.f32.mrb[0].mxu0
      %v1438 = vadd.f32 %v458, %v1437
      %1439 = vmatprep.mubr.bf16.mxu0 0
      %1440 = vmatmul.mubr.bf16.gmra.mrb[0].mxu0 %v515
      %v1441 = vpop.f32.mrb[0].mxu0
      %v1442 = vadd.f32 %v463, %v1441
      %v1443 = vpop.f32.mrb[0].mxu0
      %v1444 = vadd.f32 %v463, %v1443
      %v1445 = vpop.f32.mrb[0].mxu0
      %v1446 = vadd.f32 %v468, %v1445
      %v1447 = vpop.f32.mrb[0].mxu0
      %v1448 = vadd.f32 %v468, %v1447
      %1449 = vmatprep.mubr.bf16.mxu0 0
      %1450 = vmatmul.mubr.bf16.gmra.mrb[0].mxu0 %v518
      %v1451 = vpop.f32.mrb[0].mxu0
      %v1452 = vadd.f32 %v473, %v1451
      %v1453 = vpop.f32.mrb[0].mxu0
      %v1454 = vadd.f32 %v473, %v1453
      %v1455 = vpop.f32.mrb[0].mxu0
      %v1456 = vadd.f32 %v478, %v1455
      %v1457 = vpop.f32.mrb[0].mxu0
      %v1458 = vadd.f32 %v478, %v1457
      %1459 = vmatprep.mubr.bf16.mxu0 0
      %1460 = vmatmul.mubr.bf16.gmra.mrb[0].mxu0 %v521
      %v1461 = vpop.f32.mrb[0].mxu0
      %v1462 = vadd.f32 %v483, %v1461
      %v1463 = vpop.f32.mrb[0].mxu0
      %v1464 = vadd.f32 %v483, %v1463
      %v1465 = vpop.f32.mrb[0].mxu0
      %v1466 = vadd.f32 %v488, %v1465
      %v1467 = vpop.f32.mrb[0].mxu0
      %v1468 = vadd.f32 %v488, %v1467
      %1469 = vdwg.mxu0
      %v1470 = vmax.f32 %v1432, 0.0
      %v1471 = vmax.f32 %v1434, 0.0
      %v1472 = vmax.f32 %v1436, 0.0
      %v1473 = vmax.f32 %v1438, 0.0
      %v1474 = vmax.f32 %v1442, 0.0
      %v1475 = vmax.f32 %v1444, 0.0
      %v1476 = vmax.f32 %v1446, 0.0
      %v1477 = vmax.f32 %v1448, 0.0
      %v1478 = vmax.f32 %v1452, 0.0
      %v1479 = vmax.f32 %v1454, 0.0
      %v1480 = vmax.f32 %v1456, 0.0
      %v1481 = vmax.f32 %v1458, 0.0
      %v1482 = vmax.f32 %v1462, 0.0
      %v1483 = vmax.f32 %v1464, 0.0
      %v1484 = vmax.f32 %v1466, 0.0
      %v1485 = vmax.f32 %v1468, 0.0
      %v1486 = vmul.f32 %v1470, %v612
      %v1487 = vmul.f32 %v1471, %v613
      %v1488 = vmul.f32 %v1472, %v614
      %v1489 = vmul.f32 %v1473, %v615
      %v1490 = vmul.f32 %v1474, %v616
      %v1491 = vmul.f32 %v1475, %v617
      %v1492 = vmul.f32 %v1476, %v618
      %v1493 = vmul.f32 %v1477, %v619
      %v1494 = vmul.f32 %v1478, %v620
      %v1495 = vmul.f32 %v1479, %v621
      %v1496 = vmul.f32 %v1480, %v622
      %v1497 = vmul.f32 %v1481, %v623
      %v1498 = vmul.f32 %v1482, %v624
      %v1499 = vmul.f32 %v1483, %v625
      %v1500 = vmul.f32 %v1484, %v626
      %v1501 = vmul.f32 %v1485, %v627
      %v1502 = vpack.c.bf16 %v1488, %v1486
      %v1503 = vpack.c.bf16 %v1489, %v1487
      %v1504 = vpack.c.bf16 %v1492, %v1490
      %v1505 = vpack.c.bf16 %v1493, %v1491
      %v1506 = vpack.c.bf16 %v1496, %v1494
      %v1507 = vpack.c.bf16 %v1497, %v1495
      %v1508 = vpack.c.bf16 %v1500, %v1498
      %v1509 = vpack.c.bf16 %v1501, %v1499
      %1510 = vmatprep.subr.bf16.mxu0 %v1503
      %1511 = vmatpush1.bf16.msra.mxu0 %v1502
      %1512 = vmatprep.subr.bf16.mxu0 %v1505
      %1513 = vmatpush1.bf16.msra.mxu0 %v1504
      %1514 = vmatprep.subr.bf16.mxu0 %v1507
      %1515 = vmatpush1.bf16.msra.mxu0 %v1506
      %1516 = vmatprep.subr.bf16.mxu0 %v1509
      %1517 = vmatpush1.bf16.msra.mxu0 %v1508
      %1518 = vmatprep.subr.bf16.mxu0 0
      %1519 = vmatpush1.bf16.msra.mxu0 0
      %1520 = vmatprep.subr.bf16.mxu0 0
      %1521 = vmatpush1.bf16.msra.mxu0 0
      %1522 = vmatprep.subr.bf16.mxu0 0
      %1523 = vmatpush1.bf16.msra.mxu0 0
      %1524 = vmatprep.subr.bf16.mxu0 0
      %1525 = vmatpush1.bf16.msra.mxu0 0
      %1526 = vmatprep.subr.bf16.mxu0 0
      %1527 = vmatpush1.bf16.msra.mxu0 0
      %1528 = vmatprep.subr.bf16.mxu0 0
      %1529 = vmatpush1.bf16.msra.mxu0 0
      %1530 = vmatprep.subr.bf16.mxu0 0
      %1531 = vmatpush1.bf16.msra.mxu0 0
      %1532 = vmatprep.subr.bf16.mxu0 0
      %1533 = vmatpush1.bf16.msra.mxu0 0
      %1534 = vmatprep.subr.bf16.mxu0 0
      %1535 = vmatpush1.bf16.msra.mxu0 0
      %1536 = vmatprep.subr.bf16.mxu0 0
      %1537 = vmatpush1.bf16.msra.mxu0 0
      %1538 = vmatprep.subr.bf16.mxu0 0
      %1539 = vmatpush1.bf16.msra.mxu0 0
      %1540 = vmatprep.subr.bf16.mxu0 0
      %1541 = vmatpush1.bf16.msra.mxu0 0
      %1542 = vmatprep.mubr.bf16.mxu0 0
      %1543 = vmatmul.mubr.bf16.gmra.mrb[0].mxu0 %v690
      %v1544 = vpop.f32.mrb[0].mxu0
      %v1545 = vadd.f32 0.0, %v1544
      %v1546 = vpop.f32.mrb[0].mxu0
      %v1547 = vadd.f32 0.0, %v1546
      %v1548 = vpop.f32.mrb[0].mxu0
      %v1549 = vadd.f32 0.0, %v1548
      %v1550 = vpop.f32.mrb[0].mxu0
      %v1551 = vadd.f32 0.0, %v1550
      %1552 = vmatprep.mubr.bf16.mxu0 0
      %1553 = vmatmul.mubr.bf16.gmra.mrb[0].mxu0 %v693
      %v1554 = vpop.f32.mrb[0].mxu0
      %v1555 = vadd.f32 0.0, %v1554
      %v1556 = vpop.f32.mrb[0].mxu0
      %v1557 = vadd.f32 0.0, %v1556
      %v1558 = vpop.f32.mrb[0].mxu0
      %v1559 = vadd.f32 0.0, %v1558
      %v1560 = vpop.f32.mrb[0].mxu0
      %v1561 = vadd.f32 0.0, %v1560
      %1562 = vmatprep.mubr.bf16.mxu0 0
      %1563 = vmatmul.mubr.bf16.gmra.mrb[0].mxu0 %v696
      %v1564 = vpop.f32.mrb[0].mxu0
      %v1565 = vadd.f32 0.0, %v1564
      %v1566 = vpop.f32.mrb[0].mxu0
      %v1567 = vadd.f32 0.0, %v1566
      %v1568 = vpop.f32.mrb[0].mxu0
      %v1569 = vadd.f32 0.0, %v1568
      %v1570 = vpop.f32.mrb[0].mxu0
      %v1571 = vadd.f32 0.0, %v1570
      %1572 = vmatprep.mubr.bf16.mxu0 0
      %1573 = vmatmul.mubr.bf16.gmra.mrb[0].mxu0 %v699
      %v1574 = vpop.f32.mrb[0].mxu0
      %v1575 = vadd.f32 0.0, %v1574
      %v1576 = vpop.f32.mrb[0].mxu0
      %v1577 = vadd.f32 0.0, %v1576
      %v1578 = vpop.f32.mrb[0].mxu0
      %v1579 = vadd.f32 0.0, %v1578
      %v1580 = vpop.f32.mrb[0].mxu0
      %v1581 = vadd.f32 0.0, %v1580
      %1582 = vmatprep.mubr.bf16.mxu0 0
      %1583 = vmatmul.mubr.bf16.gmra.mrb[0].mxu0 %v702
      %v1584 = vpop.f32.mrb[0].mxu0
      %v1585 = vadd.f32 0.0, %v1584
      %v1586 = vpop.f32.mrb[0].mxu0
      %v1587 = vadd.f32 0.0, %v1586
      %v1588 = vpop.f32.mrb[0].mxu0
      %v1589 = vadd.f32 0.0, %v1588
      %v1590 = vpop.f32.mrb[0].mxu0
      %v1591 = vadd.f32 0.0, %v1590
      %1592 = vdwg.mxu0
      %1593 = vrot.lane.b32.xlu0 %v1549, 1
      %v1594 = vpop.permute.xlu0 %1593
      %1595 = vrot.lane.b32.xlu0 %v1551, 1
      %v1596 = vpop.permute.xlu0 %1595
      %v1597 = vsel %vm791, %v1594, %v1596
      %v1598 = vsel %vm791, %v1596, %v1594
      %v1599 = vadd.f32 %v1545, %v1598
      %v1600 = vadd.f32 %v1547, %v1597
      %1601 = vrot.lane.b32.xlu0 %v1555, 2
      %v1602 = vpop.permute.xlu0 %1601
      %1603 = vrot.lane.b32.xlu0 %v1557, 2
      %v1604 = vpop.permute.xlu0 %1603
      %v1605 = vsel %vm800, %v1602, %v1604
      %v1606 = vsel %vm800, %v1604, %v1602
      %v1607 = vadd.f32 %v1599, %v1606
      %v1608 = vadd.f32 %v1600, %v1605
      %1609 = vrot.lane.b32.xlu0 %v1559, 3
      %v1610 = vpop.permute.xlu0 %1609
      %1611 = vrot.lane.b32.xlu0 %v1561, 3
      %v1612 = vpop.permute.xlu0 %1611
      %v1613 = vsel %vm809, %v1610, %v1612
      %v1614 = vsel %vm809, %v1612, %v1610
      %v1615 = vadd.f32 %v1607, %v1614
      %v1616 = vadd.f32 %v1608, %v1613
      %1617 = vrot.lane.b32.xlu0 %v1565, 4
      %v1618 = vpop.permute.xlu0 %1617
      %1619 = vrot.lane.b32.xlu0 %v1567, 4
      %v1620 = vpop.permute.xlu0 %1619
      %v1621 = vsel %vm818, %v1618, %v1620
      %v1622 = vsel %vm818, %v1620, %v1618
      %v1623 = vadd.f32 %v1615, %v1622
      %v1624 = vadd.f32 %v1616, %v1621
      %v1625 = vadd.f32 %v1623, %v1569
      %v1626 = vadd.f32 %v1624, %v1571
      %1627 = vrot.lane.b32.xlu0 %v1575, 16
      %v1628 = vpop.permute.xlu0 %1627
      %1629 = vrot.lane.b32.xlu0 %v1577, 16
      %v1630 = vpop.permute.xlu0 %1629
      %v1631 = vsel %vm829, %v1628, %v1630
      %v1632 = vsel %vm829, %v1630, %v1628
      %v1633 = vadd.f32 %v1625, %v1632
      %v1634 = vadd.f32 %v1626, %v1631
      %1635 = vrot.lane.b32.xlu0 %v1579, 32
      %v1636 = vpop.permute.xlu0 %1635
      %1637 = vrot.lane.b32.xlu0 %v1581, 32
      %v1638 = vpop.permute.xlu0 %1637
      %v1639 = vsel %vm838, %v1636, %v1638
      %v1640 = vsel %vm838, %v1638, %v1636
      %v1641 = vadd.f32 %v1633, %v1640
      %v1642 = vadd.f32 %v1634, %v1639
      %1643 = vrot.lane.b32.xlu0 %v1585, 48
      %v1644 = vpop.permute.xlu0 %1643
      %1645 = vrot.lane.b32.xlu0 %v1587, 48
      %v1646 = vpop.permute.xlu0 %1645
      %v1647 = vsel %vm847, %v1644, %v1646
      %v1648 = vsel %vm847, %v1646, %v1644
      %v1649 = vadd.f32 %v1641, %v1648
      %v1650 = vadd.f32 %v1642, %v1647
      %1651 = vrot.lane.b32.xlu0 %v1589, 64
      %v1652 = vpop.permute.xlu0 %1651
      %1653 = vrot.lane.b32.xlu0 %v1591, 64
      %v1654 = vpop.permute.xlu0 %1653
      %v1655 = vsel %vm437, %v1652, %v1654
      %v1656 = vsel %vm437, %v1654, %v1652
      %v1657 = vadd.f32 %v1649, %v1656
      %v1658 = vadd.f32 %v1650, %v1655
      %v1659 = vadd.f32 %v1657, %v863
      %v1660 = vadd.f32 %v1658, %v863
      %s1661 = scalar_lea.vmem %s6, 32
      %v1662 = vld [vmem:[%s1661] sm:$0xf]
      %v1663 = vld [vmem:[%s1661 + $0x4] sm:$0xf]
      %v1664 = vld [vmem:[%s1661 + $0x8] sm:$0xf]
      %v1665 = vld [vmem:[%s1661 + $0xc] sm:$0xf]
      %v1666 = vld [vmem:[%s1661 + $0x10] sm:$0xf]
      %v1667 = vld [vmem:[%s1661 + $0x14] sm:$0xf]
      %v1668 = vld [vmem:[%s1661 + $0x18] sm:$0xf]
      %v1669 = vld [vmem:[%s1661 + $0x1c] sm:$0xf]
      %s1670 = scalar_lea.vmem %s7, 64
      %v1671 = vld [vmem:[%s1670] sm:$0xff]
      %v1672 = vld [vmem:[%s1670 + $0x8] sm:$0xff]
      %v1673 = vld [vmem:[%s1670 + $0x10] sm:$0xff]
      %v1674 = vld [vmem:[%s1670 + $0x18] sm:$0xff]
      %v1675 = vld [vmem:[%s1670 + $0x20] sm:$0xff]
      %v1676 = vld [vmem:[%s1670 + $0x28] sm:$0xff]
      %v1677 = vld [vmem:[%s1670 + $0x30] sm:$0xff]
      %v1678 = vld [vmem:[%s1670 + $0x38] sm:$0xff]
      %1679 = vrot.lane.b32.xlu0 %v1659, 127
      %v1680 = vpop.permute.xlu0 %1679
      %1681 = vrot.lane.b32.xlu0 %v1660, 127
      %v1682 = vpop.permute.xlu0 %1681
      %v1683 = vsel %vm388, %v1680, %v1682
      %v1684 = vsel %vm388, %v1682, %v1680
      %1685 = vrot.lane.b32.xlu0 %v1659, 126
      %v1686 = vpop.permute.xlu0 %1685
      %1687 = vrot.lane.b32.xlu0 %v1660, 126
      %v1688 = vpop.permute.xlu0 %1687
      %v1689 = vsel %vm395, %v1686, %v1688
      %v1690 = vsel %vm395, %v1688, %v1686
      %1691 = vrot.lane.b32.xlu0 %v1659, 125
      %v1692 = vpop.permute.xlu0 %1691
      %1693 = vrot.lane.b32.xlu0 %v1660, 125
      %v1694 = vpop.permute.xlu0 %1693
      %v1695 = vsel %vm402, %v1692, %v1694
      %v1696 = vsel %vm402, %v1694, %v1692
      %1697 = vrot.lane.b32.xlu0 %v1659, 124
      %v1698 = vpop.permute.xlu0 %1697
      %1699 = vrot.lane.b32.xlu0 %v1660, 124
      %v1700 = vpop.permute.xlu0 %1699
      %v1701 = vsel %vm409, %v1698, %v1700
      %v1702 = vsel %vm409, %v1700, %v1698
      %1703 = vrot.lane.b32.xlu0 %v1659, 112
      %v1704 = vpop.permute.xlu0 %1703
      %1705 = vrot.lane.b32.xlu0 %v1660, 112
      %v1706 = vpop.permute.xlu0 %1705
      %v1707 = vsel %vm416, %v1704, %v1706
      %v1708 = vsel %vm416, %v1706, %v1704
      %1709 = vrot.lane.b32.xlu0 %v1659, 96
      %v1710 = vpop.permute.xlu0 %1709
      %1711 = vrot.lane.b32.xlu0 %v1660, 96
      %v1712 = vpop.permute.xlu0 %1711
      %v1713 = vsel %vm423, %v1710, %v1712
      %v1714 = vsel %vm423, %v1712, %v1710
      %1715 = vrot.lane.b32.xlu0 %v1659, 80
      %v1716 = vpop.permute.xlu0 %1715
      %1717 = vrot.lane.b32.xlu0 %v1660, 80
      %v1718 = vpop.permute.xlu0 %1717
      %v1719 = vsel %vm430, %v1716, %v1718
      %v1720 = vsel %vm430, %v1718, %v1716
      %1721 = vrot.lane.b32.xlu0 %v1659, 64
      %v1722 = vpop.permute.xlu0 %1721
      %1723 = vrot.lane.b32.xlu0 %v1660, 64
      %v1724 = vpop.permute.xlu0 %1723
      %v1725 = vsel %vm437, %v1722, %v1724
      %v1726 = vsel %vm437, %v1724, %v1722
      %v1727 = vpack.c.bf16 %v1683, %v1659
      %v1728 = vpack.c.bf16 %v1684, %v1660
      %v1729 = vpack.c.bf16 %v1695, %v1689
      %v1730 = vpack.c.bf16 %v1696, %v1690
      %v1731 = vpack.c.bf16 %v1659, %v1701
      %v1732 = vpack.c.bf16 %v1660, %v1702
      %v1733 = vpack.c.bf16 %v1713, %v1707
      %v1734 = vpack.c.bf16 %v1714, %v1708
      %v1735 = vpack.c.bf16 %v1725, %v1719
      %v1736 = vpack.c.bf16 %v1726, %v1720
      %1738 = vset.pattern.permute.xlu0 0
      %1739 = vperm.xlu0 %1738, %v1671
      %v1740 = vpop.permute.xlu0 %1739
      %1743 = vset.pattern.permute.xlu0 0
      %1744 = vperm.xlu0 %1743, %v1672
      %v1745 = vpop.permute.xlu0 %1744
      %1748 = vset.pattern.permute.xlu0 0
      %1749 = vperm.xlu0 %1748, %v1673
      %v1750 = vpop.permute.xlu0 %1749
      %1753 = vset.pattern.permute.xlu0 0
      %1754 = vperm.xlu0 %1753, %v1674
      %v1755 = vpop.permute.xlu0 %1754
      %1758 = vset.pattern.permute.xlu0 0
      %1759 = vperm.xlu0 %1758, %v1675
      %v1760 = vpop.permute.xlu0 %1759
      %1763 = vset.pattern.permute.xlu0 0
      %1764 = vperm.xlu0 %1763, %v1676
      %v1765 = vpop.permute.xlu0 %1764
      %1768 = vset.pattern.permute.xlu0 0
      %1769 = vperm.xlu0 %1768, %v1677
      %v1770 = vpop.permute.xlu0 %1769
      %1773 = vset.pattern.permute.xlu0 0
      %1774 = vperm.xlu0 %1773, %v1678
      %v1775 = vpop.permute.xlu0 %1774
      %v1785 = vunpack.c.l.b16 %v1662
      %v1786 = vunpack.c.l.b16 %v1663
      %v1787 = vunpack.c.l.b16 %v1664
      %v1788 = vunpack.c.l.b16 %v1665
      %v1789 = vunpack.c.l.b16 %v1666
      %v1790 = vunpack.c.l.b16 %v1667
      %v1791 = vunpack.c.l.b16 %v1668
      %v1792 = vunpack.c.l.b16 %v1669
      %v1793 = vpack.c.b16 %v1786, %v1785
      %v1794 = vpack.c.b16 %v1788, %v1787
      %v1795 = vpack.c.b16 %v1790, %v1789
      %v1796 = vpack.c.b16 %v1792, %v1791
      %v1798 = vsel %vm510, %v1793, 0
      %v1801 = vsel %vm510, %v1794, 0
      %v1804 = vsel %vm510, %v1795, 0
      %v1807 = vsel %vm510, %v1796, 0
      %1809 = vmatprep.subr.bf16.mxu0 %v1728
      %1810 = vmatpush1.bf16.msra.mxu0 %v1727
      %1811 = vmatprep.subr.bf16.mxu0 %v1730
      %1812 = vmatpush1.bf16.msra.mxu0 %v1729
      %1813 = vmatprep.subr.bf16.mxu0 %v1732
      %1814 = vmatpush1.bf16.msra.mxu0 %v1731
      %1815 = vmatprep.subr.bf16.mxu0 %v1734
      %1816 = vmatpush1.bf16.msra.mxu0 %v1733
      %1817 = vmatprep.subr.bf16.mxu0 %v1736
      %1818 = vmatpush1.bf16.msra.mxu0 %v1735
      %1819 = vmatprep.subr.bf16.mxu0 0
      %1820 = vmatpush1.bf16.msra.mxu0 0
      %1821 = vmatprep.subr.bf16.mxu0 0
      %1822 = vmatpush1.bf16.msra.mxu0 0
      %1823 = vmatprep.subr.bf16.mxu0 0
      %1824 = vmatpush1.bf16.msra.mxu0 0
      %1825 = vmatprep.subr.bf16.mxu0 0
      %1826 = vmatpush1.bf16.msra.mxu0 0
      %1827 = vmatprep.subr.bf16.mxu0 0
      %1828 = vmatpush1.bf16.msra.mxu0 0
      %1829 = vmatprep.subr.bf16.mxu0 0
      %1830 = vmatpush1.bf16.msra.mxu0 0
      %1831 = vmatprep.subr.bf16.mxu0 0
      %1832 = vmatpush1.bf16.msra.mxu0 0
      %1833 = vmatprep.subr.bf16.mxu0 0
      %1834 = vmatpush1.bf16.msra.mxu0 0
      %1835 = vmatprep.subr.bf16.mxu0 0
      %1836 = vmatpush1.bf16.msra.mxu0 0
      %1837 = vmatprep.subr.bf16.mxu0 0
      %1838 = vmatpush1.bf16.msra.mxu0 0
      %1839 = vmatprep.subr.bf16.mxu0 0
      %1840 = vmatpush1.bf16.msra.mxu0 0
      %1841 = vmatprep.mubr.bf16.mxu0 0
      %1842 = vmatmul.mubr.bf16.gmra.mrb[0].mxu0 %v1798
      %v1843 = vpop.f32.mrb[0].mxu0
      %v1844 = vadd.f32 %v1740, %v1843
      %v1845 = vpop.f32.mrb[0].mxu0
      %v1846 = vadd.f32 %v1740, %v1845
      %v1847 = vpop.f32.mrb[0].mxu0
      %v1848 = vadd.f32 %v1745, %v1847
      %v1849 = vpop.f32.mrb[0].mxu0
      %v1850 = vadd.f32 %v1745, %v1849
      %1851 = vmatprep.mubr.bf16.mxu0 0
      %1852 = vmatmul.mubr.bf16.gmra.mrb[0].mxu0 %v1801
      %v1853 = vpop.f32.mrb[0].mxu0
      %v1854 = vadd.f32 %v1750, %v1853
      %v1855 = vpop.f32.mrb[0].mxu0
      %v1856 = vadd.f32 %v1750, %v1855
      %v1857 = vpop.f32.mrb[0].mxu0
      %v1858 = vadd.f32 %v1755, %v1857
      %v1859 = vpop.f32.mrb[0].mxu0
      %v1860 = vadd.f32 %v1755, %v1859
      %1861 = vmatprep.mubr.bf16.mxu0 0
      %1862 = vmatmul.mubr.bf16.gmra.mrb[0].mxu0 %v1804
      %v1863 = vpop.f32.mrb[0].mxu0
      %v1864 = vadd.f32 %v1760, %v1863
      %v1865 = vpop.f32.mrb[0].mxu0
      %v1866 = vadd.f32 %v1760, %v1865
      %v1867 = vpop.f32.mrb[0].mxu0
      %v1868 = vadd.f32 %v1765, %v1867
      %v1869 = vpop.f32.mrb[0].mxu0
      %v1870 = vadd.f32 %v1765, %v1869
      %1871 = vmatprep.mubr.bf16.mxu0 0
      %1872 = vmatmul.mubr.bf16.gmra.mrb[0].mxu0 %v1807
      %v1873 = vpop.f32.mrb[0].mxu0
      %v1874 = vadd.f32 %v1770, %v1873
      %v1875 = vpop.f32.mrb[0].mxu0
      %v1876 = vadd.f32 %v1770, %v1875
      %v1877 = vpop.f32.mrb[0].mxu0
      %v1878 = vadd.f32 %v1775, %v1877
      %v1879 = vpop.f32.mrb[0].mxu0
      %v1880 = vadd.f32 %v1775, %v1879
      %1881 = vdwg.mxu0
      %v1882 = vmax.f32 %v1844, 0.0
      %v1883 = vmax.f32 %v1846, 0.0
      %v1884 = vmax.f32 %v1848, 0.0
      %v1885 = vmax.f32 %v1850, 0.0
      %v1886 = vmax.f32 %v1854, 0.0
      %v1887 = vmax.f32 %v1856, 0.0
      %v1888 = vmax.f32 %v1858, 0.0
      %v1889 = vmax.f32 %v1860, 0.0
      %v1890 = vmax.f32 %v1864, 0.0
      %v1891 = vmax.f32 %v1866, 0.0
      %v1892 = vmax.f32 %v1868, 0.0
      %v1893 = vmax.f32 %v1870, 0.0
      %v1894 = vmax.f32 %v1874, 0.0
      %v1895 = vmax.f32 %v1876, 0.0
      %v1896 = vmax.f32 %v1878, 0.0
      %v1897 = vmax.f32 %v1880, 0.0
      %v1898 = vmul.f32 %v1882, %v612
      %v1899 = vmul.f32 %v1883, %v613
      %v1900 = vmul.f32 %v1884, %v614
      %v1901 = vmul.f32 %v1885, %v615
      %v1902 = vmul.f32 %v1886, %v616
      %v1903 = vmul.f32 %v1887, %v617
      %v1904 = vmul.f32 %v1888, %v618
      %v1905 = vmul.f32 %v1889, %v619
      %v1906 = vmul.f32 %v1890, %v620
      %v1907 = vmul.f32 %v1891, %v621
      %v1908 = vmul.f32 %v1892, %v622
      %v1909 = vmul.f32 %v1893, %v623
      %v1910 = vmul.f32 %v1894, %v624
      %v1911 = vmul.f32 %v1895, %v625
      %v1912 = vmul.f32 %v1896, %v626
      %v1913 = vmul.f32 %v1897, %v627
      %v1914 = vpack.c.bf16 %v1900, %v1898
      %v1915 = vpack.c.bf16 %v1901, %v1899
      %v1916 = vpack.c.bf16 %v1904, %v1902
      %v1917 = vpack.c.bf16 %v1905, %v1903
      %v1918 = vpack.c.bf16 %v1908, %v1906
      %v1919 = vpack.c.bf16 %v1909, %v1907
      %v1920 = vpack.c.bf16 %v1912, %v1910
      %v1921 = vpack.c.bf16 %v1913, %v1911
      %s1922 = scalar_lea.vmem %s8, 40
      %v1923 = vld [vmem:[%s1922] sm:$0xf]
      %v1924 = vld [vmem:[%s1922 + $0x4] sm:$0xf]
      %v1925 = vld [vmem:[%s1922 + $0x8] sm:$0xf]
      %v1926 = vld [vmem:[%s1922 + $0xc] sm:$0xf]
      %v1927 = vld [vmem:[%s1922 + $0x10] sm:$0xf]
      %v1928 = vld [vmem:[%s1922 + $0x14] sm:$0xf]
      %v1929 = vld [vmem:[%s1922 + $0x18] sm:$0xf]
      %v1930 = vld [vmem:[%s1922 + $0x1c] sm:$0xf]
      %v1931 = vld [vmem:[%s1922 + $0x20] sm:$0xf]
      %v1932 = vld [vmem:[%s1922 + $0x24] sm:$0xf]
      %s1933 = scalar_lea.vmem %s9, 8
      %v1934 = vld [vmem:[%s1933] sm:$0xff]
      %v1945 = vunpack.c.l.b16 %v1923
      %v1946 = vunpack.c.l.b16 %v1924
      %v1947 = vunpack.c.l.b16 %v1925
      %v1948 = vunpack.c.l.b16 %v1926
      %v1949 = vunpack.c.l.b16 %v1927
      %v1950 = vunpack.c.l.b16 %v1928
      %v1951 = vunpack.c.l.b16 %v1929
      %v1952 = vunpack.c.l.b16 %v1930
      %v1953 = vunpack.c.l.b16 %v1931
      %v1954 = vunpack.c.l.b16 %v1932
      %v1955 = vpack.c.b16 %v1946, %v1945
      %v1956 = vpack.c.b16 %v1948, %v1947
      %v1957 = vpack.c.b16 %v1950, %v1949
      %v1958 = vpack.c.b16 %v1952, %v1951
      %v1959 = vpack.c.b16 %v1954, %v1953
      %v1961 = vsel %vm688, %v1955, 0
      %v1964 = vsel %vm688, %v1956, 0
      %v1967 = vsel %vm688, %v1957, 0
      %v1970 = vsel %vm688, %v1958, 0
      %v1973 = vsel %vm688, %v1959, 0
      %1975 = vmatprep.subr.bf16.mxu0 %v1915
      %1976 = vmatpush1.bf16.msra.mxu0 %v1914
      %1977 = vmatprep.subr.bf16.mxu0 %v1917
      %1978 = vmatpush1.bf16.msra.mxu0 %v1916
      %1979 = vmatprep.subr.bf16.mxu0 %v1919
      %1980 = vmatpush1.bf16.msra.mxu0 %v1918
      %1981 = vmatprep.subr.bf16.mxu0 %v1921
      %1982 = vmatpush1.bf16.msra.mxu0 %v1920
      %1983 = vmatprep.subr.bf16.mxu0 0
      %1984 = vmatpush1.bf16.msra.mxu0 0
      %1985 = vmatprep.subr.bf16.mxu0 0
      %1986 = vmatpush1.bf16.msra.mxu0 0
      %1987 = vmatprep.subr.bf16.mxu0 0
      %1988 = vmatpush1.bf16.msra.mxu0 0
      %1989 = vmatprep.subr.bf16.mxu0 0
      %1990 = vmatpush1.bf16.msra.mxu0 0
      %1991 = vmatprep.subr.bf16.mxu0 0
      %1992 = vmatpush1.bf16.msra.mxu0 0
      %1993 = vmatprep.subr.bf16.mxu0 0
      %1994 = vmatpush1.bf16.msra.mxu0 0
      %1995 = vmatprep.subr.bf16.mxu0 0
      %1996 = vmatpush1.bf16.msra.mxu0 0
      %1997 = vmatprep.subr.bf16.mxu0 0
      %1998 = vmatpush1.bf16.msra.mxu0 0
      %1999 = vmatprep.subr.bf16.mxu0 0
      %2000 = vmatpush1.bf16.msra.mxu0 0
      %2001 = vmatprep.subr.bf16.mxu0 0
      %2002 = vmatpush1.bf16.msra.mxu0 0
      %2003 = vmatprep.subr.bf16.mxu0 0
      %2004 = vmatpush1.bf16.msra.mxu0 0
      %2005 = vmatprep.subr.bf16.mxu0 0
      %2006 = vmatpush1.bf16.msra.mxu0 0
      %2007 = vmatprep.mubr.bf16.mxu0 0
      %2008 = vmatmul.mubr.bf16.gmra.mrb[0].mxu0 %v1961
      %v2009 = vpop.f32.mrb[0].mxu0
      %v2010 = vadd.f32 0.0, %v2009
      %v2011 = vpop.f32.mrb[0].mxu0
      %v2012 = vadd.f32 0.0, %v2011
      %v2013 = vpop.f32.mrb[0].mxu0
      %v2014 = vadd.f32 0.0, %v2013
      %v2015 = vpop.f32.mrb[0].mxu0
      %v2016 = vadd.f32 0.0, %v2015
      %2017 = vmatprep.mubr.bf16.mxu0 0
      %2018 = vmatmul.mubr.bf16.gmra.mrb[0].mxu0 %v1964
      %v2019 = vpop.f32.mrb[0].mxu0
      %v2020 = vadd.f32 0.0, %v2019
      %v2021 = vpop.f32.mrb[0].mxu0
      %v2022 = vadd.f32 0.0, %v2021
      %v2023 = vpop.f32.mrb[0].mxu0
      %v2024 = vadd.f32 0.0, %v2023
      %v2025 = vpop.f32.mrb[0].mxu0
      %v2026 = vadd.f32 0.0, %v2025
      %2027 = vmatprep.mubr.bf16.mxu0 0
      %2028 = vmatmul.mubr.bf16.gmra.mrb[0].mxu0 %v1967
      %v2029 = vpop.f32.mrb[0].mxu0
      %v2030 = vadd.f32 0.0, %v2029
      %v2031 = vpop.f32.mrb[0].mxu0
      %v2032 = vadd.f32 0.0, %v2031
      %v2033 = vpop.f32.mrb[0].mxu0
      %v2034 = vadd.f32 0.0, %v2033
      %v2035 = vpop.f32.mrb[0].mxu0
      %v2036 = vadd.f32 0.0, %v2035
      %2037 = vmatprep.mubr.bf16.mxu0 0
      %2038 = vmatmul.mubr.bf16.gmra.mrb[0].mxu0 %v1970
      %v2039 = vpop.f32.mrb[0].mxu0
      %v2040 = vadd.f32 0.0, %v2039
      %v2041 = vpop.f32.mrb[0].mxu0
      %v2042 = vadd.f32 0.0, %v2041
      %v2043 = vpop.f32.mrb[0].mxu0
      %v2044 = vadd.f32 0.0, %v2043
      %v2045 = vpop.f32.mrb[0].mxu0
      %v2046 = vadd.f32 0.0, %v2045
      %2047 = vmatprep.mubr.bf16.mxu0 0
      %2048 = vmatmul.mubr.bf16.gmra.mrb[0].mxu0 %v1973
      %v2049 = vpop.f32.mrb[0].mxu0
      %v2050 = vadd.f32 0.0, %v2049
      %v2051 = vpop.f32.mrb[0].mxu0
      %v2052 = vadd.f32 0.0, %v2051
      %v2053 = vpop.f32.mrb[0].mxu0
      %v2054 = vadd.f32 0.0, %v2053
      %v2055 = vpop.f32.mrb[0].mxu0
      %v2056 = vadd.f32 0.0, %v2055
      %2057 = vdwg.mxu0
      %2058 = vrot.lane.b32.xlu0 %v2014, 1
      %v2059 = vpop.permute.xlu0 %2058
      %2060 = vrot.lane.b32.xlu0 %v2016, 1
      %v2061 = vpop.permute.xlu0 %2060
      %v2062 = vsel %vm791, %v2059, %v2061
      %v2063 = vsel %vm791, %v2061, %v2059
      %v2064 = vadd.f32 %v2010, %v2063
      %v2065 = vadd.f32 %v2012, %v2062
      %2066 = vrot.lane.b32.xlu0 %v2020, 2
      %v2067 = vpop.permute.xlu0 %2066
      %2068 = vrot.lane.b32.xlu0 %v2022, 2
      %v2069 = vpop.permute.xlu0 %2068
      %v2070 = vsel %vm800, %v2067, %v2069
      %v2071 = vsel %vm800, %v2069, %v2067
      %v2072 = vadd.f32 %v2064, %v2071
      %v2073 = vadd.f32 %v2065, %v2070
      %2074 = vrot.lane.b32.xlu0 %v2024, 3
      %v2075 = vpop.permute.xlu0 %2074
      %2076 = vrot.lane.b32.xlu0 %v2026, 3
      %v2077 = vpop.permute.xlu0 %2076
      %v2078 = vsel %vm809, %v2075, %v2077
      %v2079 = vsel %vm809, %v2077, %v2075
      %v2080 = vadd.f32 %v2072, %v2079
      %v2081 = vadd.f32 %v2073, %v2078
      %2082 = vrot.lane.b32.xlu0 %v2030, 4
      %v2083 = vpop.permute.xlu0 %2082
      %2084 = vrot.lane.b32.xlu0 %v2032, 4
      %v2085 = vpop.permute.xlu0 %2084
      %v2086 = vsel %vm818, %v2083, %v2085
      %v2087 = vsel %vm818, %v2085, %v2083
      %v2088 = vadd.f32 %v2080, %v2087
      %v2089 = vadd.f32 %v2081, %v2086
      %v2090 = vadd.f32 %v2088, %v2034
      %v2091 = vadd.f32 %v2089, %v2036
      %2092 = vrot.lane.b32.xlu0 %v2040, 16
      %v2093 = vpop.permute.xlu0 %2092
      %2094 = vrot.lane.b32.xlu0 %v2042, 16
      %v2095 = vpop.permute.xlu0 %2094
      %v2096 = vsel %vm829, %v2093, %v2095
      %v2097 = vsel %vm829, %v2095, %v2093
      %v2098 = vadd.f32 %v2090, %v2097
      %v2099 = vadd.f32 %v2091, %v2096
      %2100 = vrot.lane.b32.xlu0 %v2044, 32
      %v2101 = vpop.permute.xlu0 %2100
      %2102 = vrot.lane.b32.xlu0 %v2046, 32
      %v2103 = vpop.permute.xlu0 %2102
      %v2104 = vsel %vm838, %v2101, %v2103
      %v2105 = vsel %vm838, %v2103, %v2101
      %v2106 = vadd.f32 %v2098, %v2105
      %v2107 = vadd.f32 %v2099, %v2104
      %2108 = vrot.lane.b32.xlu0 %v2050, 48
      %v2109 = vpop.permute.xlu0 %2108
      %2110 = vrot.lane.b32.xlu0 %v2052, 48
      %v2111 = vpop.permute.xlu0 %2110
      %v2112 = vsel %vm847, %v2109, %v2111
      %v2113 = vsel %vm847, %v2111, %v2109
      %v2114 = vadd.f32 %v2106, %v2113
      %v2115 = vadd.f32 %v2107, %v2112
      %2116 = vrot.lane.b32.xlu0 %v2054, 64
      %v2117 = vpop.permute.xlu0 %2116
      %2118 = vrot.lane.b32.xlu0 %v2056, 64
      %v2119 = vpop.permute.xlu0 %2118
      %v2120 = vsel %vm437, %v2117, %v2119
      %v2121 = vsel %vm437, %v2119, %v2117
      %v2122 = vadd.f32 %v2114, %v2121
      %v2123 = vadd.f32 %v2115, %v2120
      %2125 = vset.pattern.permute.xlu0 0
      %2126 = vperm.xlu0 %2125, %v1934
      %v2127 = vpop.permute.xlu0 %2126
      %v2129 = vadd.f32 %v2122, %v2127
      %v2130 = vadd.f32 %v2123, %v2127
      %v2131 = vmax.f32 %v2129, 0.0
      %v2132 = vmax.f32 %v2130, 0.0
      %v2133 = vadd.f32 %v1337, %v2131
      %v2134 = vadd.f32 %v1338, %v2132
      %v2135 = vmax.f32 %v2133, 0.0
      %v2136 = vmax.f32 %v2134, 0.0
      %2137 = vrot.lane.b32.xlu0 %v2135, 127
      %v2138 = vpop.permute.xlu0 %2137
      %2139 = vrot.lane.b32.xlu0 %v2136, 127
      %v2140 = vpop.permute.xlu0 %2139
      %v2141 = vsel %vm388, %v2138, %v2140
      %v2142 = vsel %vm388, %v2140, %v2138
      %2143 = vrot.lane.b32.xlu0 %v2135, 126
      %v2144 = vpop.permute.xlu0 %2143
      %2145 = vrot.lane.b32.xlu0 %v2136, 126
      %v2146 = vpop.permute.xlu0 %2145
      %v2147 = vsel %vm395, %v2144, %v2146
      %v2148 = vsel %vm395, %v2146, %v2144
      %2149 = vrot.lane.b32.xlu0 %v2135, 125
      %v2150 = vpop.permute.xlu0 %2149
      %2151 = vrot.lane.b32.xlu0 %v2136, 125
      %v2152 = vpop.permute.xlu0 %2151
      %v2153 = vsel %vm402, %v2150, %v2152
      %v2154 = vsel %vm402, %v2152, %v2150
      %2155 = vrot.lane.b32.xlu0 %v2135, 124
      %v2156 = vpop.permute.xlu0 %2155
      %2157 = vrot.lane.b32.xlu0 %v2136, 124
      %v2158 = vpop.permute.xlu0 %2157
      %v2159 = vsel %vm409, %v2156, %v2158
      %v2160 = vsel %vm409, %v2158, %v2156
      %2161 = vrot.lane.b32.xlu0 %v2135, 112
      %v2162 = vpop.permute.xlu0 %2161
      %2163 = vrot.lane.b32.xlu0 %v2136, 112
      %v2164 = vpop.permute.xlu0 %2163
      %v2165 = vsel %vm416, %v2162, %v2164
      %v2166 = vsel %vm416, %v2164, %v2162
      %2167 = vrot.lane.b32.xlu0 %v2135, 96
      %v2168 = vpop.permute.xlu0 %2167
      %2169 = vrot.lane.b32.xlu0 %v2136, 96
      %v2170 = vpop.permute.xlu0 %2169
      %v2171 = vsel %vm423, %v2168, %v2170
      %v2172 = vsel %vm423, %v2170, %v2168
      %2173 = vrot.lane.b32.xlu0 %v2135, 80
      %v2174 = vpop.permute.xlu0 %2173
      %2175 = vrot.lane.b32.xlu0 %v2136, 80
      %v2176 = vpop.permute.xlu0 %2175
      %v2177 = vsel %vm430, %v2174, %v2176
      %v2178 = vsel %vm430, %v2176, %v2174
      %2179 = vrot.lane.b32.xlu0 %v2135, 64
      %v2180 = vpop.permute.xlu0 %2179
      %2181 = vrot.lane.b32.xlu0 %v2136, 64
      %v2182 = vpop.permute.xlu0 %2181
      %v2183 = vsel %vm437, %v2180, %v2182
      %v2184 = vsel %vm437, %v2182, %v2180
      %v2185 = vpack.c.bf16 %v2141, %v2135
      %v2186 = vpack.c.bf16 %v2142, %v2136
      %v2187 = vpack.c.bf16 %v2153, %v2147
      %v2188 = vpack.c.bf16 %v2154, %v2148
      %v2189 = vpack.c.bf16 %v2135, %v2159
      %v2190 = vpack.c.bf16 %v2136, %v2160
      %v2191 = vpack.c.bf16 %v2171, %v2165
      %v2192 = vpack.c.bf16 %v2172, %v2166
      %v2193 = vpack.c.bf16 %v2183, %v2177
      %v2194 = vpack.c.bf16 %v2184, %v2178
      %2195 = vmatprep.subr.bf16.mxu0 %v2186
      %2196 = vmatpush1.bf16.msra.mxu0 %v2185
      %2197 = vmatprep.subr.bf16.mxu0 %v2188
      %2198 = vmatpush1.bf16.msra.mxu0 %v2187
      %2199 = vmatprep.subr.bf16.mxu0 %v2190
      %2200 = vmatpush1.bf16.msra.mxu0 %v2189
      %2201 = vmatprep.subr.bf16.mxu0 %v2192
      %2202 = vmatpush1.bf16.msra.mxu0 %v2191
      %2203 = vmatprep.subr.bf16.mxu0 %v2194
      %2204 = vmatpush1.bf16.msra.mxu0 %v2193
      %2205 = vmatprep.subr.bf16.mxu0 0
      %2206 = vmatpush1.bf16.msra.mxu0 0
      %2207 = vmatprep.subr.bf16.mxu0 0
      %2208 = vmatpush1.bf16.msra.mxu0 0
      %2209 = vmatprep.subr.bf16.mxu0 0
      %2210 = vmatpush1.bf16.msra.mxu0 0
      %2211 = vmatprep.subr.bf16.mxu0 0
      %2212 = vmatpush1.bf16.msra.mxu0 0
      %2213 = vmatprep.subr.bf16.mxu0 0
      %2214 = vmatpush1.bf16.msra.mxu0 0
      %2215 = vmatprep.subr.bf16.mxu0 0
      %2216 = vmatpush1.bf16.msra.mxu0 0
      %2217 = vmatprep.subr.bf16.mxu0 0
      %2218 = vmatpush1.bf16.msra.mxu0 0
      %2219 = vmatprep.subr.bf16.mxu0 0
      %2220 = vmatpush1.bf16.msra.mxu0 0
      %2221 = vmatprep.subr.bf16.mxu0 0
      %2222 = vmatpush1.bf16.msra.mxu0 0
      %2223 = vmatprep.subr.bf16.mxu0 0
      %2224 = vmatpush1.bf16.msra.mxu0 0
      %2225 = vmatprep.subr.bf16.mxu0 0
      %2226 = vmatpush1.bf16.msra.mxu0 0
      %2227 = vmatprep.mubr.bf16.mxu0 0
      %2228 = vmatmul.mubr.bf16.gmra.mrb[0].mxu0 %v512
      %v2229 = vpop.f32.mrb[0].mxu0
      %v2230 = vadd.f32 %v453, %v2229
      %v2231 = vpop.f32.mrb[0].mxu0
      %v2232 = vadd.f32 %v453, %v2231
      %v2233 = vpop.f32.mrb[0].mxu0
      %v2234 = vadd.f32 %v458, %v2233
      %v2235 = vpop.f32.mrb[0].mxu0
      %v2236 = vadd.f32 %v458, %v2235
      %2237 = vmatprep.mubr.bf16.mxu0 0
      %2238 = vmatmul.mubr.bf16.gmra.mrb[0].mxu0 %v515
      %v2239 = vpop.f32.mrb[0].mxu0
      %v2240 = vadd.f32 %v463, %v2239
      %v2241 = vpop.f32.mrb[0].mxu0
      %v2242 = vadd.f32 %v463, %v2241
      %v2243 = vpop.f32.mrb[0].mxu0
      %v2244 = vadd.f32 %v468, %v2243
      %v2245 = vpop.f32.mrb[0].mxu0
      %v2246 = vadd.f32 %v468, %v2245
      %2247 = vmatprep.mubr.bf16.mxu0 0
      %2248 = vmatmul.mubr.bf16.gmra.mrb[0].mxu0 %v518
      %v2249 = vpop.f32.mrb[0].mxu0
      %v2250 = vadd.f32 %v473, %v2249
      %v2251 = vpop.f32.mrb[0].mxu0
      %v2252 = vadd.f32 %v473, %v2251
      %v2253 = vpop.f32.mrb[0].mxu0
      %v2254 = vadd.f32 %v478, %v2253
      %v2255 = vpop.f32.mrb[0].mxu0
      %v2256 = vadd.f32 %v478, %v2255
      %2257 = vmatprep.mubr.bf16.mxu0 0
      %2258 = vmatmul.mubr.bf16.gmra.mrb[0].mxu0 %v521
      %v2259 = vpop.f32.mrb[0].mxu0
      %v2260 = vadd.f32 %v483, %v2259
      %v2261 = vpop.f32.mrb[0].mxu0
      %v2262 = vadd.f32 %v483, %v2261
      %v2263 = vpop.f32.mrb[0].mxu0
      %v2264 = vadd.f32 %v488, %v2263
      %v2265 = vpop.f32.mrb[0].mxu0
      %v2266 = vadd.f32 %v488, %v2265
      %2267 = vdwg.mxu0
      %v2268 = vmax.f32 %v2230, 0.0
      %v2269 = vmax.f32 %v2232, 0.0
      %v2270 = vmax.f32 %v2234, 0.0
      %v2271 = vmax.f32 %v2236, 0.0
      %v2272 = vmax.f32 %v2240, 0.0
      %v2273 = vmax.f32 %v2242, 0.0
      %v2274 = vmax.f32 %v2244, 0.0
      %v2275 = vmax.f32 %v2246, 0.0
      %v2276 = vmax.f32 %v2250, 0.0
      %v2277 = vmax.f32 %v2252, 0.0
      %v2278 = vmax.f32 %v2254, 0.0
      %v2279 = vmax.f32 %v2256, 0.0
      %v2280 = vmax.f32 %v2260, 0.0
      %v2281 = vmax.f32 %v2262, 0.0
      %v2282 = vmax.f32 %v2264, 0.0
      %v2283 = vmax.f32 %v2266, 0.0
      %v2284 = vmul.f32 %v2268, %v612
      %v2285 = vmul.f32 %v2269, %v613
      %v2286 = vmul.f32 %v2270, %v614
      %v2287 = vmul.f32 %v2271, %v615
      %v2288 = vmul.f32 %v2272, %v616
      %v2289 = vmul.f32 %v2273, %v617
      %v2290 = vmul.f32 %v2274, %v618
      %v2291 = vmul.f32 %v2275, %v619
      %v2292 = vmul.f32 %v2276, %v620
      %v2293 = vmul.f32 %v2277, %v621
      %v2294 = vmul.f32 %v2278, %v622
      %v2295 = vmul.f32 %v2279, %v623
      %v2296 = vmul.f32 %v2280, %v624
      %v2297 = vmul.f32 %v2281, %v625
      %v2298 = vmul.f32 %v2282, %v626
      %v2299 = vmul.f32 %v2283, %v627
      %v2300 = vpack.c.bf16 %v2286, %v2284
      %v2301 = vpack.c.bf16 %v2287, %v2285
      %v2302 = vpack.c.bf16 %v2290, %v2288
      %v2303 = vpack.c.bf16 %v2291, %v2289
      %v2304 = vpack.c.bf16 %v2294, %v2292
      %v2305 = vpack.c.bf16 %v2295, %v2293
      %v2306 = vpack.c.bf16 %v2298, %v2296
      %v2307 = vpack.c.bf16 %v2299, %v2297
      %2308 = vmatprep.subr.bf16.mxu0 %v2301
      %2309 = vmatpush1.bf16.msra.mxu0 %v2300
      %2310 = vmatprep.subr.bf16.mxu0 %v2303
      %2311 = vmatpush1.bf16.msra.mxu0 %v2302
      %2312 = vmatprep.subr.bf16.mxu0 %v2305
      %2313 = vmatpush1.bf16.msra.mxu0 %v2304
      %2314 = vmatprep.subr.bf16.mxu0 %v2307
      %2315 = vmatpush1.bf16.msra.mxu0 %v2306
      %2316 = vmatprep.subr.bf16.mxu0 0
      %2317 = vmatpush1.bf16.msra.mxu0 0
      %2318 = vmatprep.subr.bf16.mxu0 0
      %2319 = vmatpush1.bf16.msra.mxu0 0
      %2320 = vmatprep.subr.bf16.mxu0 0
      %2321 = vmatpush1.bf16.msra.mxu0 0
      %2322 = vmatprep.subr.bf16.mxu0 0
      %2323 = vmatpush1.bf16.msra.mxu0 0
      %2324 = vmatprep.subr.bf16.mxu0 0
      %2325 = vmatpush1.bf16.msra.mxu0 0
      %2326 = vmatprep.subr.bf16.mxu0 0
      %2327 = vmatpush1.bf16.msra.mxu0 0
      %2328 = vmatprep.subr.bf16.mxu0 0
      %2329 = vmatpush1.bf16.msra.mxu0 0
      %2330 = vmatprep.subr.bf16.mxu0 0
      %2331 = vmatpush1.bf16.msra.mxu0 0
      %2332 = vmatprep.subr.bf16.mxu0 0
      %2333 = vmatpush1.bf16.msra.mxu0 0
      %2334 = vmatprep.subr.bf16.mxu0 0
      %2335 = vmatpush1.bf16.msra.mxu0 0
      %2336 = vmatprep.subr.bf16.mxu0 0
      %2337 = vmatpush1.bf16.msra.mxu0 0
      %2338 = vmatprep.subr.bf16.mxu0 0
      %2339 = vmatpush1.bf16.msra.mxu0 0
      %2340 = vmatprep.mubr.bf16.mxu0 0
      %2341 = vmatmul.mubr.bf16.gmra.mrb[0].mxu0 %v690
      %v2342 = vpop.f32.mrb[0].mxu0
      %v2343 = vadd.f32 0.0, %v2342
      %v2344 = vpop.f32.mrb[0].mxu0
      %v2345 = vadd.f32 0.0, %v2344
      %v2346 = vpop.f32.mrb[0].mxu0
      %v2347 = vadd.f32 0.0, %v2346
      %v2348 = vpop.f32.mrb[0].mxu0
      %v2349 = vadd.f32 0.0, %v2348
      %2350 = vmatprep.mubr.bf16.mxu0 0
      %2351 = vmatmul.mubr.bf16.gmra.mrb[0].mxu0 %v693
      %v2352 = vpop.f32.mrb[0].mxu0
      %v2353 = vadd.f32 0.0, %v2352
      %v2354 = vpop.f32.mrb[0].mxu0
      %v2355 = vadd.f32 0.0, %v2354
      %v2356 = vpop.f32.mrb[0].mxu0
      %v2357 = vadd.f32 0.0, %v2356
      %v2358 = vpop.f32.mrb[0].mxu0
      %v2359 = vadd.f32 0.0, %v2358
      %2360 = vmatprep.mubr.bf16.mxu0 0
      %2361 = vmatmul.mubr.bf16.gmra.mrb[0].mxu0 %v696
      %v2362 = vpop.f32.mrb[0].mxu0
      %v2363 = vadd.f32 0.0, %v2362
      %v2364 = vpop.f32.mrb[0].mxu0
      %v2365 = vadd.f32 0.0, %v2364
      %v2366 = vpop.f32.mrb[0].mxu0
      %v2367 = vadd.f32 0.0, %v2366
      %v2368 = vpop.f32.mrb[0].mxu0
      %v2369 = vadd.f32 0.0, %v2368
      %2370 = vmatprep.mubr.bf16.mxu0 0
      %2371 = vmatmul.mubr.bf16.gmra.mrb[0].mxu0 %v699
      %v2372 = vpop.f32.mrb[0].mxu0
      %v2373 = vadd.f32 0.0, %v2372
      %v2374 = vpop.f32.mrb[0].mxu0
      %v2375 = vadd.f32 0.0, %v2374
      %v2376 = vpop.f32.mrb[0].mxu0
      %v2377 = vadd.f32 0.0, %v2376
      %v2378 = vpop.f32.mrb[0].mxu0
      %v2379 = vadd.f32 0.0, %v2378
      %2380 = vmatprep.mubr.bf16.mxu0 0
      %2381 = vmatmul.mubr.bf16.gmra.mrb[0].mxu0 %v702
      %v2382 = vpop.f32.mrb[0].mxu0
      %v2383 = vadd.f32 0.0, %v2382
      %v2384 = vpop.f32.mrb[0].mxu0
      %v2385 = vadd.f32 0.0, %v2384
      %v2386 = vpop.f32.mrb[0].mxu0
      %v2387 = vadd.f32 0.0, %v2386
      %v2388 = vpop.f32.mrb[0].mxu0
      %v2389 = vadd.f32 0.0, %v2388
      %2390 = vdwg.mxu0
      %2391 = vrot.lane.b32.xlu0 %v2347, 1
      %v2392 = vpop.permute.xlu0 %2391
      %2393 = vrot.lane.b32.xlu0 %v2349, 1
      %v2394 = vpop.permute.xlu0 %2393
      %v2395 = vsel %vm791, %v2392, %v2394
      %v2396 = vsel %vm791, %v2394, %v2392
      %v2397 = vadd.f32 %v2343, %v2396
      %v2398 = vadd.f32 %v2345, %v2395
      %2399 = vrot.lane.b32.xlu0 %v2353, 2
      %v2400 = vpop.permute.xlu0 %2399
      %2401 = vrot.lane.b32.xlu0 %v2355, 2
      %v2402 = vpop.permute.xlu0 %2401
      %v2403 = vsel %vm800, %v2400, %v2402
      %v2404 = vsel %vm800, %v2402, %v2400
      %v2405 = vadd.f32 %v2397, %v2404
      %v2406 = vadd.f32 %v2398, %v2403
      %2407 = vrot.lane.b32.xlu0 %v2357, 3
      %v2408 = vpop.permute.xlu0 %2407
      %2409 = vrot.lane.b32.xlu0 %v2359, 3
      %v2410 = vpop.permute.xlu0 %2409
      %v2411 = vsel %vm809, %v2408, %v2410
      %v2412 = vsel %vm809, %v2410, %v2408
      %v2413 = vadd.f32 %v2405, %v2412
      %v2414 = vadd.f32 %v2406, %v2411
      %2415 = vrot.lane.b32.xlu0 %v2363, 4
      %v2416 = vpop.permute.xlu0 %2415
      %2417 = vrot.lane.b32.xlu0 %v2365, 4
      %v2418 = vpop.permute.xlu0 %2417
      %v2419 = vsel %vm818, %v2416, %v2418
      %v2420 = vsel %vm818, %v2418, %v2416
      %v2421 = vadd.f32 %v2413, %v2420
      %v2422 = vadd.f32 %v2414, %v2419
      %v2423 = vadd.f32 %v2421, %v2367
      %v2424 = vadd.f32 %v2422, %v2369
      %2425 = vrot.lane.b32.xlu0 %v2373, 16
      %v2426 = vpop.permute.xlu0 %2425
      %2427 = vrot.lane.b32.xlu0 %v2375, 16
      %v2428 = vpop.permute.xlu0 %2427
      %v2429 = vsel %vm829, %v2426, %v2428
      %v2430 = vsel %vm829, %v2428, %v2426
      %v2431 = vadd.f32 %v2423, %v2430
      %v2432 = vadd.f32 %v2424, %v2429
      %2433 = vrot.lane.b32.xlu0 %v2377, 32
      %v2434 = vpop.permute.xlu0 %2433
      %2435 = vrot.lane.b32.xlu0 %v2379, 32
      %v2436 = vpop.permute.xlu0 %2435
      %v2437 = vsel %vm838, %v2434, %v2436
      %v2438 = vsel %vm838, %v2436, %v2434
      %v2439 = vadd.f32 %v2431, %v2438
      %v2440 = vadd.f32 %v2432, %v2437
      %2441 = vrot.lane.b32.xlu0 %v2383, 48
      %v2442 = vpop.permute.xlu0 %2441
      %2443 = vrot.lane.b32.xlu0 %v2385, 48
      %v2444 = vpop.permute.xlu0 %2443
      %v2445 = vsel %vm847, %v2442, %v2444
      %v2446 = vsel %vm847, %v2444, %v2442
      %v2447 = vadd.f32 %v2439, %v2446
      %v2448 = vadd.f32 %v2440, %v2445
      %2449 = vrot.lane.b32.xlu0 %v2387, 64
      %v2450 = vpop.permute.xlu0 %2449
      %2451 = vrot.lane.b32.xlu0 %v2389, 64
      %v2452 = vpop.permute.xlu0 %2451
      %v2453 = vsel %vm437, %v2450, %v2452
      %v2454 = vsel %vm437, %v2452, %v2450
      %v2455 = vadd.f32 %v2447, %v2454
      %v2456 = vadd.f32 %v2448, %v2453
      %v2457 = vadd.f32 %v2455, %v863
      %v2458 = vadd.f32 %v2456, %v863
      %s2459 = scalar_lea.vmem %s6, 64
      %v2460 = vld [vmem:[%s2459] sm:$0xf]
      %v2461 = vld [vmem:[%s2459 + $0x4] sm:$0xf]
      %v2462 = vld [vmem:[%s2459 + $0x8] sm:$0xf]
      %v2463 = vld [vmem:[%s2459 + $0xc] sm:$0xf]
      %v2464 = vld [vmem:[%s2459 + $0x10] sm:$0xf]
      %v2465 = vld [vmem:[%s2459 + $0x14] sm:$0xf]
      %v2466 = vld [vmem:[%s2459 + $0x18] sm:$0xf]
      %v2467 = vld [vmem:[%s2459 + $0x1c] sm:$0xf]
      %s2468 = scalar_lea.vmem %s7, 128
      %v2469 = vld [vmem:[%s2468] sm:$0xff]
      %v2470 = vld [vmem:[%s2468 + $0x8] sm:$0xff]
      %v2471 = vld [vmem:[%s2468 + $0x10] sm:$0xff]
      %v2472 = vld [vmem:[%s2468 + $0x18] sm:$0xff]
      %v2473 = vld [vmem:[%s2468 + $0x20] sm:$0xff]
      %v2474 = vld [vmem:[%s2468 + $0x28] sm:$0xff]
      %v2475 = vld [vmem:[%s2468 + $0x30] sm:$0xff]
      %v2476 = vld [vmem:[%s2468 + $0x38] sm:$0xff]
      %2477 = vrot.lane.b32.xlu0 %v2457, 127
      %v2478 = vpop.permute.xlu0 %2477
      %2479 = vrot.lane.b32.xlu0 %v2458, 127
      %v2480 = vpop.permute.xlu0 %2479
      %v2481 = vsel %vm388, %v2478, %v2480
      %v2482 = vsel %vm388, %v2480, %v2478
      %2483 = vrot.lane.b32.xlu0 %v2457, 126
      %v2484 = vpop.permute.xlu0 %2483
      %2485 = vrot.lane.b32.xlu0 %v2458, 126
      %v2486 = vpop.permute.xlu0 %2485
      %v2487 = vsel %vm395, %v2484, %v2486
      %v2488 = vsel %vm395, %v2486, %v2484
      %2489 = vrot.lane.b32.xlu0 %v2457, 125
      %v2490 = vpop.permute.xlu0 %2489
      %2491 = vrot.lane.b32.xlu0 %v2458, 125
      %v2492 = vpop.permute.xlu0 %2491
      %v2493 = vsel %vm402, %v2490, %v2492
      %v2494 = vsel %vm402, %v2492, %v2490
      %2495 = vrot.lane.b32.xlu0 %v2457, 124
      %v2496 = vpop.permute.xlu0 %2495
      %2497 = vrot.lane.b32.xlu0 %v2458, 124
      %v2498 = vpop.permute.xlu0 %2497
      %v2499 = vsel %vm409, %v2496, %v2498
      %v2500 = vsel %vm409, %v2498, %v2496
      %2501 = vrot.lane.b32.xlu0 %v2457, 112
      %v2502 = vpop.permute.xlu0 %2501
      %2503 = vrot.lane.b32.xlu0 %v2458, 112
      %v2504 = vpop.permute.xlu0 %2503
      %v2505 = vsel %vm416, %v2502, %v2504
      %v2506 = vsel %vm416, %v2504, %v2502
      %2507 = vrot.lane.b32.xlu0 %v2457, 96
      %v2508 = vpop.permute.xlu0 %2507
      %2509 = vrot.lane.b32.xlu0 %v2458, 96
      %v2510 = vpop.permute.xlu0 %2509
      %v2511 = vsel %vm423, %v2508, %v2510
      %v2512 = vsel %vm423, %v2510, %v2508
      %2513 = vrot.lane.b32.xlu0 %v2457, 80
      %v2514 = vpop.permute.xlu0 %2513
      %2515 = vrot.lane.b32.xlu0 %v2458, 80
      %v2516 = vpop.permute.xlu0 %2515
      %v2517 = vsel %vm430, %v2514, %v2516
      %v2518 = vsel %vm430, %v2516, %v2514
      %2519 = vrot.lane.b32.xlu0 %v2457, 64
      %v2520 = vpop.permute.xlu0 %2519
      %2521 = vrot.lane.b32.xlu0 %v2458, 64
      %v2522 = vpop.permute.xlu0 %2521
      %v2523 = vsel %vm437, %v2520, %v2522
      %v2524 = vsel %vm437, %v2522, %v2520
      %v2525 = vpack.c.bf16 %v2481, %v2457
      %v2526 = vpack.c.bf16 %v2482, %v2458
      %v2527 = vpack.c.bf16 %v2493, %v2487
      %v2528 = vpack.c.bf16 %v2494, %v2488
      %v2529 = vpack.c.bf16 %v2457, %v2499
      %v2530 = vpack.c.bf16 %v2458, %v2500
      %v2531 = vpack.c.bf16 %v2511, %v2505
      %v2532 = vpack.c.bf16 %v2512, %v2506
      %v2533 = vpack.c.bf16 %v2523, %v2517
      %v2534 = vpack.c.bf16 %v2524, %v2518
      %2536 = vset.pattern.permute.xlu0 0
      %2537 = vperm.xlu0 %2536, %v2469
      %v2538 = vpop.permute.xlu0 %2537
      %2541 = vset.pattern.permute.xlu0 0
      %2542 = vperm.xlu0 %2541, %v2470
      %v2543 = vpop.permute.xlu0 %2542
      %2546 = vset.pattern.permute.xlu0 0
      %2547 = vperm.xlu0 %2546, %v2471
      %v2548 = vpop.permute.xlu0 %2547
      %2551 = vset.pattern.permute.xlu0 0
      %2552 = vperm.xlu0 %2551, %v2472
      %v2553 = vpop.permute.xlu0 %2552
      %2556 = vset.pattern.permute.xlu0 0
      %2557 = vperm.xlu0 %2556, %v2473
      %v2558 = vpop.permute.xlu0 %2557
      %2561 = vset.pattern.permute.xlu0 0
      %2562 = vperm.xlu0 %2561, %v2474
      %v2563 = vpop.permute.xlu0 %2562
      %2566 = vset.pattern.permute.xlu0 0
      %2567 = vperm.xlu0 %2566, %v2475
      %v2568 = vpop.permute.xlu0 %2567
      %2571 = vset.pattern.permute.xlu0 0
      %2572 = vperm.xlu0 %2571, %v2476
      %v2573 = vpop.permute.xlu0 %2572
      %v2583 = vunpack.c.l.b16 %v2460
      %v2584 = vunpack.c.l.b16 %v2461
      %v2585 = vunpack.c.l.b16 %v2462
      %v2586 = vunpack.c.l.b16 %v2463
      %v2587 = vunpack.c.l.b16 %v2464
      %v2588 = vunpack.c.l.b16 %v2465
      %v2589 = vunpack.c.l.b16 %v2466
      %v2590 = vunpack.c.l.b16 %v2467
      %v2591 = vpack.c.b16 %v2584, %v2583
      %v2592 = vpack.c.b16 %v2586, %v2585
      %v2593 = vpack.c.b16 %v2588, %v2587
      %v2594 = vpack.c.b16 %v2590, %v2589
      %v2596 = vsel %vm510, %v2591, 0
      %v2599 = vsel %vm510, %v2592, 0
      %v2602 = vsel %vm510, %v2593, 0
      %v2605 = vsel %vm510, %v2594, 0
      %2607 = vmatprep.subr.bf16.mxu0 %v2526
      %2608 = vmatpush1.bf16.msra.mxu0 %v2525
      %2609 = vmatprep.subr.bf16.mxu0 %v2528
      %2610 = vmatpush1.bf16.msra.mxu0 %v2527
      %2611 = vmatprep.subr.bf16.mxu0 %v2530
      %2612 = vmatpush1.bf16.msra.mxu0 %v2529
      %2613 = vmatprep.subr.bf16.mxu0 %v2532
      %2614 = vmatpush1.bf16.msra.mxu0 %v2531
      %2615 = vmatprep.subr.bf16.mxu0 %v2534
      %2616 = vmatpush1.bf16.msra.mxu0 %v2533
      %2617 = vmatprep.subr.bf16.mxu0 0
      %2618 = vmatpush1.bf16.msra.mxu0 0
      %2619 = vmatprep.subr.bf16.mxu0 0
      %2620 = vmatpush1.bf16.msra.mxu0 0
      %2621 = vmatprep.subr.bf16.mxu0 0
      %2622 = vmatpush1.bf16.msra.mxu0 0
      %2623 = vmatprep.subr.bf16.mxu0 0
      %2624 = vmatpush1.bf16.msra.mxu0 0
      %2625 = vmatprep.subr.bf16.mxu0 0
      %2626 = vmatpush1.bf16.msra.mxu0 0
      %2627 = vmatprep.subr.bf16.mxu0 0
      %2628 = vmatpush1.bf16.msra.mxu0 0
      %2629 = vmatprep.subr.bf16.mxu0 0
      %2630 = vmatpush1.bf16.msra.mxu0 0
      %2631 = vmatprep.subr.bf16.mxu0 0
      %2632 = vmatpush1.bf16.msra.mxu0 0
      %2633 = vmatprep.subr.bf16.mxu0 0
      %2634 = vmatpush1.bf16.msra.mxu0 0
      %2635 = vmatprep.subr.bf16.mxu0 0
      %2636 = vmatpush1.bf16.msra.mxu0 0
      %2637 = vmatprep.subr.bf16.mxu0 0
      %2638 = vmatpush1.bf16.msra.mxu0 0
      %2639 = vmatprep.mubr.bf16.mxu0 0
      %2640 = vmatmul.mubr.bf16.gmra.mrb[0].mxu0 %v2596
      %v2641 = vpop.f32.mrb[0].mxu0
      %v2642 = vadd.f32 %v2538, %v2641
      %v2643 = vpop.f32.mrb[0].mxu0
      %v2644 = vadd.f32 %v2538, %v2643
      %v2645 = vpop.f32.mrb[0].mxu0
      %v2646 = vadd.f32 %v2543, %v2645
      %v2647 = vpop.f32.mrb[0].mxu0
      %v2648 = vadd.f32 %v2543, %v2647
      %2649 = vmatprep.mubr.bf16.mxu0 0
      %2650 = vmatmul.mubr.bf16.gmra.mrb[0].mxu0 %v2599
      %v2651 = vpop.f32.mrb[0].mxu0
      %v2652 = vadd.f32 %v2548, %v2651
      %v2653 = vpop.f32.mrb[0].mxu0
      %v2654 = vadd.f32 %v2548, %v2653
      %v2655 = vpop.f32.mrb[0].mxu0
      %v2656 = vadd.f32 %v2553, %v2655
      %v2657 = vpop.f32.mrb[0].mxu0
      %v2658 = vadd.f32 %v2553, %v2657
      %2659 = vmatprep.mubr.bf16.mxu0 0
      %2660 = vmatmul.mubr.bf16.gmra.mrb[0].mxu0 %v2602
      %v2661 = vpop.f32.mrb[0].mxu0
      %v2662 = vadd.f32 %v2558, %v2661
      %v2663 = vpop.f32.mrb[0].mxu0
      %v2664 = vadd.f32 %v2558, %v2663
      %v2665 = vpop.f32.mrb[0].mxu0
      %v2666 = vadd.f32 %v2563, %v2665
      %v2667 = vpop.f32.mrb[0].mxu0
      %v2668 = vadd.f32 %v2563, %v2667
      %2669 = vmatprep.mubr.bf16.mxu0 0
      %2670 = vmatmul.mubr.bf16.gmra.mrb[0].mxu0 %v2605
      %v2671 = vpop.f32.mrb[0].mxu0
      %v2672 = vadd.f32 %v2568, %v2671
      %v2673 = vpop.f32.mrb[0].mxu0
      %v2674 = vadd.f32 %v2568, %v2673
      %v2675 = vpop.f32.mrb[0].mxu0
      %v2676 = vadd.f32 %v2573, %v2675
      %v2677 = vpop.f32.mrb[0].mxu0
      %v2678 = vadd.f32 %v2573, %v2677
      %2679 = vdwg.mxu0
      %v2680 = vmax.f32 %v2642, 0.0
      %v2681 = vmax.f32 %v2644, 0.0
      %v2682 = vmax.f32 %v2646, 0.0
      %v2683 = vmax.f32 %v2648, 0.0
      %v2684 = vmax.f32 %v2652, 0.0
      %v2685 = vmax.f32 %v2654, 0.0
      %v2686 = vmax.f32 %v2656, 0.0
      %v2687 = vmax.f32 %v2658, 0.0
      %v2688 = vmax.f32 %v2662, 0.0
      %v2689 = vmax.f32 %v2664, 0.0
      %v2690 = vmax.f32 %v2666, 0.0
      %v2691 = vmax.f32 %v2668, 0.0
      %v2692 = vmax.f32 %v2672, 0.0
      %v2693 = vmax.f32 %v2674, 0.0
      %v2694 = vmax.f32 %v2676, 0.0
      %v2695 = vmax.f32 %v2678, 0.0
      %v2696 = vmul.f32 %v2680, %v612
      %v2697 = vmul.f32 %v2681, %v613
      %v2698 = vmul.f32 %v2682, %v614
      %v2699 = vmul.f32 %v2683, %v615
      %v2700 = vmul.f32 %v2684, %v616
      %v2701 = vmul.f32 %v2685, %v617
      %v2702 = vmul.f32 %v2686, %v618
      %v2703 = vmul.f32 %v2687, %v619
      %v2704 = vmul.f32 %v2688, %v620
      %v2705 = vmul.f32 %v2689, %v621
      %v2706 = vmul.f32 %v2690, %v622
      %v2707 = vmul.f32 %v2691, %v623
      %v2708 = vmul.f32 %v2692, %v624
      %v2709 = vmul.f32 %v2693, %v625
      %v2710 = vmul.f32 %v2694, %v626
      %v2711 = vmul.f32 %v2695, %v627
      %v2712 = vpack.c.bf16 %v2698, %v2696
      %v2713 = vpack.c.bf16 %v2699, %v2697
      %v2714 = vpack.c.bf16 %v2702, %v2700
      %v2715 = vpack.c.bf16 %v2703, %v2701
      %v2716 = vpack.c.bf16 %v2706, %v2704
      %v2717 = vpack.c.bf16 %v2707, %v2705
      %v2718 = vpack.c.bf16 %v2710, %v2708
      %v2719 = vpack.c.bf16 %v2711, %v2709
      %s2720 = scalar_lea.vmem %s8, 80
      %v2721 = vld [vmem:[%s2720] sm:$0xf]
      %v2722 = vld [vmem:[%s2720 + $0x4] sm:$0xf]
      %v2723 = vld [vmem:[%s2720 + $0x8] sm:$0xf]
      %v2724 = vld [vmem:[%s2720 + $0xc] sm:$0xf]
      %v2725 = vld [vmem:[%s2720 + $0x10] sm:$0xf]
      %v2726 = vld [vmem:[%s2720 + $0x14] sm:$0xf]
      %v2727 = vld [vmem:[%s2720 + $0x18] sm:$0xf]
      %v2728 = vld [vmem:[%s2720 + $0x1c] sm:$0xf]
      %v2729 = vld [vmem:[%s2720 + $0x20] sm:$0xf]
      %v2730 = vld [vmem:[%s2720 + $0x24] sm:$0xf]
      %s2731 = scalar_lea.vmem %s9, 16
      %v2732 = vld [vmem:[%s2731] sm:$0xff]
      %v2743 = vunpack.c.l.b16 %v2721
      %v2744 = vunpack.c.l.b16 %v2722
      %v2745 = vunpack.c.l.b16 %v2723
      %v2746 = vunpack.c.l.b16 %v2724
      %v2747 = vunpack.c.l.b16 %v2725
      %v2748 = vunpack.c.l.b16 %v2726
      %v2749 = vunpack.c.l.b16 %v2727
      %v2750 = vunpack.c.l.b16 %v2728
      %v2751 = vunpack.c.l.b16 %v2729
      %v2752 = vunpack.c.l.b16 %v2730
      %v2753 = vpack.c.b16 %v2744, %v2743
      %v2754 = vpack.c.b16 %v2746, %v2745
      %v2755 = vpack.c.b16 %v2748, %v2747
      %v2756 = vpack.c.b16 %v2750, %v2749
      %v2757 = vpack.c.b16 %v2752, %v2751
      %v2759 = vsel %vm688, %v2753, 0
      %v2762 = vsel %vm688, %v2754, 0
      %v2765 = vsel %vm688, %v2755, 0
      %v2768 = vsel %vm688, %v2756, 0
      %v2771 = vsel %vm688, %v2757, 0
      %2773 = vmatprep.subr.bf16.mxu0 %v2713
      %2774 = vmatpush1.bf16.msra.mxu0 %v2712
      %2775 = vmatprep.subr.bf16.mxu0 %v2715
      %2776 = vmatpush1.bf16.msra.mxu0 %v2714
      %2777 = vmatprep.subr.bf16.mxu0 %v2717
      %2778 = vmatpush1.bf16.msra.mxu0 %v2716
      %2779 = vmatprep.subr.bf16.mxu0 %v2719
      %2780 = vmatpush1.bf16.msra.mxu0 %v2718
      %2781 = vmatprep.subr.bf16.mxu0 0
      %2782 = vmatpush1.bf16.msra.mxu0 0
      %2783 = vmatprep.subr.bf16.mxu0 0
      %2784 = vmatpush1.bf16.msra.mxu0 0
      %2785 = vmatprep.subr.bf16.mxu0 0
      %2786 = vmatpush1.bf16.msra.mxu0 0
      %2787 = vmatprep.subr.bf16.mxu0 0
      %2788 = vmatpush1.bf16.msra.mxu0 0
      %2789 = vmatprep.subr.bf16.mxu0 0
      %2790 = vmatpush1.bf16.msra.mxu0 0
      %2791 = vmatprep.subr.bf16.mxu0 0
      %2792 = vmatpush1.bf16.msra.mxu0 0
      %2793 = vmatprep.subr.bf16.mxu0 0
      %2794 = vmatpush1.bf16.msra.mxu0 0
      %2795 = vmatprep.subr.bf16.mxu0 0
      %2796 = vmatpush1.bf16.msra.mxu0 0
      %2797 = vmatprep.subr.bf16.mxu0 0
      %2798 = vmatpush1.bf16.msra.mxu0 0
      %2799 = vmatprep.subr.bf16.mxu0 0
      %2800 = vmatpush1.bf16.msra.mxu0 0
      %2801 = vmatprep.subr.bf16.mxu0 0
      %2802 = vmatpush1.bf16.msra.mxu0 0
      %2803 = vmatprep.subr.bf16.mxu0 0
      %2804 = vmatpush1.bf16.msra.mxu0 0
      %2805 = vmatprep.mubr.bf16.mxu0 0
      %2806 = vmatmul.mubr.bf16.gmra.mrb[0].mxu0 %v2759
      %v2807 = vpop.f32.mrb[0].mxu0
      %v2808 = vadd.f32 0.0, %v2807
      %v2809 = vpop.f32.mrb[0].mxu0
      %v2810 = vadd.f32 0.0, %v2809
      %v2811 = vpop.f32.mrb[0].mxu0
      %v2812 = vadd.f32 0.0, %v2811
      %v2813 = vpop.f32.mrb[0].mxu0
      %v2814 = vadd.f32 0.0, %v2813
      %2815 = vmatprep.mubr.bf16.mxu0 0
      %2816 = vmatmul.mubr.bf16.gmra.mrb[0].mxu0 %v2762
      %v2817 = vpop.f32.mrb[0].mxu0
      %v2818 = vadd.f32 0.0, %v2817
      %v2819 = vpop.f32.mrb[0].mxu0
      %v2820 = vadd.f32 0.0, %v2819
      %v2821 = vpop.f32.mrb[0].mxu0
      %v2822 = vadd.f32 0.0, %v2821
      %v2823 = vpop.f32.mrb[0].mxu0
      %v2824 = vadd.f32 0.0, %v2823
      %2825 = vmatprep.mubr.bf16.mxu0 0
      %2826 = vmatmul.mubr.bf16.gmra.mrb[0].mxu0 %v2765
      %v2827 = vpop.f32.mrb[0].mxu0
      %v2828 = vadd.f32 0.0, %v2827
      %v2829 = vpop.f32.mrb[0].mxu0
      %v2830 = vadd.f32 0.0, %v2829
      %v2831 = vpop.f32.mrb[0].mxu0
      %v2832 = vadd.f32 0.0, %v2831
      %v2833 = vpop.f32.mrb[0].mxu0
      %v2834 = vadd.f32 0.0, %v2833
      %2835 = vmatprep.mubr.bf16.mxu0 0
      %2836 = vmatmul.mubr.bf16.gmra.mrb[0].mxu0 %v2768
      %v2837 = vpop.f32.mrb[0].mxu0
      %v2838 = vadd.f32 0.0, %v2837
      %v2839 = vpop.f32.mrb[0].mxu0
      %v2840 = vadd.f32 0.0, %v2839
      %v2841 = vpop.f32.mrb[0].mxu0
      %v2842 = vadd.f32 0.0, %v2841
      %v2843 = vpop.f32.mrb[0].mxu0
      %v2844 = vadd.f32 0.0, %v2843
      %2845 = vmatprep.mubr.bf16.mxu0 0
      %2846 = vmatmul.mubr.bf16.gmra.mrb[0].mxu0 %v2771
      %v2847 = vpop.f32.mrb[0].mxu0
      %v2848 = vadd.f32 0.0, %v2847
      %v2849 = vpop.f32.mrb[0].mxu0
      %v2850 = vadd.f32 0.0, %v2849
      %v2851 = vpop.f32.mrb[0].mxu0
      %v2852 = vadd.f32 0.0, %v2851
      %v2853 = vpop.f32.mrb[0].mxu0
      %v2854 = vadd.f32 0.0, %v2853
      %2855 = vdwg.mxu0
      %2856 = vrot.lane.b32.xlu0 %v2812, 1
      %v2857 = vpop.permute.xlu0 %2856
      %2858 = vrot.lane.b32.xlu0 %v2814, 1
      %v2859 = vpop.permute.xlu0 %2858
      %v2860 = vsel %vm791, %v2857, %v2859
      %v2861 = vsel %vm791, %v2859, %v2857
      %v2862 = vadd.f32 %v2808, %v2861
      %v2863 = vadd.f32 %v2810, %v2860
      %2864 = vrot.lane.b32.xlu0 %v2818, 2
      %v2865 = vpop.permute.xlu0 %2864
      %2866 = vrot.lane.b32.xlu0 %v2820, 2
      %v2867 = vpop.permute.xlu0 %2866
      %v2868 = vsel %vm800, %v2865, %v2867
      %v2869 = vsel %vm800, %v2867, %v2865
      %v2870 = vadd.f32 %v2862, %v2869
      %v2871 = vadd.f32 %v2863, %v2868
      %2872 = vrot.lane.b32.xlu0 %v2822, 3
      %v2873 = vpop.permute.xlu0 %2872
      %2874 = vrot.lane.b32.xlu0 %v2824, 3
      %v2875 = vpop.permute.xlu0 %2874
      %v2876 = vsel %vm809, %v2873, %v2875
      %v2877 = vsel %vm809, %v2875, %v2873
      %v2878 = vadd.f32 %v2870, %v2877
      %v2879 = vadd.f32 %v2871, %v2876
      %2880 = vrot.lane.b32.xlu0 %v2828, 4
      %v2881 = vpop.permute.xlu0 %2880
      %2882 = vrot.lane.b32.xlu0 %v2830, 4
      %v2883 = vpop.permute.xlu0 %2882
      %v2884 = vsel %vm818, %v2881, %v2883
      %v2885 = vsel %vm818, %v2883, %v2881
      %v2886 = vadd.f32 %v2878, %v2885
      %v2887 = vadd.f32 %v2879, %v2884
      %v2888 = vadd.f32 %v2886, %v2832
      %v2889 = vadd.f32 %v2887, %v2834
      %2890 = vrot.lane.b32.xlu0 %v2838, 16
      %v2891 = vpop.permute.xlu0 %2890
      %2892 = vrot.lane.b32.xlu0 %v2840, 16
      %v2893 = vpop.permute.xlu0 %2892
      %v2894 = vsel %vm829, %v2891, %v2893
      %v2895 = vsel %vm829, %v2893, %v2891
      %v2896 = vadd.f32 %v2888, %v2895
      %v2897 = vadd.f32 %v2889, %v2894
      %2898 = vrot.lane.b32.xlu0 %v2842, 32
      %v2899 = vpop.permute.xlu0 %2898
      %2900 = vrot.lane.b32.xlu0 %v2844, 32
      %v2901 = vpop.permute.xlu0 %2900
      %v2902 = vsel %vm838, %v2899, %v2901
      %v2903 = vsel %vm838, %v2901, %v2899
      %v2904 = vadd.f32 %v2896, %v2903
      %v2905 = vadd.f32 %v2897, %v2902
      %2906 = vrot.lane.b32.xlu0 %v2848, 48
      %v2907 = vpop.permute.xlu0 %2906
      %2908 = vrot.lane.b32.xlu0 %v2850, 48
      %v2909 = vpop.permute.xlu0 %2908
      %v2910 = vsel %vm847, %v2907, %v2909
      %v2911 = vsel %vm847, %v2909, %v2907
      %v2912 = vadd.f32 %v2904, %v2911
      %v2913 = vadd.f32 %v2905, %v2910
      %2914 = vrot.lane.b32.xlu0 %v2852, 64
      %v2915 = vpop.permute.xlu0 %2914
      %2916 = vrot.lane.b32.xlu0 %v2854, 64
      %v2917 = vpop.permute.xlu0 %2916
      %v2918 = vsel %vm437, %v2915, %v2917
      %v2919 = vsel %vm437, %v2917, %v2915
      %v2920 = vadd.f32 %v2912, %v2919
      %v2921 = vadd.f32 %v2913, %v2918
      %2923 = vset.pattern.permute.xlu0 0
      %2924 = vperm.xlu0 %2923, %v2732
      %v2925 = vpop.permute.xlu0 %2924
      %v2927 = vadd.f32 %v2920, %v2925
      %v2928 = vadd.f32 %v2921, %v2925
      %v2929 = vmax.f32 %v2927, 0.0
      %v2930 = vmax.f32 %v2928, 0.0
      %v2931 = vadd.f32 %v2135, %v2929
      %v2932 = vadd.f32 %v2136, %v2930
      %v2933 = vmax.f32 %v2931, 0.0
      %v2934 = vmax.f32 %v2932, 0.0
      %2935 = vrot.lane.b32.xlu0 %v2933, 127
      %v2936 = vpop.permute.xlu0 %2935
      %2937 = vrot.lane.b32.xlu0 %v2934, 127
      %v2938 = vpop.permute.xlu0 %2937
      %v2939 = vsel %vm388, %v2936, %v2938
      %v2940 = vsel %vm388, %v2938, %v2936
      %2941 = vrot.lane.b32.xlu0 %v2933, 126
      %v2942 = vpop.permute.xlu0 %2941
      %2943 = vrot.lane.b32.xlu0 %v2934, 126
      %v2944 = vpop.permute.xlu0 %2943
      %v2945 = vsel %vm395, %v2942, %v2944
      %v2946 = vsel %vm395, %v2944, %v2942
      %2947 = vrot.lane.b32.xlu0 %v2933, 125
      %v2948 = vpop.permute.xlu0 %2947
      %2949 = vrot.lane.b32.xlu0 %v2934, 125
      %v2950 = vpop.permute.xlu0 %2949
      %v2951 = vsel %vm402, %v2948, %v2950
      %v2952 = vsel %vm402, %v2950, %v2948
      %2953 = vrot.lane.b32.xlu0 %v2933, 124
      %v2954 = vpop.permute.xlu0 %2953
      %2955 = vrot.lane.b32.xlu0 %v2934, 124
      %v2956 = vpop.permute.xlu0 %2955
      %v2957 = vsel %vm409, %v2954, %v2956
      %v2958 = vsel %vm409, %v2956, %v2954
      %2959 = vrot.lane.b32.xlu0 %v2933, 112
      %v2960 = vpop.permute.xlu0 %2959
      %2961 = vrot.lane.b32.xlu0 %v2934, 112
      %v2962 = vpop.permute.xlu0 %2961
      %v2963 = vsel %vm416, %v2960, %v2962
      %v2964 = vsel %vm416, %v2962, %v2960
      %2965 = vrot.lane.b32.xlu0 %v2933, 96
      %v2966 = vpop.permute.xlu0 %2965
      %2967 = vrot.lane.b32.xlu0 %v2934, 96
      %v2968 = vpop.permute.xlu0 %2967
      %v2969 = vsel %vm423, %v2966, %v2968
      %v2970 = vsel %vm423, %v2968, %v2966
      %2971 = vrot.lane.b32.xlu0 %v2933, 80
      %v2972 = vpop.permute.xlu0 %2971
      %2973 = vrot.lane.b32.xlu0 %v2934, 80
      %v2974 = vpop.permute.xlu0 %2973
      %v2975 = vsel %vm430, %v2972, %v2974
      %v2976 = vsel %vm430, %v2974, %v2972
      %2977 = vrot.lane.b32.xlu0 %v2933, 64
      %v2978 = vpop.permute.xlu0 %2977
      %2979 = vrot.lane.b32.xlu0 %v2934, 64
      %v2980 = vpop.permute.xlu0 %2979
      %v2981 = vsel %vm437, %v2978, %v2980
      %v2982 = vsel %vm437, %v2980, %v2978
      %v2983 = vpack.c.bf16 %v2939, %v2933
      %v2984 = vpack.c.bf16 %v2940, %v2934
      %v2985 = vpack.c.bf16 %v2951, %v2945
      %v2986 = vpack.c.bf16 %v2952, %v2946
      %v2987 = vpack.c.bf16 %v2933, %v2957
      %v2988 = vpack.c.bf16 %v2934, %v2958
      %v2989 = vpack.c.bf16 %v2969, %v2963
      %v2990 = vpack.c.bf16 %v2970, %v2964
      %v2991 = vpack.c.bf16 %v2981, %v2975
      %v2992 = vpack.c.bf16 %v2982, %v2976
      %2993 = vmatprep.subr.bf16.mxu0 %v2984
      %2994 = vmatpush1.bf16.msra.mxu0 %v2983
      %2995 = vmatprep.subr.bf16.mxu0 %v2986
      %2996 = vmatpush1.bf16.msra.mxu0 %v2985
      %2997 = vmatprep.subr.bf16.mxu0 %v2988
      %2998 = vmatpush1.bf16.msra.mxu0 %v2987
      %2999 = vmatprep.subr.bf16.mxu0 %v2990
      %3000 = vmatpush1.bf16.msra.mxu0 %v2989
      %3001 = vmatprep.subr.bf16.mxu0 %v2992
      %3002 = vmatpush1.bf16.msra.mxu0 %v2991
      %3003 = vmatprep.subr.bf16.mxu0 0
      %3004 = vmatpush1.bf16.msra.mxu0 0
      %3005 = vmatprep.subr.bf16.mxu0 0
      %3006 = vmatpush1.bf16.msra.mxu0 0
      %3007 = vmatprep.subr.bf16.mxu0 0
      %3008 = vmatpush1.bf16.msra.mxu0 0
      %3009 = vmatprep.subr.bf16.mxu0 0
      %3010 = vmatpush1.bf16.msra.mxu0 0
      %3011 = vmatprep.subr.bf16.mxu0 0
      %3012 = vmatpush1.bf16.msra.mxu0 0
      %3013 = vmatprep.subr.bf16.mxu0 0
      %3014 = vmatpush1.bf16.msra.mxu0 0
      %3015 = vmatprep.subr.bf16.mxu0 0
      %3016 = vmatpush1.bf16.msra.mxu0 0
      %3017 = vmatprep.subr.bf16.mxu0 0
      %3018 = vmatpush1.bf16.msra.mxu0 0
      %3019 = vmatprep.subr.bf16.mxu0 0
      %3020 = vmatpush1.bf16.msra.mxu0 0
      %3021 = vmatprep.subr.bf16.mxu0 0
      %3022 = vmatpush1.bf16.msra.mxu0 0
      %3023 = vmatprep.subr.bf16.mxu0 0
      %3024 = vmatpush1.bf16.msra.mxu0 0
      %3025 = vmatprep.mubr.bf16.mxu0 0
      %3026 = vmatmul.mubr.bf16.gmra.mrb[0].mxu0 %v512
      %v3027 = vpop.f32.mrb[0].mxu0
      %v3028 = vadd.f32 %v453, %v3027
      %v3029 = vpop.f32.mrb[0].mxu0
      %v3030 = vadd.f32 %v453, %v3029
      %v3031 = vpop.f32.mrb[0].mxu0
      %v3032 = vadd.f32 %v458, %v3031
      %v3033 = vpop.f32.mrb[0].mxu0
      %v3034 = vadd.f32 %v458, %v3033
      %3035 = vmatprep.mubr.bf16.mxu0 0
      %3036 = vmatmul.mubr.bf16.gmra.mrb[0].mxu0 %v515
      %v3037 = vpop.f32.mrb[0].mxu0
      %v3038 = vadd.f32 %v463, %v3037
      %v3039 = vpop.f32.mrb[0].mxu0
      %v3040 = vadd.f32 %v463, %v3039
      %v3041 = vpop.f32.mrb[0].mxu0
      %v3042 = vadd.f32 %v468, %v3041
      %v3043 = vpop.f32.mrb[0].mxu0
      %v3044 = vadd.f32 %v468, %v3043
      %3045 = vmatprep.mubr.bf16.mxu0 0
      %3046 = vmatmul.mubr.bf16.gmra.mrb[0].mxu0 %v518
      %v3047 = vpop.f32.mrb[0].mxu0
      %v3048 = vadd.f32 %v473, %v3047
      %v3049 = vpop.f32.mrb[0].mxu0
      %v3050 = vadd.f32 %v473, %v3049
      %v3051 = vpop.f32.mrb[0].mxu0
      %v3052 = vadd.f32 %v478, %v3051
      %v3053 = vpop.f32.mrb[0].mxu0
      %v3054 = vadd.f32 %v478, %v3053
      %3055 = vmatprep.mubr.bf16.mxu0 0
      %3056 = vmatmul.mubr.bf16.gmra.mrb[0].mxu0 %v521
      %v3057 = vpop.f32.mrb[0].mxu0
      %v3058 = vadd.f32 %v483, %v3057
      %v3059 = vpop.f32.mrb[0].mxu0
      %v3060 = vadd.f32 %v483, %v3059
      %v3061 = vpop.f32.mrb[0].mxu0
      %v3062 = vadd.f32 %v488, %v3061
      %v3063 = vpop.f32.mrb[0].mxu0
      %v3064 = vadd.f32 %v488, %v3063
      %3065 = vdwg.mxu0
      %v3066 = vmax.f32 %v3028, 0.0
      %v3067 = vmax.f32 %v3030, 0.0
      %v3068 = vmax.f32 %v3032, 0.0
      %v3069 = vmax.f32 %v3034, 0.0
      %v3070 = vmax.f32 %v3038, 0.0
      %v3071 = vmax.f32 %v3040, 0.0
      %v3072 = vmax.f32 %v3042, 0.0
      %v3073 = vmax.f32 %v3044, 0.0
      %v3074 = vmax.f32 %v3048, 0.0
      %v3075 = vmax.f32 %v3050, 0.0
      %v3076 = vmax.f32 %v3052, 0.0
      %v3077 = vmax.f32 %v3054, 0.0
      %v3078 = vmax.f32 %v3058, 0.0
      %v3079 = vmax.f32 %v3060, 0.0
      %v3080 = vmax.f32 %v3062, 0.0
      %v3081 = vmax.f32 %v3064, 0.0
      %v3082 = vmul.f32 %v3066, %v612
      %v3083 = vmul.f32 %v3067, %v613
      %v3084 = vmul.f32 %v3068, %v614
      %v3085 = vmul.f32 %v3069, %v615
      %v3086 = vmul.f32 %v3070, %v616
      %v3087 = vmul.f32 %v3071, %v617
      %v3088 = vmul.f32 %v3072, %v618
      %v3089 = vmul.f32 %v3073, %v619
      %v3090 = vmul.f32 %v3074, %v620
      %v3091 = vmul.f32 %v3075, %v621
      %v3092 = vmul.f32 %v3076, %v622
      %v3093 = vmul.f32 %v3077, %v623
      %v3094 = vmul.f32 %v3078, %v624
      %v3095 = vmul.f32 %v3079, %v625
      %v3096 = vmul.f32 %v3080, %v626
      %v3097 = vmul.f32 %v3081, %v627
      %v3098 = vpack.c.bf16 %v3084, %v3082
      %v3099 = vpack.c.bf16 %v3085, %v3083
      %v3100 = vpack.c.bf16 %v3088, %v3086
      %v3101 = vpack.c.bf16 %v3089, %v3087
      %v3102 = vpack.c.bf16 %v3092, %v3090
      %v3103 = vpack.c.bf16 %v3093, %v3091
      %v3104 = vpack.c.bf16 %v3096, %v3094
      %v3105 = vpack.c.bf16 %v3097, %v3095
      %3106 = vmatprep.subr.bf16.mxu0 %v3099
      %3107 = vmatpush1.bf16.msra.mxu0 %v3098
      %3108 = vmatprep.subr.bf16.mxu0 %v3101
      %3109 = vmatpush1.bf16.msra.mxu0 %v3100
      %3110 = vmatprep.subr.bf16.mxu0 %v3103
      %3111 = vmatpush1.bf16.msra.mxu0 %v3102
      %3112 = vmatprep.subr.bf16.mxu0 %v3105
      %3113 = vmatpush1.bf16.msra.mxu0 %v3104
      %3114 = vmatprep.subr.bf16.mxu0 0
      %3115 = vmatpush1.bf16.msra.mxu0 0
      %3116 = vmatprep.subr.bf16.mxu0 0
      %3117 = vmatpush1.bf16.msra.mxu0 0
      %3118 = vmatprep.subr.bf16.mxu0 0
      %3119 = vmatpush1.bf16.msra.mxu0 0
      %3120 = vmatprep.subr.bf16.mxu0 0
      %3121 = vmatpush1.bf16.msra.mxu0 0
      %3122 = vmatprep.subr.bf16.mxu0 0
      %3123 = vmatpush1.bf16.msra.mxu0 0
      %3124 = vmatprep.subr.bf16.mxu0 0
      %3125 = vmatpush1.bf16.msra.mxu0 0
      %3126 = vmatprep.subr.bf16.mxu0 0
      %3127 = vmatpush1.bf16.msra.mxu0 0
      %3128 = vmatprep.subr.bf16.mxu0 0
      %3129 = vmatpush1.bf16.msra.mxu0 0
      %3130 = vmatprep.subr.bf16.mxu0 0
      %3131 = vmatpush1.bf16.msra.mxu0 0
      %3132 = vmatprep.subr.bf16.mxu0 0
      %3133 = vmatpush1.bf16.msra.mxu0 0
      %3134 = vmatprep.subr.bf16.mxu0 0
      %3135 = vmatpush1.bf16.msra.mxu0 0
      %3136 = vmatprep.subr.bf16.mxu0 0
      %3137 = vmatpush1.bf16.msra.mxu0 0
      %3138 = vmatprep.mubr.bf16.mxu0 0
      %3139 = vmatmul.mubr.bf16.gmra.mrb[0].mxu0 %v690
      %v3140 = vpop.f32.mrb[0].mxu0
      %v3141 = vadd.f32 0.0, %v3140
      %v3142 = vpop.f32.mrb[0].mxu0
      %v3143 = vadd.f32 0.0, %v3142
      %v3144 = vpop.f32.mrb[0].mxu0
      %v3145 = vadd.f32 0.0, %v3144
      %v3146 = vpop.f32.mrb[0].mxu0
      %v3147 = vadd.f32 0.0, %v3146
      %3148 = vmatprep.mubr.bf16.mxu0 0
      %3149 = vmatmul.mubr.bf16.gmra.mrb[0].mxu0 %v693
      %v3150 = vpop.f32.mrb[0].mxu0
      %v3151 = vadd.f32 0.0, %v3150
      %v3152 = vpop.f32.mrb[0].mxu0
      %v3153 = vadd.f32 0.0, %v3152
      %v3154 = vpop.f32.mrb[0].mxu0
      %v3155 = vadd.f32 0.0, %v3154
      %v3156 = vpop.f32.mrb[0].mxu0
      %v3157 = vadd.f32 0.0, %v3156
      %3158 = vmatprep.mubr.bf16.mxu0 0
      %3159 = vmatmul.mubr.bf16.gmra.mrb[0].mxu0 %v696
      %v3160 = vpop.f32.mrb[0].mxu0
      %v3161 = vadd.f32 0.0, %v3160
      %v3162 = vpop.f32.mrb[0].mxu0
      %v3163 = vadd.f32 0.0, %v3162
      %v3164 = vpop.f32.mrb[0].mxu0
      %v3165 = vadd.f32 0.0, %v3164
      %v3166 = vpop.f32.mrb[0].mxu0
      %v3167 = vadd.f32 0.0, %v3166
      %3168 = vmatprep.mubr.bf16.mxu0 0
      %3169 = vmatmul.mubr.bf16.gmra.mrb[0].mxu0 %v699
      %v3170 = vpop.f32.mrb[0].mxu0
      %v3171 = vadd.f32 0.0, %v3170
      %v3172 = vpop.f32.mrb[0].mxu0
      %v3173 = vadd.f32 0.0, %v3172
      %v3174 = vpop.f32.mrb[0].mxu0
      %v3175 = vadd.f32 0.0, %v3174
      %v3176 = vpop.f32.mrb[0].mxu0
      %v3177 = vadd.f32 0.0, %v3176
      %3178 = vmatprep.mubr.bf16.mxu0 0
      %3179 = vmatmul.mubr.bf16.gmra.mrb[0].mxu0 %v702
      %v3180 = vpop.f32.mrb[0].mxu0
      %v3181 = vadd.f32 0.0, %v3180
      %v3182 = vpop.f32.mrb[0].mxu0
      %v3183 = vadd.f32 0.0, %v3182
      %v3184 = vpop.f32.mrb[0].mxu0
      %v3185 = vadd.f32 0.0, %v3184
      %v3186 = vpop.f32.mrb[0].mxu0
      %v3187 = vadd.f32 0.0, %v3186
      %3188 = vdwg.mxu0
      %3189 = vrot.lane.b32.xlu0 %v3145, 1
      %v3190 = vpop.permute.xlu0 %3189
      %3191 = vrot.lane.b32.xlu0 %v3147, 1
      %v3192 = vpop.permute.xlu0 %3191
      %v3193 = vsel %vm791, %v3190, %v3192
      %v3194 = vsel %vm791, %v3192, %v3190
      %v3195 = vadd.f32 %v3141, %v3194
      %v3196 = vadd.f32 %v3143, %v3193
      %3197 = vrot.lane.b32.xlu0 %v3151, 2
      %v3198 = vpop.permute.xlu0 %3197
      %3199 = vrot.lane.b32.xlu0 %v3153, 2
      %v3200 = vpop.permute.xlu0 %3199
      %v3201 = vsel %vm800, %v3198, %v3200
      %v3202 = vsel %vm800, %v3200, %v3198
      %v3203 = vadd.f32 %v3195, %v3202
      %v3204 = vadd.f32 %v3196, %v3201
      %3205 = vrot.lane.b32.xlu0 %v3155, 3
      %v3206 = vpop.permute.xlu0 %3205
      %3207 = vrot.lane.b32.xlu0 %v3157, 3
      %v3208 = vpop.permute.xlu0 %3207
      %v3209 = vsel %vm809, %v3206, %v3208
      %v3210 = vsel %vm809, %v3208, %v3206
      %v3211 = vadd.f32 %v3203, %v3210
      %v3212 = vadd.f32 %v3204, %v3209
      %3213 = vrot.lane.b32.xlu0 %v3161, 4
      %v3214 = vpop.permute.xlu0 %3213
      %3215 = vrot.lane.b32.xlu0 %v3163, 4
      %v3216 = vpop.permute.xlu0 %3215
      %v3217 = vsel %vm818, %v3214, %v3216
      %v3218 = vsel %vm818, %v3216, %v3214
      %v3219 = vadd.f32 %v3211, %v3218
      %v3220 = vadd.f32 %v3212, %v3217
      %v3221 = vadd.f32 %v3219, %v3165
      %v3222 = vadd.f32 %v3220, %v3167
      %3223 = vrot.lane.b32.xlu0 %v3171, 16
      %v3224 = vpop.permute.xlu0 %3223
      %3225 = vrot.lane.b32.xlu0 %v3173, 16
      %v3226 = vpop.permute.xlu0 %3225
      %v3227 = vsel %vm829, %v3224, %v3226
      %v3228 = vsel %vm829, %v3226, %v3224
      %v3229 = vadd.f32 %v3221, %v3228
      %v3230 = vadd.f32 %v3222, %v3227
      %3231 = vrot.lane.b32.xlu0 %v3175, 32
      %v3232 = vpop.permute.xlu0 %3231
      %3233 = vrot.lane.b32.xlu0 %v3177, 32
      %v3234 = vpop.permute.xlu0 %3233
      %v3235 = vsel %vm838, %v3232, %v3234
      %v3236 = vsel %vm838, %v3234, %v3232
      %v3237 = vadd.f32 %v3229, %v3236
      %v3238 = vadd.f32 %v3230, %v3235
      %3239 = vrot.lane.b32.xlu0 %v3181, 48
      %v3240 = vpop.permute.xlu0 %3239
      %3241 = vrot.lane.b32.xlu0 %v3183, 48
      %v3242 = vpop.permute.xlu0 %3241
      %v3243 = vsel %vm847, %v3240, %v3242
      %v3244 = vsel %vm847, %v3242, %v3240
      %v3245 = vadd.f32 %v3237, %v3244
      %v3246 = vadd.f32 %v3238, %v3243
      %3247 = vrot.lane.b32.xlu0 %v3185, 64
      %v3248 = vpop.permute.xlu0 %3247
      %3249 = vrot.lane.b32.xlu0 %v3187, 64
      %v3250 = vpop.permute.xlu0 %3249
      %v3251 = vsel %vm437, %v3248, %v3250
      %v3252 = vsel %vm437, %v3250, %v3248
      %v3253 = vadd.f32 %v3245, %v3252
      %v3254 = vadd.f32 %v3246, %v3251
      %v3255 = vadd.f32 %v3253, %v863
      %v3256 = vadd.f32 %v3254, %v863
      %s3257 = scalar_lea.vmem %s6, 96
      %v3258 = vld [vmem:[%s3257] sm:$0xf]
      %v3259 = vld [vmem:[%s3257 + $0x4] sm:$0xf]
      %v3260 = vld [vmem:[%s3257 + $0x8] sm:$0xf]
      %v3261 = vld [vmem:[%s3257 + $0xc] sm:$0xf]
      %v3262 = vld [vmem:[%s3257 + $0x10] sm:$0xf]
      %v3263 = vld [vmem:[%s3257 + $0x14] sm:$0xf]
      %v3264 = vld [vmem:[%s3257 + $0x18] sm:$0xf]
      %v3265 = vld [vmem:[%s3257 + $0x1c] sm:$0xf]
      %s3266 = scalar_lea.vmem %s7, 192
      %v3267 = vld [vmem:[%s3266] sm:$0xff]
      %v3268 = vld [vmem:[%s3266 + $0x8] sm:$0xff]
      %v3269 = vld [vmem:[%s3266 + $0x10] sm:$0xff]
      %v3270 = vld [vmem:[%s3266 + $0x18] sm:$0xff]
      %v3271 = vld [vmem:[%s3266 + $0x20] sm:$0xff]
      %v3272 = vld [vmem:[%s3266 + $0x28] sm:$0xff]
      %v3273 = vld [vmem:[%s3266 + $0x30] sm:$0xff]
      %v3274 = vld [vmem:[%s3266 + $0x38] sm:$0xff]
      %3275 = vrot.lane.b32.xlu0 %v3255, 127
      %v3276 = vpop.permute.xlu0 %3275
      %3277 = vrot.lane.b32.xlu0 %v3256, 127
      %v3278 = vpop.permute.xlu0 %3277
      %v3279 = vsel %vm388, %v3276, %v3278
      %v3280 = vsel %vm388, %v3278, %v3276
      %3281 = vrot.lane.b32.xlu0 %v3255, 126
      %v3282 = vpop.permute.xlu0 %3281
      %3283 = vrot.lane.b32.xlu0 %v3256, 126
      %v3284 = vpop.permute.xlu0 %3283
      %v3285 = vsel %vm395, %v3282, %v3284
      %v3286 = vsel %vm395, %v3284, %v3282
      %3287 = vrot.lane.b32.xlu0 %v3255, 125
      %v3288 = vpop.permute.xlu0 %3287
      %3289 = vrot.lane.b32.xlu0 %v3256, 125
      %v3290 = vpop.permute.xlu0 %3289
      %v3291 = vsel %vm402, %v3288, %v3290
      %v3292 = vsel %vm402, %v3290, %v3288
      %3293 = vrot.lane.b32.xlu0 %v3255, 124
      %v3294 = vpop.permute.xlu0 %3293
      %3295 = vrot.lane.b32.xlu0 %v3256, 124
      %v3296 = vpop.permute.xlu0 %3295
      %v3297 = vsel %vm409, %v3294, %v3296
      %v3298 = vsel %vm409, %v3296, %v3294
      %3299 = vrot.lane.b32.xlu0 %v3255, 112
      %v3300 = vpop.permute.xlu0 %3299
      %3301 = vrot.lane.b32.xlu0 %v3256, 112
      %v3302 = vpop.permute.xlu0 %3301
      %v3303 = vsel %vm416, %v3300, %v3302
      %v3304 = vsel %vm416, %v3302, %v3300
      %3305 = vrot.lane.b32.xlu0 %v3255, 96
      %v3306 = vpop.permute.xlu0 %3305
      %3307 = vrot.lane.b32.xlu0 %v3256, 96
      %v3308 = vpop.permute.xlu0 %3307
      %v3309 = vsel %vm423, %v3306, %v3308
      %v3310 = vsel %vm423, %v3308, %v3306
      %3311 = vrot.lane.b32.xlu0 %v3255, 80
      %v3312 = vpop.permute.xlu0 %3311
      %3313 = vrot.lane.b32.xlu0 %v3256, 80
      %v3314 = vpop.permute.xlu0 %3313
      %v3315 = vsel %vm430, %v3312, %v3314
      %v3316 = vsel %vm430, %v3314, %v3312
      %3317 = vrot.lane.b32.xlu0 %v3255, 64
      %v3318 = vpop.permute.xlu0 %3317
      %3319 = vrot.lane.b32.xlu0 %v3256, 64
      %v3320 = vpop.permute.xlu0 %3319
      %v3321 = vsel %vm437, %v3318, %v3320
      %v3322 = vsel %vm437, %v3320, %v3318
      %v3323 = vpack.c.bf16 %v3279, %v3255
      %v3324 = vpack.c.bf16 %v3280, %v3256
      %v3325 = vpack.c.bf16 %v3291, %v3285
      %v3326 = vpack.c.bf16 %v3292, %v3286
      %v3327 = vpack.c.bf16 %v3255, %v3297
      %v3328 = vpack.c.bf16 %v3256, %v3298
      %v3329 = vpack.c.bf16 %v3309, %v3303
      %v3330 = vpack.c.bf16 %v3310, %v3304
      %v3331 = vpack.c.bf16 %v3321, %v3315
      %v3332 = vpack.c.bf16 %v3322, %v3316
      %3334 = vset.pattern.permute.xlu0 0
      %3335 = vperm.xlu0 %3334, %v3267
      %v3336 = vpop.permute.xlu0 %3335
      %3339 = vset.pattern.permute.xlu0 0
      %3340 = vperm.xlu0 %3339, %v3268
      %v3341 = vpop.permute.xlu0 %3340
      %3344 = vset.pattern.permute.xlu0 0
      %3345 = vperm.xlu0 %3344, %v3269
      %v3346 = vpop.permute.xlu0 %3345
      %3349 = vset.pattern.permute.xlu0 0
      %3350 = vperm.xlu0 %3349, %v3270
      %v3351 = vpop.permute.xlu0 %3350
      %3354 = vset.pattern.permute.xlu0 0
      %3355 = vperm.xlu0 %3354, %v3271
      %v3356 = vpop.permute.xlu0 %3355
      %3359 = vset.pattern.permute.xlu0 0
      %3360 = vperm.xlu0 %3359, %v3272
      %v3361 = vpop.permute.xlu0 %3360
      %3364 = vset.pattern.permute.xlu0 0
      %3365 = vperm.xlu0 %3364, %v3273
      %v3366 = vpop.permute.xlu0 %3365
      %3369 = vset.pattern.permute.xlu0 0
      %3370 = vperm.xlu0 %3369, %v3274
      %v3371 = vpop.permute.xlu0 %3370
      %v3381 = vunpack.c.l.b16 %v3258
      %v3382 = vunpack.c.l.b16 %v3259
      %v3383 = vunpack.c.l.b16 %v3260
      %v3384 = vunpack.c.l.b16 %v3261
      %v3385 = vunpack.c.l.b16 %v3262
      %v3386 = vunpack.c.l.b16 %v3263
      %v3387 = vunpack.c.l.b16 %v3264
      %v3388 = vunpack.c.l.b16 %v3265
      %v3389 = vpack.c.b16 %v3382, %v3381
      %v3390 = vpack.c.b16 %v3384, %v3383
      %v3391 = vpack.c.b16 %v3386, %v3385
      %v3392 = vpack.c.b16 %v3388, %v3387
      %v3394 = vsel %vm510, %v3389, 0
      %v3397 = vsel %vm510, %v3390, 0
      %v3400 = vsel %vm510, %v3391, 0
      %v3403 = vsel %vm510, %v3392, 0
      %3405 = vmatprep.subr.bf16.mxu0 %v3324
      %3406 = vmatpush1.bf16.msra.mxu0 %v3323
      %3407 = vmatprep.subr.bf16.mxu0 %v3326
      %3408 = vmatpush1.bf16.msra.mxu0 %v3325
      %3409 = vmatprep.subr.bf16.mxu0 %v3328
      %3410 = vmatpush1.bf16.msra.mxu0 %v3327
      %3411 = vmatprep.subr.bf16.mxu0 %v3330
      %3412 = vmatpush1.bf16.msra.mxu0 %v3329
      %3413 = vmatprep.subr.bf16.mxu0 %v3332
      %3414 = vmatpush1.bf16.msra.mxu0 %v3331
      %3415 = vmatprep.subr.bf16.mxu0 0
      %3416 = vmatpush1.bf16.msra.mxu0 0
      %3417 = vmatprep.subr.bf16.mxu0 0
      %3418 = vmatpush1.bf16.msra.mxu0 0
      %3419 = vmatprep.subr.bf16.mxu0 0
      %3420 = vmatpush1.bf16.msra.mxu0 0
      %3421 = vmatprep.subr.bf16.mxu0 0
      %3422 = vmatpush1.bf16.msra.mxu0 0
      %3423 = vmatprep.subr.bf16.mxu0 0
      %3424 = vmatpush1.bf16.msra.mxu0 0
      %3425 = vmatprep.subr.bf16.mxu0 0
      %3426 = vmatpush1.bf16.msra.mxu0 0
      %3427 = vmatprep.subr.bf16.mxu0 0
      %3428 = vmatpush1.bf16.msra.mxu0 0
      %3429 = vmatprep.subr.bf16.mxu0 0
      %3430 = vmatpush1.bf16.msra.mxu0 0
      %3431 = vmatprep.subr.bf16.mxu0 0
      %3432 = vmatpush1.bf16.msra.mxu0 0
      %3433 = vmatprep.subr.bf16.mxu0 0
      %3434 = vmatpush1.bf16.msra.mxu0 0
      %3435 = vmatprep.subr.bf16.mxu0 0
      %3436 = vmatpush1.bf16.msra.mxu0 0
      %3437 = vmatprep.mubr.bf16.mxu0 0
      %3438 = vmatmul.mubr.bf16.gmra.mrb[0].mxu0 %v3394
      %v3439 = vpop.f32.mrb[0].mxu0
      %v3440 = vadd.f32 %v3336, %v3439
      %v3441 = vpop.f32.mrb[0].mxu0
      %v3442 = vadd.f32 %v3336, %v3441
      %v3443 = vpop.f32.mrb[0].mxu0
      %v3444 = vadd.f32 %v3341, %v3443
      %v3445 = vpop.f32.mrb[0].mxu0
      %v3446 = vadd.f32 %v3341, %v3445
      %3447 = vmatprep.mubr.bf16.mxu0 0
      %3448 = vmatmul.mubr.bf16.gmra.mrb[0].mxu0 %v3397
      %v3449 = vpop.f32.mrb[0].mxu0
      %v3450 = vadd.f32 %v3346, %v3449
      %v3451 = vpop.f32.mrb[0].mxu0
      %v3452 = vadd.f32 %v3346, %v3451
      %v3453 = vpop.f32.mrb[0].mxu0
      %v3454 = vadd.f32 %v3351, %v3453
      %v3455 = vpop.f32.mrb[0].mxu0
      %v3456 = vadd.f32 %v3351, %v3455
      %3457 = vmatprep.mubr.bf16.mxu0 0
      %3458 = vmatmul.mubr.bf16.gmra.mrb[0].mxu0 %v3400
      %v3459 = vpop.f32.mrb[0].mxu0
      %v3460 = vadd.f32 %v3356, %v3459
      %v3461 = vpop.f32.mrb[0].mxu0
      %v3462 = vadd.f32 %v3356, %v3461
      %v3463 = vpop.f32.mrb[0].mxu0
      %v3464 = vadd.f32 %v3361, %v3463
      %v3465 = vpop.f32.mrb[0].mxu0
      %v3466 = vadd.f32 %v3361, %v3465
      %3467 = vmatprep.mubr.bf16.mxu0 0
      %3468 = vmatmul.mubr.bf16.gmra.mrb[0].mxu0 %v3403
      %v3469 = vpop.f32.mrb[0].mxu0
      %v3470 = vadd.f32 %v3366, %v3469
      %v3471 = vpop.f32.mrb[0].mxu0
      %v3472 = vadd.f32 %v3366, %v3471
      %v3473 = vpop.f32.mrb[0].mxu0
      %v3474 = vadd.f32 %v3371, %v3473
      %v3475 = vpop.f32.mrb[0].mxu0
      %v3476 = vadd.f32 %v3371, %v3475
      %3477 = vdwg.mxu0
      %v3478 = vmax.f32 %v3440, 0.0
      %v3479 = vmax.f32 %v3442, 0.0
      %v3480 = vmax.f32 %v3444, 0.0
      %v3481 = vmax.f32 %v3446, 0.0
      %v3482 = vmax.f32 %v3450, 0.0
      %v3483 = vmax.f32 %v3452, 0.0
      %v3484 = vmax.f32 %v3454, 0.0
      %v3485 = vmax.f32 %v3456, 0.0
      %v3486 = vmax.f32 %v3460, 0.0
      %v3487 = vmax.f32 %v3462, 0.0
      %v3488 = vmax.f32 %v3464, 0.0
      %v3489 = vmax.f32 %v3466, 0.0
      %v3490 = vmax.f32 %v3470, 0.0
      %v3491 = vmax.f32 %v3472, 0.0
      %v3492 = vmax.f32 %v3474, 0.0
      %v3493 = vmax.f32 %v3476, 0.0
      %v3494 = vmul.f32 %v3478, %v612
      %v3495 = vmul.f32 %v3479, %v613
      %v3496 = vmul.f32 %v3480, %v614
      %v3497 = vmul.f32 %v3481, %v615
      %v3498 = vmul.f32 %v3482, %v616
      %v3499 = vmul.f32 %v3483, %v617
      %v3500 = vmul.f32 %v3484, %v618
      %v3501 = vmul.f32 %v3485, %v619
      %v3502 = vmul.f32 %v3486, %v620
      %v3503 = vmul.f32 %v3487, %v621
      %v3504 = vmul.f32 %v3488, %v622
      %v3505 = vmul.f32 %v3489, %v623
      %v3506 = vmul.f32 %v3490, %v624
      %v3507 = vmul.f32 %v3491, %v625
      %v3508 = vmul.f32 %v3492, %v626
      %v3509 = vmul.f32 %v3493, %v627
      %v3510 = vpack.c.bf16 %v3496, %v3494
      %v3511 = vpack.c.bf16 %v3497, %v3495
      %v3512 = vpack.c.bf16 %v3500, %v3498
      %v3513 = vpack.c.bf16 %v3501, %v3499
      %v3514 = vpack.c.bf16 %v3504, %v3502
      %v3515 = vpack.c.bf16 %v3505, %v3503
      %v3516 = vpack.c.bf16 %v3508, %v3506
      %v3517 = vpack.c.bf16 %v3509, %v3507
      %s3518 = scalar_lea.vmem %s8, 120
      %v3519 = vld [vmem:[%s3518] sm:$0xf]
      %v3520 = vld [vmem:[%s3518 + $0x4] sm:$0xf]
      %v3521 = vld [vmem:[%s3518 + $0x8] sm:$0xf]
      %v3522 = vld [vmem:[%s3518 + $0xc] sm:$0xf]
      %v3523 = vld [vmem:[%s3518 + $0x10] sm:$0xf]
      %v3524 = vld [vmem:[%s3518 + $0x14] sm:$0xf]
      %v3525 = vld [vmem:[%s3518 + $0x18] sm:$0xf]
      %v3526 = vld [vmem:[%s3518 + $0x1c] sm:$0xf]
      %v3527 = vld [vmem:[%s3518 + $0x20] sm:$0xf]
      %v3528 = vld [vmem:[%s3518 + $0x24] sm:$0xf]
      %s3529 = scalar_lea.vmem %s9, 24
      %v3530 = vld [vmem:[%s3529] sm:$0xff]
      %v3541 = vunpack.c.l.b16 %v3519
      %v3542 = vunpack.c.l.b16 %v3520
      %v3543 = vunpack.c.l.b16 %v3521
      %v3544 = vunpack.c.l.b16 %v3522
      %v3545 = vunpack.c.l.b16 %v3523
      %v3546 = vunpack.c.l.b16 %v3524
      %v3547 = vunpack.c.l.b16 %v3525
      %v3548 = vunpack.c.l.b16 %v3526
      %v3549 = vunpack.c.l.b16 %v3527
      %v3550 = vunpack.c.l.b16 %v3528
      %v3551 = vpack.c.b16 %v3542, %v3541
      %v3552 = vpack.c.b16 %v3544, %v3543
      %v3553 = vpack.c.b16 %v3546, %v3545
      %v3554 = vpack.c.b16 %v3548, %v3547
      %v3555 = vpack.c.b16 %v3550, %v3549
      %v3557 = vsel %vm688, %v3551, 0
      %v3560 = vsel %vm688, %v3552, 0
      %v3563 = vsel %vm688, %v3553, 0
      %v3566 = vsel %vm688, %v3554, 0
      %v3569 = vsel %vm688, %v3555, 0
      %3571 = vmatprep.subr.bf16.mxu0 %v3511
      %3572 = vmatpush1.bf16.msra.mxu0 %v3510
      %3573 = vmatprep.subr.bf16.mxu0 %v3513
      %3574 = vmatpush1.bf16.msra.mxu0 %v3512
      %3575 = vmatprep.subr.bf16.mxu0 %v3515
      %3576 = vmatpush1.bf16.msra.mxu0 %v3514
      %3577 = vmatprep.subr.bf16.mxu0 %v3517
      %3578 = vmatpush1.bf16.msra.mxu0 %v3516
      %3579 = vmatprep.subr.bf16.mxu0 0
      %3580 = vmatpush1.bf16.msra.mxu0 0
      %3581 = vmatprep.subr.bf16.mxu0 0
      %3582 = vmatpush1.bf16.msra.mxu0 0
      %3583 = vmatprep.subr.bf16.mxu0 0
      %3584 = vmatpush1.bf16.msra.mxu0 0
      %3585 = vmatprep.subr.bf16.mxu0 0
      %3586 = vmatpush1.bf16.msra.mxu0 0
      %3587 = vmatprep.subr.bf16.mxu0 0
      %3588 = vmatpush1.bf16.msra.mxu0 0
      %3589 = vmatprep.subr.bf16.mxu0 0
      %3590 = vmatpush1.bf16.msra.mxu0 0
      %3591 = vmatprep.subr.bf16.mxu0 0
      %3592 = vmatpush1.bf16.msra.mxu0 0
      %3593 = vmatprep.subr.bf16.mxu0 0
      %3594 = vmatpush1.bf16.msra.mxu0 0
      %3595 = vmatprep.subr.bf16.mxu0 0
      %3596 = vmatpush1.bf16.msra.mxu0 0
      %3597 = vmatprep.subr.bf16.mxu0 0
      %3598 = vmatpush1.bf16.msra.mxu0 0
      %3599 = vmatprep.subr.bf16.mxu0 0
      %3600 = vmatpush1.bf16.msra.mxu0 0
      %3601 = vmatprep.subr.bf16.mxu0 0
      %3602 = vmatpush1.bf16.msra.mxu0 0
      %3603 = vmatprep.mubr.bf16.mxu0 0
      %3604 = vmatmul.mubr.bf16.gmra.mrb[0].mxu0 %v3557
      %v3605 = vpop.f32.mrb[0].mxu0
      %v3606 = vadd.f32 0.0, %v3605
      %v3607 = vpop.f32.mrb[0].mxu0
      %v3608 = vadd.f32 0.0, %v3607
      %v3609 = vpop.f32.mrb[0].mxu0
      %v3610 = vadd.f32 0.0, %v3609
      %v3611 = vpop.f32.mrb[0].mxu0
      %v3612 = vadd.f32 0.0, %v3611
      %3613 = vmatprep.mubr.bf16.mxu0 0
      %3614 = vmatmul.mubr.bf16.gmra.mrb[0].mxu0 %v3560
      %v3615 = vpop.f32.mrb[0].mxu0
      %v3616 = vadd.f32 0.0, %v3615
      %v3617 = vpop.f32.mrb[0].mxu0
      %v3618 = vadd.f32 0.0, %v3617
      %v3619 = vpop.f32.mrb[0].mxu0
      %v3620 = vadd.f32 0.0, %v3619
      %v3621 = vpop.f32.mrb[0].mxu0
      %v3622 = vadd.f32 0.0, %v3621
      %3623 = vmatprep.mubr.bf16.mxu0 0
      %3624 = vmatmul.mubr.bf16.gmra.mrb[0].mxu0 %v3563
      %v3625 = vpop.f32.mrb[0].mxu0
      %v3626 = vadd.f32 0.0, %v3625
      %v3627 = vpop.f32.mrb[0].mxu0
      %v3628 = vadd.f32 0.0, %v3627
      %v3629 = vpop.f32.mrb[0].mxu0
      %v3630 = vadd.f32 0.0, %v3629
      %v3631 = vpop.f32.mrb[0].mxu0
      %v3632 = vadd.f32 0.0, %v3631
      %3633 = vmatprep.mubr.bf16.mxu0 0
      %3634 = vmatmul.mubr.bf16.gmra.mrb[0].mxu0 %v3566
      %v3635 = vpop.f32.mrb[0].mxu0
      %v3636 = vadd.f32 0.0, %v3635
      %v3637 = vpop.f32.mrb[0].mxu0
      %v3638 = vadd.f32 0.0, %v3637
      %v3639 = vpop.f32.mrb[0].mxu0
      %v3640 = vadd.f32 0.0, %v3639
      %v3641 = vpop.f32.mrb[0].mxu0
      %v3642 = vadd.f32 0.0, %v3641
      %3643 = vmatprep.mubr.bf16.mxu0 0
      %3644 = vmatmul.mubr.bf16.gmra.mrb[0].mxu0 %v3569
      %v3645 = vpop.f32.mrb[0].mxu0
      %v3646 = vadd.f32 0.0, %v3645
      %v3647 = vpop.f32.mrb[0].mxu0
      %v3648 = vadd.f32 0.0, %v3647
      %v3649 = vpop.f32.mrb[0].mxu0
      %v3650 = vadd.f32 0.0, %v3649
      %v3651 = vpop.f32.mrb[0].mxu0
      %v3652 = vadd.f32 0.0, %v3651
      %3653 = vdwg.mxu0
      %3654 = vrot.lane.b32.xlu0 %v3610, 1
      %v3655 = vpop.permute.xlu0 %3654
      %3656 = vrot.lane.b32.xlu0 %v3612, 1
      %v3657 = vpop.permute.xlu0 %3656
      %v3658 = vsel %vm791, %v3655, %v3657
      %v3659 = vsel %vm791, %v3657, %v3655
      %v3660 = vadd.f32 %v3606, %v3659
      %v3661 = vadd.f32 %v3608, %v3658
      %3662 = vrot.lane.b32.xlu0 %v3616, 2
      %v3663 = vpop.permute.xlu0 %3662
      %3664 = vrot.lane.b32.xlu0 %v3618, 2
      %v3665 = vpop.permute.xlu0 %3664
      %v3666 = vsel %vm800, %v3663, %v3665
      %v3667 = vsel %vm800, %v3665, %v3663
      %v3668 = vadd.f32 %v3660, %v3667
      %v3669 = vadd.f32 %v3661, %v3666
      %3670 = vrot.lane.b32.xlu0 %v3620, 3
      %v3671 = vpop.permute.xlu0 %3670
      %3672 = vrot.lane.b32.xlu0 %v3622, 3
      %v3673 = vpop.permute.xlu0 %3672
      %v3674 = vsel %vm809, %v3671, %v3673
      %v3675 = vsel %vm809, %v3673, %v3671
      %v3676 = vadd.f32 %v3668, %v3675
      %v3677 = vadd.f32 %v3669, %v3674
      %3678 = vrot.lane.b32.xlu0 %v3626, 4
      %v3679 = vpop.permute.xlu0 %3678
      %3680 = vrot.lane.b32.xlu0 %v3628, 4
      %v3681 = vpop.permute.xlu0 %3680
      %v3682 = vsel %vm818, %v3679, %v3681
      %v3683 = vsel %vm818, %v3681, %v3679
      %v3684 = vadd.f32 %v3676, %v3683
      %v3685 = vadd.f32 %v3677, %v3682
      %v3686 = vadd.f32 %v3684, %v3630
      %v3687 = vadd.f32 %v3685, %v3632
      %3688 = vrot.lane.b32.xlu0 %v3636, 16
      %v3689 = vpop.permute.xlu0 %3688
      %3690 = vrot.lane.b32.xlu0 %v3638, 16
      %v3691 = vpop.permute.xlu0 %3690
      %v3692 = vsel %vm829, %v3689, %v3691
      %v3693 = vsel %vm829, %v3691, %v3689
      %v3694 = vadd.f32 %v3686, %v3693
      %v3695 = vadd.f32 %v3687, %v3692
      %3696 = vrot.lane.b32.xlu0 %v3640, 32
      %v3697 = vpop.permute.xlu0 %3696
      %3698 = vrot.lane.b32.xlu0 %v3642, 32
      %v3699 = vpop.permute.xlu0 %3698
      %v3700 = vsel %vm838, %v3697, %v3699
      %v3701 = vsel %vm838, %v3699, %v3697
      %v3702 = vadd.f32 %v3694, %v3701
      %v3703 = vadd.f32 %v3695, %v3700
      %3704 = vrot.lane.b32.xlu0 %v3646, 48
      %v3705 = vpop.permute.xlu0 %3704
      %3706 = vrot.lane.b32.xlu0 %v3648, 48
      %v3707 = vpop.permute.xlu0 %3706
      %v3708 = vsel %vm847, %v3705, %v3707
      %v3709 = vsel %vm847, %v3707, %v3705
      %v3710 = vadd.f32 %v3702, %v3709
      %v3711 = vadd.f32 %v3703, %v3708
      %3712 = vrot.lane.b32.xlu0 %v3650, 64
      %v3713 = vpop.permute.xlu0 %3712
      %3714 = vrot.lane.b32.xlu0 %v3652, 64
      %v3715 = vpop.permute.xlu0 %3714
      %v3716 = vsel %vm437, %v3713, %v3715
      %v3717 = vsel %vm437, %v3715, %v3713
      %v3718 = vadd.f32 %v3710, %v3717
      %v3719 = vadd.f32 %v3711, %v3716
      %3721 = vset.pattern.permute.xlu0 0
      %3722 = vperm.xlu0 %3721, %v3530
      %v3723 = vpop.permute.xlu0 %3722
      %v3725 = vadd.f32 %v3718, %v3723
      %v3726 = vadd.f32 %v3719, %v3723
      %v3727 = vmax.f32 %v3725, 0.0
      %v3728 = vmax.f32 %v3726, 0.0
      %v3729 = vadd.f32 %v2933, %v3727
      %v3730 = vadd.f32 %v2934, %v3728
      %v3731 = vmax.f32 %v3729, 0.0
      %v3732 = vmax.f32 %v3730, 0.0
      %3733 = vrot.lane.b32.xlu0 %v3731, 127
      %v3734 = vpop.permute.xlu0 %3733
      %3735 = vrot.lane.b32.xlu0 %v3732, 127
      %v3736 = vpop.permute.xlu0 %3735
      %v3737 = vsel %vm388, %v3734, %v3736
      %v3738 = vsel %vm388, %v3736, %v3734
      %3739 = vrot.lane.b32.xlu0 %v3731, 126
      %v3740 = vpop.permute.xlu0 %3739
      %3741 = vrot.lane.b32.xlu0 %v3732, 126
      %v3742 = vpop.permute.xlu0 %3741
      %v3743 = vsel %vm395, %v3740, %v3742
      %v3744 = vsel %vm395, %v3742, %v3740
      %3745 = vrot.lane.b32.xlu0 %v3731, 125
      %v3746 = vpop.permute.xlu0 %3745
      %3747 = vrot.lane.b32.xlu0 %v3732, 125
      %v3748 = vpop.permute.xlu0 %3747
      %v3749 = vsel %vm402, %v3746, %v3748
      %v3750 = vsel %vm402, %v3748, %v3746
      %3751 = vrot.lane.b32.xlu0 %v3731, 124
      %v3752 = vpop.permute.xlu0 %3751
      %3753 = vrot.lane.b32.xlu0 %v3732, 124
      %v3754 = vpop.permute.xlu0 %3753
      %v3755 = vsel %vm409, %v3752, %v3754
      %v3756 = vsel %vm409, %v3754, %v3752
      %3757 = vrot.lane.b32.xlu0 %v3731, 112
      %v3758 = vpop.permute.xlu0 %3757
      %3759 = vrot.lane.b32.xlu0 %v3732, 112
      %v3760 = vpop.permute.xlu0 %3759
      %v3761 = vsel %vm416, %v3758, %v3760
      %v3762 = vsel %vm416, %v3760, %v3758
      %3763 = vrot.lane.b32.xlu0 %v3731, 96
      %v3764 = vpop.permute.xlu0 %3763
      %3765 = vrot.lane.b32.xlu0 %v3732, 96
      %v3766 = vpop.permute.xlu0 %3765
      %v3767 = vsel %vm423, %v3764, %v3766
      %v3768 = vsel %vm423, %v3766, %v3764
      %3769 = vrot.lane.b32.xlu0 %v3731, 80
      %v3770 = vpop.permute.xlu0 %3769
      %3771 = vrot.lane.b32.xlu0 %v3732, 80
      %v3772 = vpop.permute.xlu0 %3771
      %v3773 = vsel %vm430, %v3770, %v3772
      %v3774 = vsel %vm430, %v3772, %v3770
      %3775 = vrot.lane.b32.xlu0 %v3731, 64
      %v3776 = vpop.permute.xlu0 %3775
      %3777 = vrot.lane.b32.xlu0 %v3732, 64
      %v3778 = vpop.permute.xlu0 %3777
      %v3779 = vsel %vm437, %v3776, %v3778
      %v3780 = vsel %vm437, %v3778, %v3776
      %v3781 = vpack.c.bf16 %v3737, %v3731
      %v3782 = vpack.c.bf16 %v3738, %v3732
      %v3783 = vpack.c.bf16 %v3749, %v3743
      %v3784 = vpack.c.bf16 %v3750, %v3744
      %v3785 = vpack.c.bf16 %v3731, %v3755
      %v3786 = vpack.c.bf16 %v3732, %v3756
      %v3787 = vpack.c.bf16 %v3767, %v3761
      %v3788 = vpack.c.bf16 %v3768, %v3762
      %v3789 = vpack.c.bf16 %v3779, %v3773
      %v3790 = vpack.c.bf16 %v3780, %v3774
      %3791 = vmatprep.subr.bf16.mxu0 %v3782
      %3792 = vmatpush1.bf16.msra.mxu0 %v3781
      %3793 = vmatprep.subr.bf16.mxu0 %v3784
      %3794 = vmatpush1.bf16.msra.mxu0 %v3783
      %3795 = vmatprep.subr.bf16.mxu0 %v3786
      %3796 = vmatpush1.bf16.msra.mxu0 %v3785
      %3797 = vmatprep.subr.bf16.mxu0 %v3788
      %3798 = vmatpush1.bf16.msra.mxu0 %v3787
      %3799 = vmatprep.subr.bf16.mxu0 %v3790
      %3800 = vmatpush1.bf16.msra.mxu0 %v3789
      %3801 = vmatprep.subr.bf16.mxu0 0
      %3802 = vmatpush1.bf16.msra.mxu0 0
      %3803 = vmatprep.subr.bf16.mxu0 0
      %3804 = vmatpush1.bf16.msra.mxu0 0
      %3805 = vmatprep.subr.bf16.mxu0 0
      %3806 = vmatpush1.bf16.msra.mxu0 0
      %3807 = vmatprep.subr.bf16.mxu0 0
      %3808 = vmatpush1.bf16.msra.mxu0 0
      %3809 = vmatprep.subr.bf16.mxu0 0
      %3810 = vmatpush1.bf16.msra.mxu0 0
      %3811 = vmatprep.subr.bf16.mxu0 0
      %3812 = vmatpush1.bf16.msra.mxu0 0
      %3813 = vmatprep.subr.bf16.mxu0 0
      %3814 = vmatpush1.bf16.msra.mxu0 0
      %3815 = vmatprep.subr.bf16.mxu0 0
      %3816 = vmatpush1.bf16.msra.mxu0 0
      %3817 = vmatprep.subr.bf16.mxu0 0
      %3818 = vmatpush1.bf16.msra.mxu0 0
      %3819 = vmatprep.subr.bf16.mxu0 0
      %3820 = vmatpush1.bf16.msra.mxu0 0
      %3821 = vmatprep.subr.bf16.mxu0 0
      %3822 = vmatpush1.bf16.msra.mxu0 0
      %3823 = vmatprep.mubr.bf16.mxu0 0
      %3824 = vmatmul.mubr.bf16.gmra.mrb[0].mxu0 %v512
      %v3825 = vpop.f32.mrb[0].mxu0
      %v3826 = vadd.f32 %v453, %v3825
      %v3827 = vpop.f32.mrb[0].mxu0
      %v3828 = vadd.f32 %v453, %v3827
      %v3829 = vpop.f32.mrb[0].mxu0
      %v3830 = vadd.f32 %v458, %v3829
      %v3831 = vpop.f32.mrb[0].mxu0
      %v3832 = vadd.f32 %v458, %v3831
      %3833 = vmatprep.mubr.bf16.mxu0 0
      %3834 = vmatmul.mubr.bf16.gmra.mrb[0].mxu0 %v515
      %v3835 = vpop.f32.mrb[0].mxu0
      %v3836 = vadd.f32 %v463, %v3835
      %v3837 = vpop.f32.mrb[0].mxu0
      %v3838 = vadd.f32 %v463, %v3837
      %v3839 = vpop.f32.mrb[0].mxu0
      %v3840 = vadd.f32 %v468, %v3839
      %v3841 = vpop.f32.mrb[0].mxu0
      %v3842 = vadd.f32 %v468, %v3841
      %3843 = vmatprep.mubr.bf16.mxu0 0
      %3844 = vmatmul.mubr.bf16.gmra.mrb[0].mxu0 %v518
      %v3845 = vpop.f32.mrb[0].mxu0
      %v3846 = vadd.f32 %v473, %v3845
      %v3847 = vpop.f32.mrb[0].mxu0
      %v3848 = vadd.f32 %v473, %v3847
      %v3849 = vpop.f32.mrb[0].mxu0
      %v3850 = vadd.f32 %v478, %v3849
      %v3851 = vpop.f32.mrb[0].mxu0
      %v3852 = vadd.f32 %v478, %v3851
      %3853 = vmatprep.mubr.bf16.mxu0 0
      %3854 = vmatmul.mubr.bf16.gmra.mrb[0].mxu0 %v521
      %v3855 = vpop.f32.mrb[0].mxu0
      %v3856 = vadd.f32 %v483, %v3855
      %v3857 = vpop.f32.mrb[0].mxu0
      %v3858 = vadd.f32 %v483, %v3857
      %v3859 = vpop.f32.mrb[0].mxu0
      %v3860 = vadd.f32 %v488, %v3859
      %v3861 = vpop.f32.mrb[0].mxu0
      %v3862 = vadd.f32 %v488, %v3861
      %3863 = vdwg.mxu0
      %v3864 = vmax.f32 %v3826, 0.0
      %v3865 = vmax.f32 %v3828, 0.0
      %v3866 = vmax.f32 %v3830, 0.0
      %v3867 = vmax.f32 %v3832, 0.0
      %v3868 = vmax.f32 %v3836, 0.0
      %v3869 = vmax.f32 %v3838, 0.0
      %v3870 = vmax.f32 %v3840, 0.0
      %v3871 = vmax.f32 %v3842, 0.0
      %v3872 = vmax.f32 %v3846, 0.0
      %v3873 = vmax.f32 %v3848, 0.0
      %v3874 = vmax.f32 %v3850, 0.0
      %v3875 = vmax.f32 %v3852, 0.0
      %v3876 = vmax.f32 %v3856, 0.0
      %v3877 = vmax.f32 %v3858, 0.0
      %v3878 = vmax.f32 %v3860, 0.0
      %v3879 = vmax.f32 %v3862, 0.0
      %v3880 = vmul.f32 %v3864, %v612
      %v3881 = vmul.f32 %v3865, %v613
      %v3882 = vmul.f32 %v3866, %v614
      %v3883 = vmul.f32 %v3867, %v615
      %v3884 = vmul.f32 %v3868, %v616
      %v3885 = vmul.f32 %v3869, %v617
      %v3886 = vmul.f32 %v3870, %v618
      %v3887 = vmul.f32 %v3871, %v619
      %v3888 = vmul.f32 %v3872, %v620
      %v3889 = vmul.f32 %v3873, %v621
      %v3890 = vmul.f32 %v3874, %v622
      %v3891 = vmul.f32 %v3875, %v623
      %v3892 = vmul.f32 %v3876, %v624
      %v3893 = vmul.f32 %v3877, %v625
      %v3894 = vmul.f32 %v3878, %v626
      %v3895 = vmul.f32 %v3879, %v627
      %v3896 = vpack.c.bf16 %v3882, %v3880
      %v3897 = vpack.c.bf16 %v3883, %v3881
      %v3898 = vpack.c.bf16 %v3886, %v3884
      %v3899 = vpack.c.bf16 %v3887, %v3885
      %v3900 = vpack.c.bf16 %v3890, %v3888
      %v3901 = vpack.c.bf16 %v3891, %v3889
      %v3902 = vpack.c.bf16 %v3894, %v3892
      %v3903 = vpack.c.bf16 %v3895, %v3893
      %3904 = vmatprep.subr.bf16.mxu0 %v3897
      %3905 = vmatpush1.bf16.msra.mxu0 %v3896
      %3906 = vmatprep.subr.bf16.mxu0 %v3899
      %3907 = vmatpush1.bf16.msra.mxu0 %v3898
      %3908 = vmatprep.subr.bf16.mxu0 %v3901
      %3909 = vmatpush1.bf16.msra.mxu0 %v3900
      %3910 = vmatprep.subr.bf16.mxu0 %v3903
      %3911 = vmatpush1.bf16.msra.mxu0 %v3902
      %3912 = vmatprep.subr.bf16.mxu0 0
      %3913 = vmatpush1.bf16.msra.mxu0 0
      %3914 = vmatprep.subr.bf16.mxu0 0
      %3915 = vmatpush1.bf16.msra.mxu0 0
      %3916 = vmatprep.subr.bf16.mxu0 0
      %3917 = vmatpush1.bf16.msra.mxu0 0
      %3918 = vmatprep.subr.bf16.mxu0 0
      %3919 = vmatpush1.bf16.msra.mxu0 0
      %3920 = vmatprep.subr.bf16.mxu0 0
      %3921 = vmatpush1.bf16.msra.mxu0 0
      %3922 = vmatprep.subr.bf16.mxu0 0
      %3923 = vmatpush1.bf16.msra.mxu0 0
      %3924 = vmatprep.subr.bf16.mxu0 0
      %3925 = vmatpush1.bf16.msra.mxu0 0
      %3926 = vmatprep.subr.bf16.mxu0 0
      %3927 = vmatpush1.bf16.msra.mxu0 0
      %3928 = vmatprep.subr.bf16.mxu0 0
      %3929 = vmatpush1.bf16.msra.mxu0 0
      %3930 = vmatprep.subr.bf16.mxu0 0
      %3931 = vmatpush1.bf16.msra.mxu0 0
      %3932 = vmatprep.subr.bf16.mxu0 0
      %3933 = vmatpush1.bf16.msra.mxu0 0
      %3934 = vmatprep.subr.bf16.mxu0 0
      %3935 = vmatpush1.bf16.msra.mxu0 0
      %3936 = vmatprep.mubr.bf16.mxu0 0
      %3937 = vmatmul.mubr.bf16.gmra.mrb[0].mxu0 %v690
      %v3938 = vpop.f32.mrb[0].mxu0
      %v3939 = vadd.f32 0.0, %v3938
      %v3940 = vpop.f32.mrb[0].mxu0
      %v3941 = vadd.f32 0.0, %v3940
      %v3942 = vpop.f32.mrb[0].mxu0
      %v3943 = vadd.f32 0.0, %v3942
      %v3944 = vpop.f32.mrb[0].mxu0
      %v3945 = vadd.f32 0.0, %v3944
      %3946 = vmatprep.mubr.bf16.mxu0 0
      %3947 = vmatmul.mubr.bf16.gmra.mrb[0].mxu0 %v693
      %v3948 = vpop.f32.mrb[0].mxu0
      %v3949 = vadd.f32 0.0, %v3948
      %v3950 = vpop.f32.mrb[0].mxu0
      %v3951 = vadd.f32 0.0, %v3950
      %v3952 = vpop.f32.mrb[0].mxu0
      %v3953 = vadd.f32 0.0, %v3952
      %v3954 = vpop.f32.mrb[0].mxu0
      %v3955 = vadd.f32 0.0, %v3954
      %3956 = vmatprep.mubr.bf16.mxu0 0
      %3957 = vmatmul.mubr.bf16.gmra.mrb[0].mxu0 %v696
      %v3958 = vpop.f32.mrb[0].mxu0
      %v3959 = vadd.f32 0.0, %v3958
      %v3960 = vpop.f32.mrb[0].mxu0
      %v3961 = vadd.f32 0.0, %v3960
      %v3962 = vpop.f32.mrb[0].mxu0
      %v3963 = vadd.f32 0.0, %v3962
      %v3964 = vpop.f32.mrb[0].mxu0
      %v3965 = vadd.f32 0.0, %v3964
      %3966 = vmatprep.mubr.bf16.mxu0 0
      %3967 = vmatmul.mubr.bf16.gmra.mrb[0].mxu0 %v699
      %v3968 = vpop.f32.mrb[0].mxu0
      %v3969 = vadd.f32 0.0, %v3968
      %v3970 = vpop.f32.mrb[0].mxu0
      %v3971 = vadd.f32 0.0, %v3970
      %v3972 = vpop.f32.mrb[0].mxu0
      %v3973 = vadd.f32 0.0, %v3972
      %v3974 = vpop.f32.mrb[0].mxu0
      %v3975 = vadd.f32 0.0, %v3974
      %3976 = vmatprep.mubr.bf16.mxu0 0
      %3977 = vmatmul.mubr.bf16.gmra.mrb[0].mxu0 %v702
      %v3978 = vpop.f32.mrb[0].mxu0
      %v3979 = vadd.f32 0.0, %v3978
      %v3980 = vpop.f32.mrb[0].mxu0
      %v3981 = vadd.f32 0.0, %v3980
      %v3982 = vpop.f32.mrb[0].mxu0
      %v3983 = vadd.f32 0.0, %v3982
      %v3984 = vpop.f32.mrb[0].mxu0
      %v3985 = vadd.f32 0.0, %v3984
      %3986 = vdwg.mxu0
      %3987 = vrot.lane.b32.xlu0 %v3943, 1
      %v3988 = vpop.permute.xlu0 %3987
      %3989 = vrot.lane.b32.xlu0 %v3945, 1
      %v3990 = vpop.permute.xlu0 %3989
      %v3991 = vsel %vm791, %v3988, %v3990
      %v3992 = vsel %vm791, %v3990, %v3988
      %v3993 = vadd.f32 %v3939, %v3992
      %v3994 = vadd.f32 %v3941, %v3991
      %3995 = vrot.lane.b32.xlu0 %v3949, 2
      %v3996 = vpop.permute.xlu0 %3995
      %3997 = vrot.lane.b32.xlu0 %v3951, 2
      %v3998 = vpop.permute.xlu0 %3997
      %v3999 = vsel %vm800, %v3996, %v3998
      %v4000 = vsel %vm800, %v3998, %v3996
      %v4001 = vadd.f32 %v3993, %v4000
      %v4002 = vadd.f32 %v3994, %v3999
      %4003 = vrot.lane.b32.xlu0 %v3953, 3
      %v4004 = vpop.permute.xlu0 %4003
      %4005 = vrot.lane.b32.xlu0 %v3955, 3
      %v4006 = vpop.permute.xlu0 %4005
      %v4007 = vsel %vm809, %v4004, %v4006
      %v4008 = vsel %vm809, %v4006, %v4004
      %v4009 = vadd.f32 %v4001, %v4008
      %v4010 = vadd.f32 %v4002, %v4007
      %4011 = vrot.lane.b32.xlu0 %v3959, 4
      %v4012 = vpop.permute.xlu0 %4011
      %4013 = vrot.lane.b32.xlu0 %v3961, 4
      %v4014 = vpop.permute.xlu0 %4013
      %v4015 = vsel %vm818, %v4012, %v4014
      %v4016 = vsel %vm818, %v4014, %v4012
      %v4017 = vadd.f32 %v4009, %v4016
      %v4018 = vadd.f32 %v4010, %v4015
      %v4019 = vadd.f32 %v4017, %v3963
      %v4020 = vadd.f32 %v4018, %v3965
      %4021 = vrot.lane.b32.xlu0 %v3969, 16
      %v4022 = vpop.permute.xlu0 %4021
      %4023 = vrot.lane.b32.xlu0 %v3971, 16
      %v4024 = vpop.permute.xlu0 %4023
      %v4025 = vsel %vm829, %v4022, %v4024
      %v4026 = vsel %vm829, %v4024, %v4022
      %v4027 = vadd.f32 %v4019, %v4026
      %v4028 = vadd.f32 %v4020, %v4025
      %4029 = vrot.lane.b32.xlu0 %v3973, 32
      %v4030 = vpop.permute.xlu0 %4029
      %4031 = vrot.lane.b32.xlu0 %v3975, 32
      %v4032 = vpop.permute.xlu0 %4031
      %v4033 = vsel %vm838, %v4030, %v4032
      %v4034 = vsel %vm838, %v4032, %v4030
      %v4035 = vadd.f32 %v4027, %v4034
      %v4036 = vadd.f32 %v4028, %v4033
      %4037 = vrot.lane.b32.xlu0 %v3979, 48
      %v4038 = vpop.permute.xlu0 %4037
      %4039 = vrot.lane.b32.xlu0 %v3981, 48
      %v4040 = vpop.permute.xlu0 %4039
      %v4041 = vsel %vm847, %v4038, %v4040
      %v4042 = vsel %vm847, %v4040, %v4038
      %v4043 = vadd.f32 %v4035, %v4042
      %v4044 = vadd.f32 %v4036, %v4041
      %4045 = vrot.lane.b32.xlu0 %v3983, 64
      %v4046 = vpop.permute.xlu0 %4045
      %4047 = vrot.lane.b32.xlu0 %v3985, 64
      %v4048 = vpop.permute.xlu0 %4047
      %v4049 = vsel %vm437, %v4046, %v4048
      %v4050 = vsel %vm437, %v4048, %v4046
      %v4051 = vadd.f32 %v4043, %v4050
      %v4052 = vadd.f32 %v4044, %v4049
      %v4053 = vadd.f32 %v4051, %v863
      %v4054 = vadd.f32 %v4052, %v863
      %s4055 = scalar_lea.vmem %s6, 128
      %v4056 = vld [vmem:[%s4055] sm:$0xf]
      %v4057 = vld [vmem:[%s4055 + $0x4] sm:$0xf]
      %v4058 = vld [vmem:[%s4055 + $0x8] sm:$0xf]
      %v4059 = vld [vmem:[%s4055 + $0xc] sm:$0xf]
      %v4060 = vld [vmem:[%s4055 + $0x10] sm:$0xf]
      %v4061 = vld [vmem:[%s4055 + $0x14] sm:$0xf]
      %v4062 = vld [vmem:[%s4055 + $0x18] sm:$0xf]
      %v4063 = vld [vmem:[%s4055 + $0x1c] sm:$0xf]
      %s4064 = scalar_lea.vmem %s7, 256
      %v4065 = vld [vmem:[%s4064] sm:$0xff]
      %v4066 = vld [vmem:[%s4064 + $0x8] sm:$0xff]
      %v4067 = vld [vmem:[%s4064 + $0x10] sm:$0xff]
      %v4068 = vld [vmem:[%s4064 + $0x18] sm:$0xff]
      %v4069 = vld [vmem:[%s4064 + $0x20] sm:$0xff]
      %v4070 = vld [vmem:[%s4064 + $0x28] sm:$0xff]
      %v4071 = vld [vmem:[%s4064 + $0x30] sm:$0xff]
      %v4072 = vld [vmem:[%s4064 + $0x38] sm:$0xff]
      %4073 = vrot.lane.b32.xlu0 %v4053, 127
      %v4074 = vpop.permute.xlu0 %4073
      %4075 = vrot.lane.b32.xlu0 %v4054, 127
      %v4076 = vpop.permute.xlu0 %4075
      %v4077 = vsel %vm388, %v4074, %v4076
      %v4078 = vsel %vm388, %v4076, %v4074
      %4079 = vrot.lane.b32.xlu0 %v4053, 126
      %v4080 = vpop.permute.xlu0 %4079
      %4081 = vrot.lane.b32.xlu0 %v4054, 126
      %v4082 = vpop.permute.xlu0 %4081
      %v4083 = vsel %vm395, %v4080, %v4082
      %v4084 = vsel %vm395, %v4082, %v4080
      %4085 = vrot.lane.b32.xlu0 %v4053, 125
      %v4086 = vpop.permute.xlu0 %4085
      %4087 = vrot.lane.b32.xlu0 %v4054, 125
      %v4088 = vpop.permute.xlu0 %4087
      %v4089 = vsel %vm402, %v4086, %v4088
      %v4090 = vsel %vm402, %v4088, %v4086
      %4091 = vrot.lane.b32.xlu0 %v4053, 124
      %v4092 = vpop.permute.xlu0 %4091
      %4093 = vrot.lane.b32.xlu0 %v4054, 124
      %v4094 = vpop.permute.xlu0 %4093
      %v4095 = vsel %vm409, %v4092, %v4094
      %v4096 = vsel %vm409, %v4094, %v4092
      %4097 = vrot.lane.b32.xlu0 %v4053, 112
      %v4098 = vpop.permute.xlu0 %4097
      %4099 = vrot.lane.b32.xlu0 %v4054, 112
      %v4100 = vpop.permute.xlu0 %4099
      %v4101 = vsel %vm416, %v4098, %v4100
      %v4102 = vsel %vm416, %v4100, %v4098
      %4103 = vrot.lane.b32.xlu0 %v4053, 96
      %v4104 = vpop.permute.xlu0 %4103
      %4105 = vrot.lane.b32.xlu0 %v4054, 96
      %v4106 = vpop.permute.xlu0 %4105
      %v4107 = vsel %vm423, %v4104, %v4106
      %v4108 = vsel %vm423, %v4106, %v4104
      %4109 = vrot.lane.b32.xlu0 %v4053, 80
      %v4110 = vpop.permute.xlu0 %4109
      %4111 = vrot.lane.b32.xlu0 %v4054, 80
      %v4112 = vpop.permute.xlu0 %4111
      %v4113 = vsel %vm430, %v4110, %v4112
      %v4114 = vsel %vm430, %v4112, %v4110
      %4115 = vrot.lane.b32.xlu0 %v4053, 64
      %v4116 = vpop.permute.xlu0 %4115
      %4117 = vrot.lane.b32.xlu0 %v4054, 64
      %v4118 = vpop.permute.xlu0 %4117
      %v4119 = vsel %vm437, %v4116, %v4118
      %v4120 = vsel %vm437, %v4118, %v4116
      %v4121 = vpack.c.bf16 %v4077, %v4053
      %v4122 = vpack.c.bf16 %v4078, %v4054
      %v4123 = vpack.c.bf16 %v4089, %v4083
      %v4124 = vpack.c.bf16 %v4090, %v4084
      %v4125 = vpack.c.bf16 %v4053, %v4095
      %v4126 = vpack.c.bf16 %v4054, %v4096
      %v4127 = vpack.c.bf16 %v4107, %v4101
      %v4128 = vpack.c.bf16 %v4108, %v4102
      %v4129 = vpack.c.bf16 %v4119, %v4113
      %v4130 = vpack.c.bf16 %v4120, %v4114
      %4132 = vset.pattern.permute.xlu0 0
      %4133 = vperm.xlu0 %4132, %v4065
      %v4134 = vpop.permute.xlu0 %4133
      %4137 = vset.pattern.permute.xlu0 0
      %4138 = vperm.xlu0 %4137, %v4066
      %v4139 = vpop.permute.xlu0 %4138
      %4142 = vset.pattern.permute.xlu0 0
      %4143 = vperm.xlu0 %4142, %v4067
      %v4144 = vpop.permute.xlu0 %4143
      %4147 = vset.pattern.permute.xlu0 0
      %4148 = vperm.xlu0 %4147, %v4068
      %v4149 = vpop.permute.xlu0 %4148
      %4152 = vset.pattern.permute.xlu0 0
      %4153 = vperm.xlu0 %4152, %v4069
      %v4154 = vpop.permute.xlu0 %4153
      %4157 = vset.pattern.permute.xlu0 0
      %4158 = vperm.xlu0 %4157, %v4070
      %v4159 = vpop.permute.xlu0 %4158
      %4162 = vset.pattern.permute.xlu0 0
      %4163 = vperm.xlu0 %4162, %v4071
      %v4164 = vpop.permute.xlu0 %4163
      %4167 = vset.pattern.permute.xlu0 0
      %4168 = vperm.xlu0 %4167, %v4072
      %v4169 = vpop.permute.xlu0 %4168
      %v4179 = vunpack.c.l.b16 %v4056
      %v4180 = vunpack.c.l.b16 %v4057
      %v4181 = vunpack.c.l.b16 %v4058
      %v4182 = vunpack.c.l.b16 %v4059
      %v4183 = vunpack.c.l.b16 %v4060
      %v4184 = vunpack.c.l.b16 %v4061
      %v4185 = vunpack.c.l.b16 %v4062
      %v4186 = vunpack.c.l.b16 %v4063
      %v4187 = vpack.c.b16 %v4180, %v4179
      %v4188 = vpack.c.b16 %v4182, %v4181
      %v4189 = vpack.c.b16 %v4184, %v4183
      %v4190 = vpack.c.b16 %v4186, %v4185
      %v4192 = vsel %vm510, %v4187, 0
      %v4195 = vsel %vm510, %v4188, 0
      %v4198 = vsel %vm510, %v4189, 0
      %v4201 = vsel %vm510, %v4190, 0
      %4203 = vmatprep.subr.bf16.mxu0 %v4122
      %4204 = vmatpush1.bf16.msra.mxu0 %v4121
      %4205 = vmatprep.subr.bf16.mxu0 %v4124
      %4206 = vmatpush1.bf16.msra.mxu0 %v4123
      %4207 = vmatprep.subr.bf16.mxu0 %v4126
      %4208 = vmatpush1.bf16.msra.mxu0 %v4125
      %4209 = vmatprep.subr.bf16.mxu0 %v4128
      %4210 = vmatpush1.bf16.msra.mxu0 %v4127
      %4211 = vmatprep.subr.bf16.mxu0 %v4130
      %4212 = vmatpush1.bf16.msra.mxu0 %v4129
      %4213 = vmatprep.subr.bf16.mxu0 0
      %4214 = vmatpush1.bf16.msra.mxu0 0
      %4215 = vmatprep.subr.bf16.mxu0 0
      %4216 = vmatpush1.bf16.msra.mxu0 0
      %4217 = vmatprep.subr.bf16.mxu0 0
      %4218 = vmatpush1.bf16.msra.mxu0 0
      %4219 = vmatprep.subr.bf16.mxu0 0
      %4220 = vmatpush1.bf16.msra.mxu0 0
      %4221 = vmatprep.subr.bf16.mxu0 0
      %4222 = vmatpush1.bf16.msra.mxu0 0
      %4223 = vmatprep.subr.bf16.mxu0 0
      %4224 = vmatpush1.bf16.msra.mxu0 0
      %4225 = vmatprep.subr.bf16.mxu0 0
      %4226 = vmatpush1.bf16.msra.mxu0 0
      %4227 = vmatprep.subr.bf16.mxu0 0
      %4228 = vmatpush1.bf16.msra.mxu0 0
      %4229 = vmatprep.subr.bf16.mxu0 0
      %4230 = vmatpush1.bf16.msra.mxu0 0
      %4231 = vmatprep.subr.bf16.mxu0 0
      %4232 = vmatpush1.bf16.msra.mxu0 0
      %4233 = vmatprep.subr.bf16.mxu0 0
      %4234 = vmatpush1.bf16.msra.mxu0 0
      %4235 = vmatprep.mubr.bf16.mxu0 0
      %4236 = vmatmul.mubr.bf16.gmra.mrb[0].mxu0 %v4192
      %v4237 = vpop.f32.mrb[0].mxu0
      %v4238 = vadd.f32 %v4134, %v4237
      %v4239 = vpop.f32.mrb[0].mxu0
      %v4240 = vadd.f32 %v4134, %v4239
      %v4241 = vpop.f32.mrb[0].mxu0
      %v4242 = vadd.f32 %v4139, %v4241
      %v4243 = vpop.f32.mrb[0].mxu0
      %v4244 = vadd.f32 %v4139, %v4243
      %4245 = vmatprep.mubr.bf16.mxu0 0
      %4246 = vmatmul.mubr.bf16.gmra.mrb[0].mxu0 %v4195
      %v4247 = vpop.f32.mrb[0].mxu0
      %v4248 = vadd.f32 %v4144, %v4247
      %v4249 = vpop.f32.mrb[0].mxu0
      %v4250 = vadd.f32 %v4144, %v4249
      %v4251 = vpop.f32.mrb[0].mxu0
      %v4252 = vadd.f32 %v4149, %v4251
      %v4253 = vpop.f32.mrb[0].mxu0
      %v4254 = vadd.f32 %v4149, %v4253
      %4255 = vmatprep.mubr.bf16.mxu0 0
      %4256 = vmatmul.mubr.bf16.gmra.mrb[0].mxu0 %v4198
      %v4257 = vpop.f32.mrb[0].mxu0
      %v4258 = vadd.f32 %v4154, %v4257
      %v4259 = vpop.f32.mrb[0].mxu0
      %v4260 = vadd.f32 %v4154, %v4259
      %v4261 = vpop.f32.mrb[0].mxu0
      %v4262 = vadd.f32 %v4159, %v4261
      %v4263 = vpop.f32.mrb[0].mxu0
      %v4264 = vadd.f32 %v4159, %v4263
      %4265 = vmatprep.mubr.bf16.mxu0 0
      %4266 = vmatmul.mubr.bf16.gmra.mrb[0].mxu0 %v4201
      %v4267 = vpop.f32.mrb[0].mxu0
      %v4268 = vadd.f32 %v4164, %v4267
      %v4269 = vpop.f32.mrb[0].mxu0
      %v4270 = vadd.f32 %v4164, %v4269
      %v4271 = vpop.f32.mrb[0].mxu0
      %v4272 = vadd.f32 %v4169, %v4271
      %v4273 = vpop.f32.mrb[0].mxu0
      %v4274 = vadd.f32 %v4169, %v4273
      %4275 = vdwg.mxu0
      %v4276 = vmax.f32 %v4238, 0.0
      %v4277 = vmax.f32 %v4240, 0.0
      %v4278 = vmax.f32 %v4242, 0.0
      %v4279 = vmax.f32 %v4244, 0.0
      %v4280 = vmax.f32 %v4248, 0.0
      %v4281 = vmax.f32 %v4250, 0.0
      %v4282 = vmax.f32 %v4252, 0.0
      %v4283 = vmax.f32 %v4254, 0.0
      %v4284 = vmax.f32 %v4258, 0.0
      %v4285 = vmax.f32 %v4260, 0.0
      %v4286 = vmax.f32 %v4262, 0.0
      %v4287 = vmax.f32 %v4264, 0.0
      %v4288 = vmax.f32 %v4268, 0.0
      %v4289 = vmax.f32 %v4270, 0.0
      %v4290 = vmax.f32 %v4272, 0.0
      %v4291 = vmax.f32 %v4274, 0.0
      %v4292 = vmul.f32 %v4276, %v612
      %v4293 = vmul.f32 %v4277, %v613
      %v4294 = vmul.f32 %v4278, %v614
      %v4295 = vmul.f32 %v4279, %v615
      %v4296 = vmul.f32 %v4280, %v616
      %v4297 = vmul.f32 %v4281, %v617
      %v4298 = vmul.f32 %v4282, %v618
      %v4299 = vmul.f32 %v4283, %v619
      %v4300 = vmul.f32 %v4284, %v620
      %v4301 = vmul.f32 %v4285, %v621
      %v4302 = vmul.f32 %v4286, %v622
      %v4303 = vmul.f32 %v4287, %v623
      %v4304 = vmul.f32 %v4288, %v624
      %v4305 = vmul.f32 %v4289, %v625
      %v4306 = vmul.f32 %v4290, %v626
      %v4307 = vmul.f32 %v4291, %v627
      %v4308 = vpack.c.bf16 %v4294, %v4292
      %v4309 = vpack.c.bf16 %v4295, %v4293
      %v4310 = vpack.c.bf16 %v4298, %v4296
      %v4311 = vpack.c.bf16 %v4299, %v4297
      %v4312 = vpack.c.bf16 %v4302, %v4300
      %v4313 = vpack.c.bf16 %v4303, %v4301
      %v4314 = vpack.c.bf16 %v4306, %v4304
      %v4315 = vpack.c.bf16 %v4307, %v4305
      %s4316 = scalar_lea.vmem %s8, 160
      %v4317 = vld [vmem:[%s4316] sm:$0xf]
      %v4318 = vld [vmem:[%s4316 + $0x4] sm:$0xf]
      %v4319 = vld [vmem:[%s4316 + $0x8] sm:$0xf]
      %v4320 = vld [vmem:[%s4316 + $0xc] sm:$0xf]
      %v4321 = vld [vmem:[%s4316 + $0x10] sm:$0xf]
      %v4322 = vld [vmem:[%s4316 + $0x14] sm:$0xf]
      %v4323 = vld [vmem:[%s4316 + $0x18] sm:$0xf]
      %v4324 = vld [vmem:[%s4316 + $0x1c] sm:$0xf]
      %v4325 = vld [vmem:[%s4316 + $0x20] sm:$0xf]
      %v4326 = vld [vmem:[%s4316 + $0x24] sm:$0xf]
      %s4327 = scalar_lea.vmem %s9, 32
      %v4328 = vld [vmem:[%s4327] sm:$0xff]
      %v4339 = vunpack.c.l.b16 %v4317
      %v4340 = vunpack.c.l.b16 %v4318
      %v4341 = vunpack.c.l.b16 %v4319
      %v4342 = vunpack.c.l.b16 %v4320
      %v4343 = vunpack.c.l.b16 %v4321
      %v4344 = vunpack.c.l.b16 %v4322
      %v4345 = vunpack.c.l.b16 %v4323
      %v4346 = vunpack.c.l.b16 %v4324
      %v4347 = vunpack.c.l.b16 %v4325
      %v4348 = vunpack.c.l.b16 %v4326
      %v4349 = vpack.c.b16 %v4340, %v4339
      %v4350 = vpack.c.b16 %v4342, %v4341
      %v4351 = vpack.c.b16 %v4344, %v4343
      %v4352 = vpack.c.b16 %v4346, %v4345
      %v4353 = vpack.c.b16 %v4348, %v4347
      %v4355 = vsel %vm688, %v4349, 0
      %v4358 = vsel %vm688, %v4350, 0
      %v4361 = vsel %vm688, %v4351, 0
      %v4364 = vsel %vm688, %v4352, 0
      %v4367 = vsel %vm688, %v4353, 0
      %4369 = vmatprep.subr.bf16.mxu0 %v4309
      %4370 = vmatpush1.bf16.msra.mxu0 %v4308
      %4371 = vmatprep.subr.bf16.mxu0 %v4311
      %4372 = vmatpush1.bf16.msra.mxu0 %v4310
      %4373 = vmatprep.subr.bf16.mxu0 %v4313
      %4374 = vmatpush1.bf16.msra.mxu0 %v4312
      %4375 = vmatprep.subr.bf16.mxu0 %v4315
      %4376 = vmatpush1.bf16.msra.mxu0 %v4314
      %4377 = vmatprep.subr.bf16.mxu0 0
      %4378 = vmatpush1.bf16.msra.mxu0 0
      %4379 = vmatprep.subr.bf16.mxu0 0
      %4380 = vmatpush1.bf16.msra.mxu0 0
      %4381 = vmatprep.subr.bf16.mxu0 0
      %4382 = vmatpush1.bf16.msra.mxu0 0
      %4383 = vmatprep.subr.bf16.mxu0 0
      %4384 = vmatpush1.bf16.msra.mxu0 0
      %4385 = vmatprep.subr.bf16.mxu0 0
      %4386 = vmatpush1.bf16.msra.mxu0 0
      %4387 = vmatprep.subr.bf16.mxu0 0
      %4388 = vmatpush1.bf16.msra.mxu0 0
      %4389 = vmatprep.subr.bf16.mxu0 0
      %4390 = vmatpush1.bf16.msra.mxu0 0
      %4391 = vmatprep.subr.bf16.mxu0 0
      %4392 = vmatpush1.bf16.msra.mxu0 0
      %4393 = vmatprep.subr.bf16.mxu0 0
      %4394 = vmatpush1.bf16.msra.mxu0 0
      %4395 = vmatprep.subr.bf16.mxu0 0
      %4396 = vmatpush1.bf16.msra.mxu0 0
      %4397 = vmatprep.subr.bf16.mxu0 0
      %4398 = vmatpush1.bf16.msra.mxu0 0
      %4399 = vmatprep.subr.bf16.mxu0 0
      %4400 = vmatpush1.bf16.msra.mxu0 0
      %4401 = vmatprep.mubr.bf16.mxu0 0
      %4402 = vmatmul.mubr.bf16.gmra.mrb[0].mxu0 %v4355
      %v4403 = vpop.f32.mrb[0].mxu0
      %v4404 = vadd.f32 0.0, %v4403
      %v4405 = vpop.f32.mrb[0].mxu0
      %v4406 = vadd.f32 0.0, %v4405
      %v4407 = vpop.f32.mrb[0].mxu0
      %v4408 = vadd.f32 0.0, %v4407
      %v4409 = vpop.f32.mrb[0].mxu0
      %v4410 = vadd.f32 0.0, %v4409
      %4411 = vmatprep.mubr.bf16.mxu0 0
      %4412 = vmatmul.mubr.bf16.gmra.mrb[0].mxu0 %v4358
      %v4413 = vpop.f32.mrb[0].mxu0
      %v4414 = vadd.f32 0.0, %v4413
      %v4415 = vpop.f32.mrb[0].mxu0
      %v4416 = vadd.f32 0.0, %v4415
      %v4417 = vpop.f32.mrb[0].mxu0
      %v4418 = vadd.f32 0.0, %v4417
      %v4419 = vpop.f32.mrb[0].mxu0
      %v4420 = vadd.f32 0.0, %v4419
      %4421 = vmatprep.mubr.bf16.mxu0 0
      %4422 = vmatmul.mubr.bf16.gmra.mrb[0].mxu0 %v4361
      %v4423 = vpop.f32.mrb[0].mxu0
      %v4424 = vadd.f32 0.0, %v4423
      %v4425 = vpop.f32.mrb[0].mxu0
      %v4426 = vadd.f32 0.0, %v4425
      %v4427 = vpop.f32.mrb[0].mxu0
      %v4428 = vadd.f32 0.0, %v4427
      %v4429 = vpop.f32.mrb[0].mxu0
      %v4430 = vadd.f32 0.0, %v4429
      %4431 = vmatprep.mubr.bf16.mxu0 0
      %4432 = vmatmul.mubr.bf16.gmra.mrb[0].mxu0 %v4364
      %v4433 = vpop.f32.mrb[0].mxu0
      %v4434 = vadd.f32 0.0, %v4433
      %v4435 = vpop.f32.mrb[0].mxu0
      %v4436 = vadd.f32 0.0, %v4435
      %v4437 = vpop.f32.mrb[0].mxu0
      %v4438 = vadd.f32 0.0, %v4437
      %v4439 = vpop.f32.mrb[0].mxu0
      %v4440 = vadd.f32 0.0, %v4439
      %4441 = vmatprep.mubr.bf16.mxu0 0
      %4442 = vmatmul.mubr.bf16.gmra.mrb[0].mxu0 %v4367
      %v4443 = vpop.f32.mrb[0].mxu0
      %v4444 = vadd.f32 0.0, %v4443
      %v4445 = vpop.f32.mrb[0].mxu0
      %v4446 = vadd.f32 0.0, %v4445
      %v4447 = vpop.f32.mrb[0].mxu0
      %v4448 = vadd.f32 0.0, %v4447
      %v4449 = vpop.f32.mrb[0].mxu0
      %v4450 = vadd.f32 0.0, %v4449
      %4451 = vdwg.mxu0
      %4452 = vrot.lane.b32.xlu0 %v4408, 1
      %v4453 = vpop.permute.xlu0 %4452
      %4454 = vrot.lane.b32.xlu0 %v4410, 1
      %v4455 = vpop.permute.xlu0 %4454
      %v4456 = vsel %vm791, %v4453, %v4455
      %v4457 = vsel %vm791, %v4455, %v4453
      %v4458 = vadd.f32 %v4404, %v4457
      %v4459 = vadd.f32 %v4406, %v4456
      %4460 = vrot.lane.b32.xlu0 %v4414, 2
      %v4461 = vpop.permute.xlu0 %4460
      %4462 = vrot.lane.b32.xlu0 %v4416, 2
      %v4463 = vpop.permute.xlu0 %4462
      %v4464 = vsel %vm800, %v4461, %v4463
      %v4465 = vsel %vm800, %v4463, %v4461
      %v4466 = vadd.f32 %v4458, %v4465
      %v4467 = vadd.f32 %v4459, %v4464
      %4468 = vrot.lane.b32.xlu0 %v4418, 3
      %v4469 = vpop.permute.xlu0 %4468
      %4470 = vrot.lane.b32.xlu0 %v4420, 3
      %v4471 = vpop.permute.xlu0 %4470
      %v4472 = vsel %vm809, %v4469, %v4471
      %v4473 = vsel %vm809, %v4471, %v4469
      %v4474 = vadd.f32 %v4466, %v4473
      %v4475 = vadd.f32 %v4467, %v4472
      %4476 = vrot.lane.b32.xlu0 %v4424, 4
      %v4477 = vpop.permute.xlu0 %4476
      %4478 = vrot.lane.b32.xlu0 %v4426, 4
      %v4479 = vpop.permute.xlu0 %4478
      %v4480 = vsel %vm818, %v4477, %v4479
      %v4481 = vsel %vm818, %v4479, %v4477
      %v4482 = vadd.f32 %v4474, %v4481
      %v4483 = vadd.f32 %v4475, %v4480
      %v4484 = vadd.f32 %v4482, %v4428
      %v4485 = vadd.f32 %v4483, %v4430
      %4486 = vrot.lane.b32.xlu0 %v4434, 16
      %v4487 = vpop.permute.xlu0 %4486
      %4488 = vrot.lane.b32.xlu0 %v4436, 16
      %v4489 = vpop.permute.xlu0 %4488
      %v4490 = vsel %vm829, %v4487, %v4489
      %v4491 = vsel %vm829, %v4489, %v4487
      %v4492 = vadd.f32 %v4484, %v4491
      %v4493 = vadd.f32 %v4485, %v4490
      %4494 = vrot.lane.b32.xlu0 %v4438, 32
      %v4495 = vpop.permute.xlu0 %4494
      %4496 = vrot.lane.b32.xlu0 %v4440, 32
      %v4497 = vpop.permute.xlu0 %4496
      %v4498 = vsel %vm838, %v4495, %v4497
      %v4499 = vsel %vm838, %v4497, %v4495
      %v4500 = vadd.f32 %v4492, %v4499
      %v4501 = vadd.f32 %v4493, %v4498
      %4502 = vrot.lane.b32.xlu0 %v4444, 48
      %v4503 = vpop.permute.xlu0 %4502
      %4504 = vrot.lane.b32.xlu0 %v4446, 48
      %v4505 = vpop.permute.xlu0 %4504
      %v4506 = vsel %vm847, %v4503, %v4505
      %v4507 = vsel %vm847, %v4505, %v4503
      %v4508 = vadd.f32 %v4500, %v4507
      %v4509 = vadd.f32 %v4501, %v4506
      %4510 = vrot.lane.b32.xlu0 %v4448, 64
      %v4511 = vpop.permute.xlu0 %4510
      %4512 = vrot.lane.b32.xlu0 %v4450, 64
      %v4513 = vpop.permute.xlu0 %4512
      %v4514 = vsel %vm437, %v4511, %v4513
      %v4515 = vsel %vm437, %v4513, %v4511
      %v4516 = vadd.f32 %v4508, %v4515
      %v4517 = vadd.f32 %v4509, %v4514
      %4519 = vset.pattern.permute.xlu0 0
      %4520 = vperm.xlu0 %4519, %v4328
      %v4521 = vpop.permute.xlu0 %4520
      %v4523 = vadd.f32 %v4516, %v4521
      %v4524 = vadd.f32 %v4517, %v4521
      %v4525 = vmax.f32 %v4523, 0.0
      %v4526 = vmax.f32 %v4524, 0.0
      %v4527 = vadd.f32 %v3731, %v4525
      %v4528 = vadd.f32 %v3732, %v4526
      %v4529 = vmax.f32 %v4527, 0.0
      %v4530 = vmax.f32 %v4528, 0.0
      %4531 = vrot.lane.b32.xlu0 %v4529, 127
      %v4532 = vpop.permute.xlu0 %4531
      %4533 = vrot.lane.b32.xlu0 %v4530, 127
      %v4534 = vpop.permute.xlu0 %4533
      %v4535 = vsel %vm388, %v4532, %v4534
      %v4536 = vsel %vm388, %v4534, %v4532
      %4537 = vrot.lane.b32.xlu0 %v4529, 126
      %v4538 = vpop.permute.xlu0 %4537
      %4539 = vrot.lane.b32.xlu0 %v4530, 126
      %v4540 = vpop.permute.xlu0 %4539
      %v4541 = vsel %vm395, %v4538, %v4540
      %v4542 = vsel %vm395, %v4540, %v4538
      %4543 = vrot.lane.b32.xlu0 %v4529, 125
      %v4544 = vpop.permute.xlu0 %4543
      %4545 = vrot.lane.b32.xlu0 %v4530, 125
      %v4546 = vpop.permute.xlu0 %4545
      %v4547 = vsel %vm402, %v4544, %v4546
      %v4548 = vsel %vm402, %v4546, %v4544
      %4549 = vrot.lane.b32.xlu0 %v4529, 124
      %v4550 = vpop.permute.xlu0 %4549
      %4551 = vrot.lane.b32.xlu0 %v4530, 124
      %v4552 = vpop.permute.xlu0 %4551
      %v4553 = vsel %vm409, %v4550, %v4552
      %v4554 = vsel %vm409, %v4552, %v4550
      %4555 = vrot.lane.b32.xlu0 %v4529, 112
      %v4556 = vpop.permute.xlu0 %4555
      %4557 = vrot.lane.b32.xlu0 %v4530, 112
      %v4558 = vpop.permute.xlu0 %4557
      %v4559 = vsel %vm416, %v4556, %v4558
      %v4560 = vsel %vm416, %v4558, %v4556
      %4561 = vrot.lane.b32.xlu0 %v4529, 96
      %v4562 = vpop.permute.xlu0 %4561
      %4563 = vrot.lane.b32.xlu0 %v4530, 96
      %v4564 = vpop.permute.xlu0 %4563
      %v4565 = vsel %vm423, %v4562, %v4564
      %v4566 = vsel %vm423, %v4564, %v4562
      %4567 = vrot.lane.b32.xlu0 %v4529, 80
      %v4568 = vpop.permute.xlu0 %4567
      %4569 = vrot.lane.b32.xlu0 %v4530, 80
      %v4570 = vpop.permute.xlu0 %4569
      %v4571 = vsel %vm430, %v4568, %v4570
      %v4572 = vsel %vm430, %v4570, %v4568
      %4573 = vrot.lane.b32.xlu0 %v4529, 64
      %v4574 = vpop.permute.xlu0 %4573
      %4575 = vrot.lane.b32.xlu0 %v4530, 64
      %v4576 = vpop.permute.xlu0 %4575
      %v4577 = vsel %vm437, %v4574, %v4576
      %v4578 = vsel %vm437, %v4576, %v4574
      %v4579 = vpack.c.bf16 %v4535, %v4529
      %v4580 = vpack.c.bf16 %v4536, %v4530
      %v4581 = vpack.c.bf16 %v4547, %v4541
      %v4582 = vpack.c.bf16 %v4548, %v4542
      %v4583 = vpack.c.bf16 %v4529, %v4553
      %v4584 = vpack.c.bf16 %v4530, %v4554
      %v4585 = vpack.c.bf16 %v4565, %v4559
      %v4586 = vpack.c.bf16 %v4566, %v4560
      %v4587 = vpack.c.bf16 %v4577, %v4571
      %v4588 = vpack.c.bf16 %v4578, %v4572
      %4589 = vmatprep.subr.bf16.mxu0 %v4580
      %4590 = vmatpush1.bf16.msra.mxu0 %v4579
      %4591 = vmatprep.subr.bf16.mxu0 %v4582
      %4592 = vmatpush1.bf16.msra.mxu0 %v4581
      %4593 = vmatprep.subr.bf16.mxu0 %v4584
      %4594 = vmatpush1.bf16.msra.mxu0 %v4583
      %4595 = vmatprep.subr.bf16.mxu0 %v4586
      %4596 = vmatpush1.bf16.msra.mxu0 %v4585
      %4597 = vmatprep.subr.bf16.mxu0 %v4588
      %4598 = vmatpush1.bf16.msra.mxu0 %v4587
      %4599 = vmatprep.subr.bf16.mxu0 0
      %4600 = vmatpush1.bf16.msra.mxu0 0
      %4601 = vmatprep.subr.bf16.mxu0 0
      %4602 = vmatpush1.bf16.msra.mxu0 0
      %4603 = vmatprep.subr.bf16.mxu0 0
      %4604 = vmatpush1.bf16.msra.mxu0 0
      %4605 = vmatprep.subr.bf16.mxu0 0
      %4606 = vmatpush1.bf16.msra.mxu0 0
      %4607 = vmatprep.subr.bf16.mxu0 0
      %4608 = vmatpush1.bf16.msra.mxu0 0
      %4609 = vmatprep.subr.bf16.mxu0 0
      %4610 = vmatpush1.bf16.msra.mxu0 0
      %4611 = vmatprep.subr.bf16.mxu0 0
      %4612 = vmatpush1.bf16.msra.mxu0 0
      %4613 = vmatprep.subr.bf16.mxu0 0
      %4614 = vmatpush1.bf16.msra.mxu0 0
      %4615 = vmatprep.subr.bf16.mxu0 0
      %4616 = vmatpush1.bf16.msra.mxu0 0
      %4617 = vmatprep.subr.bf16.mxu0 0
      %4618 = vmatpush1.bf16.msra.mxu0 0
      %4619 = vmatprep.subr.bf16.mxu0 0
      %4620 = vmatpush1.bf16.msra.mxu0 0
      %4621 = vmatprep.mubr.bf16.mxu0 0
      %4622 = vmatmul.mubr.bf16.gmra.mrb[0].mxu0 %v512
      %v4623 = vpop.f32.mrb[0].mxu0
      %v4624 = vadd.f32 %v453, %v4623
      %v4625 = vpop.f32.mrb[0].mxu0
      %v4626 = vadd.f32 %v453, %v4625
      %v4627 = vpop.f32.mrb[0].mxu0
      %v4628 = vadd.f32 %v458, %v4627
      %v4629 = vpop.f32.mrb[0].mxu0
      %v4630 = vadd.f32 %v458, %v4629
      %4631 = vmatprep.mubr.bf16.mxu0 0
      %4632 = vmatmul.mubr.bf16.gmra.mrb[0].mxu0 %v515
      %v4633 = vpop.f32.mrb[0].mxu0
      %v4634 = vadd.f32 %v463, %v4633
      %v4635 = vpop.f32.mrb[0].mxu0
      %v4636 = vadd.f32 %v463, %v4635
      %v4637 = vpop.f32.mrb[0].mxu0
      %v4638 = vadd.f32 %v468, %v4637
      %v4639 = vpop.f32.mrb[0].mxu0
      %v4640 = vadd.f32 %v468, %v4639
      %4641 = vmatprep.mubr.bf16.mxu0 0
      %4642 = vmatmul.mubr.bf16.gmra.mrb[0].mxu0 %v518
      %v4643 = vpop.f32.mrb[0].mxu0
      %v4644 = vadd.f32 %v473, %v4643
      %v4645 = vpop.f32.mrb[0].mxu0
      %v4646 = vadd.f32 %v473, %v4645
      %v4647 = vpop.f32.mrb[0].mxu0
      %v4648 = vadd.f32 %v478, %v4647
      %v4649 = vpop.f32.mrb[0].mxu0
      %v4650 = vadd.f32 %v478, %v4649
      %4651 = vmatprep.mubr.bf16.mxu0 0
      %4652 = vmatmul.mubr.bf16.gmra.mrb[0].mxu0 %v521
      %v4653 = vpop.f32.mrb[0].mxu0
      %v4654 = vadd.f32 %v483, %v4653
      %v4655 = vpop.f32.mrb[0].mxu0
      %v4656 = vadd.f32 %v483, %v4655
      %v4657 = vpop.f32.mrb[0].mxu0
      %v4658 = vadd.f32 %v488, %v4657
      %v4659 = vpop.f32.mrb[0].mxu0
      %v4660 = vadd.f32 %v488, %v4659
      %4661 = vdwg.mxu0
      %v4662 = vmax.f32 %v4624, 0.0
      %v4663 = vmax.f32 %v4626, 0.0
      %v4664 = vmax.f32 %v4628, 0.0
      %v4665 = vmax.f32 %v4630, 0.0
      %v4666 = vmax.f32 %v4634, 0.0
      %v4667 = vmax.f32 %v4636, 0.0
      %v4668 = vmax.f32 %v4638, 0.0
      %v4669 = vmax.f32 %v4640, 0.0
      %v4670 = vmax.f32 %v4644, 0.0
      %v4671 = vmax.f32 %v4646, 0.0
      %v4672 = vmax.f32 %v4648, 0.0
      %v4673 = vmax.f32 %v4650, 0.0
      %v4674 = vmax.f32 %v4654, 0.0
      %v4675 = vmax.f32 %v4656, 0.0
      %v4676 = vmax.f32 %v4658, 0.0
      %v4677 = vmax.f32 %v4660, 0.0
      %v4678 = vmul.f32 %v4662, %v612
      %v4679 = vmul.f32 %v4663, %v613
      %v4680 = vmul.f32 %v4664, %v614
      %v4681 = vmul.f32 %v4665, %v615
      %v4682 = vmul.f32 %v4666, %v616
      %v4683 = vmul.f32 %v4667, %v617
      %v4684 = vmul.f32 %v4668, %v618
      %v4685 = vmul.f32 %v4669, %v619
      %v4686 = vmul.f32 %v4670, %v620
      %v4687 = vmul.f32 %v4671, %v621
      %v4688 = vmul.f32 %v4672, %v622
      %v4689 = vmul.f32 %v4673, %v623
      %v4690 = vmul.f32 %v4674, %v624
      %v4691 = vmul.f32 %v4675, %v625
      %v4692 = vmul.f32 %v4676, %v626
      %v4693 = vmul.f32 %v4677, %v627
      %v4694 = vpack.c.bf16 %v4680, %v4678
      %v4695 = vpack.c.bf16 %v4681, %v4679
      %v4696 = vpack.c.bf16 %v4684, %v4682
      %v4697 = vpack.c.bf16 %v4685, %v4683
      %v4698 = vpack.c.bf16 %v4688, %v4686
      %v4699 = vpack.c.bf16 %v4689, %v4687
      %v4700 = vpack.c.bf16 %v4692, %v4690
      %v4701 = vpack.c.bf16 %v4693, %v4691
      %4702 = vmatprep.subr.bf16.mxu0 %v4695
      %4703 = vmatpush1.bf16.msra.mxu0 %v4694
      %4704 = vmatprep.subr.bf16.mxu0 %v4697
      %4705 = vmatpush1.bf16.msra.mxu0 %v4696
      %4706 = vmatprep.subr.bf16.mxu0 %v4699
      %4707 = vmatpush1.bf16.msra.mxu0 %v4698
      %4708 = vmatprep.subr.bf16.mxu0 %v4701
      %4709 = vmatpush1.bf16.msra.mxu0 %v4700
      %4710 = vmatprep.subr.bf16.mxu0 0
      %4711 = vmatpush1.bf16.msra.mxu0 0
      %4712 = vmatprep.subr.bf16.mxu0 0
      %4713 = vmatpush1.bf16.msra.mxu0 0
      %4714 = vmatprep.subr.bf16.mxu0 0
      %4715 = vmatpush1.bf16.msra.mxu0 0
      %4716 = vmatprep.subr.bf16.mxu0 0
      %4717 = vmatpush1.bf16.msra.mxu0 0
      %4718 = vmatprep.subr.bf16.mxu0 0
      %4719 = vmatpush1.bf16.msra.mxu0 0
      %4720 = vmatprep.subr.bf16.mxu0 0
      %4721 = vmatpush1.bf16.msra.mxu0 0
      %4722 = vmatprep.subr.bf16.mxu0 0
      %4723 = vmatpush1.bf16.msra.mxu0 0
      %4724 = vmatprep.subr.bf16.mxu0 0
      %4725 = vmatpush1.bf16.msra.mxu0 0
      %4726 = vmatprep.subr.bf16.mxu0 0
      %4727 = vmatpush1.bf16.msra.mxu0 0
      %4728 = vmatprep.subr.bf16.mxu0 0
      %4729 = vmatpush1.bf16.msra.mxu0 0
      %4730 = vmatprep.subr.bf16.mxu0 0
      %4731 = vmatpush1.bf16.msra.mxu0 0
      %4732 = vmatprep.subr.bf16.mxu0 0
      %4733 = vmatpush1.bf16.msra.mxu0 0
      %4734 = vmatprep.mubr.bf16.mxu0 0
      %4735 = vmatmul.mubr.bf16.gmra.mrb[0].mxu0 %v690
      %v4736 = vpop.f32.mrb[0].mxu0
      %v4737 = vadd.f32 0.0, %v4736
      %v4738 = vpop.f32.mrb[0].mxu0
      %v4739 = vadd.f32 0.0, %v4738
      %v4740 = vpop.f32.mrb[0].mxu0
      %v4741 = vadd.f32 0.0, %v4740
      %v4742 = vpop.f32.mrb[0].mxu0
      %v4743 = vadd.f32 0.0, %v4742
      %4744 = vmatprep.mubr.bf16.mxu0 0
      %4745 = vmatmul.mubr.bf16.gmra.mrb[0].mxu0 %v693
      %v4746 = vpop.f32.mrb[0].mxu0
      %v4747 = vadd.f32 0.0, %v4746
      %v4748 = vpop.f32.mrb[0].mxu0
      %v4749 = vadd.f32 0.0, %v4748
      %v4750 = vpop.f32.mrb[0].mxu0
      %v4751 = vadd.f32 0.0, %v4750
      %v4752 = vpop.f32.mrb[0].mxu0
      %v4753 = vadd.f32 0.0, %v4752
      %4754 = vmatprep.mubr.bf16.mxu0 0
      %4755 = vmatmul.mubr.bf16.gmra.mrb[0].mxu0 %v696
      %v4756 = vpop.f32.mrb[0].mxu0
      %v4757 = vadd.f32 0.0, %v4756
      %v4758 = vpop.f32.mrb[0].mxu0
      %v4759 = vadd.f32 0.0, %v4758
      %v4760 = vpop.f32.mrb[0].mxu0
      %v4761 = vadd.f32 0.0, %v4760
      %v4762 = vpop.f32.mrb[0].mxu0
      %v4763 = vadd.f32 0.0, %v4762
      %4764 = vmatprep.mubr.bf16.mxu0 0
      %4765 = vmatmul.mubr.bf16.gmra.mrb[0].mxu0 %v699
      %v4766 = vpop.f32.mrb[0].mxu0
      %v4767 = vadd.f32 0.0, %v4766
      %v4768 = vpop.f32.mrb[0].mxu0
      %v4769 = vadd.f32 0.0, %v4768
      %v4770 = vpop.f32.mrb[0].mxu0
      %v4771 = vadd.f32 0.0, %v4770
      %v4772 = vpop.f32.mrb[0].mxu0
      %v4773 = vadd.f32 0.0, %v4772
      %4774 = vmatprep.mubr.bf16.mxu0 0
      %4775 = vmatmul.mubr.bf16.gmra.mrb[0].mxu0 %v702
      %v4776 = vpop.f32.mrb[0].mxu0
      %v4777 = vadd.f32 0.0, %v4776
      %v4778 = vpop.f32.mrb[0].mxu0
      %v4779 = vadd.f32 0.0, %v4778
      %v4780 = vpop.f32.mrb[0].mxu0
      %v4781 = vadd.f32 0.0, %v4780
      %v4782 = vpop.f32.mrb[0].mxu0
      %v4783 = vadd.f32 0.0, %v4782
      %4784 = vdwg.mxu0
      %4785 = vrot.lane.b32.xlu0 %v4741, 1
      %v4786 = vpop.permute.xlu0 %4785
      %4787 = vrot.lane.b32.xlu0 %v4743, 1
      %v4788 = vpop.permute.xlu0 %4787
      %v4789 = vsel %vm791, %v4786, %v4788
      %v4790 = vsel %vm791, %v4788, %v4786
      %v4791 = vadd.f32 %v4737, %v4790
      %v4792 = vadd.f32 %v4739, %v4789
      %4793 = vrot.lane.b32.xlu0 %v4747, 2
      %v4794 = vpop.permute.xlu0 %4793
      %4795 = vrot.lane.b32.xlu0 %v4749, 2
      %v4796 = vpop.permute.xlu0 %4795
      %v4797 = vsel %vm800, %v4794, %v4796
      %v4798 = vsel %vm800, %v4796, %v4794
      %v4799 = vadd.f32 %v4791, %v4798
      %v4800 = vadd.f32 %v4792, %v4797
      %4801 = vrot.lane.b32.xlu0 %v4751, 3
      %v4802 = vpop.permute.xlu0 %4801
      %4803 = vrot.lane.b32.xlu0 %v4753, 3
      %v4804 = vpop.permute.xlu0 %4803
      %v4805 = vsel %vm809, %v4802, %v4804
      %v4806 = vsel %vm809, %v4804, %v4802
      %v4807 = vadd.f32 %v4799, %v4806
      %v4808 = vadd.f32 %v4800, %v4805
      %4809 = vrot.lane.b32.xlu0 %v4757, 4
      %v4810 = vpop.permute.xlu0 %4809
      %4811 = vrot.lane.b32.xlu0 %v4759, 4
      %v4812 = vpop.permute.xlu0 %4811
      %v4813 = vsel %vm818, %v4810, %v4812
      %v4814 = vsel %vm818, %v4812, %v4810
      %v4815 = vadd.f32 %v4807, %v4814
      %v4816 = vadd.f32 %v4808, %v4813
      %v4817 = vadd.f32 %v4815, %v4761
      %v4818 = vadd.f32 %v4816, %v4763
      %4819 = vrot.lane.b32.xlu0 %v4767, 16
      %v4820 = vpop.permute.xlu0 %4819
      %4821 = vrot.lane.b32.xlu0 %v4769, 16
      %v4822 = vpop.permute.xlu0 %4821
      %v4823 = vsel %vm829, %v4820, %v4822
      %v4824 = vsel %vm829, %v4822, %v4820
      %v4825 = vadd.f32 %v4817, %v4824
      %v4826 = vadd.f32 %v4818, %v4823
      %4827 = vrot.lane.b32.xlu0 %v4771, 32
      %v4828 = vpop.permute.xlu0 %4827
      %4829 = vrot.lane.b32.xlu0 %v4773, 32
      %v4830 = vpop.permute.xlu0 %4829
      %v4831 = vsel %vm838, %v4828, %v4830
      %v4832 = vsel %vm838, %v4830, %v4828
      %v4833 = vadd.f32 %v4825, %v4832
      %v4834 = vadd.f32 %v4826, %v4831
      %4835 = vrot.lane.b32.xlu0 %v4777, 48
      %v4836 = vpop.permute.xlu0 %4835
      %4837 = vrot.lane.b32.xlu0 %v4779, 48
      %v4838 = vpop.permute.xlu0 %4837
      %v4839 = vsel %vm847, %v4836, %v4838
      %v4840 = vsel %vm847, %v4838, %v4836
      %v4841 = vadd.f32 %v4833, %v4840
      %v4842 = vadd.f32 %v4834, %v4839
      %4843 = vrot.lane.b32.xlu0 %v4781, 64
      %v4844 = vpop.permute.xlu0 %4843
      %4845 = vrot.lane.b32.xlu0 %v4783, 64
      %v4846 = vpop.permute.xlu0 %4845
      %v4847 = vsel %vm437, %v4844, %v4846
      %v4848 = vsel %vm437, %v4846, %v4844
      %v4849 = vadd.f32 %v4841, %v4848
      %v4850 = vadd.f32 %v4842, %v4847
      %v4851 = vadd.f32 %v4849, %v863
      %v4852 = vadd.f32 %v4850, %v863
      %s4853 = scalar_lea.vmem %s6, 160
      %v4854 = vld [vmem:[%s4853] sm:$0xf]
      %v4855 = vld [vmem:[%s4853 + $0x4] sm:$0xf]
      %v4856 = vld [vmem:[%s4853 + $0x8] sm:$0xf]
      %v4857 = vld [vmem:[%s4853 + $0xc] sm:$0xf]
      %v4858 = vld [vmem:[%s4853 + $0x10] sm:$0xf]
      %v4859 = vld [vmem:[%s4853 + $0x14] sm:$0xf]
      %v4860 = vld [vmem:[%s4853 + $0x18] sm:$0xf]
      %v4861 = vld [vmem:[%s4853 + $0x1c] sm:$0xf]
      %s4862 = scalar_lea.vmem %s7, 320
      %v4863 = vld [vmem:[%s4862] sm:$0xff]
      %v4864 = vld [vmem:[%s4862 + $0x8] sm:$0xff]
      %v4865 = vld [vmem:[%s4862 + $0x10] sm:$0xff]
      %v4866 = vld [vmem:[%s4862 + $0x18] sm:$0xff]
      %v4867 = vld [vmem:[%s4862 + $0x20] sm:$0xff]
      %v4868 = vld [vmem:[%s4862 + $0x28] sm:$0xff]
      %v4869 = vld [vmem:[%s4862 + $0x30] sm:$0xff]
      %v4870 = vld [vmem:[%s4862 + $0x38] sm:$0xff]
      %4871 = vrot.lane.b32.xlu0 %v4851, 127
      %v4872 = vpop.permute.xlu0 %4871
      %4873 = vrot.lane.b32.xlu0 %v4852, 127
      %v4874 = vpop.permute.xlu0 %4873
      %v4875 = vsel %vm388, %v4872, %v4874
      %v4876 = vsel %vm388, %v4874, %v4872
      %4877 = vrot.lane.b32.xlu0 %v4851, 126
      %v4878 = vpop.permute.xlu0 %4877
      %4879 = vrot.lane.b32.xlu0 %v4852, 126
      %v4880 = vpop.permute.xlu0 %4879
      %v4881 = vsel %vm395, %v4878, %v4880
      %v4882 = vsel %vm395, %v4880, %v4878
      %4883 = vrot.lane.b32.xlu0 %v4851, 125
      %v4884 = vpop.permute.xlu0 %4883
      %4885 = vrot.lane.b32.xlu0 %v4852, 125
      %v4886 = vpop.permute.xlu0 %4885
      %v4887 = vsel %vm402, %v4884, %v4886
      %v4888 = vsel %vm402, %v4886, %v4884
      %4889 = vrot.lane.b32.xlu0 %v4851, 124
      %v4890 = vpop.permute.xlu0 %4889
      %4891 = vrot.lane.b32.xlu0 %v4852, 124
      %v4892 = vpop.permute.xlu0 %4891
      %v4893 = vsel %vm409, %v4890, %v4892
      %v4894 = vsel %vm409, %v4892, %v4890
      %4895 = vrot.lane.b32.xlu0 %v4851, 112
      %v4896 = vpop.permute.xlu0 %4895
      %4897 = vrot.lane.b32.xlu0 %v4852, 112
      %v4898 = vpop.permute.xlu0 %4897
      %v4899 = vsel %vm416, %v4896, %v4898
      %v4900 = vsel %vm416, %v4898, %v4896
      %4901 = vrot.lane.b32.xlu0 %v4851, 96
      %v4902 = vpop.permute.xlu0 %4901
      %4903 = vrot.lane.b32.xlu0 %v4852, 96
      %v4904 = vpop.permute.xlu0 %4903
      %v4905 = vsel %vm423, %v4902, %v4904
      %v4906 = vsel %vm423, %v4904, %v4902
      %4907 = vrot.lane.b32.xlu0 %v4851, 80
      %v4908 = vpop.permute.xlu0 %4907
      %4909 = vrot.lane.b32.xlu0 %v4852, 80
      %v4910 = vpop.permute.xlu0 %4909
      %v4911 = vsel %vm430, %v4908, %v4910
      %v4912 = vsel %vm430, %v4910, %v4908
      %4913 = vrot.lane.b32.xlu0 %v4851, 64
      %v4914 = vpop.permute.xlu0 %4913
      %4915 = vrot.lane.b32.xlu0 %v4852, 64
      %v4916 = vpop.permute.xlu0 %4915
      %v4917 = vsel %vm437, %v4914, %v4916
      %v4918 = vsel %vm437, %v4916, %v4914
      %v4919 = vpack.c.bf16 %v4875, %v4851
      %v4920 = vpack.c.bf16 %v4876, %v4852
      %v4921 = vpack.c.bf16 %v4887, %v4881
      %v4922 = vpack.c.bf16 %v4888, %v4882
      %v4923 = vpack.c.bf16 %v4851, %v4893
      %v4924 = vpack.c.bf16 %v4852, %v4894
      %v4925 = vpack.c.bf16 %v4905, %v4899
      %v4926 = vpack.c.bf16 %v4906, %v4900
      %v4927 = vpack.c.bf16 %v4917, %v4911
      %v4928 = vpack.c.bf16 %v4918, %v4912
      %4930 = vset.pattern.permute.xlu0 0
      %4931 = vperm.xlu0 %4930, %v4863
      %v4932 = vpop.permute.xlu0 %4931
      %4935 = vset.pattern.permute.xlu0 0
      %4936 = vperm.xlu0 %4935, %v4864
      %v4937 = vpop.permute.xlu0 %4936
      %4940 = vset.pattern.permute.xlu0 0
      %4941 = vperm.xlu0 %4940, %v4865
      %v4942 = vpop.permute.xlu0 %4941
      %4945 = vset.pattern.permute.xlu0 0
      %4946 = vperm.xlu0 %4945, %v4866
      %v4947 = vpop.permute.xlu0 %4946
      %4950 = vset.pattern.permute.xlu0 0
      %4951 = vperm.xlu0 %4950, %v4867
      %v4952 = vpop.permute.xlu0 %4951
      %4955 = vset.pattern.permute.xlu0 0
      %4956 = vperm.xlu0 %4955, %v4868
      %v4957 = vpop.permute.xlu0 %4956
      %4960 = vset.pattern.permute.xlu0 0
      %4961 = vperm.xlu0 %4960, %v4869
      %v4962 = vpop.permute.xlu0 %4961
      %4965 = vset.pattern.permute.xlu0 0
      %4966 = vperm.xlu0 %4965, %v4870
      %v4967 = vpop.permute.xlu0 %4966
      %v4977 = vunpack.c.l.b16 %v4854
      %v4978 = vunpack.c.l.b16 %v4855
      %v4979 = vunpack.c.l.b16 %v4856
      %v4980 = vunpack.c.l.b16 %v4857
      %v4981 = vunpack.c.l.b16 %v4858
      %v4982 = vunpack.c.l.b16 %v4859
      %v4983 = vunpack.c.l.b16 %v4860
      %v4984 = vunpack.c.l.b16 %v4861
      %v4985 = vpack.c.b16 %v4978, %v4977
      %v4986 = vpack.c.b16 %v4980, %v4979
      %v4987 = vpack.c.b16 %v4982, %v4981
      %v4988 = vpack.c.b16 %v4984, %v4983
      %v4990 = vsel %vm510, %v4985, 0
      %v4993 = vsel %vm510, %v4986, 0
      %v4996 = vsel %vm510, %v4987, 0
      %v4999 = vsel %vm510, %v4988, 0
      %5001 = vmatprep.subr.bf16.mxu0 %v4920
      %5002 = vmatpush1.bf16.msra.mxu0 %v4919
      %5003 = vmatprep.subr.bf16.mxu0 %v4922
      %5004 = vmatpush1.bf16.msra.mxu0 %v4921
      %5005 = vmatprep.subr.bf16.mxu0 %v4924
      %5006 = vmatpush1.bf16.msra.mxu0 %v4923
      %5007 = vmatprep.subr.bf16.mxu0 %v4926
      %5008 = vmatpush1.bf16.msra.mxu0 %v4925
      %5009 = vmatprep.subr.bf16.mxu0 %v4928
      %5010 = vmatpush1.bf16.msra.mxu0 %v4927
      %5011 = vmatprep.subr.bf16.mxu0 0
      %5012 = vmatpush1.bf16.msra.mxu0 0
      %5013 = vmatprep.subr.bf16.mxu0 0
      %5014 = vmatpush1.bf16.msra.mxu0 0
      %5015 = vmatprep.subr.bf16.mxu0 0
      %5016 = vmatpush1.bf16.msra.mxu0 0
      %5017 = vmatprep.subr.bf16.mxu0 0
      %5018 = vmatpush1.bf16.msra.mxu0 0
      %5019 = vmatprep.subr.bf16.mxu0 0
      %5020 = vmatpush1.bf16.msra.mxu0 0
      %5021 = vmatprep.subr.bf16.mxu0 0
      %5022 = vmatpush1.bf16.msra.mxu0 0
      %5023 = vmatprep.subr.bf16.mxu0 0
      %5024 = vmatpush1.bf16.msra.mxu0 0
      %5025 = vmatprep.subr.bf16.mxu0 0
      %5026 = vmatpush1.bf16.msra.mxu0 0
      %5027 = vmatprep.subr.bf16.mxu0 0
      %5028 = vmatpush1.bf16.msra.mxu0 0
      %5029 = vmatprep.subr.bf16.mxu0 0
      %5030 = vmatpush1.bf16.msra.mxu0 0
      %5031 = vmatprep.subr.bf16.mxu0 0
      %5032 = vmatpush1.bf16.msra.mxu0 0
      %5033 = vmatprep.mubr.bf16.mxu0 0
      %5034 = vmatmul.mubr.bf16.gmra.mrb[0].mxu0 %v4990
      %v5035 = vpop.f32.mrb[0].mxu0
      %v5036 = vadd.f32 %v4932, %v5035
      %v5037 = vpop.f32.mrb[0].mxu0
      %v5038 = vadd.f32 %v4932, %v5037
      %v5039 = vpop.f32.mrb[0].mxu0
      %v5040 = vadd.f32 %v4937, %v5039
      %v5041 = vpop.f32.mrb[0].mxu0
      %v5042 = vadd.f32 %v4937, %v5041
      %5043 = vmatprep.mubr.bf16.mxu0 0
      %5044 = vmatmul.mubr.bf16.gmra.mrb[0].mxu0 %v4993
      %v5045 = vpop.f32.mrb[0].mxu0
      %v5046 = vadd.f32 %v4942, %v5045
      %v5047 = vpop.f32.mrb[0].mxu0
      %v5048 = vadd.f32 %v4942, %v5047
      %v5049 = vpop.f32.mrb[0].mxu0
      %v5050 = vadd.f32 %v4947, %v5049
      %v5051 = vpop.f32.mrb[0].mxu0
      %v5052 = vadd.f32 %v4947, %v5051
      %5053 = vmatprep.mubr.bf16.mxu0 0
      %5054 = vmatmul.mubr.bf16.gmra.mrb[0].mxu0 %v4996
      %v5055 = vpop.f32.mrb[0].mxu0
      %v5056 = vadd.f32 %v4952, %v5055
      %v5057 = vpop.f32.mrb[0].mxu0
      %v5058 = vadd.f32 %v4952, %v5057
      %v5059 = vpop.f32.mrb[0].mxu0
      %v5060 = vadd.f32 %v4957, %v5059
      %v5061 = vpop.f32.mrb[0].mxu0
      %v5062 = vadd.f32 %v4957, %v5061
      %5063 = vmatprep.mubr.bf16.mxu0 0
      %5064 = vmatmul.mubr.bf16.gmra.mrb[0].mxu0 %v4999
      %v5065 = vpop.f32.mrb[0].mxu0
      %v5066 = vadd.f32 %v4962, %v5065
      %v5067 = vpop.f32.mrb[0].mxu0
      %v5068 = vadd.f32 %v4962, %v5067
      %v5069 = vpop.f32.mrb[0].mxu0
      %v5070 = vadd.f32 %v4967, %v5069
      %v5071 = vpop.f32.mrb[0].mxu0
      %v5072 = vadd.f32 %v4967, %v5071
      %5073 = vdwg.mxu0
      %v5074 = vmax.f32 %v5036, 0.0
      %v5075 = vmax.f32 %v5038, 0.0
      %v5076 = vmax.f32 %v5040, 0.0
      %v5077 = vmax.f32 %v5042, 0.0
      %v5078 = vmax.f32 %v5046, 0.0
      %v5079 = vmax.f32 %v5048, 0.0
      %v5080 = vmax.f32 %v5050, 0.0
      %v5081 = vmax.f32 %v5052, 0.0
      %v5082 = vmax.f32 %v5056, 0.0
      %v5083 = vmax.f32 %v5058, 0.0
      %v5084 = vmax.f32 %v5060, 0.0
      %v5085 = vmax.f32 %v5062, 0.0
      %v5086 = vmax.f32 %v5066, 0.0
      %v5087 = vmax.f32 %v5068, 0.0
      %v5088 = vmax.f32 %v5070, 0.0
      %v5089 = vmax.f32 %v5072, 0.0
      %v5090 = vmul.f32 %v5074, %v612
      %v5091 = vmul.f32 %v5075, %v613
      %v5092 = vmul.f32 %v5076, %v614
      %v5093 = vmul.f32 %v5077, %v615
      %v5094 = vmul.f32 %v5078, %v616
      %v5095 = vmul.f32 %v5079, %v617
      %v5096 = vmul.f32 %v5080, %v618
      %v5097 = vmul.f32 %v5081, %v619
      %v5098 = vmul.f32 %v5082, %v620
      %v5099 = vmul.f32 %v5083, %v621
      %v5100 = vmul.f32 %v5084, %v622
      %v5101 = vmul.f32 %v5085, %v623
      %v5102 = vmul.f32 %v5086, %v624
      %v5103 = vmul.f32 %v5087, %v625
      %v5104 = vmul.f32 %v5088, %v626
      %v5105 = vmul.f32 %v5089, %v627
      %v5106 = vpack.c.bf16 %v5092, %v5090
      %v5107 = vpack.c.bf16 %v5093, %v5091
      %v5108 = vpack.c.bf16 %v5096, %v5094
      %v5109 = vpack.c.bf16 %v5097, %v5095
      %v5110 = vpack.c.bf16 %v5100, %v5098
      %v5111 = vpack.c.bf16 %v5101, %v5099
      %v5112 = vpack.c.bf16 %v5104, %v5102
      %v5113 = vpack.c.bf16 %v5105, %v5103
      %s5114 = scalar_lea.vmem %s8, 200
      %v5115 = vld [vmem:[%s5114] sm:$0xf]
      %v5116 = vld [vmem:[%s5114 + $0x4] sm:$0xf]
      %v5117 = vld [vmem:[%s5114 + $0x8] sm:$0xf]
      %v5118 = vld [vmem:[%s5114 + $0xc] sm:$0xf]
      %v5119 = vld [vmem:[%s5114 + $0x10] sm:$0xf]
      %v5120 = vld [vmem:[%s5114 + $0x14] sm:$0xf]
      %v5121 = vld [vmem:[%s5114 + $0x18] sm:$0xf]
      %v5122 = vld [vmem:[%s5114 + $0x1c] sm:$0xf]
      %v5123 = vld [vmem:[%s5114 + $0x20] sm:$0xf]
      %v5124 = vld [vmem:[%s5114 + $0x24] sm:$0xf]
      %s5125 = scalar_lea.vmem %s9, 40
      %v5126 = vld [vmem:[%s5125] sm:$0xff]
      %v5137 = vunpack.c.l.b16 %v5115
      %v5138 = vunpack.c.l.b16 %v5116
      %v5139 = vunpack.c.l.b16 %v5117
      %v5140 = vunpack.c.l.b16 %v5118
      %v5141 = vunpack.c.l.b16 %v5119
      %v5142 = vunpack.c.l.b16 %v5120
      %v5143 = vunpack.c.l.b16 %v5121
      %v5144 = vunpack.c.l.b16 %v5122
      %v5145 = vunpack.c.l.b16 %v5123
      %v5146 = vunpack.c.l.b16 %v5124
      %v5147 = vpack.c.b16 %v5138, %v5137
      %v5148 = vpack.c.b16 %v5140, %v5139
      %v5149 = vpack.c.b16 %v5142, %v5141
      %v5150 = vpack.c.b16 %v5144, %v5143
      %v5151 = vpack.c.b16 %v5146, %v5145
      %v5153 = vsel %vm688, %v5147, 0
      %v5156 = vsel %vm688, %v5148, 0
      %v5159 = vsel %vm688, %v5149, 0
      %v5162 = vsel %vm688, %v5150, 0
      %v5165 = vsel %vm688, %v5151, 0
      %5167 = vmatprep.subr.bf16.mxu0 %v5107
      %5168 = vmatpush1.bf16.msra.mxu0 %v5106
      %5169 = vmatprep.subr.bf16.mxu0 %v5109
      %5170 = vmatpush1.bf16.msra.mxu0 %v5108
      %5171 = vmatprep.subr.bf16.mxu0 %v5111
      %5172 = vmatpush1.bf16.msra.mxu0 %v5110
      %5173 = vmatprep.subr.bf16.mxu0 %v5113
      %5174 = vmatpush1.bf16.msra.mxu0 %v5112
      %5175 = vmatprep.subr.bf16.mxu0 0
      %5176 = vmatpush1.bf16.msra.mxu0 0
      %5177 = vmatprep.subr.bf16.mxu0 0
      %5178 = vmatpush1.bf16.msra.mxu0 0
      %5179 = vmatprep.subr.bf16.mxu0 0
      %5180 = vmatpush1.bf16.msra.mxu0 0
      %5181 = vmatprep.subr.bf16.mxu0 0
      %5182 = vmatpush1.bf16.msra.mxu0 0
      %5183 = vmatprep.subr.bf16.mxu0 0
      %5184 = vmatpush1.bf16.msra.mxu0 0
      %5185 = vmatprep.subr.bf16.mxu0 0
      %5186 = vmatpush1.bf16.msra.mxu0 0
      %5187 = vmatprep.subr.bf16.mxu0 0
      %5188 = vmatpush1.bf16.msra.mxu0 0
      %5189 = vmatprep.subr.bf16.mxu0 0
      %5190 = vmatpush1.bf16.msra.mxu0 0
      %5191 = vmatprep.subr.bf16.mxu0 0
      %5192 = vmatpush1.bf16.msra.mxu0 0
      %5193 = vmatprep.subr.bf16.mxu0 0
      %5194 = vmatpush1.bf16.msra.mxu0 0
      %5195 = vmatprep.subr.bf16.mxu0 0
      %5196 = vmatpush1.bf16.msra.mxu0 0
      %5197 = vmatprep.subr.bf16.mxu0 0
      %5198 = vmatpush1.bf16.msra.mxu0 0
      %5199 = vmatprep.mubr.bf16.mxu0 0
      %5200 = vmatmul.mubr.bf16.gmra.mrb[0].mxu0 %v5153
      %v5201 = vpop.f32.mrb[0].mxu0
      %v5202 = vadd.f32 0.0, %v5201
      %v5203 = vpop.f32.mrb[0].mxu0
      %v5204 = vadd.f32 0.0, %v5203
      %v5205 = vpop.f32.mrb[0].mxu0
      %v5206 = vadd.f32 0.0, %v5205
      %v5207 = vpop.f32.mrb[0].mxu0
      %v5208 = vadd.f32 0.0, %v5207
      %5209 = vmatprep.mubr.bf16.mxu0 0
      %5210 = vmatmul.mubr.bf16.gmra.mrb[0].mxu0 %v5156
      %v5211 = vpop.f32.mrb[0].mxu0
      %v5212 = vadd.f32 0.0, %v5211
      %v5213 = vpop.f32.mrb[0].mxu0
      %v5214 = vadd.f32 0.0, %v5213
      %v5215 = vpop.f32.mrb[0].mxu0
      %v5216 = vadd.f32 0.0, %v5215
      %v5217 = vpop.f32.mrb[0].mxu0
      %v5218 = vadd.f32 0.0, %v5217
      %5219 = vmatprep.mubr.bf16.mxu0 0
      %5220 = vmatmul.mubr.bf16.gmra.mrb[0].mxu0 %v5159
      %v5221 = vpop.f32.mrb[0].mxu0
      %v5222 = vadd.f32 0.0, %v5221
      %v5223 = vpop.f32.mrb[0].mxu0
      %v5224 = vadd.f32 0.0, %v5223
      %v5225 = vpop.f32.mrb[0].mxu0
      %v5226 = vadd.f32 0.0, %v5225
      %v5227 = vpop.f32.mrb[0].mxu0
      %v5228 = vadd.f32 0.0, %v5227
      %5229 = vmatprep.mubr.bf16.mxu0 0
      %5230 = vmatmul.mubr.bf16.gmra.mrb[0].mxu0 %v5162
      %v5231 = vpop.f32.mrb[0].mxu0
      %v5232 = vadd.f32 0.0, %v5231
      %v5233 = vpop.f32.mrb[0].mxu0
      %v5234 = vadd.f32 0.0, %v5233
      %v5235 = vpop.f32.mrb[0].mxu0
      %v5236 = vadd.f32 0.0, %v5235
      %v5237 = vpop.f32.mrb[0].mxu0
      %v5238 = vadd.f32 0.0, %v5237
      %5239 = vmatprep.mubr.bf16.mxu0 0
      %5240 = vmatmul.mubr.bf16.gmra.mrb[0].mxu0 %v5165
      %v5241 = vpop.f32.mrb[0].mxu0
      %v5242 = vadd.f32 0.0, %v5241
      %v5243 = vpop.f32.mrb[0].mxu0
      %v5244 = vadd.f32 0.0, %v5243
      %v5245 = vpop.f32.mrb[0].mxu0
      %v5246 = vadd.f32 0.0, %v5245
      %v5247 = vpop.f32.mrb[0].mxu0
      %v5248 = vadd.f32 0.0, %v5247
      %5249 = vdwg.mxu0
      %5250 = vrot.lane.b32.xlu0 %v5206, 1
      %v5251 = vpop.permute.xlu0 %5250
      %5252 = vrot.lane.b32.xlu0 %v5208, 1
      %v5253 = vpop.permute.xlu0 %5252
      %v5254 = vsel %vm791, %v5251, %v5253
      %v5255 = vsel %vm791, %v5253, %v5251
      %v5256 = vadd.f32 %v5202, %v5255
      %v5257 = vadd.f32 %v5204, %v5254
      %5258 = vrot.lane.b32.xlu0 %v5212, 2
      %v5259 = vpop.permute.xlu0 %5258
      %5260 = vrot.lane.b32.xlu0 %v5214, 2
      %v5261 = vpop.permute.xlu0 %5260
      %v5262 = vsel %vm800, %v5259, %v5261
      %v5263 = vsel %vm800, %v5261, %v5259
      %v5264 = vadd.f32 %v5256, %v5263
      %v5265 = vadd.f32 %v5257, %v5262
      %5266 = vrot.lane.b32.xlu0 %v5216, 3
      %v5267 = vpop.permute.xlu0 %5266
      %5268 = vrot.lane.b32.xlu0 %v5218, 3
      %v5269 = vpop.permute.xlu0 %5268
      %v5270 = vsel %vm809, %v5267, %v5269
      %v5271 = vsel %vm809, %v5269, %v5267
      %v5272 = vadd.f32 %v5264, %v5271
      %v5273 = vadd.f32 %v5265, %v5270
      %5274 = vrot.lane.b32.xlu0 %v5222, 4
      %v5275 = vpop.permute.xlu0 %5274
      %5276 = vrot.lane.b32.xlu0 %v5224, 4
      %v5277 = vpop.permute.xlu0 %5276
      %v5278 = vsel %vm818, %v5275, %v5277
      %v5279 = vsel %vm818, %v5277, %v5275
      %v5280 = vadd.f32 %v5272, %v5279
      %v5281 = vadd.f32 %v5273, %v5278
      %v5282 = vadd.f32 %v5280, %v5226
      %v5283 = vadd.f32 %v5281, %v5228
      %5284 = vrot.lane.b32.xlu0 %v5232, 16
      %v5285 = vpop.permute.xlu0 %5284
      %5286 = vrot.lane.b32.xlu0 %v5234, 16
      %v5287 = vpop.permute.xlu0 %5286
      %v5288 = vsel %vm829, %v5285, %v5287
      %v5289 = vsel %vm829, %v5287, %v5285
      %v5290 = vadd.f32 %v5282, %v5289
      %v5291 = vadd.f32 %v5283, %v5288
      %5292 = vrot.lane.b32.xlu0 %v5236, 32
      %v5293 = vpop.permute.xlu0 %5292
      %5294 = vrot.lane.b32.xlu0 %v5238, 32
      %v5295 = vpop.permute.xlu0 %5294
      %v5296 = vsel %vm838, %v5293, %v5295
      %v5297 = vsel %vm838, %v5295, %v5293
      %v5298 = vadd.f32 %v5290, %v5297
      %v5299 = vadd.f32 %v5291, %v5296
      %5300 = vrot.lane.b32.xlu0 %v5242, 48
      %v5301 = vpop.permute.xlu0 %5300
      %5302 = vrot.lane.b32.xlu0 %v5244, 48
      %v5303 = vpop.permute.xlu0 %5302
      %v5304 = vsel %vm847, %v5301, %v5303
      %v5305 = vsel %vm847, %v5303, %v5301
      %v5306 = vadd.f32 %v5298, %v5305
      %v5307 = vadd.f32 %v5299, %v5304
      %5308 = vrot.lane.b32.xlu0 %v5246, 64
      %v5309 = vpop.permute.xlu0 %5308
      %5310 = vrot.lane.b32.xlu0 %v5248, 64
      %v5311 = vpop.permute.xlu0 %5310
      %v5312 = vsel %vm437, %v5309, %v5311
      %v5313 = vsel %vm437, %v5311, %v5309
      %v5314 = vadd.f32 %v5306, %v5313
      %v5315 = vadd.f32 %v5307, %v5312
      %5317 = vset.pattern.permute.xlu0 0
      %5318 = vperm.xlu0 %5317, %v5126
      %v5319 = vpop.permute.xlu0 %5318
      %v5321 = vadd.f32 %v5314, %v5319
      %v5322 = vadd.f32 %v5315, %v5319
      %v5323 = vmax.f32 %v5321, 0.0
      %v5324 = vmax.f32 %v5322, 0.0
      %v5325 = vadd.f32 %v4529, %v5323
      %v5326 = vadd.f32 %v4530, %v5324
      %v5327 = vmax.f32 %v5325, 0.0
      %v5328 = vmax.f32 %v5326, 0.0
      %5329 = vrot.lane.b32.xlu0 %v5327, 127
      %v5330 = vpop.permute.xlu0 %5329
      %5331 = vrot.lane.b32.xlu0 %v5328, 127
      %v5332 = vpop.permute.xlu0 %5331
      %v5333 = vsel %vm388, %v5330, %v5332
      %v5334 = vsel %vm388, %v5332, %v5330
      %5335 = vrot.lane.b32.xlu0 %v5327, 126
      %v5336 = vpop.permute.xlu0 %5335
      %5337 = vrot.lane.b32.xlu0 %v5328, 126
      %v5338 = vpop.permute.xlu0 %5337
      %v5339 = vsel %vm395, %v5336, %v5338
      %v5340 = vsel %vm395, %v5338, %v5336
      %5341 = vrot.lane.b32.xlu0 %v5327, 125
      %v5342 = vpop.permute.xlu0 %5341
      %5343 = vrot.lane.b32.xlu0 %v5328, 125
      %v5344 = vpop.permute.xlu0 %5343
      %v5345 = vsel %vm402, %v5342, %v5344
      %v5346 = vsel %vm402, %v5344, %v5342
      %5347 = vrot.lane.b32.xlu0 %v5327, 124
      %v5348 = vpop.permute.xlu0 %5347
      %5349 = vrot.lane.b32.xlu0 %v5328, 124
      %v5350 = vpop.permute.xlu0 %5349
      %v5351 = vsel %vm409, %v5348, %v5350
      %v5352 = vsel %vm409, %v5350, %v5348
      %5353 = vrot.lane.b32.xlu0 %v5327, 112
      %v5354 = vpop.permute.xlu0 %5353
      %5355 = vrot.lane.b32.xlu0 %v5328, 112
      %v5356 = vpop.permute.xlu0 %5355
      %v5357 = vsel %vm416, %v5354, %v5356
      %v5358 = vsel %vm416, %v5356, %v5354
      %5359 = vrot.lane.b32.xlu0 %v5327, 96
      %v5360 = vpop.permute.xlu0 %5359
      %5361 = vrot.lane.b32.xlu0 %v5328, 96
      %v5362 = vpop.permute.xlu0 %5361
      %v5363 = vsel %vm423, %v5360, %v5362
      %v5364 = vsel %vm423, %v5362, %v5360
      %5365 = vrot.lane.b32.xlu0 %v5327, 80
      %v5366 = vpop.permute.xlu0 %5365
      %5367 = vrot.lane.b32.xlu0 %v5328, 80
      %v5368 = vpop.permute.xlu0 %5367
      %v5369 = vsel %vm430, %v5366, %v5368
      %v5370 = vsel %vm430, %v5368, %v5366
      %5371 = vrot.lane.b32.xlu0 %v5327, 64
      %v5372 = vpop.permute.xlu0 %5371
      %5373 = vrot.lane.b32.xlu0 %v5328, 64
      %v5374 = vpop.permute.xlu0 %5373
      %v5375 = vsel %vm437, %v5372, %v5374
      %v5376 = vsel %vm437, %v5374, %v5372
      %v5377 = vpack.c.bf16 %v5333, %v5327
      %v5378 = vpack.c.bf16 %v5334, %v5328
      %v5379 = vpack.c.bf16 %v5345, %v5339
      %v5380 = vpack.c.bf16 %v5346, %v5340
      %v5381 = vpack.c.bf16 %v5327, %v5351
      %v5382 = vpack.c.bf16 %v5328, %v5352
      %v5383 = vpack.c.bf16 %v5363, %v5357
      %v5384 = vpack.c.bf16 %v5364, %v5358
      %v5385 = vpack.c.bf16 %v5375, %v5369
      %v5386 = vpack.c.bf16 %v5376, %v5370
      %5387 = vmatprep.subr.bf16.mxu0 %v5378
      %5388 = vmatpush1.bf16.msra.mxu0 %v5377
      %5389 = vmatprep.subr.bf16.mxu0 %v5380
      %5390 = vmatpush1.bf16.msra.mxu0 %v5379
      %5391 = vmatprep.subr.bf16.mxu0 %v5382
      %5392 = vmatpush1.bf16.msra.mxu0 %v5381
      %5393 = vmatprep.subr.bf16.mxu0 %v5384
      %5394 = vmatpush1.bf16.msra.mxu0 %v5383
      %5395 = vmatprep.subr.bf16.mxu0 %v5386
      %5396 = vmatpush1.bf16.msra.mxu0 %v5385
      %5397 = vmatprep.subr.bf16.mxu0 0
      %5398 = vmatpush1.bf16.msra.mxu0 0
      %5399 = vmatprep.subr.bf16.mxu0 0
      %5400 = vmatpush1.bf16.msra.mxu0 0
      %5401 = vmatprep.subr.bf16.mxu0 0
      %5402 = vmatpush1.bf16.msra.mxu0 0
      %5403 = vmatprep.subr.bf16.mxu0 0
      %5404 = vmatpush1.bf16.msra.mxu0 0
      %5405 = vmatprep.subr.bf16.mxu0 0
      %5406 = vmatpush1.bf16.msra.mxu0 0
      %5407 = vmatprep.subr.bf16.mxu0 0
      %5408 = vmatpush1.bf16.msra.mxu0 0
      %5409 = vmatprep.subr.bf16.mxu0 0
      %5410 = vmatpush1.bf16.msra.mxu0 0
      %5411 = vmatprep.subr.bf16.mxu0 0
      %5412 = vmatpush1.bf16.msra.mxu0 0
      %5413 = vmatprep.subr.bf16.mxu0 0
      %5414 = vmatpush1.bf16.msra.mxu0 0
      %5415 = vmatprep.subr.bf16.mxu0 0
      %5416 = vmatpush1.bf16.msra.mxu0 0
      %5417 = vmatprep.subr.bf16.mxu0 0
      %5418 = vmatpush1.bf16.msra.mxu0 0
      %5419 = vmatprep.mubr.bf16.mxu0 0
      %5420 = vmatmul.mubr.bf16.gmra.mrb[0].mxu0 %v512
      %v5421 = vpop.f32.mrb[0].mxu0
      %v5422 = vadd.f32 %v453, %v5421
      %v5423 = vpop.f32.mrb[0].mxu0
      %v5424 = vadd.f32 %v453, %v5423
      %v5425 = vpop.f32.mrb[0].mxu0
      %v5426 = vadd.f32 %v458, %v5425
      %v5427 = vpop.f32.mrb[0].mxu0
      %v5428 = vadd.f32 %v458, %v5427
      %5429 = vmatprep.mubr.bf16.mxu0 0
      %5430 = vmatmul.mubr.bf16.gmra.mrb[0].mxu0 %v515
      %v5431 = vpop.f32.mrb[0].mxu0
      %v5432 = vadd.f32 %v463, %v5431
      %v5433 = vpop.f32.mrb[0].mxu0
      %v5434 = vadd.f32 %v463, %v5433
      %v5435 = vpop.f32.mrb[0].mxu0
      %v5436 = vadd.f32 %v468, %v5435
      %v5437 = vpop.f32.mrb[0].mxu0
      %v5438 = vadd.f32 %v468, %v5437
      %5439 = vmatprep.mubr.bf16.mxu0 0
      %5440 = vmatmul.mubr.bf16.gmra.mrb[0].mxu0 %v518
      %v5441 = vpop.f32.mrb[0].mxu0
      %v5442 = vadd.f32 %v473, %v5441
      %v5443 = vpop.f32.mrb[0].mxu0
      %v5444 = vadd.f32 %v473, %v5443
      %v5445 = vpop.f32.mrb[0].mxu0
      %v5446 = vadd.f32 %v478, %v5445
      %v5447 = vpop.f32.mrb[0].mxu0
      %v5448 = vadd.f32 %v478, %v5447
      %5449 = vmatprep.mubr.bf16.mxu0 0
      %5450 = vmatmul.mubr.bf16.gmra.mrb[0].mxu0 %v521
      %v5451 = vpop.f32.mrb[0].mxu0
      %v5452 = vadd.f32 %v483, %v5451
      %v5453 = vpop.f32.mrb[0].mxu0
      %v5454 = vadd.f32 %v483, %v5453
      %v5455 = vpop.f32.mrb[0].mxu0
      %v5456 = vadd.f32 %v488, %v5455
      %v5457 = vpop.f32.mrb[0].mxu0
      %v5458 = vadd.f32 %v488, %v5457
      %5459 = vdwg.mxu0
      %v5460 = vmax.f32 %v5422, 0.0
      %v5461 = vmax.f32 %v5424, 0.0
      %v5462 = vmax.f32 %v5426, 0.0
      %v5463 = vmax.f32 %v5428, 0.0
      %v5464 = vmax.f32 %v5432, 0.0
      %v5465 = vmax.f32 %v5434, 0.0
      %v5466 = vmax.f32 %v5436, 0.0
      %v5467 = vmax.f32 %v5438, 0.0
      %v5468 = vmax.f32 %v5442, 0.0
      %v5469 = vmax.f32 %v5444, 0.0
      %v5470 = vmax.f32 %v5446, 0.0
      %v5471 = vmax.f32 %v5448, 0.0
      %v5472 = vmax.f32 %v5452, 0.0
      %v5473 = vmax.f32 %v5454, 0.0
      %v5474 = vmax.f32 %v5456, 0.0
      %v5475 = vmax.f32 %v5458, 0.0
      %v5476 = vmul.f32 %v5460, %v612
      %v5477 = vmul.f32 %v5461, %v613
      %v5478 = vmul.f32 %v5462, %v614
      %v5479 = vmul.f32 %v5463, %v615
      %v5480 = vmul.f32 %v5464, %v616
      %v5481 = vmul.f32 %v5465, %v617
      %v5482 = vmul.f32 %v5466, %v618
      %v5483 = vmul.f32 %v5467, %v619
      %v5484 = vmul.f32 %v5468, %v620
      %v5485 = vmul.f32 %v5469, %v621
      %v5486 = vmul.f32 %v5470, %v622
      %v5487 = vmul.f32 %v5471, %v623
      %v5488 = vmul.f32 %v5472, %v624
      %v5489 = vmul.f32 %v5473, %v625
      %v5490 = vmul.f32 %v5474, %v626
      %v5491 = vmul.f32 %v5475, %v627
      %v5492 = vpack.c.bf16 %v5478, %v5476
      %v5493 = vpack.c.bf16 %v5479, %v5477
      %v5494 = vpack.c.bf16 %v5482, %v5480
      %v5495 = vpack.c.bf16 %v5483, %v5481
      %v5496 = vpack.c.bf16 %v5486, %v5484
      %v5497 = vpack.c.bf16 %v5487, %v5485
      %v5498 = vpack.c.bf16 %v5490, %v5488
      %v5499 = vpack.c.bf16 %v5491, %v5489
      %5500 = vmatprep.subr.bf16.mxu0 %v5493
      %5501 = vmatpush1.bf16.msra.mxu0 %v5492
      %5502 = vmatprep.subr.bf16.mxu0 %v5495
      %5503 = vmatpush1.bf16.msra.mxu0 %v5494
      %5504 = vmatprep.subr.bf16.mxu0 %v5497
      %5505 = vmatpush1.bf16.msra.mxu0 %v5496
      %5506 = vmatprep.subr.bf16.mxu0 %v5499
      %5507 = vmatpush1.bf16.msra.mxu0 %v5498
      %5508 = vmatprep.subr.bf16.mxu0 0
      %5509 = vmatpush1.bf16.msra.mxu0 0
      %5510 = vmatprep.subr.bf16.mxu0 0
      %5511 = vmatpush1.bf16.msra.mxu0 0
      %5512 = vmatprep.subr.bf16.mxu0 0
      %5513 = vmatpush1.bf16.msra.mxu0 0
      %5514 = vmatprep.subr.bf16.mxu0 0
      %5515 = vmatpush1.bf16.msra.mxu0 0
      %5516 = vmatprep.subr.bf16.mxu0 0
      %5517 = vmatpush1.bf16.msra.mxu0 0
      %5518 = vmatprep.subr.bf16.mxu0 0
      %5519 = vmatpush1.bf16.msra.mxu0 0
      %5520 = vmatprep.subr.bf16.mxu0 0
      %5521 = vmatpush1.bf16.msra.mxu0 0
      %5522 = vmatprep.subr.bf16.mxu0 0
      %5523 = vmatpush1.bf16.msra.mxu0 0
      %5524 = vmatprep.subr.bf16.mxu0 0
      %5525 = vmatpush1.bf16.msra.mxu0 0
      %5526 = vmatprep.subr.bf16.mxu0 0
      %5527 = vmatpush1.bf16.msra.mxu0 0
      %5528 = vmatprep.subr.bf16.mxu0 0
      %5529 = vmatpush1.bf16.msra.mxu0 0
      %5530 = vmatprep.subr.bf16.mxu0 0
      %5531 = vmatpush1.bf16.msra.mxu0 0
      %5532 = vmatprep.mubr.bf16.mxu0 0
      %5533 = vmatmul.mubr.bf16.gmra.mrb[0].mxu0 %v690
      %v5534 = vpop.f32.mrb[0].mxu0
      %v5535 = vadd.f32 0.0, %v5534
      %v5536 = vpop.f32.mrb[0].mxu0
      %v5537 = vadd.f32 0.0, %v5536
      %v5538 = vpop.f32.mrb[0].mxu0
      %v5539 = vadd.f32 0.0, %v5538
      %v5540 = vpop.f32.mrb[0].mxu0
      %v5541 = vadd.f32 0.0, %v5540
      %5542 = vmatprep.mubr.bf16.mxu0 0
      %5543 = vmatmul.mubr.bf16.gmra.mrb[0].mxu0 %v693
      %v5544 = vpop.f32.mrb[0].mxu0
      %v5545 = vadd.f32 0.0, %v5544
      %v5546 = vpop.f32.mrb[0].mxu0
      %v5547 = vadd.f32 0.0, %v5546
      %v5548 = vpop.f32.mrb[0].mxu0
      %v5549 = vadd.f32 0.0, %v5548
      %v5550 = vpop.f32.mrb[0].mxu0
      %v5551 = vadd.f32 0.0, %v5550
      %5552 = vmatprep.mubr.bf16.mxu0 0
      %5553 = vmatmul.mubr.bf16.gmra.mrb[0].mxu0 %v696
      %v5554 = vpop.f32.mrb[0].mxu0
      %v5555 = vadd.f32 0.0, %v5554
      %v5556 = vpop.f32.mrb[0].mxu0
      %v5557 = vadd.f32 0.0, %v5556
      %v5558 = vpop.f32.mrb[0].mxu0
      %v5559 = vadd.f32 0.0, %v5558
      %v5560 = vpop.f32.mrb[0].mxu0
      %v5561 = vadd.f32 0.0, %v5560
      %5562 = vmatprep.mubr.bf16.mxu0 0
      %5563 = vmatmul.mubr.bf16.gmra.mrb[0].mxu0 %v699
      %v5564 = vpop.f32.mrb[0].mxu0
      %v5565 = vadd.f32 0.0, %v5564
      %v5566 = vpop.f32.mrb[0].mxu0
      %v5567 = vadd.f32 0.0, %v5566
      %v5568 = vpop.f32.mrb[0].mxu0
      %v5569 = vadd.f32 0.0, %v5568
      %v5570 = vpop.f32.mrb[0].mxu0
      %v5571 = vadd.f32 0.0, %v5570
      %5572 = vmatprep.mubr.bf16.mxu0 0
      %5573 = vmatmul.mubr.bf16.gmra.mrb[0].mxu0 %v702
      %v5574 = vpop.f32.mrb[0].mxu0
      %v5575 = vadd.f32 0.0, %v5574
      %v5576 = vpop.f32.mrb[0].mxu0
      %v5577 = vadd.f32 0.0, %v5576
      %v5578 = vpop.f32.mrb[0].mxu0
      %v5579 = vadd.f32 0.0, %v5578
      %v5580 = vpop.f32.mrb[0].mxu0
      %v5581 = vadd.f32 0.0, %v5580
      %5582 = vdwg.mxu0
      %5583 = vrot.lane.b32.xlu0 %v5539, 1
      %v5584 = vpop.permute.xlu0 %5583
      %5585 = vrot.lane.b32.xlu0 %v5541, 1
      %v5586 = vpop.permute.xlu0 %5585
      %v5587 = vsel %vm791, %v5584, %v5586
      %v5588 = vsel %vm791, %v5586, %v5584
      %v5589 = vadd.f32 %v5535, %v5588
      %v5590 = vadd.f32 %v5537, %v5587
      %5591 = vrot.lane.b32.xlu0 %v5545, 2
      %v5592 = vpop.permute.xlu0 %5591
      %5593 = vrot.lane.b32.xlu0 %v5547, 2
      %v5594 = vpop.permute.xlu0 %5593
      %v5595 = vsel %vm800, %v5592, %v5594
      %v5596 = vsel %vm800, %v5594, %v5592
      %v5597 = vadd.f32 %v5589, %v5596
      %v5598 = vadd.f32 %v5590, %v5595
      %5599 = vrot.lane.b32.xlu0 %v5549, 3
      %v5600 = vpop.permute.xlu0 %5599
      %5601 = vrot.lane.b32.xlu0 %v5551, 3
      %v5602 = vpop.permute.xlu0 %5601
      %v5603 = vsel %vm809, %v5600, %v5602
      %v5604 = vsel %vm809, %v5602, %v5600
      %v5605 = vadd.f32 %v5597, %v5604
      %v5606 = vadd.f32 %v5598, %v5603
      %5607 = vrot.lane.b32.xlu0 %v5555, 4
      %v5608 = vpop.permute.xlu0 %5607
      %5609 = vrot.lane.b32.xlu0 %v5557, 4
      %v5610 = vpop.permute.xlu0 %5609
      %v5611 = vsel %vm818, %v5608, %v5610
      %v5612 = vsel %vm818, %v5610, %v5608
      %v5613 = vadd.f32 %v5605, %v5612
      %v5614 = vadd.f32 %v5606, %v5611
      %v5615 = vadd.f32 %v5613, %v5559
      %v5616 = vadd.f32 %v5614, %v5561
      %5617 = vrot.lane.b32.xlu0 %v5565, 16
      %v5618 = vpop.permute.xlu0 %5617
      %5619 = vrot.lane.b32.xlu0 %v5567, 16
      %v5620 = vpop.permute.xlu0 %5619
      %v5621 = vsel %vm829, %v5618, %v5620
      %v5622 = vsel %vm829, %v5620, %v5618
      %v5623 = vadd.f32 %v5615, %v5622
      %v5624 = vadd.f32 %v5616, %v5621
      %5625 = vrot.lane.b32.xlu0 %v5569, 32
      %v5626 = vpop.permute.xlu0 %5625
      %5627 = vrot.lane.b32.xlu0 %v5571, 32
      %v5628 = vpop.permute.xlu0 %5627
      %v5629 = vsel %vm838, %v5626, %v5628
      %v5630 = vsel %vm838, %v5628, %v5626
      %v5631 = vadd.f32 %v5623, %v5630
      %v5632 = vadd.f32 %v5624, %v5629
      %5633 = vrot.lane.b32.xlu0 %v5575, 48
      %v5634 = vpop.permute.xlu0 %5633
      %5635 = vrot.lane.b32.xlu0 %v5577, 48
      %v5636 = vpop.permute.xlu0 %5635
      %v5637 = vsel %vm847, %v5634, %v5636
      %v5638 = vsel %vm847, %v5636, %v5634
      %v5639 = vadd.f32 %v5631, %v5638
      %v5640 = vadd.f32 %v5632, %v5637
      %5641 = vrot.lane.b32.xlu0 %v5579, 64
      %v5642 = vpop.permute.xlu0 %5641
      %5643 = vrot.lane.b32.xlu0 %v5581, 64
      %v5644 = vpop.permute.xlu0 %5643
      %v5645 = vsel %vm437, %v5642, %v5644
      %v5646 = vsel %vm437, %v5644, %v5642
      %v5647 = vadd.f32 %v5639, %v5646
      %v5648 = vadd.f32 %v5640, %v5645
      %v5649 = vadd.f32 %v5647, %v863
      %v5650 = vadd.f32 %v5648, %v863
      %s5651 = scalar_lea.vmem %s6, 192
      %v5652 = vld [vmem:[%s5651] sm:$0xf]
      %v5653 = vld [vmem:[%s5651 + $0x4] sm:$0xf]
      %v5654 = vld [vmem:[%s5651 + $0x8] sm:$0xf]
      %v5655 = vld [vmem:[%s5651 + $0xc] sm:$0xf]
      %v5656 = vld [vmem:[%s5651 + $0x10] sm:$0xf]
      %v5657 = vld [vmem:[%s5651 + $0x14] sm:$0xf]
      %v5658 = vld [vmem:[%s5651 + $0x18] sm:$0xf]
      %v5659 = vld [vmem:[%s5651 + $0x1c] sm:$0xf]
      %s5660 = scalar_lea.vmem %s7, 384
      %v5661 = vld [vmem:[%s5660] sm:$0xff]
      %v5662 = vld [vmem:[%s5660 + $0x8] sm:$0xff]
      %v5663 = vld [vmem:[%s5660 + $0x10] sm:$0xff]
      %v5664 = vld [vmem:[%s5660 + $0x18] sm:$0xff]
      %v5665 = vld [vmem:[%s5660 + $0x20] sm:$0xff]
      %v5666 = vld [vmem:[%s5660 + $0x28] sm:$0xff]
      %v5667 = vld [vmem:[%s5660 + $0x30] sm:$0xff]
      %v5668 = vld [vmem:[%s5660 + $0x38] sm:$0xff]
      %5669 = vrot.lane.b32.xlu0 %v5649, 127
      %v5670 = vpop.permute.xlu0 %5669
      %5671 = vrot.lane.b32.xlu0 %v5650, 127
      %v5672 = vpop.permute.xlu0 %5671
      %v5673 = vsel %vm388, %v5670, %v5672
      %v5674 = vsel %vm388, %v5672, %v5670
      %5675 = vrot.lane.b32.xlu0 %v5649, 126
      %v5676 = vpop.permute.xlu0 %5675
      %5677 = vrot.lane.b32.xlu0 %v5650, 126
      %v5678 = vpop.permute.xlu0 %5677
      %v5679 = vsel %vm395, %v5676, %v5678
      %v5680 = vsel %vm395, %v5678, %v5676
      %5681 = vrot.lane.b32.xlu0 %v5649, 125
      %v5682 = vpop.permute.xlu0 %5681
      %5683 = vrot.lane.b32.xlu0 %v5650, 125
      %v5684 = vpop.permute.xlu0 %5683
      %v5685 = vsel %vm402, %v5682, %v5684
      %v5686 = vsel %vm402, %v5684, %v5682
      %5687 = vrot.lane.b32.xlu0 %v5649, 124
      %v5688 = vpop.permute.xlu0 %5687
      %5689 = vrot.lane.b32.xlu0 %v5650, 124
      %v5690 = vpop.permute.xlu0 %5689
      %v5691 = vsel %vm409, %v5688, %v5690
      %v5692 = vsel %vm409, %v5690, %v5688
      %5693 = vrot.lane.b32.xlu0 %v5649, 112
      %v5694 = vpop.permute.xlu0 %5693
      %5695 = vrot.lane.b32.xlu0 %v5650, 112
      %v5696 = vpop.permute.xlu0 %5695
      %v5697 = vsel %vm416, %v5694, %v5696
      %v5698 = vsel %vm416, %v5696, %v5694
      %5699 = vrot.lane.b32.xlu0 %v5649, 96
      %v5700 = vpop.permute.xlu0 %5699
      %5701 = vrot.lane.b32.xlu0 %v5650, 96
      %v5702 = vpop.permute.xlu0 %5701
      %v5703 = vsel %vm423, %v5700, %v5702
      %v5704 = vsel %vm423, %v5702, %v5700
      %5705 = vrot.lane.b32.xlu0 %v5649, 80
      %v5706 = vpop.permute.xlu0 %5705
      %5707 = vrot.lane.b32.xlu0 %v5650, 80
      %v5708 = vpop.permute.xlu0 %5707
      %v5709 = vsel %vm430, %v5706, %v5708
      %v5710 = vsel %vm430, %v5708, %v5706
      %5711 = vrot.lane.b32.xlu0 %v5649, 64
      %v5712 = vpop.permute.xlu0 %5711
      %5713 = vrot.lane.b32.xlu0 %v5650, 64
      %v5714 = vpop.permute.xlu0 %5713
      %v5715 = vsel %vm437, %v5712, %v5714
      %v5716 = vsel %vm437, %v5714, %v5712
      %v5717 = vpack.c.bf16 %v5673, %v5649
      %v5718 = vpack.c.bf16 %v5674, %v5650
      %v5719 = vpack.c.bf16 %v5685, %v5679
      %v5720 = vpack.c.bf16 %v5686, %v5680
      %v5721 = vpack.c.bf16 %v5649, %v5691
      %v5722 = vpack.c.bf16 %v5650, %v5692
      %v5723 = vpack.c.bf16 %v5703, %v5697
      %v5724 = vpack.c.bf16 %v5704, %v5698
      %v5725 = vpack.c.bf16 %v5715, %v5709
      %v5726 = vpack.c.bf16 %v5716, %v5710
      %5728 = vset.pattern.permute.xlu0 0
      %5729 = vperm.xlu0 %5728, %v5661
      %v5730 = vpop.permute.xlu0 %5729
      %5733 = vset.pattern.permute.xlu0 0
      %5734 = vperm.xlu0 %5733, %v5662
      %v5735 = vpop.permute.xlu0 %5734
      %5738 = vset.pattern.permute.xlu0 0
      %5739 = vperm.xlu0 %5738, %v5663
      %v5740 = vpop.permute.xlu0 %5739
      %5743 = vset.pattern.permute.xlu0 0
      %5744 = vperm.xlu0 %5743, %v5664
      %v5745 = vpop.permute.xlu0 %5744
      %5748 = vset.pattern.permute.xlu0 0
      %5749 = vperm.xlu0 %5748, %v5665
      %v5750 = vpop.permute.xlu0 %5749
      %5753 = vset.pattern.permute.xlu0 0
      %5754 = vperm.xlu0 %5753, %v5666
      %v5755 = vpop.permute.xlu0 %5754
      %5758 = vset.pattern.permute.xlu0 0
      %5759 = vperm.xlu0 %5758, %v5667
      %v5760 = vpop.permute.xlu0 %5759
      %5763 = vset.pattern.permute.xlu0 0
      %5764 = vperm.xlu0 %5763, %v5668
      %v5765 = vpop.permute.xlu0 %5764
      %v5775 = vunpack.c.l.b16 %v5652
      %v5776 = vunpack.c.l.b16 %v5653
      %v5777 = vunpack.c.l.b16 %v5654
      %v5778 = vunpack.c.l.b16 %v5655
      %v5779 = vunpack.c.l.b16 %v5656
      %v5780 = vunpack.c.l.b16 %v5657
      %v5781 = vunpack.c.l.b16 %v5658
      %v5782 = vunpack.c.l.b16 %v5659
      %v5783 = vpack.c.b16 %v5776, %v5775
      %v5784 = vpack.c.b16 %v5778, %v5777
      %v5785 = vpack.c.b16 %v5780, %v5779
      %v5786 = vpack.c.b16 %v5782, %v5781
      %v5788 = vsel %vm510, %v5783, 0
      %v5791 = vsel %vm510, %v5784, 0
      %v5794 = vsel %vm510, %v5785, 0
      %v5797 = vsel %vm510, %v5786, 0
      %5799 = vmatprep.subr.bf16.mxu0 %v5718
      %5800 = vmatpush1.bf16.msra.mxu0 %v5717
      %5801 = vmatprep.subr.bf16.mxu0 %v5720
      %5802 = vmatpush1.bf16.msra.mxu0 %v5719
      %5803 = vmatprep.subr.bf16.mxu0 %v5722
      %5804 = vmatpush1.bf16.msra.mxu0 %v5721
      %5805 = vmatprep.subr.bf16.mxu0 %v5724
      %5806 = vmatpush1.bf16.msra.mxu0 %v5723
      %5807 = vmatprep.subr.bf16.mxu0 %v5726
      %5808 = vmatpush1.bf16.msra.mxu0 %v5725
      %5809 = vmatprep.subr.bf16.mxu0 0
      %5810 = vmatpush1.bf16.msra.mxu0 0
      %5811 = vmatprep.subr.bf16.mxu0 0
      %5812 = vmatpush1.bf16.msra.mxu0 0
      %5813 = vmatprep.subr.bf16.mxu0 0
      %5814 = vmatpush1.bf16.msra.mxu0 0
      %5815 = vmatprep.subr.bf16.mxu0 0
      %5816 = vmatpush1.bf16.msra.mxu0 0
      %5817 = vmatprep.subr.bf16.mxu0 0
      %5818 = vmatpush1.bf16.msra.mxu0 0
      %5819 = vmatprep.subr.bf16.mxu0 0
      %5820 = vmatpush1.bf16.msra.mxu0 0
      %5821 = vmatprep.subr.bf16.mxu0 0
      %5822 = vmatpush1.bf16.msra.mxu0 0
      %5823 = vmatprep.subr.bf16.mxu0 0
      %5824 = vmatpush1.bf16.msra.mxu0 0
      %5825 = vmatprep.subr.bf16.mxu0 0
      %5826 = vmatpush1.bf16.msra.mxu0 0
      %5827 = vmatprep.subr.bf16.mxu0 0
      %5828 = vmatpush1.bf16.msra.mxu0 0
      %5829 = vmatprep.subr.bf16.mxu0 0
      %5830 = vmatpush1.bf16.msra.mxu0 0
      %5831 = vmatprep.mubr.bf16.mxu0 0
      %5832 = vmatmul.mubr.bf16.gmra.mrb[0].mxu0 %v5788
      %v5833 = vpop.f32.mrb[0].mxu0
      %v5834 = vadd.f32 %v5730, %v5833
      %v5835 = vpop.f32.mrb[0].mxu0
      %v5836 = vadd.f32 %v5730, %v5835
      %v5837 = vpop.f32.mrb[0].mxu0
      %v5838 = vadd.f32 %v5735, %v5837
      %v5839 = vpop.f32.mrb[0].mxu0
      %v5840 = vadd.f32 %v5735, %v5839
      %5841 = vmatprep.mubr.bf16.mxu0 0
      %5842 = vmatmul.mubr.bf16.gmra.mrb[0].mxu0 %v5791
      %v5843 = vpop.f32.mrb[0].mxu0
      %v5844 = vadd.f32 %v5740, %v5843
      %v5845 = vpop.f32.mrb[0].mxu0
      %v5846 = vadd.f32 %v5740, %v5845
      %v5847 = vpop.f32.mrb[0].mxu0
      %v5848 = vadd.f32 %v5745, %v5847
      %v5849 = vpop.f32.mrb[0].mxu0
      %v5850 = vadd.f32 %v5745, %v5849
      %5851 = vmatprep.mubr.bf16.mxu0 0
      %5852 = vmatmul.mubr.bf16.gmra.mrb[0].mxu0 %v5794
      %v5853 = vpop.f32.mrb[0].mxu0
      %v5854 = vadd.f32 %v5750, %v5853
      %v5855 = vpop.f32.mrb[0].mxu0
      %v5856 = vadd.f32 %v5750, %v5855
      %v5857 = vpop.f32.mrb[0].mxu0
      %v5858 = vadd.f32 %v5755, %v5857
      %v5859 = vpop.f32.mrb[0].mxu0
      %v5860 = vadd.f32 %v5755, %v5859
      %5861 = vmatprep.mubr.bf16.mxu0 0
      %5862 = vmatmul.mubr.bf16.gmra.mrb[0].mxu0 %v5797
      %v5863 = vpop.f32.mrb[0].mxu0
      %v5864 = vadd.f32 %v5760, %v5863
      %v5865 = vpop.f32.mrb[0].mxu0
      %v5866 = vadd.f32 %v5760, %v5865
      %v5867 = vpop.f32.mrb[0].mxu0
      %v5868 = vadd.f32 %v5765, %v5867
      %v5869 = vpop.f32.mrb[0].mxu0
      %v5870 = vadd.f32 %v5765, %v5869
      %5871 = vdwg.mxu0
      %v5872 = vmax.f32 %v5834, 0.0
      %v5873 = vmax.f32 %v5836, 0.0
      %v5874 = vmax.f32 %v5838, 0.0
      %v5875 = vmax.f32 %v5840, 0.0
      %v5876 = vmax.f32 %v5844, 0.0
      %v5877 = vmax.f32 %v5846, 0.0
      %v5878 = vmax.f32 %v5848, 0.0
      %v5879 = vmax.f32 %v5850, 0.0
      %v5880 = vmax.f32 %v5854, 0.0
      %v5881 = vmax.f32 %v5856, 0.0
      %v5882 = vmax.f32 %v5858, 0.0
      %v5883 = vmax.f32 %v5860, 0.0
      %v5884 = vmax.f32 %v5864, 0.0
      %v5885 = vmax.f32 %v5866, 0.0
      %v5886 = vmax.f32 %v5868, 0.0
      %v5887 = vmax.f32 %v5870, 0.0
      %v5888 = vmul.f32 %v5872, %v612
      %v5889 = vmul.f32 %v5873, %v613
      %v5890 = vmul.f32 %v5874, %v614
      %v5891 = vmul.f32 %v5875, %v615
      %v5892 = vmul.f32 %v5876, %v616
      %v5893 = vmul.f32 %v5877, %v617
      %v5894 = vmul.f32 %v5878, %v618
      %v5895 = vmul.f32 %v5879, %v619
      %v5896 = vmul.f32 %v5880, %v620
      %v5897 = vmul.f32 %v5881, %v621
      %v5898 = vmul.f32 %v5882, %v622
      %v5899 = vmul.f32 %v5883, %v623
      %v5900 = vmul.f32 %v5884, %v624
      %v5901 = vmul.f32 %v5885, %v625
      %v5902 = vmul.f32 %v5886, %v626
      %v5903 = vmul.f32 %v5887, %v627
      %v5904 = vpack.c.bf16 %v5890, %v5888
      %v5905 = vpack.c.bf16 %v5891, %v5889
      %v5906 = vpack.c.bf16 %v5894, %v5892
      %v5907 = vpack.c.bf16 %v5895, %v5893
      %v5908 = vpack.c.bf16 %v5898, %v5896
      %v5909 = vpack.c.bf16 %v5899, %v5897
      %v5910 = vpack.c.bf16 %v5902, %v5900
      %v5911 = vpack.c.bf16 %v5903, %v5901
      %s5912 = scalar_lea.vmem %s8, 240
      %v5913 = vld [vmem:[%s5912] sm:$0xf]
      %v5914 = vld [vmem:[%s5912 + $0x4] sm:$0xf]
      %v5915 = vld [vmem:[%s5912 + $0x8] sm:$0xf]
      %v5916 = vld [vmem:[%s5912 + $0xc] sm:$0xf]
      %v5917 = vld [vmem:[%s5912 + $0x10] sm:$0xf]
      %v5918 = vld [vmem:[%s5912 + $0x14] sm:$0xf]
      %v5919 = vld [vmem:[%s5912 + $0x18] sm:$0xf]
      %v5920 = vld [vmem:[%s5912 + $0x1c] sm:$0xf]
      %v5921 = vld [vmem:[%s5912 + $0x20] sm:$0xf]
      %v5922 = vld [vmem:[%s5912 + $0x24] sm:$0xf]
      %s5923 = scalar_lea.vmem %s9, 48
      %v5924 = vld [vmem:[%s5923] sm:$0xff]
      %v5935 = vunpack.c.l.b16 %v5913
      %v5936 = vunpack.c.l.b16 %v5914
      %v5937 = vunpack.c.l.b16 %v5915
      %v5938 = vunpack.c.l.b16 %v5916
      %v5939 = vunpack.c.l.b16 %v5917
      %v5940 = vunpack.c.l.b16 %v5918
      %v5941 = vunpack.c.l.b16 %v5919
      %v5942 = vunpack.c.l.b16 %v5920
      %v5943 = vunpack.c.l.b16 %v5921
      %v5944 = vunpack.c.l.b16 %v5922
      %v5945 = vpack.c.b16 %v5936, %v5935
      %v5946 = vpack.c.b16 %v5938, %v5937
      %v5947 = vpack.c.b16 %v5940, %v5939
      %v5948 = vpack.c.b16 %v5942, %v5941
      %v5949 = vpack.c.b16 %v5944, %v5943
      %v5951 = vsel %vm688, %v5945, 0
      %v5954 = vsel %vm688, %v5946, 0
      %v5957 = vsel %vm688, %v5947, 0
      %v5960 = vsel %vm688, %v5948, 0
      %v5963 = vsel %vm688, %v5949, 0
      %5965 = vmatprep.subr.bf16.mxu0 %v5905
      %5966 = vmatpush1.bf16.msra.mxu0 %v5904
      %5967 = vmatprep.subr.bf16.mxu0 %v5907
      %5968 = vmatpush1.bf16.msra.mxu0 %v5906
      %5969 = vmatprep.subr.bf16.mxu0 %v5909
      %5970 = vmatpush1.bf16.msra.mxu0 %v5908
      %5971 = vmatprep.subr.bf16.mxu0 %v5911
      %5972 = vmatpush1.bf16.msra.mxu0 %v5910
      %5973 = vmatprep.subr.bf16.mxu0 0
      %5974 = vmatpush1.bf16.msra.mxu0 0
      %5975 = vmatprep.subr.bf16.mxu0 0
      %5976 = vmatpush1.bf16.msra.mxu0 0
      %5977 = vmatprep.subr.bf16.mxu0 0
      %5978 = vmatpush1.bf16.msra.mxu0 0
      %5979 = vmatprep.subr.bf16.mxu0 0
      %5980 = vmatpush1.bf16.msra.mxu0 0
      %5981 = vmatprep.subr.bf16.mxu0 0
      %5982 = vmatpush1.bf16.msra.mxu0 0
      %5983 = vmatprep.subr.bf16.mxu0 0
      %5984 = vmatpush1.bf16.msra.mxu0 0
      %5985 = vmatprep.subr.bf16.mxu0 0
      %5986 = vmatpush1.bf16.msra.mxu0 0
      %5987 = vmatprep.subr.bf16.mxu0 0
      %5988 = vmatpush1.bf16.msra.mxu0 0
      %5989 = vmatprep.subr.bf16.mxu0 0
      %5990 = vmatpush1.bf16.msra.mxu0 0
      %5991 = vmatprep.subr.bf16.mxu0 0
      %5992 = vmatpush1.bf16.msra.mxu0 0
      %5993 = vmatprep.subr.bf16.mxu0 0
      %5994 = vmatpush1.bf16.msra.mxu0 0
      %5995 = vmatprep.subr.bf16.mxu0 0
      %5996 = vmatpush1.bf16.msra.mxu0 0
      %5997 = vmatprep.mubr.bf16.mxu0 0
      %5998 = vmatmul.mubr.bf16.gmra.mrb[0].mxu0 %v5951
      %v5999 = vpop.f32.mrb[0].mxu0
      %v6000 = vadd.f32 0.0, %v5999
      %v6001 = vpop.f32.mrb[0].mxu0
      %v6002 = vadd.f32 0.0, %v6001
      %v6003 = vpop.f32.mrb[0].mxu0
      %v6004 = vadd.f32 0.0, %v6003
      %v6005 = vpop.f32.mrb[0].mxu0
      %v6006 = vadd.f32 0.0, %v6005
      %6007 = vmatprep.mubr.bf16.mxu0 0
      %6008 = vmatmul.mubr.bf16.gmra.mrb[0].mxu0 %v5954
      %v6009 = vpop.f32.mrb[0].mxu0
      %v6010 = vadd.f32 0.0, %v6009
      %v6011 = vpop.f32.mrb[0].mxu0
      %v6012 = vadd.f32 0.0, %v6011
      %v6013 = vpop.f32.mrb[0].mxu0
      %v6014 = vadd.f32 0.0, %v6013
      %v6015 = vpop.f32.mrb[0].mxu0
      %v6016 = vadd.f32 0.0, %v6015
      %6017 = vmatprep.mubr.bf16.mxu0 0
      %6018 = vmatmul.mubr.bf16.gmra.mrb[0].mxu0 %v5957
      %v6019 = vpop.f32.mrb[0].mxu0
      %v6020 = vadd.f32 0.0, %v6019
      %v6021 = vpop.f32.mrb[0].mxu0
      %v6022 = vadd.f32 0.0, %v6021
      %v6023 = vpop.f32.mrb[0].mxu0
      %v6024 = vadd.f32 0.0, %v6023
      %v6025 = vpop.f32.mrb[0].mxu0
      %v6026 = vadd.f32 0.0, %v6025
      %6027 = vmatprep.mubr.bf16.mxu0 0
      %6028 = vmatmul.mubr.bf16.gmra.mrb[0].mxu0 %v5960
      %v6029 = vpop.f32.mrb[0].mxu0
      %v6030 = vadd.f32 0.0, %v6029
      %v6031 = vpop.f32.mrb[0].mxu0
      %v6032 = vadd.f32 0.0, %v6031
      %v6033 = vpop.f32.mrb[0].mxu0
      %v6034 = vadd.f32 0.0, %v6033
      %v6035 = vpop.f32.mrb[0].mxu0
      %v6036 = vadd.f32 0.0, %v6035
      %6037 = vmatprep.mubr.bf16.mxu0 0
      %6038 = vmatmul.mubr.bf16.gmra.mrb[0].mxu0 %v5963
      %v6039 = vpop.f32.mrb[0].mxu0
      %v6040 = vadd.f32 0.0, %v6039
      %v6041 = vpop.f32.mrb[0].mxu0
      %v6042 = vadd.f32 0.0, %v6041
      %v6043 = vpop.f32.mrb[0].mxu0
      %v6044 = vadd.f32 0.0, %v6043
      %v6045 = vpop.f32.mrb[0].mxu0
      %v6046 = vadd.f32 0.0, %v6045
      %6047 = vdwg.mxu0
      %6048 = vrot.lane.b32.xlu0 %v6004, 1
      %v6049 = vpop.permute.xlu0 %6048
      %6050 = vrot.lane.b32.xlu0 %v6006, 1
      %v6051 = vpop.permute.xlu0 %6050
      %v6052 = vsel %vm791, %v6049, %v6051
      %v6053 = vsel %vm791, %v6051, %v6049
      %v6054 = vadd.f32 %v6000, %v6053
      %v6055 = vadd.f32 %v6002, %v6052
      %6056 = vrot.lane.b32.xlu0 %v6010, 2
      %v6057 = vpop.permute.xlu0 %6056
      %6058 = vrot.lane.b32.xlu0 %v6012, 2
      %v6059 = vpop.permute.xlu0 %6058
      %v6060 = vsel %vm800, %v6057, %v6059
      %v6061 = vsel %vm800, %v6059, %v6057
      %v6062 = vadd.f32 %v6054, %v6061
      %v6063 = vadd.f32 %v6055, %v6060
      %6064 = vrot.lane.b32.xlu0 %v6014, 3
      %v6065 = vpop.permute.xlu0 %6064
      %6066 = vrot.lane.b32.xlu0 %v6016, 3
      %v6067 = vpop.permute.xlu0 %6066
      %v6068 = vsel %vm809, %v6065, %v6067
      %v6069 = vsel %vm809, %v6067, %v6065
      %v6070 = vadd.f32 %v6062, %v6069
      %v6071 = vadd.f32 %v6063, %v6068
      %6072 = vrot.lane.b32.xlu0 %v6020, 4
      %v6073 = vpop.permute.xlu0 %6072
      %6074 = vrot.lane.b32.xlu0 %v6022, 4
      %v6075 = vpop.permute.xlu0 %6074
      %v6076 = vsel %vm818, %v6073, %v6075
      %v6077 = vsel %vm818, %v6075, %v6073
      %v6078 = vadd.f32 %v6070, %v6077
      %v6079 = vadd.f32 %v6071, %v6076
      %v6080 = vadd.f32 %v6078, %v6024
      %v6081 = vadd.f32 %v6079, %v6026
      %6082 = vrot.lane.b32.xlu0 %v6030, 16
      %v6083 = vpop.permute.xlu0 %6082
      %6084 = vrot.lane.b32.xlu0 %v6032, 16
      %v6085 = vpop.permute.xlu0 %6084
      %v6086 = vsel %vm829, %v6083, %v6085
      %v6087 = vsel %vm829, %v6085, %v6083
      %v6088 = vadd.f32 %v6080, %v6087
      %v6089 = vadd.f32 %v6081, %v6086
      %6090 = vrot.lane.b32.xlu0 %v6034, 32
      %v6091 = vpop.permute.xlu0 %6090
      %6092 = vrot.lane.b32.xlu0 %v6036, 32
      %v6093 = vpop.permute.xlu0 %6092
      %v6094 = vsel %vm838, %v6091, %v6093
      %v6095 = vsel %vm838, %v6093, %v6091
      %v6096 = vadd.f32 %v6088, %v6095
      %v6097 = vadd.f32 %v6089, %v6094
      %6098 = vrot.lane.b32.xlu0 %v6040, 48
      %v6099 = vpop.permute.xlu0 %6098
      %6100 = vrot.lane.b32.xlu0 %v6042, 48
      %v6101 = vpop.permute.xlu0 %6100
      %v6102 = vsel %vm847, %v6099, %v6101
      %v6103 = vsel %vm847, %v6101, %v6099
      %v6104 = vadd.f32 %v6096, %v6103
      %v6105 = vadd.f32 %v6097, %v6102
      %6106 = vrot.lane.b32.xlu0 %v6044, 64
      %v6107 = vpop.permute.xlu0 %6106
      %6108 = vrot.lane.b32.xlu0 %v6046, 64
      %v6109 = vpop.permute.xlu0 %6108
      %v6110 = vsel %vm437, %v6107, %v6109
      %v6111 = vsel %vm437, %v6109, %v6107
      %v6112 = vadd.f32 %v6104, %v6111
      %v6113 = vadd.f32 %v6105, %v6110
      %6115 = vset.pattern.permute.xlu0 0
      %6116 = vperm.xlu0 %6115, %v5924
      %v6117 = vpop.permute.xlu0 %6116
      %v6119 = vadd.f32 %v6112, %v6117
      %v6120 = vadd.f32 %v6113, %v6117
      %v6121 = vmax.f32 %v6119, 0.0
      %v6122 = vmax.f32 %v6120, 0.0
      %v6123 = vadd.f32 %v5327, %v6121
      %v6124 = vadd.f32 %v5328, %v6122
      %v6125 = vmax.f32 %v6123, 0.0
      %v6126 = vmax.f32 %v6124, 0.0
      %6127 = vrot.lane.b32.xlu0 %v6125, 127
      %v6128 = vpop.permute.xlu0 %6127
      %6129 = vrot.lane.b32.xlu0 %v6126, 127
      %v6130 = vpop.permute.xlu0 %6129
      %v6131 = vsel %vm388, %v6128, %v6130
      %v6132 = vsel %vm388, %v6130, %v6128
      %6133 = vrot.lane.b32.xlu0 %v6125, 126
      %v6134 = vpop.permute.xlu0 %6133
      %6135 = vrot.lane.b32.xlu0 %v6126, 126
      %v6136 = vpop.permute.xlu0 %6135
      %v6137 = vsel %vm395, %v6134, %v6136
      %v6138 = vsel %vm395, %v6136, %v6134
      %6139 = vrot.lane.b32.xlu0 %v6125, 125
      %v6140 = vpop.permute.xlu0 %6139
      %6141 = vrot.lane.b32.xlu0 %v6126, 125
      %v6142 = vpop.permute.xlu0 %6141
      %v6143 = vsel %vm402, %v6140, %v6142
      %v6144 = vsel %vm402, %v6142, %v6140
      %6145 = vrot.lane.b32.xlu0 %v6125, 124
      %v6146 = vpop.permute.xlu0 %6145
      %6147 = vrot.lane.b32.xlu0 %v6126, 124
      %v6148 = vpop.permute.xlu0 %6147
      %v6149 = vsel %vm409, %v6146, %v6148
      %v6150 = vsel %vm409, %v6148, %v6146
      %6151 = vrot.lane.b32.xlu0 %v6125, 112
      %v6152 = vpop.permute.xlu0 %6151
      %6153 = vrot.lane.b32.xlu0 %v6126, 112
      %v6154 = vpop.permute.xlu0 %6153
      %v6155 = vsel %vm416, %v6152, %v6154
      %v6156 = vsel %vm416, %v6154, %v6152
      %6157 = vrot.lane.b32.xlu0 %v6125, 96
      %v6158 = vpop.permute.xlu0 %6157
      %6159 = vrot.lane.b32.xlu0 %v6126, 96
      %v6160 = vpop.permute.xlu0 %6159
      %v6161 = vsel %vm423, %v6158, %v6160
      %v6162 = vsel %vm423, %v6160, %v6158
      %6163 = vrot.lane.b32.xlu0 %v6125, 80
      %v6164 = vpop.permute.xlu0 %6163
      %6165 = vrot.lane.b32.xlu0 %v6126, 80
      %v6166 = vpop.permute.xlu0 %6165
      %v6167 = vsel %vm430, %v6164, %v6166
      %v6168 = vsel %vm430, %v6166, %v6164
      %6169 = vrot.lane.b32.xlu0 %v6125, 64
      %v6170 = vpop.permute.xlu0 %6169
      %6171 = vrot.lane.b32.xlu0 %v6126, 64
      %v6172 = vpop.permute.xlu0 %6171
      %v6173 = vsel %vm437, %v6170, %v6172
      %v6174 = vsel %vm437, %v6172, %v6170
      %v6175 = vpack.c.bf16 %v6131, %v6125
      %v6176 = vpack.c.bf16 %v6132, %v6126
      %v6177 = vpack.c.bf16 %v6143, %v6137
      %v6178 = vpack.c.bf16 %v6144, %v6138
      %v6179 = vpack.c.bf16 %v6125, %v6149
      %v6180 = vpack.c.bf16 %v6126, %v6150
      %v6181 = vpack.c.bf16 %v6161, %v6155
      %v6182 = vpack.c.bf16 %v6162, %v6156
      %v6183 = vpack.c.bf16 %v6173, %v6167
      %v6184 = vpack.c.bf16 %v6174, %v6168
      %6185 = vmatprep.subr.bf16.mxu0 %v6176
      %6186 = vmatpush1.bf16.msra.mxu0 %v6175
      %6187 = vmatprep.subr.bf16.mxu0 %v6178
      %6188 = vmatpush1.bf16.msra.mxu0 %v6177
      %6189 = vmatprep.subr.bf16.mxu0 %v6180
      %6190 = vmatpush1.bf16.msra.mxu0 %v6179
      %6191 = vmatprep.subr.bf16.mxu0 %v6182
      %6192 = vmatpush1.bf16.msra.mxu0 %v6181
      %6193 = vmatprep.subr.bf16.mxu0 %v6184
      %6194 = vmatpush1.bf16.msra.mxu0 %v6183
      %6195 = vmatprep.subr.bf16.mxu0 0
      %6196 = vmatpush1.bf16.msra.mxu0 0
      %6197 = vmatprep.subr.bf16.mxu0 0
      %6198 = vmatpush1.bf16.msra.mxu0 0
      %6199 = vmatprep.subr.bf16.mxu0 0
      %6200 = vmatpush1.bf16.msra.mxu0 0
      %6201 = vmatprep.subr.bf16.mxu0 0
      %6202 = vmatpush1.bf16.msra.mxu0 0
      %6203 = vmatprep.subr.bf16.mxu0 0
      %6204 = vmatpush1.bf16.msra.mxu0 0
      %6205 = vmatprep.subr.bf16.mxu0 0
      %6206 = vmatpush1.bf16.msra.mxu0 0
      %6207 = vmatprep.subr.bf16.mxu0 0
      %6208 = vmatpush1.bf16.msra.mxu0 0
      %6209 = vmatprep.subr.bf16.mxu0 0
      %6210 = vmatpush1.bf16.msra.mxu0 0
      %6211 = vmatprep.subr.bf16.mxu0 0
      %6212 = vmatpush1.bf16.msra.mxu0 0
      %6213 = vmatprep.subr.bf16.mxu0 0
      %6214 = vmatpush1.bf16.msra.mxu0 0
      %6215 = vmatprep.subr.bf16.mxu0 0
      %6216 = vmatpush1.bf16.msra.mxu0 0
      %6217 = vmatprep.mubr.bf16.mxu0 0
      %6218 = vmatmul.mubr.bf16.gmra.mrb[0].mxu0 %v512
      %v6219 = vpop.f32.mrb[0].mxu0
      %v6220 = vadd.f32 %v453, %v6219
      %v6221 = vpop.f32.mrb[0].mxu0
      %v6222 = vadd.f32 %v453, %v6221
      %v6223 = vpop.f32.mrb[0].mxu0
      %v6224 = vadd.f32 %v458, %v6223
      %v6225 = vpop.f32.mrb[0].mxu0
      %v6226 = vadd.f32 %v458, %v6225
      %6227 = vmatprep.mubr.bf16.mxu0 0
      %6228 = vmatmul.mubr.bf16.gmra.mrb[0].mxu0 %v515
      %v6229 = vpop.f32.mrb[0].mxu0
      %v6230 = vadd.f32 %v463, %v6229
      %v6231 = vpop.f32.mrb[0].mxu0
      %v6232 = vadd.f32 %v463, %v6231
      %v6233 = vpop.f32.mrb[0].mxu0
      %v6234 = vadd.f32 %v468, %v6233
      %v6235 = vpop.f32.mrb[0].mxu0
      %v6236 = vadd.f32 %v468, %v6235
      %6237 = vmatprep.mubr.bf16.mxu0 0
      %6238 = vmatmul.mubr.bf16.gmra.mrb[0].mxu0 %v518
      %v6239 = vpop.f32.mrb[0].mxu0
      %v6240 = vadd.f32 %v473, %v6239
      %v6241 = vpop.f32.mrb[0].mxu0
      %v6242 = vadd.f32 %v473, %v6241
      %v6243 = vpop.f32.mrb[0].mxu0
      %v6244 = vadd.f32 %v478, %v6243
      %v6245 = vpop.f32.mrb[0].mxu0
      %v6246 = vadd.f32 %v478, %v6245
      %6247 = vmatprep.mubr.bf16.mxu0 0
      %6248 = vmatmul.mubr.bf16.gmra.mrb[0].mxu0 %v521
      %v6249 = vpop.f32.mrb[0].mxu0
      %v6250 = vadd.f32 %v483, %v6249
      %v6251 = vpop.f32.mrb[0].mxu0
      %v6252 = vadd.f32 %v483, %v6251
      %v6253 = vpop.f32.mrb[0].mxu0
      %v6254 = vadd.f32 %v488, %v6253
      %v6255 = vpop.f32.mrb[0].mxu0
      %v6256 = vadd.f32 %v488, %v6255
      %6257 = vdwg.mxu0
      %v6258 = vmax.f32 %v6220, 0.0
      %v6259 = vmax.f32 %v6222, 0.0
      %v6260 = vmax.f32 %v6224, 0.0
      %v6261 = vmax.f32 %v6226, 0.0
      %v6262 = vmax.f32 %v6230, 0.0
      %v6263 = vmax.f32 %v6232, 0.0
      %v6264 = vmax.f32 %v6234, 0.0
      %v6265 = vmax.f32 %v6236, 0.0
      %v6266 = vmax.f32 %v6240, 0.0
      %v6267 = vmax.f32 %v6242, 0.0
      %v6268 = vmax.f32 %v6244, 0.0
      %v6269 = vmax.f32 %v6246, 0.0
      %v6270 = vmax.f32 %v6250, 0.0
      %v6271 = vmax.f32 %v6252, 0.0
      %v6272 = vmax.f32 %v6254, 0.0
      %v6273 = vmax.f32 %v6256, 0.0
      %v6274 = vmul.f32 %v6258, %v612
      %v6275 = vmul.f32 %v6259, %v613
      %v6276 = vmul.f32 %v6260, %v614
      %v6277 = vmul.f32 %v6261, %v615
      %v6278 = vmul.f32 %v6262, %v616
      %v6279 = vmul.f32 %v6263, %v617
      %v6280 = vmul.f32 %v6264, %v618
      %v6281 = vmul.f32 %v6265, %v619
      %v6282 = vmul.f32 %v6266, %v620
      %v6283 = vmul.f32 %v6267, %v621
      %v6284 = vmul.f32 %v6268, %v622
      %v6285 = vmul.f32 %v6269, %v623
      %v6286 = vmul.f32 %v6270, %v624
      %v6287 = vmul.f32 %v6271, %v625
      %v6288 = vmul.f32 %v6272, %v626
      %v6289 = vmul.f32 %v6273, %v627
      %v6290 = vpack.c.bf16 %v6276, %v6274
      %v6291 = vpack.c.bf16 %v6277, %v6275
      %v6292 = vpack.c.bf16 %v6280, %v6278
      %v6293 = vpack.c.bf16 %v6281, %v6279
      %v6294 = vpack.c.bf16 %v6284, %v6282
      %v6295 = vpack.c.bf16 %v6285, %v6283
      %v6296 = vpack.c.bf16 %v6288, %v6286
      %v6297 = vpack.c.bf16 %v6289, %v6287
      %6298 = vmatprep.subr.bf16.mxu0 %v6291
      %6299 = vmatpush1.bf16.msra.mxu0 %v6290
      %6300 = vmatprep.subr.bf16.mxu0 %v6293
      %6301 = vmatpush1.bf16.msra.mxu0 %v6292
      %6302 = vmatprep.subr.bf16.mxu0 %v6295
      %6303 = vmatpush1.bf16.msra.mxu0 %v6294
      %6304 = vmatprep.subr.bf16.mxu0 %v6297
      %6305 = vmatpush1.bf16.msra.mxu0 %v6296
      %6306 = vmatprep.subr.bf16.mxu0 0
      %6307 = vmatpush1.bf16.msra.mxu0 0
      %6308 = vmatprep.subr.bf16.mxu0 0
      %6309 = vmatpush1.bf16.msra.mxu0 0
      %6310 = vmatprep.subr.bf16.mxu0 0
      %6311 = vmatpush1.bf16.msra.mxu0 0
      %6312 = vmatprep.subr.bf16.mxu0 0
      %6313 = vmatpush1.bf16.msra.mxu0 0
      %6314 = vmatprep.subr.bf16.mxu0 0
      %6315 = vmatpush1.bf16.msra.mxu0 0
      %6316 = vmatprep.subr.bf16.mxu0 0
      %6317 = vmatpush1.bf16.msra.mxu0 0
      %6318 = vmatprep.subr.bf16.mxu0 0
      %6319 = vmatpush1.bf16.msra.mxu0 0
      %6320 = vmatprep.subr.bf16.mxu0 0
      %6321 = vmatpush1.bf16.msra.mxu0 0
      %6322 = vmatprep.subr.bf16.mxu0 0
      %6323 = vmatpush1.bf16.msra.mxu0 0
      %6324 = vmatprep.subr.bf16.mxu0 0
      %6325 = vmatpush1.bf16.msra.mxu0 0
      %6326 = vmatprep.subr.bf16.mxu0 0
      %6327 = vmatpush1.bf16.msra.mxu0 0
      %6328 = vmatprep.subr.bf16.mxu0 0
      %6329 = vmatpush1.bf16.msra.mxu0 0
      %6330 = vmatprep.mubr.bf16.mxu0 0
      %6331 = vmatmul.mubr.bf16.gmra.mrb[0].mxu0 %v690
      %v6332 = vpop.f32.mrb[0].mxu0
      %v6333 = vadd.f32 0.0, %v6332
      %v6334 = vpop.f32.mrb[0].mxu0
      %v6335 = vadd.f32 0.0, %v6334
      %v6336 = vpop.f32.mrb[0].mxu0
      %v6337 = vadd.f32 0.0, %v6336
      %v6338 = vpop.f32.mrb[0].mxu0
      %v6339 = vadd.f32 0.0, %v6338
      %6340 = vmatprep.mubr.bf16.mxu0 0
      %6341 = vmatmul.mubr.bf16.gmra.mrb[0].mxu0 %v693
      %v6342 = vpop.f32.mrb[0].mxu0
      %v6343 = vadd.f32 0.0, %v6342
      %v6344 = vpop.f32.mrb[0].mxu0
      %v6345 = vadd.f32 0.0, %v6344
      %v6346 = vpop.f32.mrb[0].mxu0
      %v6347 = vadd.f32 0.0, %v6346
      %v6348 = vpop.f32.mrb[0].mxu0
      %v6349 = vadd.f32 0.0, %v6348
      %6350 = vmatprep.mubr.bf16.mxu0 0
      %6351 = vmatmul.mubr.bf16.gmra.mrb[0].mxu0 %v696
      %v6352 = vpop.f32.mrb[0].mxu0
      %v6353 = vadd.f32 0.0, %v6352
      %v6354 = vpop.f32.mrb[0].mxu0
      %v6355 = vadd.f32 0.0, %v6354
      %v6356 = vpop.f32.mrb[0].mxu0
      %v6357 = vadd.f32 0.0, %v6356
      %v6358 = vpop.f32.mrb[0].mxu0
      %v6359 = vadd.f32 0.0, %v6358
      %6360 = vmatprep.mubr.bf16.mxu0 0
      %6361 = vmatmul.mubr.bf16.gmra.mrb[0].mxu0 %v699
      %v6362 = vpop.f32.mrb[0].mxu0
      %v6363 = vadd.f32 0.0, %v6362
      %v6364 = vpop.f32.mrb[0].mxu0
      %v6365 = vadd.f32 0.0, %v6364
      %v6366 = vpop.f32.mrb[0].mxu0
      %v6367 = vadd.f32 0.0, %v6366
      %v6368 = vpop.f32.mrb[0].mxu0
      %v6369 = vadd.f32 0.0, %v6368
      %6370 = vmatprep.mubr.bf16.mxu0 0
      %6371 = vmatmul.mubr.bf16.gmra.mrb[0].mxu0 %v702
      %v6372 = vpop.f32.mrb[0].mxu0
      %v6373 = vadd.f32 0.0, %v6372
      %v6374 = vpop.f32.mrb[0].mxu0
      %v6375 = vadd.f32 0.0, %v6374
      %v6376 = vpop.f32.mrb[0].mxu0
      %v6377 = vadd.f32 0.0, %v6376
      %v6378 = vpop.f32.mrb[0].mxu0
      %v6379 = vadd.f32 0.0, %v6378
      %6380 = vdwg.mxu0
      %6381 = vrot.lane.b32.xlu0 %v6337, 1
      %v6382 = vpop.permute.xlu0 %6381
      %6383 = vrot.lane.b32.xlu0 %v6339, 1
      %v6384 = vpop.permute.xlu0 %6383
      %v6385 = vsel %vm791, %v6382, %v6384
      %v6386 = vsel %vm791, %v6384, %v6382
      %v6387 = vadd.f32 %v6333, %v6386
      %v6388 = vadd.f32 %v6335, %v6385
      %6389 = vrot.lane.b32.xlu0 %v6343, 2
      %v6390 = vpop.permute.xlu0 %6389
      %6391 = vrot.lane.b32.xlu0 %v6345, 2
      %v6392 = vpop.permute.xlu0 %6391
      %v6393 = vsel %vm800, %v6390, %v6392
      %v6394 = vsel %vm800, %v6392, %v6390
      %v6395 = vadd.f32 %v6387, %v6394
      %v6396 = vadd.f32 %v6388, %v6393
      %6397 = vrot.lane.b32.xlu0 %v6347, 3
      %v6398 = vpop.permute.xlu0 %6397
      %6399 = vrot.lane.b32.xlu0 %v6349, 3
      %v6400 = vpop.permute.xlu0 %6399
      %v6401 = vsel %vm809, %v6398, %v6400
      %v6402 = vsel %vm809, %v6400, %v6398
      %v6403 = vadd.f32 %v6395, %v6402
      %v6404 = vadd.f32 %v6396, %v6401
      %6405 = vrot.lane.b32.xlu0 %v6353, 4
      %v6406 = vpop.permute.xlu0 %6405
      %6407 = vrot.lane.b32.xlu0 %v6355, 4
      %v6408 = vpop.permute.xlu0 %6407
      %v6409 = vsel %vm818, %v6406, %v6408
      %v6410 = vsel %vm818, %v6408, %v6406
      %v6411 = vadd.f32 %v6403, %v6410
      %v6412 = vadd.f32 %v6404, %v6409
      %v6413 = vadd.f32 %v6411, %v6357
      %v6414 = vadd.f32 %v6412, %v6359
      %6415 = vrot.lane.b32.xlu0 %v6363, 16
      %v6416 = vpop.permute.xlu0 %6415
      %6417 = vrot.lane.b32.xlu0 %v6365, 16
      %v6418 = vpop.permute.xlu0 %6417
      %v6419 = vsel %vm829, %v6416, %v6418
      %v6420 = vsel %vm829, %v6418, %v6416
      %v6421 = vadd.f32 %v6413, %v6420
      %v6422 = vadd.f32 %v6414, %v6419
      %6423 = vrot.lane.b32.xlu0 %v6367, 32
      %v6424 = vpop.permute.xlu0 %6423
      %6425 = vrot.lane.b32.xlu0 %v6369, 32
      %v6426 = vpop.permute.xlu0 %6425
      %v6427 = vsel %vm838, %v6424, %v6426
      %v6428 = vsel %vm838, %v6426, %v6424
      %v6429 = vadd.f32 %v6421, %v6428
      %v6430 = vadd.f32 %v6422, %v6427
      %6431 = vrot.lane.b32.xlu0 %v6373, 48
      %v6432 = vpop.permute.xlu0 %6431
      %6433 = vrot.lane.b32.xlu0 %v6375, 48
      %v6434 = vpop.permute.xlu0 %6433
      %v6435 = vsel %vm847, %v6432, %v6434
      %v6436 = vsel %vm847, %v6434, %v6432
      %v6437 = vadd.f32 %v6429, %v6436
      %v6438 = vadd.f32 %v6430, %v6435
      %6439 = vrot.lane.b32.xlu0 %v6377, 64
      %v6440 = vpop.permute.xlu0 %6439
      %6441 = vrot.lane.b32.xlu0 %v6379, 64
      %v6442 = vpop.permute.xlu0 %6441
      %v6443 = vsel %vm437, %v6440, %v6442
      %v6444 = vsel %vm437, %v6442, %v6440
      %v6445 = vadd.f32 %v6437, %v6444
      %v6446 = vadd.f32 %v6438, %v6443
      %v6447 = vadd.f32 %v6445, %v863
      %v6448 = vadd.f32 %v6446, %v863
      %s6449 = scalar_lea.vmem %s6, 224
      %v6450 = vld [vmem:[%s6449] sm:$0xf]
      %v6451 = vld [vmem:[%s6449 + $0x4] sm:$0xf]
      %v6452 = vld [vmem:[%s6449 + $0x8] sm:$0xf]
      %v6453 = vld [vmem:[%s6449 + $0xc] sm:$0xf]
      %v6454 = vld [vmem:[%s6449 + $0x10] sm:$0xf]
      %v6455 = vld [vmem:[%s6449 + $0x14] sm:$0xf]
      %v6456 = vld [vmem:[%s6449 + $0x18] sm:$0xf]
      %v6457 = vld [vmem:[%s6449 + $0x1c] sm:$0xf]
      %s6458 = scalar_lea.vmem %s7, 448
      %v6459 = vld [vmem:[%s6458] sm:$0xff]
      %v6460 = vld [vmem:[%s6458 + $0x8] sm:$0xff]
      %v6461 = vld [vmem:[%s6458 + $0x10] sm:$0xff]
      %v6462 = vld [vmem:[%s6458 + $0x18] sm:$0xff]
      %v6463 = vld [vmem:[%s6458 + $0x20] sm:$0xff]
      %v6464 = vld [vmem:[%s6458 + $0x28] sm:$0xff]
      %v6465 = vld [vmem:[%s6458 + $0x30] sm:$0xff]
      %v6466 = vld [vmem:[%s6458 + $0x38] sm:$0xff]
      %6467 = vrot.lane.b32.xlu0 %v6447, 127
      %v6468 = vpop.permute.xlu0 %6467
      %6469 = vrot.lane.b32.xlu0 %v6448, 127
      %v6470 = vpop.permute.xlu0 %6469
      %v6471 = vsel %vm388, %v6468, %v6470
      %v6472 = vsel %vm388, %v6470, %v6468
      %6473 = vrot.lane.b32.xlu0 %v6447, 126
      %v6474 = vpop.permute.xlu0 %6473
      %6475 = vrot.lane.b32.xlu0 %v6448, 126
      %v6476 = vpop.permute.xlu0 %6475
      %v6477 = vsel %vm395, %v6474, %v6476
      %v6478 = vsel %vm395, %v6476, %v6474
      %6479 = vrot.lane.b32.xlu0 %v6447, 125
      %v6480 = vpop.permute.xlu0 %6479
      %6481 = vrot.lane.b32.xlu0 %v6448, 125
      %v6482 = vpop.permute.xlu0 %6481
      %v6483 = vsel %vm402, %v6480, %v6482
      %v6484 = vsel %vm402, %v6482, %v6480
      %6485 = vrot.lane.b32.xlu0 %v6447, 124
      %v6486 = vpop.permute.xlu0 %6485
      %6487 = vrot.lane.b32.xlu0 %v6448, 124
      %v6488 = vpop.permute.xlu0 %6487
      %v6489 = vsel %vm409, %v6486, %v6488
      %v6490 = vsel %vm409, %v6488, %v6486
      %6491 = vrot.lane.b32.xlu0 %v6447, 112
      %v6492 = vpop.permute.xlu0 %6491
      %6493 = vrot.lane.b32.xlu0 %v6448, 112
      %v6494 = vpop.permute.xlu0 %6493
      %v6495 = vsel %vm416, %v6492, %v6494
      %v6496 = vsel %vm416, %v6494, %v6492
      %6497 = vrot.lane.b32.xlu0 %v6447, 96
      %v6498 = vpop.permute.xlu0 %6497
      %6499 = vrot.lane.b32.xlu0 %v6448, 96
      %v6500 = vpop.permute.xlu0 %6499
      %v6501 = vsel %vm423, %v6498, %v6500
      %v6502 = vsel %vm423, %v6500, %v6498
      %6503 = vrot.lane.b32.xlu0 %v6447, 80
      %v6504 = vpop.permute.xlu0 %6503
      %6505 = vrot.lane.b32.xlu0 %v6448, 80
      %v6506 = vpop.permute.xlu0 %6505
      %v6507 = vsel %vm430, %v6504, %v6506
      %v6508 = vsel %vm430, %v6506, %v6504
      %6509 = vrot.lane.b32.xlu0 %v6447, 64
      %v6510 = vpop.permute.xlu0 %6509
      %6511 = vrot.lane.b32.xlu0 %v6448, 64
      %v6512 = vpop.permute.xlu0 %6511
      %v6513 = vsel %vm437, %v6510, %v6512
      %v6514 = vsel %vm437, %v6512, %v6510
      %v6515 = vpack.c.bf16 %v6471, %v6447
      %v6516 = vpack.c.bf16 %v6472, %v6448
      %v6517 = vpack.c.bf16 %v6483, %v6477
      %v6518 = vpack.c.bf16 %v6484, %v6478
      %v6519 = vpack.c.bf16 %v6447, %v6489
      %v6520 = vpack.c.bf16 %v6448, %v6490
      %v6521 = vpack.c.bf16 %v6501, %v6495
      %v6522 = vpack.c.bf16 %v6502, %v6496
      %v6523 = vpack.c.bf16 %v6513, %v6507
      %v6524 = vpack.c.bf16 %v6514, %v6508
      %6526 = vset.pattern.permute.xlu0 0
      %6527 = vperm.xlu0 %6526, %v6459
      %v6528 = vpop.permute.xlu0 %6527
      %6531 = vset.pattern.permute.xlu0 0
      %6532 = vperm.xlu0 %6531, %v6460
      %v6533 = vpop.permute.xlu0 %6532
      %6536 = vset.pattern.permute.xlu0 0
      %6537 = vperm.xlu0 %6536, %v6461
      %v6538 = vpop.permute.xlu0 %6537
      %6541 = vset.pattern.permute.xlu0 0
      %6542 = vperm.xlu0 %6541, %v6462
      %v6543 = vpop.permute.xlu0 %6542
      %6546 = vset.pattern.permute.xlu0 0
      %6547 = vperm.xlu0 %6546, %v6463
      %v6548 = vpop.permute.xlu0 %6547
      %6551 = vset.pattern.permute.xlu0 0
      %6552 = vperm.xlu0 %6551, %v6464
      %v6553 = vpop.permute.xlu0 %6552
      %6556 = vset.pattern.permute.xlu0 0
      %6557 = vperm.xlu0 %6556, %v6465
      %v6558 = vpop.permute.xlu0 %6557
      %6561 = vset.pattern.permute.xlu0 0
      %6562 = vperm.xlu0 %6561, %v6466
      %v6563 = vpop.permute.xlu0 %6562
      %v6573 = vunpack.c.l.b16 %v6450
      %v6574 = vunpack.c.l.b16 %v6451
      %v6575 = vunpack.c.l.b16 %v6452
      %v6576 = vunpack.c.l.b16 %v6453
      %v6577 = vunpack.c.l.b16 %v6454
      %v6578 = vunpack.c.l.b16 %v6455
      %v6579 = vunpack.c.l.b16 %v6456
      %v6580 = vunpack.c.l.b16 %v6457
      %v6581 = vpack.c.b16 %v6574, %v6573
      %v6582 = vpack.c.b16 %v6576, %v6575
      %v6583 = vpack.c.b16 %v6578, %v6577
      %v6584 = vpack.c.b16 %v6580, %v6579
      %v6586 = vsel %vm510, %v6581, 0
      %v6589 = vsel %vm510, %v6582, 0
      %v6592 = vsel %vm510, %v6583, 0
      %v6595 = vsel %vm510, %v6584, 0
      %6597 = vmatprep.subr.bf16.mxu0 %v6516
      %6598 = vmatpush1.bf16.msra.mxu0 %v6515
      %6599 = vmatprep.subr.bf16.mxu0 %v6518
      %6600 = vmatpush1.bf16.msra.mxu0 %v6517
      %6601 = vmatprep.subr.bf16.mxu0 %v6520
      %6602 = vmatpush1.bf16.msra.mxu0 %v6519
      %6603 = vmatprep.subr.bf16.mxu0 %v6522
      %6604 = vmatpush1.bf16.msra.mxu0 %v6521
      %6605 = vmatprep.subr.bf16.mxu0 %v6524
      %6606 = vmatpush1.bf16.msra.mxu0 %v6523
      %6607 = vmatprep.subr.bf16.mxu0 0
      %6608 = vmatpush1.bf16.msra.mxu0 0
      %6609 = vmatprep.subr.bf16.mxu0 0
      %6610 = vmatpush1.bf16.msra.mxu0 0
      %6611 = vmatprep.subr.bf16.mxu0 0
      %6612 = vmatpush1.bf16.msra.mxu0 0
      %6613 = vmatprep.subr.bf16.mxu0 0
      %6614 = vmatpush1.bf16.msra.mxu0 0
      %6615 = vmatprep.subr.bf16.mxu0 0
      %6616 = vmatpush1.bf16.msra.mxu0 0
      %6617 = vmatprep.subr.bf16.mxu0 0
      %6618 = vmatpush1.bf16.msra.mxu0 0
      %6619 = vmatprep.subr.bf16.mxu0 0
      %6620 = vmatpush1.bf16.msra.mxu0 0
      %6621 = vmatprep.subr.bf16.mxu0 0
      %6622 = vmatpush1.bf16.msra.mxu0 0
      %6623 = vmatprep.subr.bf16.mxu0 0
      %6624 = vmatpush1.bf16.msra.mxu0 0
      %6625 = vmatprep.subr.bf16.mxu0 0
      %6626 = vmatpush1.bf16.msra.mxu0 0
      %6627 = vmatprep.subr.bf16.mxu0 0
      %6628 = vmatpush1.bf16.msra.mxu0 0
      %6629 = vmatprep.mubr.bf16.mxu0 0
      %6630 = vmatmul.mubr.bf16.gmra.mrb[0].mxu0 %v6586
      %v6631 = vpop.f32.mrb[0].mxu0
      %v6632 = vadd.f32 %v6528, %v6631
      %v6633 = vpop.f32.mrb[0].mxu0
      %v6634 = vadd.f32 %v6528, %v6633
      %v6635 = vpop.f32.mrb[0].mxu0
      %v6636 = vadd.f32 %v6533, %v6635
      %v6637 = vpop.f32.mrb[0].mxu0
      %v6638 = vadd.f32 %v6533, %v6637
      %6639 = vmatprep.mubr.bf16.mxu0 0
      %6640 = vmatmul.mubr.bf16.gmra.mrb[0].mxu0 %v6589
      %v6641 = vpop.f32.mrb[0].mxu0
      %v6642 = vadd.f32 %v6538, %v6641
      %v6643 = vpop.f32.mrb[0].mxu0
      %v6644 = vadd.f32 %v6538, %v6643
      %v6645 = vpop.f32.mrb[0].mxu0
      %v6646 = vadd.f32 %v6543, %v6645
      %v6647 = vpop.f32.mrb[0].mxu0
      %v6648 = vadd.f32 %v6543, %v6647
      %6649 = vmatprep.mubr.bf16.mxu0 0
      %6650 = vmatmul.mubr.bf16.gmra.mrb[0].mxu0 %v6592
      %v6651 = vpop.f32.mrb[0].mxu0
      %v6652 = vadd.f32 %v6548, %v6651
      %v6653 = vpop.f32.mrb[0].mxu0
      %v6654 = vadd.f32 %v6548, %v6653
      %v6655 = vpop.f32.mrb[0].mxu0
      %v6656 = vadd.f32 %v6553, %v6655
      %v6657 = vpop.f32.mrb[0].mxu0
      %v6658 = vadd.f32 %v6553, %v6657
      %6659 = vmatprep.mubr.bf16.mxu0 0
      %6660 = vmatmul.mubr.bf16.gmra.mrb[0].mxu0 %v6595
      %v6661 = vpop.f32.mrb[0].mxu0
      %v6662 = vadd.f32 %v6558, %v6661
      %v6663 = vpop.f32.mrb[0].mxu0
      %v6664 = vadd.f32 %v6558, %v6663
      %v6665 = vpop.f32.mrb[0].mxu0
      %v6666 = vadd.f32 %v6563, %v6665
      %v6667 = vpop.f32.mrb[0].mxu0
      %v6668 = vadd.f32 %v6563, %v6667
      %6669 = vdwg.mxu0
      %v6670 = vmax.f32 %v6632, 0.0
      %v6671 = vmax.f32 %v6634, 0.0
      %v6672 = vmax.f32 %v6636, 0.0
      %v6673 = vmax.f32 %v6638, 0.0
      %v6674 = vmax.f32 %v6642, 0.0
      %v6675 = vmax.f32 %v6644, 0.0
      %v6676 = vmax.f32 %v6646, 0.0
      %v6677 = vmax.f32 %v6648, 0.0
      %v6678 = vmax.f32 %v6652, 0.0
      %v6679 = vmax.f32 %v6654, 0.0
      %v6680 = vmax.f32 %v6656, 0.0
      %v6681 = vmax.f32 %v6658, 0.0
      %v6682 = vmax.f32 %v6662, 0.0
      %v6683 = vmax.f32 %v6664, 0.0
      %v6684 = vmax.f32 %v6666, 0.0
      %v6685 = vmax.f32 %v6668, 0.0
      %v6686 = vmul.f32 %v6670, %v612
      %v6687 = vmul.f32 %v6671, %v613
      %v6688 = vmul.f32 %v6672, %v614
      %v6689 = vmul.f32 %v6673, %v615
      %v6690 = vmul.f32 %v6674, %v616
      %v6691 = vmul.f32 %v6675, %v617
      %v6692 = vmul.f32 %v6676, %v618
      %v6693 = vmul.f32 %v6677, %v619
      %v6694 = vmul.f32 %v6678, %v620
      %v6695 = vmul.f32 %v6679, %v621
      %v6696 = vmul.f32 %v6680, %v622
      %v6697 = vmul.f32 %v6681, %v623
      %v6698 = vmul.f32 %v6682, %v624
      %v6699 = vmul.f32 %v6683, %v625
      %v6700 = vmul.f32 %v6684, %v626
      %v6701 = vmul.f32 %v6685, %v627
      %v6702 = vpack.c.bf16 %v6688, %v6686
      %v6703 = vpack.c.bf16 %v6689, %v6687
      %v6704 = vpack.c.bf16 %v6692, %v6690
      %v6705 = vpack.c.bf16 %v6693, %v6691
      %v6706 = vpack.c.bf16 %v6696, %v6694
      %v6707 = vpack.c.bf16 %v6697, %v6695
      %v6708 = vpack.c.bf16 %v6700, %v6698
      %v6709 = vpack.c.bf16 %v6701, %v6699
      %s6710 = scalar_lea.vmem %s8, 280
      %v6711 = vld [vmem:[%s6710] sm:$0xf]
      %v6712 = vld [vmem:[%s6710 + $0x4] sm:$0xf]
      %v6713 = vld [vmem:[%s6710 + $0x8] sm:$0xf]
      %v6714 = vld [vmem:[%s6710 + $0xc] sm:$0xf]
      %v6715 = vld [vmem:[%s6710 + $0x10] sm:$0xf]
      %v6716 = vld [vmem:[%s6710 + $0x14] sm:$0xf]
      %v6717 = vld [vmem:[%s6710 + $0x18] sm:$0xf]
      %v6718 = vld [vmem:[%s6710 + $0x1c] sm:$0xf]
      %v6719 = vld [vmem:[%s6710 + $0x20] sm:$0xf]
      %v6720 = vld [vmem:[%s6710 + $0x24] sm:$0xf]
      %s6721 = scalar_lea.vmem %s9, 56
      %v6722 = vld [vmem:[%s6721] sm:$0xff]
      %v6733 = vunpack.c.l.b16 %v6711
      %v6734 = vunpack.c.l.b16 %v6712
      %v6735 = vunpack.c.l.b16 %v6713
      %v6736 = vunpack.c.l.b16 %v6714
      %v6737 = vunpack.c.l.b16 %v6715
      %v6738 = vunpack.c.l.b16 %v6716
      %v6739 = vunpack.c.l.b16 %v6717
      %v6740 = vunpack.c.l.b16 %v6718
      %v6741 = vunpack.c.l.b16 %v6719
      %v6742 = vunpack.c.l.b16 %v6720
      %v6743 = vpack.c.b16 %v6734, %v6733
      %v6744 = vpack.c.b16 %v6736, %v6735
      %v6745 = vpack.c.b16 %v6738, %v6737
      %v6746 = vpack.c.b16 %v6740, %v6739
      %v6747 = vpack.c.b16 %v6742, %v6741
      %v6749 = vsel %vm688, %v6743, 0
      %v6752 = vsel %vm688, %v6744, 0
      %v6755 = vsel %vm688, %v6745, 0
      %v6758 = vsel %vm688, %v6746, 0
      %v6761 = vsel %vm688, %v6747, 0
      %6763 = vmatprep.subr.bf16.mxu0 %v6703
      %6764 = vmatpush1.bf16.msra.mxu0 %v6702
      %6765 = vmatprep.subr.bf16.mxu0 %v6705
      %6766 = vmatpush1.bf16.msra.mxu0 %v6704
      %6767 = vmatprep.subr.bf16.mxu0 %v6707
      %6768 = vmatpush1.bf16.msra.mxu0 %v6706
      %6769 = vmatprep.subr.bf16.mxu0 %v6709
      %6770 = vmatpush1.bf16.msra.mxu0 %v6708
      %6771 = vmatprep.subr.bf16.mxu0 0
      %6772 = vmatpush1.bf16.msra.mxu0 0
      %6773 = vmatprep.subr.bf16.mxu0 0
      %6774 = vmatpush1.bf16.msra.mxu0 0
      %6775 = vmatprep.subr.bf16.mxu0 0
      %6776 = vmatpush1.bf16.msra.mxu0 0
      %6777 = vmatprep.subr.bf16.mxu0 0
      %6778 = vmatpush1.bf16.msra.mxu0 0
      %6779 = vmatprep.subr.bf16.mxu0 0
      %6780 = vmatpush1.bf16.msra.mxu0 0
      %6781 = vmatprep.subr.bf16.mxu0 0
      %6782 = vmatpush1.bf16.msra.mxu0 0
      %6783 = vmatprep.subr.bf16.mxu0 0
      %6784 = vmatpush1.bf16.msra.mxu0 0
      %6785 = vmatprep.subr.bf16.mxu0 0
      %6786 = vmatpush1.bf16.msra.mxu0 0
      %6787 = vmatprep.subr.bf16.mxu0 0
      %6788 = vmatpush1.bf16.msra.mxu0 0
      %6789 = vmatprep.subr.bf16.mxu0 0
      %6790 = vmatpush1.bf16.msra.mxu0 0
      %6791 = vmatprep.subr.bf16.mxu0 0
      %6792 = vmatpush1.bf16.msra.mxu0 0
      %6793 = vmatprep.subr.bf16.mxu0 0
      %6794 = vmatpush1.bf16.msra.mxu0 0
      %6795 = vmatprep.mubr.bf16.mxu0 0
      %6796 = vmatmul.mubr.bf16.gmra.mrb[0].mxu0 %v6749
      %v6797 = vpop.f32.mrb[0].mxu0
      %v6798 = vadd.f32 0.0, %v6797
      %v6799 = vpop.f32.mrb[0].mxu0
      %v6800 = vadd.f32 0.0, %v6799
      %v6801 = vpop.f32.mrb[0].mxu0
      %v6802 = vadd.f32 0.0, %v6801
      %v6803 = vpop.f32.mrb[0].mxu0
      %v6804 = vadd.f32 0.0, %v6803
      %6805 = vmatprep.mubr.bf16.mxu0 0
      %6806 = vmatmul.mubr.bf16.gmra.mrb[0].mxu0 %v6752
      %v6807 = vpop.f32.mrb[0].mxu0
      %v6808 = vadd.f32 0.0, %v6807
      %v6809 = vpop.f32.mrb[0].mxu0
      %v6810 = vadd.f32 0.0, %v6809
      %v6811 = vpop.f32.mrb[0].mxu0
      %v6812 = vadd.f32 0.0, %v6811
      %v6813 = vpop.f32.mrb[0].mxu0
      %v6814 = vadd.f32 0.0, %v6813
      %6815 = vmatprep.mubr.bf16.mxu0 0
      %6816 = vmatmul.mubr.bf16.gmra.mrb[0].mxu0 %v6755
      %v6817 = vpop.f32.mrb[0].mxu0
      %v6818 = vadd.f32 0.0, %v6817
      %v6819 = vpop.f32.mrb[0].mxu0
      %v6820 = vadd.f32 0.0, %v6819
      %v6821 = vpop.f32.mrb[0].mxu0
      %v6822 = vadd.f32 0.0, %v6821
      %v6823 = vpop.f32.mrb[0].mxu0
      %v6824 = vadd.f32 0.0, %v6823
      %6825 = vmatprep.mubr.bf16.mxu0 0
      %6826 = vmatmul.mubr.bf16.gmra.mrb[0].mxu0 %v6758
      %v6827 = vpop.f32.mrb[0].mxu0
      %v6828 = vadd.f32 0.0, %v6827
      %v6829 = vpop.f32.mrb[0].mxu0
      %v6830 = vadd.f32 0.0, %v6829
      %v6831 = vpop.f32.mrb[0].mxu0
      %v6832 = vadd.f32 0.0, %v6831
      %v6833 = vpop.f32.mrb[0].mxu0
      %v6834 = vadd.f32 0.0, %v6833
      %6835 = vmatprep.mubr.bf16.mxu0 0
      %6836 = vmatmul.mubr.bf16.gmra.mrb[0].mxu0 %v6761
      %v6837 = vpop.f32.mrb[0].mxu0
      %v6838 = vadd.f32 0.0, %v6837
      %v6839 = vpop.f32.mrb[0].mxu0
      %v6840 = vadd.f32 0.0, %v6839
      %v6841 = vpop.f32.mrb[0].mxu0
      %v6842 = vadd.f32 0.0, %v6841
      %v6843 = vpop.f32.mrb[0].mxu0
      %v6844 = vadd.f32 0.0, %v6843
      %6845 = vdwg.mxu0
      %6846 = vrot.lane.b32.xlu0 %v6802, 1
      %v6847 = vpop.permute.xlu0 %6846
      %6848 = vrot.lane.b32.xlu0 %v6804, 1
      %v6849 = vpop.permute.xlu0 %6848
      %v6850 = vsel %vm791, %v6847, %v6849
      %v6851 = vsel %vm791, %v6849, %v6847
      %v6852 = vadd.f32 %v6798, %v6851
      %v6853 = vadd.f32 %v6800, %v6850
      %6854 = vrot.lane.b32.xlu0 %v6808, 2
      %v6855 = vpop.permute.xlu0 %6854
      %6856 = vrot.lane.b32.xlu0 %v6810, 2
      %v6857 = vpop.permute.xlu0 %6856
      %v6858 = vsel %vm800, %v6855, %v6857
      %v6859 = vsel %vm800, %v6857, %v6855
      %v6860 = vadd.f32 %v6852, %v6859
      %v6861 = vadd.f32 %v6853, %v6858
      %6862 = vrot.lane.b32.xlu0 %v6812, 3
      %v6863 = vpop.permute.xlu0 %6862
      %6864 = vrot.lane.b32.xlu0 %v6814, 3
      %v6865 = vpop.permute.xlu0 %6864
      %v6866 = vsel %vm809, %v6863, %v6865
      %v6867 = vsel %vm809, %v6865, %v6863
      %v6868 = vadd.f32 %v6860, %v6867
      %v6869 = vadd.f32 %v6861, %v6866
      %6870 = vrot.lane.b32.xlu0 %v6818, 4
      %v6871 = vpop.permute.xlu0 %6870
      %6872 = vrot.lane.b32.xlu0 %v6820, 4
      %v6873 = vpop.permute.xlu0 %6872
      %v6874 = vsel %vm818, %v6871, %v6873
      %v6875 = vsel %vm818, %v6873, %v6871
      %v6876 = vadd.f32 %v6868, %v6875
      %v6877 = vadd.f32 %v6869, %v6874
      %v6878 = vadd.f32 %v6876, %v6822
      %v6879 = vadd.f32 %v6877, %v6824
      %6880 = vrot.lane.b32.xlu0 %v6828, 16
      %v6881 = vpop.permute.xlu0 %6880
      %6882 = vrot.lane.b32.xlu0 %v6830, 16
      %v6883 = vpop.permute.xlu0 %6882
      %v6884 = vsel %vm829, %v6881, %v6883
      %v6885 = vsel %vm829, %v6883, %v6881
      %v6886 = vadd.f32 %v6878, %v6885
      %v6887 = vadd.f32 %v6879, %v6884
      %6888 = vrot.lane.b32.xlu0 %v6832, 32
      %v6889 = vpop.permute.xlu0 %6888
      %6890 = vrot.lane.b32.xlu0 %v6834, 32
      %v6891 = vpop.permute.xlu0 %6890
      %v6892 = vsel %vm838, %v6889, %v6891
      %v6893 = vsel %vm838, %v6891, %v6889
      %v6894 = vadd.f32 %v6886, %v6893
      %v6895 = vadd.f32 %v6887, %v6892
      %6896 = vrot.lane.b32.xlu0 %v6838, 48
      %v6897 = vpop.permute.xlu0 %6896
      %6898 = vrot.lane.b32.xlu0 %v6840, 48
      %v6899 = vpop.permute.xlu0 %6898
      %v6900 = vsel %vm847, %v6897, %v6899
      %v6901 = vsel %vm847, %v6899, %v6897
      %v6902 = vadd.f32 %v6894, %v6901
      %v6903 = vadd.f32 %v6895, %v6900
      %6904 = vrot.lane.b32.xlu0 %v6842, 64
      %v6905 = vpop.permute.xlu0 %6904
      %6906 = vrot.lane.b32.xlu0 %v6844, 64
      %v6907 = vpop.permute.xlu0 %6906
      %v6908 = vsel %vm437, %v6905, %v6907
      %v6909 = vsel %vm437, %v6907, %v6905
      %v6910 = vadd.f32 %v6902, %v6909
      %v6911 = vadd.f32 %v6903, %v6908
      %6913 = vset.pattern.permute.xlu0 0
      %6914 = vperm.xlu0 %6913, %v6722
      %v6915 = vpop.permute.xlu0 %6914
      %v6917 = vadd.f32 %v6910, %v6915
      %v6918 = vadd.f32 %v6911, %v6915
      %v6919 = vmax.f32 %v6917, 0.0
      %v6920 = vmax.f32 %v6918, 0.0
      %v6921 = vadd.f32 %v6125, %v6919
      %v6922 = vadd.f32 %v6126, %v6920
      %v6923 = vmax.f32 %v6921, 0.0
      %v6924 = vmax.f32 %v6922, 0.0
      %6925 = vrot.lane.b32.xlu0 %v6923, 127
      %v6926 = vpop.permute.xlu0 %6925
      %6927 = vrot.lane.b32.xlu0 %v6924, 127
      %v6928 = vpop.permute.xlu0 %6927
      %v6929 = vsel %vm388, %v6926, %v6928
      %v6930 = vsel %vm388, %v6928, %v6926
      %6931 = vrot.lane.b32.xlu0 %v6923, 126
      %v6932 = vpop.permute.xlu0 %6931
      %6933 = vrot.lane.b32.xlu0 %v6924, 126
      %v6934 = vpop.permute.xlu0 %6933
      %v6935 = vsel %vm395, %v6932, %v6934
      %v6936 = vsel %vm395, %v6934, %v6932
      %6937 = vrot.lane.b32.xlu0 %v6923, 125
      %v6938 = vpop.permute.xlu0 %6937
      %6939 = vrot.lane.b32.xlu0 %v6924, 125
      %v6940 = vpop.permute.xlu0 %6939
      %v6941 = vsel %vm402, %v6938, %v6940
      %v6942 = vsel %vm402, %v6940, %v6938
      %6943 = vrot.lane.b32.xlu0 %v6923, 124
      %v6944 = vpop.permute.xlu0 %6943
      %6945 = vrot.lane.b32.xlu0 %v6924, 124
      %v6946 = vpop.permute.xlu0 %6945
      %v6947 = vsel %vm409, %v6944, %v6946
      %v6948 = vsel %vm409, %v6946, %v6944
      %6949 = vrot.lane.b32.xlu0 %v6923, 112
      %v6950 = vpop.permute.xlu0 %6949
      %6951 = vrot.lane.b32.xlu0 %v6924, 112
      %v6952 = vpop.permute.xlu0 %6951
      %v6953 = vsel %vm416, %v6950, %v6952
      %v6954 = vsel %vm416, %v6952, %v6950
      %6955 = vrot.lane.b32.xlu0 %v6923, 96
      %v6956 = vpop.permute.xlu0 %6955
      %6957 = vrot.lane.b32.xlu0 %v6924, 96
      %v6958 = vpop.permute.xlu0 %6957
      %v6959 = vsel %vm423, %v6956, %v6958
      %v6960 = vsel %vm423, %v6958, %v6956
      %6961 = vrot.lane.b32.xlu0 %v6923, 80
      %v6962 = vpop.permute.xlu0 %6961
      %6963 = vrot.lane.b32.xlu0 %v6924, 80
      %v6964 = vpop.permute.xlu0 %6963
      %v6965 = vsel %vm430, %v6962, %v6964
      %v6966 = vsel %vm430, %v6964, %v6962
      %6967 = vrot.lane.b32.xlu0 %v6923, 64
      %v6968 = vpop.permute.xlu0 %6967
      %6969 = vrot.lane.b32.xlu0 %v6924, 64
      %v6970 = vpop.permute.xlu0 %6969
      %v6971 = vsel %vm437, %v6968, %v6970
      %v6972 = vsel %vm437, %v6970, %v6968
      %v6973 = vpack.c.bf16 %v6929, %v6923
      %v6974 = vpack.c.bf16 %v6930, %v6924
      %v6975 = vpack.c.bf16 %v6941, %v6935
      %v6976 = vpack.c.bf16 %v6942, %v6936
      %v6977 = vpack.c.bf16 %v6923, %v6947
      %v6978 = vpack.c.bf16 %v6924, %v6948
      %v6979 = vpack.c.bf16 %v6959, %v6953
      %v6980 = vpack.c.bf16 %v6960, %v6954
      %v6981 = vpack.c.bf16 %v6971, %v6965
      %v6982 = vpack.c.bf16 %v6972, %v6966
      %6983 = vmatprep.subr.bf16.mxu0 %v6974
      %6984 = vmatpush1.bf16.msra.mxu0 %v6973
      %6985 = vmatprep.subr.bf16.mxu0 %v6976
      %6986 = vmatpush1.bf16.msra.mxu0 %v6975
      %6987 = vmatprep.subr.bf16.mxu0 %v6978
      %6988 = vmatpush1.bf16.msra.mxu0 %v6977
      %6989 = vmatprep.subr.bf16.mxu0 %v6980
      %6990 = vmatpush1.bf16.msra.mxu0 %v6979
      %6991 = vmatprep.subr.bf16.mxu0 %v6982
      %6992 = vmatpush1.bf16.msra.mxu0 %v6981
      %6993 = vmatprep.subr.bf16.mxu0 0
      %6994 = vmatpush1.bf16.msra.mxu0 0
      %6995 = vmatprep.subr.bf16.mxu0 0
      %6996 = vmatpush1.bf16.msra.mxu0 0
      %6997 = vmatprep.subr.bf16.mxu0 0
      %6998 = vmatpush1.bf16.msra.mxu0 0
      %6999 = vmatprep.subr.bf16.mxu0 0
      %7000 = vmatpush1.bf16.msra.mxu0 0
      %7001 = vmatprep.subr.bf16.mxu0 0
      %7002 = vmatpush1.bf16.msra.mxu0 0
      %7003 = vmatprep.subr.bf16.mxu0 0
      %7004 = vmatpush1.bf16.msra.mxu0 0
      %7005 = vmatprep.subr.bf16.mxu0 0
      %7006 = vmatpush1.bf16.msra.mxu0 0
      %7007 = vmatprep.subr.bf16.mxu0 0
      %7008 = vmatpush1.bf16.msra.mxu0 0
      %7009 = vmatprep.subr.bf16.mxu0 0
      %7010 = vmatpush1.bf16.msra.mxu0 0
      %7011 = vmatprep.subr.bf16.mxu0 0
      %7012 = vmatpush1.bf16.msra.mxu0 0
      %7013 = vmatprep.subr.bf16.mxu0 0
      %7014 = vmatpush1.bf16.msra.mxu0 0
      %7015 = vmatprep.mubr.bf16.mxu0 0
      %7016 = vmatmul.mubr.bf16.gmra.mrb[0].mxu0 %v512
      %v7017 = vpop.f32.mrb[0].mxu0
      %v7018 = vadd.f32 %v453, %v7017
      %v7019 = vpop.f32.mrb[0].mxu0
      %v7020 = vadd.f32 %v453, %v7019
      %v7021 = vpop.f32.mrb[0].mxu0
      %v7022 = vadd.f32 %v458, %v7021
      %v7023 = vpop.f32.mrb[0].mxu0
      %v7024 = vadd.f32 %v458, %v7023
      %7025 = vmatprep.mubr.bf16.mxu0 0
      %7026 = vmatmul.mubr.bf16.gmra.mrb[0].mxu0 %v515
      %v7027 = vpop.f32.mrb[0].mxu0
      %v7028 = vadd.f32 %v463, %v7027
      %v7029 = vpop.f32.mrb[0].mxu0
      %v7030 = vadd.f32 %v463, %v7029
      %v7031 = vpop.f32.mrb[0].mxu0
      %v7032 = vadd.f32 %v468, %v7031
      %v7033 = vpop.f32.mrb[0].mxu0
      %v7034 = vadd.f32 %v468, %v7033
      %7035 = vmatprep.mubr.bf16.mxu0 0
      %7036 = vmatmul.mubr.bf16.gmra.mrb[0].mxu0 %v518
      %v7037 = vpop.f32.mrb[0].mxu0
      %v7038 = vadd.f32 %v473, %v7037
      %v7039 = vpop.f32.mrb[0].mxu0
      %v7040 = vadd.f32 %v473, %v7039
      %v7041 = vpop.f32.mrb[0].mxu0
      %v7042 = vadd.f32 %v478, %v7041
      %v7043 = vpop.f32.mrb[0].mxu0
      %v7044 = vadd.f32 %v478, %v7043
      %7045 = vmatprep.mubr.bf16.mxu0 0
      %7046 = vmatmul.mubr.bf16.gmra.mrb[0].mxu0 %v521
      %v7047 = vpop.f32.mrb[0].mxu0
      %v7048 = vadd.f32 %v483, %v7047
      %v7049 = vpop.f32.mrb[0].mxu0
      %v7050 = vadd.f32 %v483, %v7049
      %v7051 = vpop.f32.mrb[0].mxu0
      %v7052 = vadd.f32 %v488, %v7051
      %v7053 = vpop.f32.mrb[0].mxu0
      %v7054 = vadd.f32 %v488, %v7053
      %7055 = vdwg.mxu0
      %v7056 = vmax.f32 %v7018, 0.0
      %v7057 = vmax.f32 %v7020, 0.0
      %v7058 = vmax.f32 %v7022, 0.0
      %v7059 = vmax.f32 %v7024, 0.0
      %v7060 = vmax.f32 %v7028, 0.0
      %v7061 = vmax.f32 %v7030, 0.0
      %v7062 = vmax.f32 %v7032, 0.0
      %v7063 = vmax.f32 %v7034, 0.0
      %v7064 = vmax.f32 %v7038, 0.0
      %v7065 = vmax.f32 %v7040, 0.0
      %v7066 = vmax.f32 %v7042, 0.0
      %v7067 = vmax.f32 %v7044, 0.0
      %v7068 = vmax.f32 %v7048, 0.0
      %v7069 = vmax.f32 %v7050, 0.0
      %v7070 = vmax.f32 %v7052, 0.0
      %v7071 = vmax.f32 %v7054, 0.0
      %v7072 = vmul.f32 %v7056, %v612
      %v7073 = vmul.f32 %v7057, %v613
      %v7074 = vmul.f32 %v7058, %v614
      %v7075 = vmul.f32 %v7059, %v615
      %v7076 = vmul.f32 %v7060, %v616
      %v7077 = vmul.f32 %v7061, %v617
      %v7078 = vmul.f32 %v7062, %v618
      %v7079 = vmul.f32 %v7063, %v619
      %v7080 = vmul.f32 %v7064, %v620
      %v7081 = vmul.f32 %v7065, %v621
      %v7082 = vmul.f32 %v7066, %v622
      %v7083 = vmul.f32 %v7067, %v623
      %v7084 = vmul.f32 %v7068, %v624
      %v7085 = vmul.f32 %v7069, %v625
      %v7086 = vmul.f32 %v7070, %v626
      %v7087 = vmul.f32 %v7071, %v627
      %v7088 = vpack.c.bf16 %v7074, %v7072
      %v7089 = vpack.c.bf16 %v7075, %v7073
      %v7090 = vpack.c.bf16 %v7078, %v7076
      %v7091 = vpack.c.bf16 %v7079, %v7077
      %v7092 = vpack.c.bf16 %v7082, %v7080
      %v7093 = vpack.c.bf16 %v7083, %v7081
      %v7094 = vpack.c.bf16 %v7086, %v7084
      %v7095 = vpack.c.bf16 %v7087, %v7085
      %7096 = vmatprep.subr.bf16.mxu0 %v7089
      %7097 = vmatpush1.bf16.msra.mxu0 %v7088
      %7098 = vmatprep.subr.bf16.mxu0 %v7091
      %7099 = vmatpush1.bf16.msra.mxu0 %v7090
      %7100 = vmatprep.subr.bf16.mxu0 %v7093
      %7101 = vmatpush1.bf16.msra.mxu0 %v7092
      %7102 = vmatprep.subr.bf16.mxu0 %v7095
      %7103 = vmatpush1.bf16.msra.mxu0 %v7094
      %7104 = vmatprep.subr.bf16.mxu0 0
      %7105 = vmatpush1.bf16.msra.mxu0 0
      %7106 = vmatprep.subr.bf16.mxu0 0
      %7107 = vmatpush1.bf16.msra.mxu0 0
      %7108 = vmatprep.subr.bf16.mxu0 0
      %7109 = vmatpush1.bf16.msra.mxu0 0
      %7110 = vmatprep.subr.bf16.mxu0 0
      %7111 = vmatpush1.bf16.msra.mxu0 0
      %7112 = vmatprep.subr.bf16.mxu0 0
      %7113 = vmatpush1.bf16.msra.mxu0 0
      %7114 = vmatprep.subr.bf16.mxu0 0
      %7115 = vmatpush1.bf16.msra.mxu0 0
      %7116 = vmatprep.subr.bf16.mxu0 0
      %7117 = vmatpush1.bf16.msra.mxu0 0
      %7118 = vmatprep.subr.bf16.mxu0 0
      %7119 = vmatpush1.bf16.msra.mxu0 0
      %7120 = vmatprep.subr.bf16.mxu0 0
      %7121 = vmatpush1.bf16.msra.mxu0 0
      %7122 = vmatprep.subr.bf16.mxu0 0
      %7123 = vmatpush1.bf16.msra.mxu0 0
      %7124 = vmatprep.subr.bf16.mxu0 0
      %7125 = vmatpush1.bf16.msra.mxu0 0
      %7126 = vmatprep.subr.bf16.mxu0 0
      %7127 = vmatpush1.bf16.msra.mxu0 0
      %7128 = vmatprep.mubr.bf16.mxu0 0
      %7129 = vmatmul.mubr.bf16.gmra.mrb[0].mxu0 %v690
      %v7130 = vpop.f32.mrb[0].mxu0
      %v7131 = vadd.f32 0.0, %v7130
      %v7132 = vpop.f32.mrb[0].mxu0
      %v7133 = vadd.f32 0.0, %v7132
      %v7134 = vpop.f32.mrb[0].mxu0
      %v7135 = vadd.f32 0.0, %v7134
      %v7136 = vpop.f32.mrb[0].mxu0
      %v7137 = vadd.f32 0.0, %v7136
      %7138 = vmatprep.mubr.bf16.mxu0 0
      %7139 = vmatmul.mubr.bf16.gmra.mrb[0].mxu0 %v693
      %v7140 = vpop.f32.mrb[0].mxu0
      %v7141 = vadd.f32 0.0, %v7140
      %v7142 = vpop.f32.mrb[0].mxu0
      %v7143 = vadd.f32 0.0, %v7142
      %v7144 = vpop.f32.mrb[0].mxu0
      %v7145 = vadd.f32 0.0, %v7144
      %v7146 = vpop.f32.mrb[0].mxu0
      %v7147 = vadd.f32 0.0, %v7146
      %7148 = vmatprep.mubr.bf16.mxu0 0
      %7149 = vmatmul.mubr.bf16.gmra.mrb[0].mxu0 %v696
      %v7150 = vpop.f32.mrb[0].mxu0
      %v7151 = vadd.f32 0.0, %v7150
      %v7152 = vpop.f32.mrb[0].mxu0
      %v7153 = vadd.f32 0.0, %v7152
      %v7154 = vpop.f32.mrb[0].mxu0
      %v7155 = vadd.f32 0.0, %v7154
      %v7156 = vpop.f32.mrb[0].mxu0
      %v7157 = vadd.f32 0.0, %v7156
      %7158 = vmatprep.mubr.bf16.mxu0 0
      %7159 = vmatmul.mubr.bf16.gmra.mrb[0].mxu0 %v699
      %v7160 = vpop.f32.mrb[0].mxu0
      %v7161 = vadd.f32 0.0, %v7160
      %v7162 = vpop.f32.mrb[0].mxu0
      %v7163 = vadd.f32 0.0, %v7162
      %v7164 = vpop.f32.mrb[0].mxu0
      %v7165 = vadd.f32 0.0, %v7164
      %v7166 = vpop.f32.mrb[0].mxu0
      %v7167 = vadd.f32 0.0, %v7166
      %7168 = vmatprep.mubr.bf16.mxu0 0
      %7169 = vmatmul.mubr.bf16.gmra.mrb[0].mxu0 %v702
      %v7170 = vpop.f32.mrb[0].mxu0
      %v7171 = vadd.f32 0.0, %v7170
      %v7172 = vpop.f32.mrb[0].mxu0
      %v7173 = vadd.f32 0.0, %v7172
      %v7174 = vpop.f32.mrb[0].mxu0
      %v7175 = vadd.f32 0.0, %v7174
      %v7176 = vpop.f32.mrb[0].mxu0
      %v7177 = vadd.f32 0.0, %v7176
      %7178 = vdwg.mxu0
      %7179 = vrot.lane.b32.xlu0 %v7135, 1
      %v7180 = vpop.permute.xlu0 %7179
      %7181 = vrot.lane.b32.xlu0 %v7137, 1
      %v7182 = vpop.permute.xlu0 %7181
      %v7183 = vsel %vm791, %v7180, %v7182
      %v7184 = vsel %vm791, %v7182, %v7180
      %v7185 = vadd.f32 %v7131, %v7184
      %v7186 = vadd.f32 %v7133, %v7183
      %7187 = vrot.lane.b32.xlu0 %v7141, 2
      %v7188 = vpop.permute.xlu0 %7187
      %7189 = vrot.lane.b32.xlu0 %v7143, 2
      %v7190 = vpop.permute.xlu0 %7189
      %v7191 = vsel %vm800, %v7188, %v7190
      %v7192 = vsel %vm800, %v7190, %v7188
      %v7193 = vadd.f32 %v7185, %v7192
      %v7194 = vadd.f32 %v7186, %v7191
      %7195 = vrot.lane.b32.xlu0 %v7145, 3
      %v7196 = vpop.permute.xlu0 %7195
      %7197 = vrot.lane.b32.xlu0 %v7147, 3
      %v7198 = vpop.permute.xlu0 %7197
      %v7199 = vsel %vm809, %v7196, %v7198
      %v7200 = vsel %vm809, %v7198, %v7196
      %v7201 = vadd.f32 %v7193, %v7200
      %v7202 = vadd.f32 %v7194, %v7199
      %7203 = vrot.lane.b32.xlu0 %v7151, 4
      %v7204 = vpop.permute.xlu0 %7203
      %7205 = vrot.lane.b32.xlu0 %v7153, 4
      %v7206 = vpop.permute.xlu0 %7205
      %v7207 = vsel %vm818, %v7204, %v7206
      %v7208 = vsel %vm818, %v7206, %v7204
      %v7209 = vadd.f32 %v7201, %v7208
      %v7210 = vadd.f32 %v7202, %v7207
      %v7211 = vadd.f32 %v7209, %v7155
      %v7212 = vadd.f32 %v7210, %v7157
      %7213 = vrot.lane.b32.xlu0 %v7161, 16
      %v7214 = vpop.permute.xlu0 %7213
      %7215 = vrot.lane.b32.xlu0 %v7163, 16
      %v7216 = vpop.permute.xlu0 %7215
      %v7217 = vsel %vm829, %v7214, %v7216
      %v7218 = vsel %vm829, %v7216, %v7214
      %v7219 = vadd.f32 %v7211, %v7218
      %v7220 = vadd.f32 %v7212, %v7217
      %7221 = vrot.lane.b32.xlu0 %v7165, 32
      %v7222 = vpop.permute.xlu0 %7221
      %7223 = vrot.lane.b32.xlu0 %v7167, 32
      %v7224 = vpop.permute.xlu0 %7223
      %v7225 = vsel %vm838, %v7222, %v7224
      %v7226 = vsel %vm838, %v7224, %v7222
      %v7227 = vadd.f32 %v7219, %v7226
      %v7228 = vadd.f32 %v7220, %v7225
      %7229 = vrot.lane.b32.xlu0 %v7171, 48
      %v7230 = vpop.permute.xlu0 %7229
      %7231 = vrot.lane.b32.xlu0 %v7173, 48
      %v7232 = vpop.permute.xlu0 %7231
      %v7233 = vsel %vm847, %v7230, %v7232
      %v7234 = vsel %vm847, %v7232, %v7230
      %v7235 = vadd.f32 %v7227, %v7234
      %v7236 = vadd.f32 %v7228, %v7233
      %7237 = vrot.lane.b32.xlu0 %v7175, 64
      %v7238 = vpop.permute.xlu0 %7237
      %7239 = vrot.lane.b32.xlu0 %v7177, 64
      %v7240 = vpop.permute.xlu0 %7239
      %v7241 = vsel %vm437, %v7238, %v7240
      %v7242 = vsel %vm437, %v7240, %v7238
      %v7243 = vadd.f32 %v7235, %v7242
      %v7244 = vadd.f32 %v7236, %v7241
      %v7245 = vadd.f32 %v7243, %v863
      %v7246 = vadd.f32 %v7244, %v863
      %s7247 = scalar_lea.vmem %s6, 256
      %v7248 = vld [vmem:[%s7247] sm:$0xf]
      %v7249 = vld [vmem:[%s7247 + $0x4] sm:$0xf]
      %v7250 = vld [vmem:[%s7247 + $0x8] sm:$0xf]
      %v7251 = vld [vmem:[%s7247 + $0xc] sm:$0xf]
      %v7252 = vld [vmem:[%s7247 + $0x10] sm:$0xf]
      %v7253 = vld [vmem:[%s7247 + $0x14] sm:$0xf]
      %v7254 = vld [vmem:[%s7247 + $0x18] sm:$0xf]
      %v7255 = vld [vmem:[%s7247 + $0x1c] sm:$0xf]
      %s7256 = scalar_lea.vmem %s7, 512
      %v7257 = vld [vmem:[%s7256] sm:$0xff]
      %v7258 = vld [vmem:[%s7256 + $0x8] sm:$0xff]
      %v7259 = vld [vmem:[%s7256 + $0x10] sm:$0xff]
      %v7260 = vld [vmem:[%s7256 + $0x18] sm:$0xff]
      %v7261 = vld [vmem:[%s7256 + $0x20] sm:$0xff]
      %v7262 = vld [vmem:[%s7256 + $0x28] sm:$0xff]
      %v7263 = vld [vmem:[%s7256 + $0x30] sm:$0xff]
      %v7264 = vld [vmem:[%s7256 + $0x38] sm:$0xff]
      %7265 = vrot.lane.b32.xlu0 %v7245, 127
      %v7266 = vpop.permute.xlu0 %7265
      %7267 = vrot.lane.b32.xlu0 %v7246, 127
      %v7268 = vpop.permute.xlu0 %7267
      %v7269 = vsel %vm388, %v7266, %v7268
      %v7270 = vsel %vm388, %v7268, %v7266
      %7271 = vrot.lane.b32.xlu0 %v7245, 126
      %v7272 = vpop.permute.xlu0 %7271
      %7273 = vrot.lane.b32.xlu0 %v7246, 126
      %v7274 = vpop.permute.xlu0 %7273
      %v7275 = vsel %vm395, %v7272, %v7274
      %v7276 = vsel %vm395, %v7274, %v7272
      %7277 = vrot.lane.b32.xlu0 %v7245, 125
      %v7278 = vpop.permute.xlu0 %7277
      %7279 = vrot.lane.b32.xlu0 %v7246, 125
      %v7280 = vpop.permute.xlu0 %7279
      %v7281 = vsel %vm402, %v7278, %v7280
      %v7282 = vsel %vm402, %v7280, %v7278
      %7283 = vrot.lane.b32.xlu0 %v7245, 124
      %v7284 = vpop.permute.xlu0 %7283
      %7285 = vrot.lane.b32.xlu0 %v7246, 124
      %v7286 = vpop.permute.xlu0 %7285
      %v7287 = vsel %vm409, %v7284, %v7286
      %v7288 = vsel %vm409, %v7286, %v7284
      %7289 = vrot.lane.b32.xlu0 %v7245, 112
      %v7290 = vpop.permute.xlu0 %7289
      %7291 = vrot.lane.b32.xlu0 %v7246, 112
      %v7292 = vpop.permute.xlu0 %7291
      %v7293 = vsel %vm416, %v7290, %v7292
      %v7294 = vsel %vm416, %v7292, %v7290
      %7295 = vrot.lane.b32.xlu0 %v7245, 96
      %v7296 = vpop.permute.xlu0 %7295
      %7297 = vrot.lane.b32.xlu0 %v7246, 96
      %v7298 = vpop.permute.xlu0 %7297
      %v7299 = vsel %vm423, %v7296, %v7298
      %v7300 = vsel %vm423, %v7298, %v7296
      %7301 = vrot.lane.b32.xlu0 %v7245, 80
      %v7302 = vpop.permute.xlu0 %7301
      %7303 = vrot.lane.b32.xlu0 %v7246, 80
      %v7304 = vpop.permute.xlu0 %7303
      %v7305 = vsel %vm430, %v7302, %v7304
      %v7306 = vsel %vm430, %v7304, %v7302
      %7307 = vrot.lane.b32.xlu0 %v7245, 64
      %v7308 = vpop.permute.xlu0 %7307
      %7309 = vrot.lane.b32.xlu0 %v7246, 64
      %v7310 = vpop.permute.xlu0 %7309
      %v7311 = vsel %vm437, %v7308, %v7310
      %v7312 = vsel %vm437, %v7310, %v7308
      %v7313 = vpack.c.bf16 %v7269, %v7245
      %v7314 = vpack.c.bf16 %v7270, %v7246
      %v7315 = vpack.c.bf16 %v7281, %v7275
      %v7316 = vpack.c.bf16 %v7282, %v7276
      %v7317 = vpack.c.bf16 %v7245, %v7287
      %v7318 = vpack.c.bf16 %v7246, %v7288
      %v7319 = vpack.c.bf16 %v7299, %v7293
      %v7320 = vpack.c.bf16 %v7300, %v7294
      %v7321 = vpack.c.bf16 %v7311, %v7305
      %v7322 = vpack.c.bf16 %v7312, %v7306
      %7324 = vset.pattern.permute.xlu0 0
      %7325 = vperm.xlu0 %7324, %v7257
      %v7326 = vpop.permute.xlu0 %7325
      %7329 = vset.pattern.permute.xlu0 0
      %7330 = vperm.xlu0 %7329, %v7258
      %v7331 = vpop.permute.xlu0 %7330
      %7334 = vset.pattern.permute.xlu0 0
      %7335 = vperm.xlu0 %7334, %v7259
      %v7336 = vpop.permute.xlu0 %7335
      %7339 = vset.pattern.permute.xlu0 0
      %7340 = vperm.xlu0 %7339, %v7260
      %v7341 = vpop.permute.xlu0 %7340
      %7344 = vset.pattern.permute.xlu0 0
      %7345 = vperm.xlu0 %7344, %v7261
      %v7346 = vpop.permute.xlu0 %7345
      %7349 = vset.pattern.permute.xlu0 0
      %7350 = vperm.xlu0 %7349, %v7262
      %v7351 = vpop.permute.xlu0 %7350
      %7354 = vset.pattern.permute.xlu0 0
      %7355 = vperm.xlu0 %7354, %v7263
      %v7356 = vpop.permute.xlu0 %7355
      %7359 = vset.pattern.permute.xlu0 0
      %7360 = vperm.xlu0 %7359, %v7264
      %v7361 = vpop.permute.xlu0 %7360
      %v7371 = vunpack.c.l.b16 %v7248
      %v7372 = vunpack.c.l.b16 %v7249
      %v7373 = vunpack.c.l.b16 %v7250
      %v7374 = vunpack.c.l.b16 %v7251
      %v7375 = vunpack.c.l.b16 %v7252
      %v7376 = vunpack.c.l.b16 %v7253
      %v7377 = vunpack.c.l.b16 %v7254
      %v7378 = vunpack.c.l.b16 %v7255
      %v7379 = vpack.c.b16 %v7372, %v7371
      %v7380 = vpack.c.b16 %v7374, %v7373
      %v7381 = vpack.c.b16 %v7376, %v7375
      %v7382 = vpack.c.b16 %v7378, %v7377
      %v7384 = vsel %vm510, %v7379, 0
      %v7387 = vsel %vm510, %v7380, 0
      %v7390 = vsel %vm510, %v7381, 0
      %v7393 = vsel %vm510, %v7382, 0
      %7395 = vmatprep.subr.bf16.mxu0 %v7314
      %7396 = vmatpush1.bf16.msra.mxu0 %v7313
      %7397 = vmatprep.subr.bf16.mxu0 %v7316
      %7398 = vmatpush1.bf16.msra.mxu0 %v7315
      %7399 = vmatprep.subr.bf16.mxu0 %v7318
      %7400 = vmatpush1.bf16.msra.mxu0 %v7317
      %7401 = vmatprep.subr.bf16.mxu0 %v7320
      %7402 = vmatpush1.bf16.msra.mxu0 %v7319
      %7403 = vmatprep.subr.bf16.mxu0 %v7322
      %7404 = vmatpush1.bf16.msra.mxu0 %v7321
      %7405 = vmatprep.subr.bf16.mxu0 0
      %7406 = vmatpush1.bf16.msra.mxu0 0
      %7407 = vmatprep.subr.bf16.mxu0 0
      %7408 = vmatpush1.bf16.msra.mxu0 0
      %7409 = vmatprep.subr.bf16.mxu0 0
      %7410 = vmatpush1.bf16.msra.mxu0 0
      %7411 = vmatprep.subr.bf16.mxu0 0
      %7412 = vmatpush1.bf16.msra.mxu0 0
      %7413 = vmatprep.subr.bf16.mxu0 0
      %7414 = vmatpush1.bf16.msra.mxu0 0
      %7415 = vmatprep.subr.bf16.mxu0 0
      %7416 = vmatpush1.bf16.msra.mxu0 0
      %7417 = vmatprep.subr.bf16.mxu0 0
      %7418 = vmatpush1.bf16.msra.mxu0 0
      %7419 = vmatprep.subr.bf16.mxu0 0
      %7420 = vmatpush1.bf16.msra.mxu0 0
      %7421 = vmatprep.subr.bf16.mxu0 0
      %7422 = vmatpush1.bf16.msra.mxu0 0
      %7423 = vmatprep.subr.bf16.mxu0 0
      %7424 = vmatpush1.bf16.msra.mxu0 0
      %7425 = vmatprep.subr.bf16.mxu0 0
      %7426 = vmatpush1.bf16.msra.mxu0 0
      %7427 = vmatprep.mubr.bf16.mxu0 0
      %7428 = vmatmul.mubr.bf16.gmra.mrb[0].mxu0 %v7384
      %v7429 = vpop.f32.mrb[0].mxu0
      %v7430 = vadd.f32 %v7326, %v7429
      %v7431 = vpop.f32.mrb[0].mxu0
      %v7432 = vadd.f32 %v7326, %v7431
      %v7433 = vpop.f32.mrb[0].mxu0
      %v7434 = vadd.f32 %v7331, %v7433
      %v7435 = vpop.f32.mrb[0].mxu0
      %v7436 = vadd.f32 %v7331, %v7435
      %7437 = vmatprep.mubr.bf16.mxu0 0
      %7438 = vmatmul.mubr.bf16.gmra.mrb[0].mxu0 %v7387
      %v7439 = vpop.f32.mrb[0].mxu0
      %v7440 = vadd.f32 %v7336, %v7439
      %v7441 = vpop.f32.mrb[0].mxu0
      %v7442 = vadd.f32 %v7336, %v7441
      %v7443 = vpop.f32.mrb[0].mxu0
      %v7444 = vadd.f32 %v7341, %v7443
      %v7445 = vpop.f32.mrb[0].mxu0
      %v7446 = vadd.f32 %v7341, %v7445
      %7447 = vmatprep.mubr.bf16.mxu0 0
      %7448 = vmatmul.mubr.bf16.gmra.mrb[0].mxu0 %v7390
      %v7449 = vpop.f32.mrb[0].mxu0
      %v7450 = vadd.f32 %v7346, %v7449
      %v7451 = vpop.f32.mrb[0].mxu0
      %v7452 = vadd.f32 %v7346, %v7451
      %v7453 = vpop.f32.mrb[0].mxu0
      %v7454 = vadd.f32 %v7351, %v7453
      %v7455 = vpop.f32.mrb[0].mxu0
      %v7456 = vadd.f32 %v7351, %v7455
      %7457 = vmatprep.mubr.bf16.mxu0 0
      %7458 = vmatmul.mubr.bf16.gmra.mrb[0].mxu0 %v7393
      %v7459 = vpop.f32.mrb[0].mxu0
      %v7460 = vadd.f32 %v7356, %v7459
      %v7461 = vpop.f32.mrb[0].mxu0
      %v7462 = vadd.f32 %v7356, %v7461
      %v7463 = vpop.f32.mrb[0].mxu0
      %v7464 = vadd.f32 %v7361, %v7463
      %v7465 = vpop.f32.mrb[0].mxu0
      %v7466 = vadd.f32 %v7361, %v7465
      %7467 = vdwg.mxu0
      %v7468 = vmax.f32 %v7430, 0.0
      %v7469 = vmax.f32 %v7432, 0.0
      %v7470 = vmax.f32 %v7434, 0.0
      %v7471 = vmax.f32 %v7436, 0.0
      %v7472 = vmax.f32 %v7440, 0.0
      %v7473 = vmax.f32 %v7442, 0.0
      %v7474 = vmax.f32 %v7444, 0.0
      %v7475 = vmax.f32 %v7446, 0.0
      %v7476 = vmax.f32 %v7450, 0.0
      %v7477 = vmax.f32 %v7452, 0.0
      %v7478 = vmax.f32 %v7454, 0.0
      %v7479 = vmax.f32 %v7456, 0.0
      %v7480 = vmax.f32 %v7460, 0.0
      %v7481 = vmax.f32 %v7462, 0.0
      %v7482 = vmax.f32 %v7464, 0.0
      %v7483 = vmax.f32 %v7466, 0.0
      %v7484 = vmul.f32 %v7468, %v612
      %v7485 = vmul.f32 %v7469, %v613
      %v7486 = vmul.f32 %v7470, %v614
      %v7487 = vmul.f32 %v7471, %v615
      %v7488 = vmul.f32 %v7472, %v616
      %v7489 = vmul.f32 %v7473, %v617
      %v7490 = vmul.f32 %v7474, %v618
      %v7491 = vmul.f32 %v7475, %v619
      %v7492 = vmul.f32 %v7476, %v620
      %v7493 = vmul.f32 %v7477, %v621
      %v7494 = vmul.f32 %v7478, %v622
      %v7495 = vmul.f32 %v7479, %v623
      %v7496 = vmul.f32 %v7480, %v624
      %v7497 = vmul.f32 %v7481, %v625
      %v7498 = vmul.f32 %v7482, %v626
      %v7499 = vmul.f32 %v7483, %v627
      %v7500 = vpack.c.bf16 %v7486, %v7484
      %v7501 = vpack.c.bf16 %v7487, %v7485
      %v7502 = vpack.c.bf16 %v7490, %v7488
      %v7503 = vpack.c.bf16 %v7491, %v7489
      %v7504 = vpack.c.bf16 %v7494, %v7492
      %v7505 = vpack.c.bf16 %v7495, %v7493
      %v7506 = vpack.c.bf16 %v7498, %v7496
      %v7507 = vpack.c.bf16 %v7499, %v7497
      %s7508 = scalar_lea.vmem %s8, 320
      %v7509 = vld [vmem:[%s7508] sm:$0xf]
      %v7510 = vld [vmem:[%s7508 + $0x4] sm:$0xf]
      %v7511 = vld [vmem:[%s7508 + $0x8] sm:$0xf]
      %v7512 = vld [vmem:[%s7508 + $0xc] sm:$0xf]
      %v7513 = vld [vmem:[%s7508 + $0x10] sm:$0xf]
      %v7514 = vld [vmem:[%s7508 + $0x14] sm:$0xf]
      %v7515 = vld [vmem:[%s7508 + $0x18] sm:$0xf]
      %v7516 = vld [vmem:[%s7508 + $0x1c] sm:$0xf]
      %v7517 = vld [vmem:[%s7508 + $0x20] sm:$0xf]
      %v7518 = vld [vmem:[%s7508 + $0x24] sm:$0xf]
      %s7519 = scalar_lea.vmem %s9, 64
      %v7520 = vld [vmem:[%s7519] sm:$0xff]
      %v7531 = vunpack.c.l.b16 %v7509
      %v7532 = vunpack.c.l.b16 %v7510
      %v7533 = vunpack.c.l.b16 %v7511
      %v7534 = vunpack.c.l.b16 %v7512
      %v7535 = vunpack.c.l.b16 %v7513
      %v7536 = vunpack.c.l.b16 %v7514
      %v7537 = vunpack.c.l.b16 %v7515
      %v7538 = vunpack.c.l.b16 %v7516
      %v7539 = vunpack.c.l.b16 %v7517
      %v7540 = vunpack.c.l.b16 %v7518
      %v7541 = vpack.c.b16 %v7532, %v7531
      %v7542 = vpack.c.b16 %v7534, %v7533
      %v7543 = vpack.c.b16 %v7536, %v7535
      %v7544 = vpack.c.b16 %v7538, %v7537
      %v7545 = vpack.c.b16 %v7540, %v7539
      %v7547 = vsel %vm688, %v7541, 0
      %v7550 = vsel %vm688, %v7542, 0
      %v7553 = vsel %vm688, %v7543, 0
      %v7556 = vsel %vm688, %v7544, 0
      %v7559 = vsel %vm688, %v7545, 0
      %7561 = vmatprep.subr.bf16.mxu0 %v7501
      %7562 = vmatpush1.bf16.msra.mxu0 %v7500
      %7563 = vmatprep.subr.bf16.mxu0 %v7503
      %7564 = vmatpush1.bf16.msra.mxu0 %v7502
      %7565 = vmatprep.subr.bf16.mxu0 %v7505
      %7566 = vmatpush1.bf16.msra.mxu0 %v7504
      %7567 = vmatprep.subr.bf16.mxu0 %v7507
      %7568 = vmatpush1.bf16.msra.mxu0 %v7506
      %7569 = vmatprep.subr.bf16.mxu0 0
      %7570 = vmatpush1.bf16.msra.mxu0 0
      %7571 = vmatprep.subr.bf16.mxu0 0
      %7572 = vmatpush1.bf16.msra.mxu0 0
      %7573 = vmatprep.subr.bf16.mxu0 0
      %7574 = vmatpush1.bf16.msra.mxu0 0
      %7575 = vmatprep.subr.bf16.mxu0 0
      %7576 = vmatpush1.bf16.msra.mxu0 0
      %7577 = vmatprep.subr.bf16.mxu0 0
      %7578 = vmatpush1.bf16.msra.mxu0 0
      %7579 = vmatprep.subr.bf16.mxu0 0
      %7580 = vmatpush1.bf16.msra.mxu0 0
      %7581 = vmatprep.subr.bf16.mxu0 0
      %7582 = vmatpush1.bf16.msra.mxu0 0
      %7583 = vmatprep.subr.bf16.mxu0 0
      %7584 = vmatpush1.bf16.msra.mxu0 0
      %7585 = vmatprep.subr.bf16.mxu0 0
      %7586 = vmatpush1.bf16.msra.mxu0 0
      %7587 = vmatprep.subr.bf16.mxu0 0
      %7588 = vmatpush1.bf16.msra.mxu0 0
      %7589 = vmatprep.subr.bf16.mxu0 0
      %7590 = vmatpush1.bf16.msra.mxu0 0
      %7591 = vmatprep.subr.bf16.mxu0 0
      %7592 = vmatpush1.bf16.msra.mxu0 0
      %7593 = vmatprep.mubr.bf16.mxu0 0
      %7594 = vmatmul.mubr.bf16.gmra.mrb[0].mxu0 %v7547
      %v7595 = vpop.f32.mrb[0].mxu0
      %v7596 = vadd.f32 0.0, %v7595
      %v7597 = vpop.f32.mrb[0].mxu0
      %v7598 = vadd.f32 0.0, %v7597
      %v7599 = vpop.f32.mrb[0].mxu0
      %v7600 = vadd.f32 0.0, %v7599
      %v7601 = vpop.f32.mrb[0].mxu0
      %v7602 = vadd.f32 0.0, %v7601
      %7603 = vmatprep.mubr.bf16.mxu0 0
      %7604 = vmatmul.mubr.bf16.gmra.mrb[0].mxu0 %v7550
      %v7605 = vpop.f32.mrb[0].mxu0
      %v7606 = vadd.f32 0.0, %v7605
      %v7607 = vpop.f32.mrb[0].mxu0
      %v7608 = vadd.f32 0.0, %v7607
      %v7609 = vpop.f32.mrb[0].mxu0
      %v7610 = vadd.f32 0.0, %v7609
      %v7611 = vpop.f32.mrb[0].mxu0
      %v7612 = vadd.f32 0.0, %v7611
      %7613 = vmatprep.mubr.bf16.mxu0 0
      %7614 = vmatmul.mubr.bf16.gmra.mrb[0].mxu0 %v7553
      %v7615 = vpop.f32.mrb[0].mxu0
      %v7616 = vadd.f32 0.0, %v7615
      %v7617 = vpop.f32.mrb[0].mxu0
      %v7618 = vadd.f32 0.0, %v7617
      %v7619 = vpop.f32.mrb[0].mxu0
      %v7620 = vadd.f32 0.0, %v7619
      %v7621 = vpop.f32.mrb[0].mxu0
      %v7622 = vadd.f32 0.0, %v7621
      %7623 = vmatprep.mubr.bf16.mxu0 0
      %7624 = vmatmul.mubr.bf16.gmra.mrb[0].mxu0 %v7556
      %v7625 = vpop.f32.mrb[0].mxu0
      %v7626 = vadd.f32 0.0, %v7625
      %v7627 = vpop.f32.mrb[0].mxu0
      %v7628 = vadd.f32 0.0, %v7627
      %v7629 = vpop.f32.mrb[0].mxu0
      %v7630 = vadd.f32 0.0, %v7629
      %v7631 = vpop.f32.mrb[0].mxu0
      %v7632 = vadd.f32 0.0, %v7631
      %7633 = vmatprep.mubr.bf16.mxu0 0
      %7634 = vmatmul.mubr.bf16.gmra.mrb[0].mxu0 %v7559
      %v7635 = vpop.f32.mrb[0].mxu0
      %v7636 = vadd.f32 0.0, %v7635
      %v7637 = vpop.f32.mrb[0].mxu0
      %v7638 = vadd.f32 0.0, %v7637
      %v7639 = vpop.f32.mrb[0].mxu0
      %v7640 = vadd.f32 0.0, %v7639
      %v7641 = vpop.f32.mrb[0].mxu0
      %v7642 = vadd.f32 0.0, %v7641
      %7643 = vdwg.mxu0
      %7644 = vrot.lane.b32.xlu0 %v7600, 1
      %v7645 = vpop.permute.xlu0 %7644
      %7646 = vrot.lane.b32.xlu0 %v7602, 1
      %v7647 = vpop.permute.xlu0 %7646
      %v7648 = vsel %vm791, %v7645, %v7647
      %v7649 = vsel %vm791, %v7647, %v7645
      %v7650 = vadd.f32 %v7596, %v7649
      %v7651 = vadd.f32 %v7598, %v7648
      %7652 = vrot.lane.b32.xlu0 %v7606, 2
      %v7653 = vpop.permute.xlu0 %7652
      %7654 = vrot.lane.b32.xlu0 %v7608, 2
      %v7655 = vpop.permute.xlu0 %7654
      %v7656 = vsel %vm800, %v7653, %v7655
      %v7657 = vsel %vm800, %v7655, %v7653
      %v7658 = vadd.f32 %v7650, %v7657
      %v7659 = vadd.f32 %v7651, %v7656
      %7660 = vrot.lane.b32.xlu0 %v7610, 3
      %v7661 = vpop.permute.xlu0 %7660
      %7662 = vrot.lane.b32.xlu0 %v7612, 3
      %v7663 = vpop.permute.xlu0 %7662
      %v7664 = vsel %vm809, %v7661, %v7663
      %v7665 = vsel %vm809, %v7663, %v7661
      %v7666 = vadd.f32 %v7658, %v7665
      %v7667 = vadd.f32 %v7659, %v7664
      %7668 = vrot.lane.b32.xlu0 %v7616, 4
      %v7669 = vpop.permute.xlu0 %7668
      %7670 = vrot.lane.b32.xlu0 %v7618, 4
      %v7671 = vpop.permute.xlu0 %7670
      %v7672 = vsel %vm818, %v7669, %v7671
      %v7673 = vsel %vm818, %v7671, %v7669
      %v7674 = vadd.f32 %v7666, %v7673
      %v7675 = vadd.f32 %v7667, %v7672
      %v7676 = vadd.f32 %v7674, %v7620
      %v7677 = vadd.f32 %v7675, %v7622
      %7678 = vrot.lane.b32.xlu0 %v7626, 16
      %v7679 = vpop.permute.xlu0 %7678
      %7680 = vrot.lane.b32.xlu0 %v7628, 16
      %v7681 = vpop.permute.xlu0 %7680
      %v7682 = vsel %vm829, %v7679, %v7681
      %v7683 = vsel %vm829, %v7681, %v7679
      %v7684 = vadd.f32 %v7676, %v7683
      %v7685 = vadd.f32 %v7677, %v7682
      %7686 = vrot.lane.b32.xlu0 %v7630, 32
      %v7687 = vpop.permute.xlu0 %7686
      %7688 = vrot.lane.b32.xlu0 %v7632, 32
      %v7689 = vpop.permute.xlu0 %7688
      %v7690 = vsel %vm838, %v7687, %v7689
      %v7691 = vsel %vm838, %v7689, %v7687
      %v7692 = vadd.f32 %v7684, %v7691
      %v7693 = vadd.f32 %v7685, %v7690
      %7694 = vrot.lane.b32.xlu0 %v7636, 48
      %v7695 = vpop.permute.xlu0 %7694
      %7696 = vrot.lane.b32.xlu0 %v7638, 48
      %v7697 = vpop.permute.xlu0 %7696
      %v7698 = vsel %vm847, %v7695, %v7697
      %v7699 = vsel %vm847, %v7697, %v7695
      %v7700 = vadd.f32 %v7692, %v7699
      %v7701 = vadd.f32 %v7693, %v7698
      %7702 = vrot.lane.b32.xlu0 %v7640, 64
      %v7703 = vpop.permute.xlu0 %7702
      %7704 = vrot.lane.b32.xlu0 %v7642, 64
      %v7705 = vpop.permute.xlu0 %7704
      %v7706 = vsel %vm437, %v7703, %v7705
      %v7707 = vsel %vm437, %v7705, %v7703
      %v7708 = vadd.f32 %v7700, %v7707
      %v7709 = vadd.f32 %v7701, %v7706
      %7711 = vset.pattern.permute.xlu0 0
      %7712 = vperm.xlu0 %7711, %v7520
      %v7713 = vpop.permute.xlu0 %7712
      %v7715 = vadd.f32 %v7708, %v7713
      %v7716 = vadd.f32 %v7709, %v7713
      %v7717 = vmax.f32 %v7715, 0.0
      %v7718 = vmax.f32 %v7716, 0.0
      %v7719 = vadd.f32 %v6923, %v7717
      %v7720 = vadd.f32 %v6924, %v7718
      %v7721 = vmax.f32 %v7719, 0.0
      %v7722 = vmax.f32 %v7720, 0.0
      %7723 = vrot.lane.b32.xlu0 %v7721, 127
      %v7724 = vpop.permute.xlu0 %7723
      %7725 = vrot.lane.b32.xlu0 %v7722, 127
      %v7726 = vpop.permute.xlu0 %7725
      %v7727 = vsel %vm388, %v7724, %v7726
      %v7728 = vsel %vm388, %v7726, %v7724
      %7729 = vrot.lane.b32.xlu0 %v7721, 126
      %v7730 = vpop.permute.xlu0 %7729
      %7731 = vrot.lane.b32.xlu0 %v7722, 126
      %v7732 = vpop.permute.xlu0 %7731
      %v7733 = vsel %vm395, %v7730, %v7732
      %v7734 = vsel %vm395, %v7732, %v7730
      %7735 = vrot.lane.b32.xlu0 %v7721, 125
      %v7736 = vpop.permute.xlu0 %7735
      %7737 = vrot.lane.b32.xlu0 %v7722, 125
      %v7738 = vpop.permute.xlu0 %7737
      %v7739 = vsel %vm402, %v7736, %v7738
      %v7740 = vsel %vm402, %v7738, %v7736
      %7741 = vrot.lane.b32.xlu0 %v7721, 124
      %v7742 = vpop.permute.xlu0 %7741
      %7743 = vrot.lane.b32.xlu0 %v7722, 124
      %v7744 = vpop.permute.xlu0 %7743
      %v7745 = vsel %vm409, %v7742, %v7744
      %v7746 = vsel %vm409, %v7744, %v7742
      %7747 = vrot.lane.b32.xlu0 %v7721, 112
      %v7748 = vpop.permute.xlu0 %7747
      %7749 = vrot.lane.b32.xlu0 %v7722, 112
      %v7750 = vpop.permute.xlu0 %7749
      %v7751 = vsel %vm416, %v7748, %v7750
      %v7752 = vsel %vm416, %v7750, %v7748
      %7753 = vrot.lane.b32.xlu0 %v7721, 96
      %v7754 = vpop.permute.xlu0 %7753
      %7755 = vrot.lane.b32.xlu0 %v7722, 96
      %v7756 = vpop.permute.xlu0 %7755
      %v7757 = vsel %vm423, %v7754, %v7756
      %v7758 = vsel %vm423, %v7756, %v7754
      %7759 = vrot.lane.b32.xlu0 %v7721, 80
      %v7760 = vpop.permute.xlu0 %7759
      %7761 = vrot.lane.b32.xlu0 %v7722, 80
      %v7762 = vpop.permute.xlu0 %7761
      %v7763 = vsel %vm430, %v7760, %v7762
      %v7764 = vsel %vm430, %v7762, %v7760
      %7765 = vrot.lane.b32.xlu0 %v7721, 64
      %v7766 = vpop.permute.xlu0 %7765
      %7767 = vrot.lane.b32.xlu0 %v7722, 64
      %v7768 = vpop.permute.xlu0 %7767
      %v7769 = vsel %vm437, %v7766, %v7768
      %v7770 = vsel %vm437, %v7768, %v7766
      %v7771 = vpack.c.bf16 %v7727, %v7721
      %v7772 = vpack.c.bf16 %v7728, %v7722
      %v7773 = vpack.c.bf16 %v7739, %v7733
      %v7774 = vpack.c.bf16 %v7740, %v7734
      %v7775 = vpack.c.bf16 %v7721, %v7745
      %v7776 = vpack.c.bf16 %v7722, %v7746
      %v7777 = vpack.c.bf16 %v7757, %v7751
      %v7778 = vpack.c.bf16 %v7758, %v7752
      %v7779 = vpack.c.bf16 %v7769, %v7763
      %v7780 = vpack.c.bf16 %v7770, %v7764
      %7781 = vmatprep.subr.bf16.mxu0 %v7772
      %7782 = vmatpush1.bf16.msra.mxu0 %v7771
      %7783 = vmatprep.subr.bf16.mxu0 %v7774
      %7784 = vmatpush1.bf16.msra.mxu0 %v7773
      %7785 = vmatprep.subr.bf16.mxu0 %v7776
      %7786 = vmatpush1.bf16.msra.mxu0 %v7775
      %7787 = vmatprep.subr.bf16.mxu0 %v7778
      %7788 = vmatpush1.bf16.msra.mxu0 %v7777
      %7789 = vmatprep.subr.bf16.mxu0 %v7780
      %7790 = vmatpush1.bf16.msra.mxu0 %v7779
      %7791 = vmatprep.subr.bf16.mxu0 0
      %7792 = vmatpush1.bf16.msra.mxu0 0
      %7793 = vmatprep.subr.bf16.mxu0 0
      %7794 = vmatpush1.bf16.msra.mxu0 0
      %7795 = vmatprep.subr.bf16.mxu0 0
      %7796 = vmatpush1.bf16.msra.mxu0 0
      %7797 = vmatprep.subr.bf16.mxu0 0
      %7798 = vmatpush1.bf16.msra.mxu0 0
      %7799 = vmatprep.subr.bf16.mxu0 0
      %7800 = vmatpush1.bf16.msra.mxu0 0
      %7801 = vmatprep.subr.bf16.mxu0 0
      %7802 = vmatpush1.bf16.msra.mxu0 0
      %7803 = vmatprep.subr.bf16.mxu0 0
      %7804 = vmatpush1.bf16.msra.mxu0 0
      %7805 = vmatprep.subr.bf16.mxu0 0
      %7806 = vmatpush1.bf16.msra.mxu0 0
      %7807 = vmatprep.subr.bf16.mxu0 0
      %7808 = vmatpush1.bf16.msra.mxu0 0
      %7809 = vmatprep.subr.bf16.mxu0 0
      %7810 = vmatpush1.bf16.msra.mxu0 0
      %7811 = vmatprep.subr.bf16.mxu0 0
      %7812 = vmatpush1.bf16.msra.mxu0 0
      %7813 = vmatprep.mubr.bf16.mxu0 0
      %7814 = vmatmul.mubr.bf16.gmra.mrb[0].mxu0 %v512
      %v7815 = vpop.f32.mrb[0].mxu0
      %v7816 = vadd.f32 %v453, %v7815
      %v7817 = vpop.f32.mrb[0].mxu0
      %v7818 = vadd.f32 %v453, %v7817
      %v7819 = vpop.f32.mrb[0].mxu0
      %v7820 = vadd.f32 %v458, %v7819
      %v7821 = vpop.f32.mrb[0].mxu0
      %v7822 = vadd.f32 %v458, %v7821
      %7823 = vmatprep.mubr.bf16.mxu0 0
      %7824 = vmatmul.mubr.bf16.gmra.mrb[0].mxu0 %v515
      %v7825 = vpop.f32.mrb[0].mxu0
      %v7826 = vadd.f32 %v463, %v7825
      %v7827 = vpop.f32.mrb[0].mxu0
      %v7828 = vadd.f32 %v463, %v7827
      %v7829 = vpop.f32.mrb[0].mxu0
      %v7830 = vadd.f32 %v468, %v7829
      %v7831 = vpop.f32.mrb[0].mxu0
      %v7832 = vadd.f32 %v468, %v7831
      %7833 = vmatprep.mubr.bf16.mxu0 0
      %7834 = vmatmul.mubr.bf16.gmra.mrb[0].mxu0 %v518
      %v7835 = vpop.f32.mrb[0].mxu0
      %v7836 = vadd.f32 %v473, %v7835
      %v7837 = vpop.f32.mrb[0].mxu0
      %v7838 = vadd.f32 %v473, %v7837
      %v7839 = vpop.f32.mrb[0].mxu0
      %v7840 = vadd.f32 %v478, %v7839
      %v7841 = vpop.f32.mrb[0].mxu0
      %v7842 = vadd.f32 %v478, %v7841
      %7843 = vmatprep.mubr.bf16.mxu0 0
      %7844 = vmatmul.mubr.bf16.gmra.mrb[0].mxu0 %v521
      %v7845 = vpop.f32.mrb[0].mxu0
      %v7846 = vadd.f32 %v483, %v7845
      %v7847 = vpop.f32.mrb[0].mxu0
      %v7848 = vadd.f32 %v483, %v7847
      %v7849 = vpop.f32.mrb[0].mxu0
      %v7850 = vadd.f32 %v488, %v7849
      %v7851 = vpop.f32.mrb[0].mxu0
      %v7852 = vadd.f32 %v488, %v7851
      %7853 = vdwg.mxu0
      %v7854 = vmax.f32 %v7816, 0.0
      %v7855 = vmax.f32 %v7818, 0.0
      %v7856 = vmax.f32 %v7820, 0.0
      %v7857 = vmax.f32 %v7822, 0.0
      %v7858 = vmax.f32 %v7826, 0.0
      %v7859 = vmax.f32 %v7828, 0.0
      %v7860 = vmax.f32 %v7830, 0.0
      %v7861 = vmax.f32 %v7832, 0.0
      %v7862 = vmax.f32 %v7836, 0.0
      %v7863 = vmax.f32 %v7838, 0.0
      %v7864 = vmax.f32 %v7840, 0.0
      %v7865 = vmax.f32 %v7842, 0.0
      %v7866 = vmax.f32 %v7846, 0.0
      %v7867 = vmax.f32 %v7848, 0.0
      %v7868 = vmax.f32 %v7850, 0.0
      %v7869 = vmax.f32 %v7852, 0.0
      %v7870 = vmul.f32 %v7854, %v612
      %v7871 = vmul.f32 %v7855, %v613
      %v7872 = vmul.f32 %v7856, %v614
      %v7873 = vmul.f32 %v7857, %v615
      %v7874 = vmul.f32 %v7858, %v616
      %v7875 = vmul.f32 %v7859, %v617
      %v7876 = vmul.f32 %v7860, %v618
      %v7877 = vmul.f32 %v7861, %v619
      %v7878 = vmul.f32 %v7862, %v620
      %v7879 = vmul.f32 %v7863, %v621
      %v7880 = vmul.f32 %v7864, %v622
      %v7881 = vmul.f32 %v7865, %v623
      %v7882 = vmul.f32 %v7866, %v624
      %v7883 = vmul.f32 %v7867, %v625
      %v7884 = vmul.f32 %v7868, %v626
      %v7885 = vmul.f32 %v7869, %v627
      %v7886 = vpack.c.bf16 %v7872, %v7870
      %v7887 = vpack.c.bf16 %v7873, %v7871
      %v7888 = vpack.c.bf16 %v7876, %v7874
      %v7889 = vpack.c.bf16 %v7877, %v7875
      %v7890 = vpack.c.bf16 %v7880, %v7878
      %v7891 = vpack.c.bf16 %v7881, %v7879
      %v7892 = vpack.c.bf16 %v7884, %v7882
      %v7893 = vpack.c.bf16 %v7885, %v7883
      %7894 = vmatprep.subr.bf16.mxu0 %v7887
      %7895 = vmatpush1.bf16.msra.mxu0 %v7886
      %7896 = vmatprep.subr.bf16.mxu0 %v7889
      %7897 = vmatpush1.bf16.msra.mxu0 %v7888
      %7898 = vmatprep.subr.bf16.mxu0 %v7891
      %7899 = vmatpush1.bf16.msra.mxu0 %v7890
      %7900 = vmatprep.subr.bf16.mxu0 %v7893
      %7901 = vmatpush1.bf16.msra.mxu0 %v7892
      %7902 = vmatprep.subr.bf16.mxu0 0
      %7903 = vmatpush1.bf16.msra.mxu0 0
      %7904 = vmatprep.subr.bf16.mxu0 0
      %7905 = vmatpush1.bf16.msra.mxu0 0
      %7906 = vmatprep.subr.bf16.mxu0 0
      %7907 = vmatpush1.bf16.msra.mxu0 0
      %7908 = vmatprep.subr.bf16.mxu0 0
      %7909 = vmatpush1.bf16.msra.mxu0 0
      %7910 = vmatprep.subr.bf16.mxu0 0
      %7911 = vmatpush1.bf16.msra.mxu0 0
      %7912 = vmatprep.subr.bf16.mxu0 0
      %7913 = vmatpush1.bf16.msra.mxu0 0
      %7914 = vmatprep.subr.bf16.mxu0 0
      %7915 = vmatpush1.bf16.msra.mxu0 0
      %7916 = vmatprep.subr.bf16.mxu0 0
      %7917 = vmatpush1.bf16.msra.mxu0 0
      %7918 = vmatprep.subr.bf16.mxu0 0
      %7919 = vmatpush1.bf16.msra.mxu0 0
      %7920 = vmatprep.subr.bf16.mxu0 0
      %7921 = vmatpush1.bf16.msra.mxu0 0
      %7922 = vmatprep.subr.bf16.mxu0 0
      %7923 = vmatpush1.bf16.msra.mxu0 0
      %7924 = vmatprep.subr.bf16.mxu0 0
      %7925 = vmatpush1.bf16.msra.mxu0 0
      %7926 = vmatprep.mubr.bf16.mxu0 0
      %7927 = vmatmul.mubr.bf16.gmra.mrb[0].mxu0 %v690
      %v7928 = vpop.f32.mrb[0].mxu0
      %v7929 = vadd.f32 0.0, %v7928
      %v7930 = vpop.f32.mrb[0].mxu0
      %v7931 = vadd.f32 0.0, %v7930
      %v7932 = vpop.f32.mrb[0].mxu0
      %v7933 = vadd.f32 0.0, %v7932
      %v7934 = vpop.f32.mrb[0].mxu0
      %v7935 = vadd.f32 0.0, %v7934
      %7936 = vmatprep.mubr.bf16.mxu0 0
      %7937 = vmatmul.mubr.bf16.gmra.mrb[0].mxu0 %v693
      %v7938 = vpop.f32.mrb[0].mxu0
      %v7939 = vadd.f32 0.0, %v7938
      %v7940 = vpop.f32.mrb[0].mxu0
      %v7941 = vadd.f32 0.0, %v7940
      %v7942 = vpop.f32.mrb[0].mxu0
      %v7943 = vadd.f32 0.0, %v7942
      %v7944 = vpop.f32.mrb[0].mxu0
      %v7945 = vadd.f32 0.0, %v7944
      %7946 = vmatprep.mubr.bf16.mxu0 0
      %7947 = vmatmul.mubr.bf16.gmra.mrb[0].mxu0 %v696
      %v7948 = vpop.f32.mrb[0].mxu0
      %v7949 = vadd.f32 0.0, %v7948
      %v7950 = vpop.f32.mrb[0].mxu0
      %v7951 = vadd.f32 0.0, %v7950
      %v7952 = vpop.f32.mrb[0].mxu0
      %v7953 = vadd.f32 0.0, %v7952
      %v7954 = vpop.f32.mrb[0].mxu0
      %v7955 = vadd.f32 0.0, %v7954
      %7956 = vmatprep.mubr.bf16.mxu0 0
      %7957 = vmatmul.mubr.bf16.gmra.mrb[0].mxu0 %v699
      %v7958 = vpop.f32.mrb[0].mxu0
      %v7959 = vadd.f32 0.0, %v7958
      %v7960 = vpop.f32.mrb[0].mxu0
      %v7961 = vadd.f32 0.0, %v7960
      %v7962 = vpop.f32.mrb[0].mxu0
      %v7963 = vadd.f32 0.0, %v7962
      %v7964 = vpop.f32.mrb[0].mxu0
      %v7965 = vadd.f32 0.0, %v7964
      %7966 = vmatprep.mubr.bf16.mxu0 0
      %7967 = vmatmul.mubr.bf16.gmra.mrb[0].mxu0 %v702
      %v7968 = vpop.f32.mrb[0].mxu0
      %v7969 = vadd.f32 0.0, %v7968
      %v7970 = vpop.f32.mrb[0].mxu0
      %v7971 = vadd.f32 0.0, %v7970
      %v7972 = vpop.f32.mrb[0].mxu0
      %v7973 = vadd.f32 0.0, %v7972
      %v7974 = vpop.f32.mrb[0].mxu0
      %v7975 = vadd.f32 0.0, %v7974
      %7976 = vdwg.mxu0
      %7977 = vrot.lane.b32.xlu0 %v7933, 1
      %v7978 = vpop.permute.xlu0 %7977
      %7979 = vrot.lane.b32.xlu0 %v7935, 1
      %v7980 = vpop.permute.xlu0 %7979
      %v7981 = vsel %vm791, %v7978, %v7980
      %v7982 = vsel %vm791, %v7980, %v7978
      %v7983 = vadd.f32 %v7929, %v7982
      %v7984 = vadd.f32 %v7931, %v7981
      %7985 = vrot.lane.b32.xlu0 %v7939, 2
      %v7986 = vpop.permute.xlu0 %7985
      %7987 = vrot.lane.b32.xlu0 %v7941, 2
      %v7988 = vpop.permute.xlu0 %7987
      %v7989 = vsel %vm800, %v7986, %v7988
      %v7990 = vsel %vm800, %v7988, %v7986
      %v7991 = vadd.f32 %v7983, %v7990
      %v7992 = vadd.f32 %v7984, %v7989
      %7993 = vrot.lane.b32.xlu0 %v7943, 3
      %v7994 = vpop.permute.xlu0 %7993
      %7995 = vrot.lane.b32.xlu0 %v7945, 3
      %v7996 = vpop.permute.xlu0 %7995
      %v7997 = vsel %vm809, %v7994, %v7996
      %v7998 = vsel %vm809, %v7996, %v7994
      %v7999 = vadd.f32 %v7991, %v7998
      %v8000 = vadd.f32 %v7992, %v7997
      %8001 = vrot.lane.b32.xlu0 %v7949, 4
      %v8002 = vpop.permute.xlu0 %8001
      %8003 = vrot.lane.b32.xlu0 %v7951, 4
      %v8004 = vpop.permute.xlu0 %8003
      %v8005 = vsel %vm818, %v8002, %v8004
      %v8006 = vsel %vm818, %v8004, %v8002
      %v8007 = vadd.f32 %v7999, %v8006
      %v8008 = vadd.f32 %v8000, %v8005
      %v8009 = vadd.f32 %v8007, %v7953
      %v8010 = vadd.f32 %v8008, %v7955
      %8011 = vrot.lane.b32.xlu0 %v7959, 16
      %v8012 = vpop.permute.xlu0 %8011
      %8013 = vrot.lane.b32.xlu0 %v7961, 16
      %v8014 = vpop.permute.xlu0 %8013
      %v8015 = vsel %vm829, %v8012, %v8014
      %v8016 = vsel %vm829, %v8014, %v8012
      %v8017 = vadd.f32 %v8009, %v8016
      %v8018 = vadd.f32 %v8010, %v8015
      %8019 = vrot.lane.b32.xlu0 %v7963, 32
      %v8020 = vpop.permute.xlu0 %8019
      %8021 = vrot.lane.b32.xlu0 %v7965, 32
      %v8022 = vpop.permute.xlu0 %8021
      %v8023 = vsel %vm838, %v8020, %v8022
      %v8024 = vsel %vm838, %v8022, %v8020
      %v8025 = vadd.f32 %v8017, %v8024
      %v8026 = vadd.f32 %v8018, %v8023
      %8027 = vrot.lane.b32.xlu0 %v7969, 48
      %v8028 = vpop.permute.xlu0 %8027
      %8029 = vrot.lane.b32.xlu0 %v7971, 48
      %v8030 = vpop.permute.xlu0 %8029
      %v8031 = vsel %vm847, %v8028, %v8030
      %v8032 = vsel %vm847, %v8030, %v8028
      %v8033 = vadd.f32 %v8025, %v8032
      %v8034 = vadd.f32 %v8026, %v8031
      %8035 = vrot.lane.b32.xlu0 %v7973, 64
      %v8036 = vpop.permute.xlu0 %8035
      %8037 = vrot.lane.b32.xlu0 %v7975, 64
      %v8038 = vpop.permute.xlu0 %8037
      %v8039 = vsel %vm437, %v8036, %v8038
      %v8040 = vsel %vm437, %v8038, %v8036
      %v8041 = vadd.f32 %v8033, %v8040
      %v8042 = vadd.f32 %v8034, %v8039
      %v8043 = vadd.f32 %v8041, %v863
      %v8044 = vadd.f32 %v8042, %v863
      %s8045 = scalar_lea.vmem %s6, 288
      %v8046 = vld [vmem:[%s8045] sm:$0xf]
      %v8047 = vld [vmem:[%s8045 + $0x4] sm:$0xf]
      %v8048 = vld [vmem:[%s8045 + $0x8] sm:$0xf]
      %v8049 = vld [vmem:[%s8045 + $0xc] sm:$0xf]
      %v8050 = vld [vmem:[%s8045 + $0x10] sm:$0xf]
      %v8051 = vld [vmem:[%s8045 + $0x14] sm:$0xf]
      %v8052 = vld [vmem:[%s8045 + $0x18] sm:$0xf]
      %v8053 = vld [vmem:[%s8045 + $0x1c] sm:$0xf]
      %s8054 = scalar_lea.vmem %s7, 576
      %v8055 = vld [vmem:[%s8054] sm:$0xff]
      %v8056 = vld [vmem:[%s8054 + $0x8] sm:$0xff]
      %v8057 = vld [vmem:[%s8054 + $0x10] sm:$0xff]
      %v8058 = vld [vmem:[%s8054 + $0x18] sm:$0xff]
      %v8059 = vld [vmem:[%s8054 + $0x20] sm:$0xff]
      %v8060 = vld [vmem:[%s8054 + $0x28] sm:$0xff]
      %v8061 = vld [vmem:[%s8054 + $0x30] sm:$0xff]
      %v8062 = vld [vmem:[%s8054 + $0x38] sm:$0xff]
      %8063 = vrot.lane.b32.xlu0 %v8043, 127
      %v8064 = vpop.permute.xlu0 %8063
      %8065 = vrot.lane.b32.xlu0 %v8044, 127
      %v8066 = vpop.permute.xlu0 %8065
      %v8067 = vsel %vm388, %v8064, %v8066
      %v8068 = vsel %vm388, %v8066, %v8064
      %8069 = vrot.lane.b32.xlu0 %v8043, 126
      %v8070 = vpop.permute.xlu0 %8069
      %8071 = vrot.lane.b32.xlu0 %v8044, 126
      %v8072 = vpop.permute.xlu0 %8071
      %v8073 = vsel %vm395, %v8070, %v8072
      %v8074 = vsel %vm395, %v8072, %v8070
      %8075 = vrot.lane.b32.xlu0 %v8043, 125
      %v8076 = vpop.permute.xlu0 %8075
      %8077 = vrot.lane.b32.xlu0 %v8044, 125
      %v8078 = vpop.permute.xlu0 %8077
      %v8079 = vsel %vm402, %v8076, %v8078
      %v8080 = vsel %vm402, %v8078, %v8076
      %8081 = vrot.lane.b32.xlu0 %v8043, 124
      %v8082 = vpop.permute.xlu0 %8081
      %8083 = vrot.lane.b32.xlu0 %v8044, 124
      %v8084 = vpop.permute.xlu0 %8083
      %v8085 = vsel %vm409, %v8082, %v8084
      %v8086 = vsel %vm409, %v8084, %v8082
      %8087 = vrot.lane.b32.xlu0 %v8043, 112
      %v8088 = vpop.permute.xlu0 %8087
      %8089 = vrot.lane.b32.xlu0 %v8044, 112
      %v8090 = vpop.permute.xlu0 %8089
      %v8091 = vsel %vm416, %v8088, %v8090
      %v8092 = vsel %vm416, %v8090, %v8088
      %8093 = vrot.lane.b32.xlu0 %v8043, 96
      %v8094 = vpop.permute.xlu0 %8093
      %8095 = vrot.lane.b32.xlu0 %v8044, 96
      %v8096 = vpop.permute.xlu0 %8095
      %v8097 = vsel %vm423, %v8094, %v8096
      %v8098 = vsel %vm423, %v8096, %v8094
      %8099 = vrot.lane.b32.xlu0 %v8043, 80
      %v8100 = vpop.permute.xlu0 %8099
      %8101 = vrot.lane.b32.xlu0 %v8044, 80
      %v8102 = vpop.permute.xlu0 %8101
      %v8103 = vsel %vm430, %v8100, %v8102
      %v8104 = vsel %vm430, %v8102, %v8100
      %8105 = vrot.lane.b32.xlu0 %v8043, 64
      %v8106 = vpop.permute.xlu0 %8105
      %8107 = vrot.lane.b32.xlu0 %v8044, 64
      %v8108 = vpop.permute.xlu0 %8107
      %v8109 = vsel %vm437, %v8106, %v8108
      %v8110 = vsel %vm437, %v8108, %v8106
      %v8111 = vpack.c.bf16 %v8067, %v8043
      %v8112 = vpack.c.bf16 %v8068, %v8044
      %v8113 = vpack.c.bf16 %v8079, %v8073
      %v8114 = vpack.c.bf16 %v8080, %v8074
      %v8115 = vpack.c.bf16 %v8043, %v8085
      %v8116 = vpack.c.bf16 %v8044, %v8086
      %v8117 = vpack.c.bf16 %v8097, %v8091
      %v8118 = vpack.c.bf16 %v8098, %v8092
      %v8119 = vpack.c.bf16 %v8109, %v8103
      %v8120 = vpack.c.bf16 %v8110, %v8104
      %8122 = vset.pattern.permute.xlu0 0
      %8123 = vperm.xlu0 %8122, %v8055
      %v8124 = vpop.permute.xlu0 %8123
      %8127 = vset.pattern.permute.xlu0 0
      %8128 = vperm.xlu0 %8127, %v8056
      %v8129 = vpop.permute.xlu0 %8128
      %8132 = vset.pattern.permute.xlu0 0
      %8133 = vperm.xlu0 %8132, %v8057
      %v8134 = vpop.permute.xlu0 %8133
      %8137 = vset.pattern.permute.xlu0 0
      %8138 = vperm.xlu0 %8137, %v8058
      %v8139 = vpop.permute.xlu0 %8138
      %8142 = vset.pattern.permute.xlu0 0
      %8143 = vperm.xlu0 %8142, %v8059
      %v8144 = vpop.permute.xlu0 %8143
      %8147 = vset.pattern.permute.xlu0 0
      %8148 = vperm.xlu0 %8147, %v8060
      %v8149 = vpop.permute.xlu0 %8148
      %8152 = vset.pattern.permute.xlu0 0
      %8153 = vperm.xlu0 %8152, %v8061
      %v8154 = vpop.permute.xlu0 %8153
      %8157 = vset.pattern.permute.xlu0 0
      %8158 = vperm.xlu0 %8157, %v8062
      %v8159 = vpop.permute.xlu0 %8158
      %v8169 = vunpack.c.l.b16 %v8046
      %v8170 = vunpack.c.l.b16 %v8047
      %v8171 = vunpack.c.l.b16 %v8048
      %v8172 = vunpack.c.l.b16 %v8049
      %v8173 = vunpack.c.l.b16 %v8050
      %v8174 = vunpack.c.l.b16 %v8051
      %v8175 = vunpack.c.l.b16 %v8052
      %v8176 = vunpack.c.l.b16 %v8053
      %v8177 = vpack.c.b16 %v8170, %v8169
      %v8178 = vpack.c.b16 %v8172, %v8171
      %v8179 = vpack.c.b16 %v8174, %v8173
      %v8180 = vpack.c.b16 %v8176, %v8175
      %v8182 = vsel %vm510, %v8177, 0
      %v8185 = vsel %vm510, %v8178, 0
      %v8188 = vsel %vm510, %v8179, 0
      %v8191 = vsel %vm510, %v8180, 0
      %8193 = vmatprep.subr.bf16.mxu0 %v8112
      %8194 = vmatpush1.bf16.msra.mxu0 %v8111
      %8195 = vmatprep.subr.bf16.mxu0 %v8114
      %8196 = vmatpush1.bf16.msra.mxu0 %v8113
      %8197 = vmatprep.subr.bf16.mxu0 %v8116
      %8198 = vmatpush1.bf16.msra.mxu0 %v8115
      %8199 = vmatprep.subr.bf16.mxu0 %v8118
      %8200 = vmatpush1.bf16.msra.mxu0 %v8117
      %8201 = vmatprep.subr.bf16.mxu0 %v8120
      %8202 = vmatpush1.bf16.msra.mxu0 %v8119
      %8203 = vmatprep.subr.bf16.mxu0 0
      %8204 = vmatpush1.bf16.msra.mxu0 0
      %8205 = vmatprep.subr.bf16.mxu0 0
      %8206 = vmatpush1.bf16.msra.mxu0 0
      %8207 = vmatprep.subr.bf16.mxu0 0
      %8208 = vmatpush1.bf16.msra.mxu0 0
      %8209 = vmatprep.subr.bf16.mxu0 0
      %8210 = vmatpush1.bf16.msra.mxu0 0
      %8211 = vmatprep.subr.bf16.mxu0 0
      %8212 = vmatpush1.bf16.msra.mxu0 0
      %8213 = vmatprep.subr.bf16.mxu0 0
      %8214 = vmatpush1.bf16.msra.mxu0 0
      %8215 = vmatprep.subr.bf16.mxu0 0
      %8216 = vmatpush1.bf16.msra.mxu0 0
      %8217 = vmatprep.subr.bf16.mxu0 0
      %8218 = vmatpush1.bf16.msra.mxu0 0
      %8219 = vmatprep.subr.bf16.mxu0 0
      %8220 = vmatpush1.bf16.msra.mxu0 0
      %8221 = vmatprep.subr.bf16.mxu0 0
      %8222 = vmatpush1.bf16.msra.mxu0 0
      %8223 = vmatprep.subr.bf16.mxu0 0
      %8224 = vmatpush1.bf16.msra.mxu0 0
      %8225 = vmatprep.mubr.bf16.mxu0 0
      %8226 = vmatmul.mubr.bf16.gmra.mrb[0].mxu0 %v8182
      %v8227 = vpop.f32.mrb[0].mxu0
      %v8228 = vadd.f32 %v8124, %v8227
      %v8229 = vpop.f32.mrb[0].mxu0
      %v8230 = vadd.f32 %v8124, %v8229
      %v8231 = vpop.f32.mrb[0].mxu0
      %v8232 = vadd.f32 %v8129, %v8231
      %v8233 = vpop.f32.mrb[0].mxu0
      %v8234 = vadd.f32 %v8129, %v8233
      %8235 = vmatprep.mubr.bf16.mxu0 0
      %8236 = vmatmul.mubr.bf16.gmra.mrb[0].mxu0 %v8185
      %v8237 = vpop.f32.mrb[0].mxu0
      %v8238 = vadd.f32 %v8134, %v8237
      %v8239 = vpop.f32.mrb[0].mxu0
      %v8240 = vadd.f32 %v8134, %v8239
      %v8241 = vpop.f32.mrb[0].mxu0
      %v8242 = vadd.f32 %v8139, %v8241
      %v8243 = vpop.f32.mrb[0].mxu0
      %v8244 = vadd.f32 %v8139, %v8243
      %8245 = vmatprep.mubr.bf16.mxu0 0
      %8246 = vmatmul.mubr.bf16.gmra.mrb[0].mxu0 %v8188
      %v8247 = vpop.f32.mrb[0].mxu0
      %v8248 = vadd.f32 %v8144, %v8247
      %v8249 = vpop.f32.mrb[0].mxu0
      %v8250 = vadd.f32 %v8144, %v8249
      %v8251 = vpop.f32.mrb[0].mxu0
      %v8252 = vadd.f32 %v8149, %v8251
      %v8253 = vpop.f32.mrb[0].mxu0
      %v8254 = vadd.f32 %v8149, %v8253
      %8255 = vmatprep.mubr.bf16.mxu0 0
      %8256 = vmatmul.mubr.bf16.gmra.mrb[0].mxu0 %v8191
      %v8257 = vpop.f32.mrb[0].mxu0
      %v8258 = vadd.f32 %v8154, %v8257
      %v8259 = vpop.f32.mrb[0].mxu0
      %v8260 = vadd.f32 %v8154, %v8259
      %v8261 = vpop.f32.mrb[0].mxu0
      %v8262 = vadd.f32 %v8159, %v8261
      %v8263 = vpop.f32.mrb[0].mxu0
      %v8264 = vadd.f32 %v8159, %v8263
      %8265 = vdwg.mxu0
      %v8266 = vmax.f32 %v8228, 0.0
      %v8267 = vmax.f32 %v8230, 0.0
      %v8268 = vmax.f32 %v8232, 0.0
      %v8269 = vmax.f32 %v8234, 0.0
      %v8270 = vmax.f32 %v8238, 0.0
      %v8271 = vmax.f32 %v8240, 0.0
      %v8272 = vmax.f32 %v8242, 0.0
      %v8273 = vmax.f32 %v8244, 0.0
      %v8274 = vmax.f32 %v8248, 0.0
      %v8275 = vmax.f32 %v8250, 0.0
      %v8276 = vmax.f32 %v8252, 0.0
      %v8277 = vmax.f32 %v8254, 0.0
      %v8278 = vmax.f32 %v8258, 0.0
      %v8279 = vmax.f32 %v8260, 0.0
      %v8280 = vmax.f32 %v8262, 0.0
      %v8281 = vmax.f32 %v8264, 0.0
      %v8282 = vmul.f32 %v8266, %v612
      %v8283 = vmul.f32 %v8267, %v613
      %v8284 = vmul.f32 %v8268, %v614
      %v8285 = vmul.f32 %v8269, %v615
      %v8286 = vmul.f32 %v8270, %v616
      %v8287 = vmul.f32 %v8271, %v617
      %v8288 = vmul.f32 %v8272, %v618
      %v8289 = vmul.f32 %v8273, %v619
      %v8290 = vmul.f32 %v8274, %v620
      %v8291 = vmul.f32 %v8275, %v621
      %v8292 = vmul.f32 %v8276, %v622
      %v8293 = vmul.f32 %v8277, %v623
      %v8294 = vmul.f32 %v8278, %v624
      %v8295 = vmul.f32 %v8279, %v625
      %v8296 = vmul.f32 %v8280, %v626
      %v8297 = vmul.f32 %v8281, %v627
      %v8298 = vpack.c.bf16 %v8284, %v8282
      %v8299 = vpack.c.bf16 %v8285, %v8283
      %v8300 = vpack.c.bf16 %v8288, %v8286
      %v8301 = vpack.c.bf16 %v8289, %v8287
      %v8302 = vpack.c.bf16 %v8292, %v8290
      %v8303 = vpack.c.bf16 %v8293, %v8291
      %v8304 = vpack.c.bf16 %v8296, %v8294
      %v8305 = vpack.c.bf16 %v8297, %v8295
      %s8306 = scalar_lea.vmem %s8, 360
      %v8307 = vld [vmem:[%s8306] sm:$0xf]
      %v8308 = vld [vmem:[%s8306 + $0x4] sm:$0xf]
      %v8309 = vld [vmem:[%s8306 + $0x8] sm:$0xf]
      %v8310 = vld [vmem:[%s8306 + $0xc] sm:$0xf]
      %v8311 = vld [vmem:[%s8306 + $0x10] sm:$0xf]
      %v8312 = vld [vmem:[%s8306 + $0x14] sm:$0xf]
      %v8313 = vld [vmem:[%s8306 + $0x18] sm:$0xf]
      %v8314 = vld [vmem:[%s8306 + $0x1c] sm:$0xf]
      %v8315 = vld [vmem:[%s8306 + $0x20] sm:$0xf]
      %v8316 = vld [vmem:[%s8306 + $0x24] sm:$0xf]
      %s8317 = scalar_lea.vmem %s9, 72
      %v8318 = vld [vmem:[%s8317] sm:$0xff]
      %v8329 = vunpack.c.l.b16 %v8307
      %v8330 = vunpack.c.l.b16 %v8308
      %v8331 = vunpack.c.l.b16 %v8309
      %v8332 = vunpack.c.l.b16 %v8310
      %v8333 = vunpack.c.l.b16 %v8311
      %v8334 = vunpack.c.l.b16 %v8312
      %v8335 = vunpack.c.l.b16 %v8313
      %v8336 = vunpack.c.l.b16 %v8314
      %v8337 = vunpack.c.l.b16 %v8315
      %v8338 = vunpack.c.l.b16 %v8316
      %v8339 = vpack.c.b16 %v8330, %v8329
      %v8340 = vpack.c.b16 %v8332, %v8331
      %v8341 = vpack.c.b16 %v8334, %v8333
      %v8342 = vpack.c.b16 %v8336, %v8335
      %v8343 = vpack.c.b16 %v8338, %v8337
      %v8345 = vsel %vm688, %v8339, 0
      %v8348 = vsel %vm688, %v8340, 0
      %v8351 = vsel %vm688, %v8341, 0
      %v8354 = vsel %vm688, %v8342, 0
      %v8357 = vsel %vm688, %v8343, 0
      %8359 = vmatprep.subr.bf16.mxu0 %v8299
      %8360 = vmatpush1.bf16.msra.mxu0 %v8298
      %8361 = vmatprep.subr.bf16.mxu0 %v8301
      %8362 = vmatpush1.bf16.msra.mxu0 %v8300
      %8363 = vmatprep.subr.bf16.mxu0 %v8303
      %8364 = vmatpush1.bf16.msra.mxu0 %v8302
      %8365 = vmatprep.subr.bf16.mxu0 %v8305
      %8366 = vmatpush1.bf16.msra.mxu0 %v8304
      %8367 = vmatprep.subr.bf16.mxu0 0
      %8368 = vmatpush1.bf16.msra.mxu0 0
      %8369 = vmatprep.subr.bf16.mxu0 0
      %8370 = vmatpush1.bf16.msra.mxu0 0
      %8371 = vmatprep.subr.bf16.mxu0 0
      %8372 = vmatpush1.bf16.msra.mxu0 0
      %8373 = vmatprep.subr.bf16.mxu0 0
      %8374 = vmatpush1.bf16.msra.mxu0 0
      %8375 = vmatprep.subr.bf16.mxu0 0
      %8376 = vmatpush1.bf16.msra.mxu0 0
      %8377 = vmatprep.subr.bf16.mxu0 0
      %8378 = vmatpush1.bf16.msra.mxu0 0
      %8379 = vmatprep.subr.bf16.mxu0 0
      %8380 = vmatpush1.bf16.msra.mxu0 0
      %8381 = vmatprep.subr.bf16.mxu0 0
      %8382 = vmatpush1.bf16.msra.mxu0 0
      %8383 = vmatprep.subr.bf16.mxu0 0
      %8384 = vmatpush1.bf16.msra.mxu0 0
      %8385 = vmatprep.subr.bf16.mxu0 0
      %8386 = vmatpush1.bf16.msra.mxu0 0
      %8387 = vmatprep.subr.bf16.mxu0 0
      %8388 = vmatpush1.bf16.msra.mxu0 0
      %8389 = vmatprep.subr.bf16.mxu0 0
      %8390 = vmatpush1.bf16.msra.mxu0 0
      %8391 = vmatprep.mubr.bf16.mxu0 0
      %8392 = vmatmul.mubr.bf16.gmra.mrb[0].mxu0 %v8345
      %v8393 = vpop.f32.mrb[0].mxu0
      %v8394 = vadd.f32 0.0, %v8393
      %v8395 = vpop.f32.mrb[0].mxu0
      %v8396 = vadd.f32 0.0, %v8395
      %v8397 = vpop.f32.mrb[0].mxu0
      %v8398 = vadd.f32 0.0, %v8397
      %v8399 = vpop.f32.mrb[0].mxu0
      %v8400 = vadd.f32 0.0, %v8399
      %8401 = vmatprep.mubr.bf16.mxu0 0
      %8402 = vmatmul.mubr.bf16.gmra.mrb[0].mxu0 %v8348
      %v8403 = vpop.f32.mrb[0].mxu0
      %v8404 = vadd.f32 0.0, %v8403
      %v8405 = vpop.f32.mrb[0].mxu0
      %v8406 = vadd.f32 0.0, %v8405
      %v8407 = vpop.f32.mrb[0].mxu0
      %v8408 = vadd.f32 0.0, %v8407
      %v8409 = vpop.f32.mrb[0].mxu0
      %v8410 = vadd.f32 0.0, %v8409
      %8411 = vmatprep.mubr.bf16.mxu0 0
      %8412 = vmatmul.mubr.bf16.gmra.mrb[0].mxu0 %v8351
      %v8413 = vpop.f32.mrb[0].mxu0
      %v8414 = vadd.f32 0.0, %v8413
      %v8415 = vpop.f32.mrb[0].mxu0
      %v8416 = vadd.f32 0.0, %v8415
      %v8417 = vpop.f32.mrb[0].mxu0
      %v8418 = vadd.f32 0.0, %v8417
      %v8419 = vpop.f32.mrb[0].mxu0
      %v8420 = vadd.f32 0.0, %v8419
      %8421 = vmatprep.mubr.bf16.mxu0 0
      %8422 = vmatmul.mubr.bf16.gmra.mrb[0].mxu0 %v8354
      %v8423 = vpop.f32.mrb[0].mxu0
      %v8424 = vadd.f32 0.0, %v8423
      %v8425 = vpop.f32.mrb[0].mxu0
      %v8426 = vadd.f32 0.0, %v8425
      %v8427 = vpop.f32.mrb[0].mxu0
      %v8428 = vadd.f32 0.0, %v8427
      %v8429 = vpop.f32.mrb[0].mxu0
      %v8430 = vadd.f32 0.0, %v8429
      %8431 = vmatprep.mubr.bf16.mxu0 0
      %8432 = vmatmul.mubr.bf16.gmra.mrb[0].mxu0 %v8357
      %v8433 = vpop.f32.mrb[0].mxu0
      %v8434 = vadd.f32 0.0, %v8433
      %v8435 = vpop.f32.mrb[0].mxu0
      %v8436 = vadd.f32 0.0, %v8435
      %v8437 = vpop.f32.mrb[0].mxu0
      %v8438 = vadd.f32 0.0, %v8437
      %v8439 = vpop.f32.mrb[0].mxu0
      %v8440 = vadd.f32 0.0, %v8439
      %8441 = vdwg.mxu0
      %8442 = vrot.lane.b32.xlu0 %v8398, 1
      %v8443 = vpop.permute.xlu0 %8442
      %8444 = vrot.lane.b32.xlu0 %v8400, 1
      %v8445 = vpop.permute.xlu0 %8444
      %v8446 = vsel %vm791, %v8443, %v8445
      %v8447 = vsel %vm791, %v8445, %v8443
      %v8448 = vadd.f32 %v8394, %v8447
      %v8449 = vadd.f32 %v8396, %v8446
      %8450 = vrot.lane.b32.xlu0 %v8404, 2
      %v8451 = vpop.permute.xlu0 %8450
      %8452 = vrot.lane.b32.xlu0 %v8406, 2
      %v8453 = vpop.permute.xlu0 %8452
      %v8454 = vsel %vm800, %v8451, %v8453
      %v8455 = vsel %vm800, %v8453, %v8451
      %v8456 = vadd.f32 %v8448, %v8455
      %v8457 = vadd.f32 %v8449, %v8454
      %8458 = vrot.lane.b32.xlu0 %v8408, 3
      %v8459 = vpop.permute.xlu0 %8458
      %8460 = vrot.lane.b32.xlu0 %v8410, 3
      %v8461 = vpop.permute.xlu0 %8460
      %v8462 = vsel %vm809, %v8459, %v8461
      %v8463 = vsel %vm809, %v8461, %v8459
      %v8464 = vadd.f32 %v8456, %v8463
      %v8465 = vadd.f32 %v8457, %v8462
      %8466 = vrot.lane.b32.xlu0 %v8414, 4
      %v8467 = vpop.permute.xlu0 %8466
      %8468 = vrot.lane.b32.xlu0 %v8416, 4
      %v8469 = vpop.permute.xlu0 %8468
      %v8470 = vsel %vm818, %v8467, %v8469
      %v8471 = vsel %vm818, %v8469, %v8467
      %v8472 = vadd.f32 %v8464, %v8471
      %v8473 = vadd.f32 %v8465, %v8470
      %v8474 = vadd.f32 %v8472, %v8418
      %v8475 = vadd.f32 %v8473, %v8420
      %8476 = vrot.lane.b32.xlu0 %v8424, 16
      %v8477 = vpop.permute.xlu0 %8476
      %8478 = vrot.lane.b32.xlu0 %v8426, 16
      %v8479 = vpop.permute.xlu0 %8478
      %v8480 = vsel %vm829, %v8477, %v8479
      %v8481 = vsel %vm829, %v8479, %v8477
      %v8482 = vadd.f32 %v8474, %v8481
      %v8483 = vadd.f32 %v8475, %v8480
      %8484 = vrot.lane.b32.xlu0 %v8428, 32
      %v8485 = vpop.permute.xlu0 %8484
      %8486 = vrot.lane.b32.xlu0 %v8430, 32
      %v8487 = vpop.permute.xlu0 %8486
      %v8488 = vsel %vm838, %v8485, %v8487
      %v8489 = vsel %vm838, %v8487, %v8485
      %v8490 = vadd.f32 %v8482, %v8489
      %v8491 = vadd.f32 %v8483, %v8488
      %8492 = vrot.lane.b32.xlu0 %v8434, 48
      %v8493 = vpop.permute.xlu0 %8492
      %8494 = vrot.lane.b32.xlu0 %v8436, 48
      %v8495 = vpop.permute.xlu0 %8494
      %v8496 = vsel %vm847, %v8493, %v8495
      %v8497 = vsel %vm847, %v8495, %v8493
      %v8498 = vadd.f32 %v8490, %v8497
      %v8499 = vadd.f32 %v8491, %v8496
      %8500 = vrot.lane.b32.xlu0 %v8438, 64
      %v8501 = vpop.permute.xlu0 %8500
      %8502 = vrot.lane.b32.xlu0 %v8440, 64
      %v8503 = vpop.permute.xlu0 %8502
      %v8504 = vsel %vm437, %v8501, %v8503
      %v8505 = vsel %vm437, %v8503, %v8501
      %v8506 = vadd.f32 %v8498, %v8505
      %v8507 = vadd.f32 %v8499, %v8504
      %8509 = vset.pattern.permute.xlu0 0
      %8510 = vperm.xlu0 %8509, %v8318
      %v8511 = vpop.permute.xlu0 %8510
      %v8513 = vadd.f32 %v8506, %v8511
      %v8514 = vadd.f32 %v8507, %v8511
      %v8515 = vmax.f32 %v8513, 0.0
      %v8516 = vmax.f32 %v8514, 0.0
      %v8517 = vadd.f32 %v7721, %v8515
      %v8518 = vadd.f32 %v7722, %v8516
      %v8519 = vmax.f32 %v8517, 0.0
      %v8520 = vmax.f32 %v8518, 0.0
      %8521 = vst [vmem:[%s361] sm:$0xff] %v8519
      %8522 = vst [vmem:[%s361 + $0x8] sm:$0xff] %v8520
      %s8523 = smul.u32 2, %s21
      %p8524 = scmp.lt.s32.totalorder %s8523, 3
      %s8525 = scalar_select %p8524, %s8523, 3
      %s8526 = smul.addr %s8525, 8
      %s8527 = scalar_lea.vmem %s10, %s8526
      // Predicated region
      $region61: #{net_forward_pallas.1} parent=59 // pred_check
        %p8528 = pneg %p254
      $region62: #{net_forward_pallas.1} parent=59 // pred_check_branch
        %8530 = sbr.rel (%p8528) target = $region64
      $region63: #{net_forward_pallas.1} parent=59 // pred_region
        %s8531 = smul.u32 2, %s21
      $region64: #{net_forward_pallas.1} parent=59 // pred_fallthru
        _
    $region60: #{net_forward_pallas.1} parent=5 // pred_fallthru
      _
    %p8532 = scmp.le.s32.totalorder 2, %s16
    // Predicated region
    $region65: #{net_forward_pallas.1} parent=5 // pred_check
      %p8533 = pneg %p8532
    $region66: #{net_forward_pallas.1} parent=5 // pred_check_branch
      %8535 = sbr.rel (%p8533) target = $region68
    $region67: #{net_forward_pallas.1} parent=5 // pred_region
      %s8536 = ssub.s32 %s16, 2
      // Predicated region
      $region69: #{net_forward_pallas.1} parent=67 // pred_check
        %p8537 = pneg %p260
      $region70: #{net_forward_pallas.1} parent=67 // pred_check_branch
        %8539 = sbr.rel (%p8537) target = $region72
      $region71: #{net_forward_pallas.1} parent=67 // pred_region
        %s8540 = smul.u32 2, %s22
        %p8541 = scmp.lt.s32.totalorder %s8540, 3
        %s8542 = scalar_select %p8541, %s8540, 3
        %s8543 = smul.addr %s8542, 8
        %s8544 = scalar_lea.vmem %s10, %s8543
      $region72: #{net_forward_pallas.1} parent=67 // pred_fallthru
        _
    $region68: #{net_forward_pallas.1} parent=5 // pred_fallthru
      _
  $region6: #{net_forward_pallas.1} parent=0 // loop_footer
    %s20 = sadd.s32 1, %s16
  $region7: #{net_forward_pallas.1} parent=0 // loop_footer_branch
    %15 = sbr.rel target = $region3
  $region8: #{net_forward_pallas.1} parent=0 // loop_exit
    _

</llo_original>
